<compile_context>
chip_gen: v7x
topology: tpu7x:2x2x1
jax: 0.10.0
libtpu: 0.0.40
codegen_flags: <defaults>
</compile_context>

<pallas_src>
import functools
import math

import jax
import jax.numpy as jnp
from jax.experimental import pallas as pl
from jax.experimental.pallas import tpu as pltpu


# --------------------------------- the kernel --------------------------------

def imode_kernel(dts_ref,                       # (n_steps,)                 SMEM
                 xgt_ref,                       # (n_steps, B, xs)           VMEM
                 gbias_ref,                     # (n_steps, B, 6ah+6xh)      VMEM
                 mask_ref,                      # (n_steps, B, ah)           VMEM
                 wcat_ref,                      # (xh+ah+xs, 6ah+6xh)        VMEM
                 w1_ref, b1_ref, w2_ref, b2_ref,  # ode MLP params           VMEM
                 out_ref,                       # (n_steps, B, OUT_W)        VMEM
                 *, x_hidden, a_hidden, x_size, n_steps, n_forced, leaky_slope):
    xh, ah, xs = x_hidden, a_hidden, x_size
    B = xgt_ref.shape[1]
    out_w = out_ref.shape[2]

    # Hoist loop-invariant weight loads (fine at these sizes; at production hidden
    # sizes read the refs inside the body instead to avoid vreg spills).
    wcat = wcat_ref[...]
    w1 = w1_ref[...]
    w2 = w2_ref[...]
    # Hoisted bias broadcasts (JAX does not CSE broadcast_in_dim -> do it once).
    b1 = jnp.broadcast_to(b1_ref[...], (B, w1.shape[1]))
    b2 = jnp.broadcast_to(b2_ref[...], (B, w2.shape[1]))
    pad_w = out_w - xs - ah
    zero_pad = jnp.zeros((B, pad_w), jnp.float32) if pad_w > 0 else None

    def ode_f(s):
        h = jnp.dot(s, w1, preferred_element_type=jnp.float32) + b1
        h = jnp.where(h >= 0.0, h, leaky_slope * h)
        return jnp.dot(h, w2, preferred_element_type=jnp.float32) + b2

    def step(i, lhs, x_cur, z_x, z_a):
        # ---- ONE fused matmul for all four GRU projections ----
        # columns: [gi_a (3ah) | gh_a (3ah) | gi_x (3xh) | gh_x (3xh)];
        # gbias[i] already carries a_t@Wih_a[a-rows]+b_ih_a and all other GRU biases.
        gates = (jnp.dot(lhs, wcat, preferred_element_type=jnp.float32)
                 + gbias_ref[i])
        gi_a = gates[:, 0:3 * ah]
        gh_a = gates[:, 3 * ah:6 * ah]
        gi_x = gates[:, 6 * ah:6 * ah + 3 * xh]
        gh_x = gates[:, 6 * ah + 3 * xh:6 * ah + 6 * xh]

        # ----- rnncell_a -----
        ru_a = jax.nn.sigmoid(gi_a[:, :2 * ah] + gh_a[:, :2 * ah])
        r_a, u_a = ru_a[:, :ah], ru_a[:, ah:]
        n_a = jnp.tanh(gi_a[:, 2 * ah:] + r_a * gh_a[:, 2 * ah:])
        z_a_new = (1.0 - u_a) * n_a + u_a * z_a

        m = mask_ref[i]                           # (B, ah), pre-broadcast in wrapper
        z_a_m = m * z_a_new + (1.0 - m) * z_a     # masked merge

        # ----- rnncell_x -----
        ru_x = jax.nn.sigmoid(gi_x[:, :2 * xh] + gh_x[:, :2 * xh])
        r_x, u_x = ru_x[:, :xh], ru_x[:, xh:]
        n_x = jnp.tanh(gi_x[:, 2 * xh:] + r_x * gh_x[:, 2 * xh:])
        z_x_new = (1.0 - u_x) * n_x + u_x * z_x

        # ----- ODE step on [z_x | z_a | x] over [t_i, t_{i+1}]  (rk4, 3/8 rule) -----
        s0 = jnp.concatenate([z_x_new, z_a_m, x_cur], axis=1)
        dt = dts_ref[i]
        k1 = ode_f(s0)
        k2 = ode_f(s0 + dt * (1.0 / 3.0) * k1)
        k3 = ode_f(s0 + dt * (k2 - (1.0 / 3.0) * k1))
        k4 = ode_f(s0 + dt * (k1 - k2 + k3))
        s1 = s0 + (k1 + 3.0 * (k2 + k3) + k4) * (dt * 0.125)

        # lane-dense (128-padded) per-step output slab: [x_new | z_a_masked | 0...]
        pieces = [s1[:, xh + ah:], z_a_m]
        if zero_pad is not None:
            pieces.append(zero_pad)
        out_ref[i] = jnp.concatenate(pieces, axis=1)
        return s1

    # initial fused state [z_x | z_a | x0]
    x0 = xgt_ref[0]
    s = jnp.concatenate([jnp.zeros((B, xh + ah), jnp.float32), x0], axis=1)

    def body_forced(i, s):
        x_cur = xgt_ref[i]                                    # teacher forcing
        lhs = jnp.concatenate([s[:, :xh + ah], x_cur], axis=1)
        return step(i, lhs, x_cur, s[:, :xh], s[:, xh:xh + ah])

    def body_free(i, s):
        # carried state is already [z_x | z_a | x] == the fused-matmul LHS
        return step(i, s, s[:, xh + ah:], s[:, :xh], s[:, xh:xh + ah])

    if n_forced > 0:
        s = jax.lax.fori_loop(0, n_forced, body_forced, s, unroll=True)
    if n_forced < n_steps:
        jax.lax.fori_loop(n_forced, n_steps, body_free, s, unroll=True)


# --------------------------------- wrapper ------------------------------------

def imode_forward(x, y, time_steps, params, *, x_hidden, a_hidden,
                  feed_first, feed_idx):
    """x: (B, T, x_size), y: (B, T, a_size), time_steps: (T,).
    Returns (x_list (B, T, x_size), z_a_list (B, T, a_hidden))."""
    B, T, x_size = x.shape
    a_size = y.shape[-1]
    xh, ah, xs = x_hidden, a_hidden, x_size
    n_steps = T - 1
    n_forced = min(int(feed_idx), n_steps) if feed_first else 0
    B_pad = ((B + 7) // 8) * 8                       # pad batch to f32 sublanes
    OUT_W = max(128, ((xs + ah + 127) // 128) * 128)  # lane-dense output width

    x_f = x.astype(jnp.float32)
    y_f = y.astype(jnp.float32)

    # time-major, batch-padded per-step inputs (only the first T-1 steps are used)
    x_tm = jnp.transpose(x_f, (1, 0, 2))[:n_steps]            # (ns, B, xs)
    y_tm = jnp.transpose(y_f, (1, 0, 2))[:n_steps]            # (ns, B, as)
    x_tm = jnp.pad(x_tm, ((0, 0), (0, B_pad - B), (0, 0)))
    y_tm = jnp.pad(y_tm, ((0, 0), (0, B_pad - B), (0, 0)))

    # hoisted observation-side input projection of rnncell_a (+ bih_a folded in)
    wih_a = params['wih_a']                                   # (xs + as, 3ah)
    wih_ax = wih_a[:xs]                                       # (xs, 3ah)
    wih_aa = wih_a[xs:]                                       # (as, 3ah)
    a_proj = jnp.einsum('tba,ah->tbh', y_tm, wih_aa) + params['bih_a']

    # observation mask (exact-zero rows of a_t are "unobserved"); pre-broadcast to ah
    mask_t = (jnp.sum(y_tm, axis=-1, keepdims=True) != 0.0).astype(jnp.float32)
    mask_t = jnp.broadcast_to(mask_t, (n_steps, B_pad, ah))

    # ---- fused GRU projection weight: one (xh+ah+xs, 6ah+6xh) block matrix ----
    # LHS order  : [z_x | z_a | x]  (== the carried state)
    # column order: [gi_a (3ah) | gh_a (3ah) | gi_x (3xh) | gh_x (3xh)]
    Drow, Ncol = xh + ah + xs, 6 * ah + 6 * xh
    w_cat = jnp.zeros((Drow, Ncol), jnp.float32)
    w_cat = w_cat.at[0:xh, 6 * ah + 3 * xh:6 * ah + 6 * xh].set(params['whh_x'])
    w_cat = w_cat.at[xh:xh + ah, 3 * ah:6 * ah].set(params['whh_a'])
    w_cat = w_cat.at[xh + ah:, 0:3 * ah].set(wih_ax)
    w_cat = w_cat.at[xh + ah:, 6 * ah:6 * ah + 3 * xh].set(params['wih_x'])

    # per-step additive term: observation projection + ALL GRU biases (no in-kernel
    # bias broadcasts left in the recurrence)
    gbias = jnp.concatenate([
        a_proj,
        jnp.broadcast_to(params['bhh_a'], (n_steps, B_pad, 3 * ah)),
        jnp.broadcast_to(params['bih_x'], (n_steps, B_pad, 3 * xh)),
        jnp.broadcast_to(params['bhh_x'], (n_steps, B_pad, 3 * xh)),
    ], axis=-1)

    # per-step dt in SMEM
    ts = time_steps.astype(jnp.float32)
    dts = ts[1:] - ts[:-1]                                    # (ns,)

    kernel = functools.partial(
        imode_kernel, x_hidden=xh, a_hidden=ah, x_size=xs,
        n_steps=n_steps, n_forced=n_forced, leaky_slope=0.01)

    vmem = pl.BlockSpec(memory_space=pltpu.MemorySpace.VMEM)
    smem = pl.BlockSpec(memory_space=pltpu.MemorySpace.SMEM)

    out = pl.pallas_call(
        kernel,
        out_shape=jax.ShapeDtypeStruct((n_steps, B_pad, OUT_W), jnp.float32),
        in_specs=[smem] + [vmem] * 8,
        out_specs=vmem,
        compiler_params=pltpu.CompilerParams(vmem_limit_bytes=32 * 1024 * 1024),
    )(dts, x_tm, gbias, mask_t, w_cat,
      params['w1'], params['b1'], params['w2'], params['b2'])

    # split lane-dense slab and reassemble PyTorch conventions (glue, plain JAX)
    x_steps = jnp.transpose(out[:, :B, :xs], (1, 0, 2))        # (B, ns, xs)
    za_steps = jnp.transpose(out[:, :B, xs:xs + ah], (1, 0, 2))  # (B, ns, ah)
    x_list = jnp.concatenate([x_f[:, :1, :], x_steps], axis=1)
    z_a_list = jnp.concatenate(
        [jnp.zeros((B, 1, ah), jnp.float32), za_steps], axis=1)
    return x_list, z_a_list


# ------------------------ pure-JAX reference (for checking) -------------------

def imode_reference(x, y, time_steps, params, *, x_hidden, a_hidden,
                    feed_first, feed_idx):
    B, T, x_size = x.shape
    x = x.astype(jnp.float32)
    y = y.astype(jnp.float32)
    ts = time_steps.astype(jnp.float32)

    def gru(xv, h, wih, whh, bih, bhh, H):
        gi = xv @ wih + bih
        gh = h @ whh + bhh
        r = jax.nn.sigmoid(gi[:, :H] + gh[:, :H])
        z = jax.nn.sigmoid(gi[:, H:2 * H] + gh[:, H:2 * H])
        n = jnp.tanh(gi[:, 2 * H:] + r * gh[:, 2 * H:])
        return (1 - z) * n + z * h

    def ode_f(s):
        h = s @ params['w1'] + params['b1']
        h = jnp.where(h >= 0, h, 0.01 * h)
        return h @ params['w2'] + params['b2']

    xc = x[:, 0, :]
    z_x = jnp.zeros((B, x_hidden), jnp.float32)
    z_a = jnp.zeros((B, a_hidden), jnp.float32)
    x_list = [xc]
    za_list = [z_a]
    for i in range(T - 1):
        a_t = y[:, i, :]
        if feed_first and i < feed_idx:
            xc = x[:, i, :]
        z_a_new = gru(jnp.concatenate([xc, a_t], axis=1), z_a,
                      params['wih_a'], params['whh_a'],
                      params['bih_a'][0], params['bhh_a'][0], a_hidden)
        mask = (a_t.sum(1) != 0)[:, None]
        z_a = jnp.where(mask, z_a_new, z_a)
        za_list.append(z_a)
        z_x = gru(xc, z_x, params['wih_x'], params['whh_x'],
                  params['bih_x'][0], params['bhh_x'][0], x_hidden)
        s0 = jnp.concatenate([z_x, z_a, xc], axis=1)
        dt = ts[i + 1] - ts[i]
        k1 = ode_f(s0)
        k2 = ode_f(s0 + dt * k1 / 3.0)
        k3 = ode_f(s0 + dt * (k2 - k1 / 3.0))
        k4 = ode_f(s0 + dt * (k1 - k2 + k3))
        s1 = s0 + (k1 + 3.0 * (k2 + k3) + k4) * dt * 0.125
        z_x = s1[:, :x_hidden]
        z_a = s1[:, x_hidden:x_hidden + a_hidden]
        xc = s1[:, x_hidden + a_hidden:]
        x_list.append(xc)
    return jnp.stack(x_list, axis=1), jnp.stack(za_list, axis=1)


# ----------------------------------- main --------------------------------------

def init_params(key, x_size, a_size, x_hidden, a_hidden, ode_hidden):
    D = x_hidden + a_hidden + x_size
    ks = jax.random.split(key, 12)

    def u(k, shape, fan):
        s = 1.0 / math.sqrt(fan)
        return jax.random.uniform(k, shape, jnp.float32, -s, s)

    return {
        # GRUCell a (input = x_size + a_size, hidden = a_hidden); stored transposed.
        'wih_a': u(ks[0], (x_size + a_size, 3 * a_hidden), a_hidden),
        'whh_a': u(ks[1], (a_hidden, 3 * a_hidden), a_hidden),
        'bih_a': u(ks[2], (1, 3 * a_hidden), a_hidden),
        'bhh_a': u(ks[3], (1, 3 * a_hidden), a_hidden),
        # GRUCell x (input = x_size, hidden = x_hidden)
        'wih_x': u(ks[4], (x_size, 3 * x_hidden), x_hidden),
        'whh_x': u(ks[5], (x_hidden, 3 * x_hidden), x_hidden),
        'bih_x': u(ks[6], (1, 3 * x_hidden), x_hidden),
        'bhh_x': u(ks[7], (1, 3 * x_hidden), x_hidden),
        # ode_fn MLP (state D -> ode_hidden -> D)
        'w1': u(ks[8], (D, ode_hidden), D),
        'b1': u(ks[9], (1, ode_hidden), D),
        'w2': u(ks[10], (ode_hidden, D), ode_hidden),
        'b2': u(ks[11], (1, D), ode_hidden),
    }


if __name__ == "__main__":
    B, T = 2, 8
    x_size, a_size = 8, 4
    x_hidden, a_hidden = 16, 16
    ode_hidden = 32
    feed_first = True
    feed_idx = int(0.5 * T)   # args.feed_ratio * args.num_steps

    key = jax.random.PRNGKey(0)
    kx, ky, kmask, kp = jax.random.split(key, 4)
    x = jax.random.normal(kx, (B, T, x_size), jnp.float32)
    y = jax.random.normal(ky, (B, T, a_size), jnp.float32)
    # zero out some a_t rows to exercise the observation mask
    obs = (jax.random.uniform(kmask, (B, T, 1)) > 0.4).astype(jnp.float32)
    y = y * obs
    time_steps = jnp.linspace(0.0, 1.0, T).astype(jnp.float32)

    params = init_params(kp, x_size, a_size, x_hidden, a_hidden, ode_hidden)

    x_list, z_a_list = imode_forward(
        x, y, time_steps, params,
        x_hidden=x_hidden, a_hidden=a_hidden,
        feed_first=feed_first, feed_idx=feed_idx)
    jax.block_until_ready((x_list, z_a_list))

    x_ref, za_ref = imode_reference(
        x, y, time_steps, params,
        x_hidden=x_hidden, a_hidden=a_hidden,
        feed_first=feed_first, feed_idx=feed_idx)

    assert x_list.shape == (B, T, x_size)
    assert z_a_list.shape == (B, T, a_hidden)
    # Tolerance limited by TPU DEFAULT (bf16-pass) matmul precision and the differing
    # summation orders of the fused vs. separate projections; real ordering/fusion bugs
    # would be O(0.1-1) and are still caught.
    assert jnp.allclose(x_list, x_ref, rtol=2e-2, atol=2e-2)
    assert jnp.allclose(z_a_list, za_ref, rtol=2e-2, atol=2e-2)

    print("KERNEL_OK")
</pallas_src>

<mosaic_0001>
module attributes {stable_mosaic.version = 11 : i64} {
  func.func @imode_kernel(%arg0: memref<7xf32, #tpu.memory_space<smem>>, %arg1: memref<7x8x8xf32, #tpu.memory_space<vmem>>, %arg2: memref<7x8x192xf32, #tpu.memory_space<vmem>>, %arg3: memref<7x8x16xf32, #tpu.memory_space<vmem>>, %arg4: memref<40x192xf32, #tpu.memory_space<vmem>>, %arg5: memref<40x32xf32, #tpu.memory_space<vmem>>, %arg6: memref<1x32xf32, #tpu.memory_space<vmem>>, %arg7: memref<32x40xf32, #tpu.memory_space<vmem>>, %arg8: memref<1x40xf32, #tpu.memory_space<vmem>>, %arg9: memref<7x8x128xf32, #tpu.memory_space<vmem>>) attributes {dimension_semantics = [], scalar_prefetch = 0 : i64, scratch_operands = 0 : i64, tpu.core_type = #tpu.core_type<tc>} {
    %c0 = arith.constant 0 : index
    %c0_0 = arith.constant 0 : index
    %0 = vector.load %arg4[%c0, %c0_0] : memref<40x192xf32, #tpu.memory_space<vmem>>, vector<40x192xf32>
    %c0_1 = arith.constant 0 : index
    %c0_2 = arith.constant 0 : index
    %1 = vector.load %arg5[%c0_1, %c0_2] : memref<40x32xf32, #tpu.memory_space<vmem>>, vector<40x32xf32>
    %c0_3 = arith.constant 0 : index
    %c0_4 = arith.constant 0 : index
    %2 = vector.load %arg7[%c0_3, %c0_4] : memref<32x40xf32, #tpu.memory_space<vmem>>, vector<32x40xf32>
    %c0_5 = arith.constant 0 : index
    %c0_6 = arith.constant 0 : index
    %3 = vector.load %arg6[%c0_5, %c0_6] : memref<1x32xf32, #tpu.memory_space<vmem>>, vector<1x32xf32>
    %4 = vector.shape_cast %3 : vector<1x32xf32> to vector<1x32xf32>
    %5 = vector.broadcast %4 : vector<1x32xf32> to vector<8x32xf32>
    %c0_7 = arith.constant 0 : index
    %c0_8 = arith.constant 0 : index
    %6 = vector.load %arg8[%c0_7, %c0_8] : memref<1x40xf32, #tpu.memory_space<vmem>>, vector<1x40xf32>
    %7 = vector.shape_cast %6 : vector<1x40xf32> to vector<1x40xf32>
    %8 = vector.broadcast %7 : vector<1x40xf32> to vector<8x40xf32>
    %cst = arith.constant 0.000000e+00 : f32
    %9 = vector.broadcast %cst : f32 to vector<8x104xf32>
    %c0_9 = arith.constant 0 : index
    %c0_10 = arith.constant 0 : index
    %c0_11 = arith.constant 0 : index
    %10 = vector.load %arg1[%c0_9, %c0_10, %c0_11] : memref<7x8x8xf32, #tpu.memory_space<vmem>>, vector<1x8x8xf32>
    %11 = vector.shape_cast %10 : vector<1x8x8xf32> to vector<8x8xf32>
    %cst_12 = arith.constant 0.000000e+00 : f32
    %12 = vector.broadcast %cst_12 : f32 to vector<8x32xf32>
    %13 = tpu.concatenate %12, %11 in 1 : vector<8x32xf32>, vector<8x8xf32> -> vector<8x40xf32>
    %c0_i32 = arith.constant 0 : i32
    %14 = arith.index_cast %c0_i32 : i32 to index
    %c0_13 = arith.constant 0 : index
    %c0_14 = arith.constant 0 : index
    %15 = vector.load %arg1[%14, %c0_13, %c0_14] : memref<7x8x8xf32, #tpu.memory_space<vmem>>, vector<1x8x8xf32>
    %16 = vector.shape_cast %15 : vector<1x8x8xf32> to vector<8x8xf32>
    %17 = vector.extract_strided_slice %13 {offsets = [0, 0], sizes = [8, 32], strides = [1, 1]} : vector<8x40xf32> to vector<8x32xf32>
    %18 = tpu.concatenate %17, %16 in 1 : vector<8x32xf32>, vector<8x8xf32> -> vector<8x40xf32>
    %19 = vector.extract_strided_slice %13 {offsets = [0, 0], sizes = [8, 16], strides = [1, 1]} : vector<8x40xf32> to vector<8x16xf32>
    %20 = vector.extract_strided_slice %13 {offsets = [0, 16], sizes = [8, 16], strides = [1, 1]} : vector<8x40xf32> to vector<8x16xf32>
    %cst_15 = arith.constant dense<0.000000e+00> : vector<8x192xf32>
    %21 = tpu.matmul %18, %0, %cst_15 {dimension_numbers = #tpu.dot_dimension_numbers<[1], [0], [0], [1], [0, 0, 1, 1], [], []>} : vector<8x40xf32>, vector<40x192xf32>, vector<8x192xf32> -> vector<8x192xf32>
    %22 = arith.index_cast %c0_i32 : i32 to index
    %c0_16 = arith.constant 0 : index
    %c0_17 = arith.constant 0 : index
    %23 = vector.load %arg2[%22, %c0_16, %c0_17] : memref<7x8x192xf32, #tpu.memory_space<vmem>>, vector<1x8x192xf32>
    %24 = vector.shape_cast %23 : vector<1x8x192xf32> to vector<8x192xf32>
    %25 = arith.addf %21, %24 : vector<8x192xf32>
    %26 = vector.extract_strided_slice %25 {offsets = [0, 0], sizes = [8, 48], strides = [1, 1]} : vector<8x192xf32> to vector<8x48xf32>
    %27 = vector.extract_strided_slice %25 {offsets = [0, 48], sizes = [8, 48], strides = [1, 1]} : vector<8x192xf32> to vector<8x48xf32>
    %28 = vector.extract_strided_slice %25 {offsets = [0, 96], sizes = [8, 48], strides = [1, 1]} : vector<8x192xf32> to vector<8x48xf32>
    %29 = vector.extract_strided_slice %25 {offsets = [0, 144], sizes = [8, 48], strides = [1, 1]} : vector<8x192xf32> to vector<8x48xf32>
    %30 = vector.extract_strided_slice %26 {offsets = [0, 0], sizes = [8, 32], strides = [1, 1]} : vector<8x48xf32> to vector<8x32xf32>
    %31 = vector.extract_strided_slice %27 {offsets = [0, 0], sizes = [8, 32], strides = [1, 1]} : vector<8x48xf32> to vector<8x32xf32>
    %32 = arith.addf %30, %31 : vector<8x32xf32>
    %33 = arith.negf %32 : vector<8x32xf32>
    %34 = math.exp %33 : vector<8x32xf32>
    %cst_18 = arith.constant 1.000000e+00 : f32
    %35 = vector.broadcast %cst_18 : f32 to vector<8x32xf32>
    %36 = arith.addf %35, %34 : vector<8x32xf32>
    %37 = arith.divf %35, %36 : vector<8x32xf32>
    %38 = vector.extract_strided_slice %37 {offsets = [0, 0], sizes = [8, 16], strides = [1, 1]} : vector<8x32xf32> to vector<8x16xf32>
    %39 = vector.extract_strided_slice %37 {offsets = [0, 16], sizes = [8, 16], strides = [1, 1]} : vector<8x32xf32> to vector<8x16xf32>
    %40 = vector.extract_strided_slice %26 {offsets = [0, 32], sizes = [8, 16], strides = [1, 1]} : vector<8x48xf32> to vector<8x16xf32>
    %41 = vector.extract_strided_slice %27 {offsets = [0, 32], sizes = [8, 16], strides = [1, 1]} : vector<8x48xf32> to vector<8x16xf32>
    %42 = arith.mulf %38, %41 : vector<8x16xf32>
    %43 = arith.addf %40, %42 : vector<8x16xf32>
    %44 = math.tanh %43 : vector<8x16xf32>
    %cst_19 = arith.constant 1.000000e+00 : f32
    %45 = vector.broadcast %cst_19 : f32 to vector<8x16xf32>
    %46 = arith.subf %45, %39 : vector<8x16xf32>
    %47 = arith.mulf %46, %44 : vector<8x16xf32>
    %48 = arith.mulf %39, %20 : vector<8x16xf32>
    %49 = arith.addf %47, %48 : vector<8x16xf32>
    %50 = arith.index_cast %c0_i32 : i32 to index
    %c0_20 = arith.constant 0 : index
    %c0_21 = arith.constant 0 : index
    %51 = vector.load %arg3[%50, %c0_20, %c0_21] : memref<7x8x16xf32, #tpu.memory_space<vmem>>, vector<1x8x16xf32>
    %52 = vector.shape_cast %51 : vector<1x8x16xf32> to vector<8x16xf32>
    %53 = arith.mulf %52, %49 : vector<8x16xf32>
    %cst_22 = arith.constant 1.000000e+00 : f32
    %54 = vector.broadcast %cst_22 : f32 to vector<8x16xf32>
    %55 = arith.subf %54, %52 : vector<8x16xf32>
    %56 = arith.mulf %55, %20 : vector<8x16xf32>
    %57 = arith.addf %53, %56 : vector<8x16xf32>
    %58 = vector.extract_strided_slice %28 {offsets = [0, 0], sizes = [8, 32], strides = [1, 1]} : vector<8x48xf32> to vector<8x32xf32>
    %59 = vector.extract_strided_slice %29 {offsets = [0, 0], sizes = [8, 32], strides = [1, 1]} : vector<8x48xf32> to vector<8x32xf32>
    %60 = arith.addf %58, %59 : vector<8x32xf32>
    %61 = arith.negf %60 : vector<8x32xf32>
    %62 = math.exp %61 : vector<8x32xf32>
    %cst_23 = arith.constant 1.000000e+00 : f32
    %63 = vector.broadcast %cst_23 : f32 to vector<8x32xf32>
    %64 = arith.addf %63, %62 : vector<8x32xf32>
    %65 = arith.divf %63, %64 : vector<8x32xf32>
    %66 = vector.extract_strided_slice %65 {offsets = [0, 0], sizes = [8, 16], strides = [1, 1]} : vector<8x32xf32> to vector<8x16xf32>
    %67 = vector.extract_strided_slice %65 {offsets = [0, 16], sizes = [8, 16], strides = [1, 1]} : vector<8x32xf32> to vector<8x16xf32>
    %68 = vector.extract_strided_slice %28 {offsets = [0, 32], sizes = [8, 16], strides = [1, 1]} : vector<8x48xf32> to vector<8x16xf32>
    %69 = vector.extract_strided_slice %29 {offsets = [0, 32], sizes = [8, 16], strides = [1, 1]} : vector<8x48xf32> to vector<8x16xf32>
    %70 = arith.mulf %66, %69 : vector<8x16xf32>
    %71 = arith.addf %68, %70 : vector<8x16xf32>
    %72 = math.tanh %71 : vector<8x16xf32>
    %cst_24 = arith.constant 1.000000e+00 : f32
    %73 = vector.broadcast %cst_24 : f32 to vector<8x16xf32>
    %74 = arith.subf %73, %67 : vector<8x16xf32>
    %75 = arith.mulf %74, %72 : vector<8x16xf32>
    %76 = arith.mulf %67, %19 : vector<8x16xf32>
    %77 = arith.addf %75, %76 : vector<8x16xf32>
    %78 = tpu.concatenate %77, %57, %16 in 1 : vector<8x16xf32>, vector<8x16xf32>, vector<8x8xf32> -> vector<8x40xf32>
    %79 = arith.index_cast %c0_i32 : i32 to index
    %80 = memref.load %arg0[%79] : memref<7xf32, #tpu.memory_space<smem>>
    %cst_25 = arith.constant dense<0.000000e+00> : vector<8x32xf32>
    %81 = tpu.matmul %78, %1, %cst_25 {dimension_numbers = #tpu.dot_dimension_numbers<[1], [0], [0], [1], [0, 0, 1, 1], [], []>} : vector<8x40xf32>, vector<40x32xf32>, vector<8x32xf32> -> vector<8x32xf32>
    %82 = arith.addf %81, %5 : vector<8x32xf32>
    %cst_26 = arith.constant 0.000000e+00 : f32
    %83 = vector.broadcast %cst_26 : f32 to vector<8x32xf32>
    %84 = arith.cmpf oge, %82, %83 : vector<8x32xf32>
    %cst_27 = arith.constant 0.00999999977 : f32
    %85 = vector.broadcast %cst_27 : f32 to vector<8x32xf32>
    %86 = arith.mulf %85, %82 : vector<8x32xf32>
    %87 = arith.select %84, %82, %86 : vector<8x32xi1>, vector<8x32xf32>
    %cst_28 = arith.constant dense<0.000000e+00> : vector<8x40xf32>
    %88 = tpu.matmul %87, %2, %cst_28 {dimension_numbers = #tpu.dot_dimension_numbers<[1], [0], [0], [1], [0, 0, 1, 1], [], []>} : vector<8x32xf32>, vector<32x40xf32>, vector<8x40xf32> -> vector<8x40xf32>
    %89 = arith.addf %88, %8 : vector<8x40xf32>
    %cst_29 = arith.constant 0.333333343 : f32
    %90 = arith.mulf %80, %cst_29 : f32
    %91 = vector.broadcast %90 : f32 to vector<8x40xf32>
    %92 = arith.mulf %91, %89 : vector<8x40xf32>
    %93 = arith.addf %78, %92 : vector<8x40xf32>
    %cst_30 = arith.constant dense<0.000000e+00> : vector<8x32xf32>
    %94 = tpu.matmul %93, %1, %cst_30 {dimension_numbers = #tpu.dot_dimension_numbers<[1], [0], [0], [1], [0, 0, 1, 1], [], []>} : vector<8x40xf32>, vector<40x32xf32>, vector<8x32xf32> -> vector<8x32xf32>
    %95 = arith.addf %94, %5 : vector<8x32xf32>
    %cst_31 = arith.constant 0.000000e+00 : f32
    %96 = vector.broadcast %cst_31 : f32 to vector<8x32xf32>
    %97 = arith.cmpf oge, %95, %96 : vector<8x32xf32>
    %cst_32 = arith.constant 0.00999999977 : f32
    %98 = vector.broadcast %cst_32 : f32 to vector<8x32xf32>
    %99 = arith.mulf %98, %95 : vector<8x32xf32>
    %100 = arith.select %97, %95, %99 : vector<8x32xi1>, vector<8x32xf32>
    %cst_33 = arith.constant dense<0.000000e+00> : vector<8x40xf32>
    %101 = tpu.matmul %100, %2, %cst_33 {dimension_numbers = #tpu.dot_dimension_numbers<[1], [0], [0], [1], [0, 0, 1, 1], [], []>} : vector<8x32xf32>, vector<32x40xf32>, vector<8x40xf32> -> vector<8x40xf32>
    %102 = arith.addf %101, %8 : vector<8x40xf32>
    %cst_34 = arith.constant 0.333333343 : f32
    %103 = vector.broadcast %cst_34 : f32 to vector<8x40xf32>
    %104 = arith.mulf %103, %89 : vector<8x40xf32>
    %105 = arith.subf %102, %104 : vector<8x40xf32>
    %106 = vector.broadcast %80 : f32 to vector<8x40xf32>
    %107 = arith.mulf %106, %105 : vector<8x40xf32>
    %108 = arith.addf %78, %107 : vector<8x40xf32>
    %cst_35 = arith.constant dense<0.000000e+00> : vector<8x32xf32>
    %109 = tpu.matmul %108, %1, %cst_35 {dimension_numbers = #tpu.dot_dimension_numbers<[1], [0], [0], [1], [0, 0, 1, 1], [], []>} : vector<8x40xf32>, vector<40x32xf32>, vector<8x32xf32> -> vector<8x32xf32>
    %110 = arith.addf %109, %5 : vector<8x32xf32>
    %cst_36 = arith.constant 0.000000e+00 : f32
    %111 = vector.broadcast %cst_36 : f32 to vector<8x32xf32>
    %112 = arith.cmpf oge, %110, %111 : vector<8x32xf32>
    %cst_37 = arith.constant 0.00999999977 : f32
    %113 = vector.broadcast %cst_37 : f32 to vector<8x32xf32>
    %114 = arith.mulf %113, %110 : vector<8x32xf32>
    %115 = arith.select %112, %110, %114 : vector<8x32xi1>, vector<8x32xf32>
    %cst_38 = arith.constant dense<0.000000e+00> : vector<8x40xf32>
    %116 = tpu.matmul %115, %2, %cst_38 {dimension_numbers = #tpu.dot_dimension_numbers<[1], [0], [0], [1], [0, 0, 1, 1], [], []>} : vector<8x32xf32>, vector<32x40xf32>, vector<8x40xf32> -> vector<8x40xf32>
    %117 = arith.addf %116, %8 : vector<8x40xf32>
    %118 = arith.subf %89, %102 : vector<8x40xf32>
    %119 = arith.addf %118, %117 : vector<8x40xf32>
    %120 = vector.broadcast %80 : f32 to vector<8x40xf32>
    %121 = arith.mulf %120, %119 : vector<8x40xf32>
    %122 = arith.addf %78, %121 : vector<8x40xf32>
    %cst_39 = arith.constant dense<0.000000e+00> : vector<8x32xf32>
    %123 = tpu.matmul %122, %1, %cst_39 {dimension_numbers = #tpu.dot_dimension_numbers<[1], [0], [0], [1], [0, 0, 1, 1], [], []>} : vector<8x40xf32>, vector<40x32xf32>, vector<8x32xf32> -> vector<8x32xf32>
    %124 = arith.addf %123, %5 : vector<8x32xf32>
    %cst_40 = arith.constant 0.000000e+00 : f32
    %125 = vector.broadcast %cst_40 : f32 to vector<8x32xf32>
    %126 = arith.cmpf oge, %124, %125 : vector<8x32xf32>
    %cst_41 = arith.constant 0.00999999977 : f32
    %127 = vector.broadcast %cst_41 : f32 to vector<8x32xf32>
    %128 = arith.mulf %127, %124 : vector<8x32xf32>
    %129 = arith.select %126, %124, %128 : vector<8x32xi1>, vector<8x32xf32>
    %cst_42 = arith.constant dense<0.000000e+00> : vector<8x40xf32>
    %130 = tpu.matmul %129, %2, %cst_42 {dimension_numbers = #tpu.dot_dimension_numbers<[1], [0], [0], [1], [0, 0, 1, 1], [], []>} : vector<8x32xf32>, vector<32x40xf32>, vector<8x40xf32> -> vector<8x40xf32>
    %131 = arith.addf %130, %8 : vector<8x40xf32>
    %132 = arith.addf %102, %117 : vector<8x40xf32>
    %cst_43 = arith.constant 3.000000e+00 : f32
    %133 = vector.broadcast %cst_43 : f32 to vector<8x40xf32>
    %134 = arith.mulf %133, %132 : vector<8x40xf32>
    %135 = arith.addf %89, %134 : vector<8x40xf32>
    %136 = arith.addf %135, %131 : vector<8x40xf32>
    %cst_44 = arith.constant 1.250000e-01 : f32
    %137 = arith.mulf %80, %cst_44 : f32
    %138 = vector.broadcast %137 : f32 to vector<8x40xf32>
    %139 = arith.mulf %136, %138 : vector<8x40xf32>
    %140 = arith.addf %78, %139 : vector<8x40xf32>
    %141 = vector.extract_strided_slice %140 {offsets = [0, 32], sizes = [8, 8], strides = [1, 1]} : vector<8x40xf32> to vector<8x8xf32>
    %142 = tpu.concatenate %141, %57, %9 in 1 : vector<8x8xf32>, vector<8x16xf32>, vector<8x104xf32> -> vector<8x128xf32>
    %143 = arith.index_cast %c0_i32 : i32 to index
    %c0_45 = arith.constant 0 : index
    %c0_46 = arith.constant 0 : index
    %144 = vector.load %arg9[%143, %c0_45, %c0_46] : memref<7x8x128xf32, #tpu.memory_space<vmem>>, vector<1x8x128xf32>
    %145 = vector.shape_cast %144 : vector<1x8x128xf32> to vector<8x128xf32>
    %146 = vector.shape_cast %142 : vector<8x128xf32> to vector<1x8x128xf32>
    tpu.vector_store %arg9[%143, %c0_45, %c0_46], %146 {strides = array<i32>} : memref<7x8x128xf32, #tpu.memory_space<vmem>>, vector<1x8x128xf32>,
    %c1_i32 = arith.constant 1 : i32
    %147 = arith.index_cast %c1_i32 : i32 to index
    %c0_47 = arith.constant 0 : index
    %c0_48 = arith.constant 0 : index
    %148 = vector.load %arg1[%147, %c0_47, %c0_48] : memref<7x8x8xf32, #tpu.memory_space<vmem>>, vector<1x8x8xf32>
    %149 = vector.shape_cast %148 : vector<1x8x8xf32> to vector<8x8xf32>
    %150 = vector.extract_strided_slice %140 {offsets = [0, 0], sizes = [8, 32], strides = [1, 1]} : vector<8x40xf32> to vector<8x32xf32>
    %151 = tpu.concatenate %150, %149 in 1 : vector<8x32xf32>, vector<8x8xf32> -> vector<8x40xf32>
    %152 = vector.extract_strided_slice %140 {offsets = [0, 0], sizes = [8, 16], strides = [1, 1]} : vector<8x40xf32> to vector<8x16xf32>
    %153 = vector.extract_strided_slice %140 {offsets = [0, 16], sizes = [8, 16], strides = [1, 1]} : vector<8x40xf32> to vector<8x16xf32>
    %cst_49 = arith.constant dense<0.000000e+00> : vector<8x192xf32>
    %154 = tpu.matmul %151, %0, %cst_49 {dimension_numbers = #tpu.dot_dimension_numbers<[1], [0], [0], [1], [0, 0, 1, 1], [], []>} : vector<8x40xf32>, vector<40x192xf32>, vector<8x192xf32> -> vector<8x192xf32>
    %155 = arith.index_cast %c1_i32 : i32 to index
    %c0_50 = arith.constant 0 : index
    %c0_51 = arith.constant 0 : index
    %156 = vector.load %arg2[%155, %c0_50, %c0_51] : memref<7x8x192xf32, #tpu.memory_space<vmem>>, vector<1x8x192xf32>
    %157 = vector.shape_cast %156 : vector<1x8x192xf32> to vector<8x192xf32>
    %158 = arith.addf %154, %157 : vector<8x192xf32>
    %159 = vector.extract_strided_slice %158 {offsets = [0, 0], sizes = [8, 48], strides = [1, 1]} : vector<8x192xf32> to vector<8x48xf32>
    %160 = vector.extract_strided_slice %158 {offsets = [0, 48], sizes = [8, 48], strides = [1, 1]} : vector<8x192xf32> to vector<8x48xf32>
    %161 = vector.extract_strided_slice %158 {offsets = [0, 96], sizes = [8, 48], strides = [1, 1]} : vector<8x192xf32> to vector<8x48xf32>
    %162 = vector.extract_strided_slice %158 {offsets = [0, 144], sizes = [8, 48], strides = [1, 1]} : vector<8x192xf32> to vector<8x48xf32>
    %163 = vector.extract_strided_slice %159 {offsets = [0, 0], sizes = [8, 32], strides = [1, 1]} : vector<8x48xf32> to vector<8x32xf32>
    %164 = vector.extract_strided_slice %160 {offsets = [0, 0], sizes = [8, 32], strides = [1, 1]} : vector<8x48xf32> to vector<8x32xf32>
    %165 = arith.addf %163, %164 : vector<8x32xf32>
    %166 = arith.negf %165 : vector<8x32xf32>
    %167 = math.exp %166 : vector<8x32xf32>
    %cst_52 = arith.constant 1.000000e+00 : f32
    %168 = vector.broadcast %cst_52 : f32 to vector<8x32xf32>
    %169 = arith.addf %168, %167 : vector<8x32xf32>
    %170 = arith.divf %168, %169 : vector<8x32xf32>
    %171 = vector.extract_strided_slice %170 {offsets = [0, 0], sizes = [8, 16], strides = [1, 1]} : vector<8x32xf32> to vector<8x16xf32>
    %172 = vector.extract_strided_slice %170 {offsets = [0, 16], sizes = [8, 16], strides = [1, 1]} : vector<8x32xf32> to vector<8x16xf32>
    %173 = vector.extract_strided_slice %159 {offsets = [0, 32], sizes = [8, 16], strides = [1, 1]} : vector<8x48xf32> to vector<8x16xf32>
    %174 = vector.extract_strided_slice %160 {offsets = [0, 32], sizes = [8, 16], strides = [1, 1]} : vector<8x48xf32> to vector<8x16xf32>
    %175 = arith.mulf %171, %174 : vector<8x16xf32>
    %176 = arith.addf %173, %175 : vector<8x16xf32>
    %177 = math.tanh %176 : vector<8x16xf32>
    %cst_53 = arith.constant 1.000000e+00 : f32
    %178 = vector.broadcast %cst_53 : f32 to vector<8x16xf32>
    %179 = arith.subf %178, %172 : vector<8x16xf32>
    %180 = arith.mulf %179, %177 : vector<8x16xf32>
    %181 = arith.mulf %172, %153 : vector<8x16xf32>
    %182 = arith.addf %180, %181 : vector<8x16xf32>
    %183 = arith.index_cast %c1_i32 : i32 to index
    %c0_54 = arith.constant 0 : index
    %c0_55 = arith.constant 0 : index
    %184 = vector.load %arg3[%183, %c0_54, %c0_55] : memref<7x8x16xf32, #tpu.memory_space<vmem>>, vector<1x8x16xf32>
    %185 = vector.shape_cast %184 : vector<1x8x16xf32> to vector<8x16xf32>
    %186 = arith.mulf %185, %182 : vector<8x16xf32>
    %cst_56 = arith.constant 1.000000e+00 : f32
    %187 = vector.broadcast %cst_56 : f32 to vector<8x16xf32>
    %188 = arith.subf %187, %185 : vector<8x16xf32>
    %189 = arith.mulf %188, %153 : vector<8x16xf32>
    %190 = arith.addf %186, %189 : vector<8x16xf32>
    %191 = vector.extract_strided_slice %161 {offsets = [0, 0], sizes = [8, 32], strides = [1, 1]} : vector<8x48xf32> to vector<8x32xf32>
    %192 = vector.extract_strided_slice %162 {offsets = [0, 0], sizes = [8, 32], strides = [1, 1]} : vector<8x48xf32> to vector<8x32xf32>
    %193 = arith.addf %191, %192 : vector<8x32xf32>
    %194 = arith.negf %193 : vector<8x32xf32>
    %195 = math.exp %194 : vector<8x32xf32>
    %cst_57 = arith.constant 1.000000e+00 : f32
    %196 = vector.broadcast %cst_57 : f32 to vector<8x32xf32>
    %197 = arith.addf %196, %195 : vector<8x32xf32>
    %198 = arith.divf %196, %197 : vector<8x32xf32>
    %199 = vector.extract_strided_slice %198 {offsets = [0, 0], sizes = [8, 16], strides = [1, 1]} : vector<8x32xf32> to vector<8x16xf32>
    %200 = vector.extract_strided_slice %198 {offsets = [0, 16], sizes = [8, 16], strides = [1, 1]} : vector<8x32xf32> to vector<8x16xf32>
    %201 = vector.extract_strided_slice %161 {offsets = [0, 32], sizes = [8, 16], strides = [1, 1]} : vector<8x48xf32> to vector<8x16xf32>
    %202 = vector.extract_strided_slice %162 {offsets = [0, 32], sizes = [8, 16], strides = [1, 1]} : vector<8x48xf32> to vector<8x16xf32>
    %203 = arith.mulf %199, %202 : vector<8x16xf32>
    %204 = arith.addf %201, %203 : vector<8x16xf32>
    %205 = math.tanh %204 : vector<8x16xf32>
    %cst_58 = arith.constant 1.000000e+00 : f32
    %206 = vector.broadcast %cst_58 : f32 to vector<8x16xf32>
    %207 = arith.subf %206, %200 : vector<8x16xf32>
    %208 = arith.mulf %207, %205 : vector<8x16xf32>
    %209 = arith.mulf %200, %152 : vector<8x16xf32>
    %210 = arith.addf %208, %209 : vector<8x16xf32>
    %211 = tpu.concatenate %210, %190, %149 in 1 : vector<8x16xf32>, vector<8x16xf32>, vector<8x8xf32> -> vector<8x40xf32>
    %212 = arith.index_cast %c1_i32 : i32 to index
    %213 = memref.load %arg0[%212] : memref<7xf32, #tpu.memory_space<smem>>
    %cst_59 = arith.constant dense<0.000000e+00> : vector<8x32xf32>
    %214 = tpu.matmul %211, %1, %cst_59 {dimension_numbers = #tpu.dot_dimension_numbers<[1], [0], [0], [1], [0, 0, 1, 1], [], []>} : vector<8x40xf32>, vector<40x32xf32>, vector<8x32xf32> -> vector<8x32xf32>
    %215 = arith.addf %214, %5 : vector<8x32xf32>
    %cst_60 = arith.constant 0.000000e+00 : f32
    %216 = vector.broadcast %cst_60 : f32 to vector<8x32xf32>
    %217 = arith.cmpf oge, %215, %216 : vector<8x32xf32>
    %cst_61 = arith.constant 0.00999999977 : f32
    %218 = vector.broadcast %cst_61 : f32 to vector<8x32xf32>
    %219 = arith.mulf %218, %215 : vector<8x32xf32>
    %220 = arith.select %217, %215, %219 : vector<8x32xi1>, vector<8x32xf32>
    %cst_62 = arith.constant dense<0.000000e+00> : vector<8x40xf32>
    %221 = tpu.matmul %220, %2, %cst_62 {dimension_numbers = #tpu.dot_dimension_numbers<[1], [0], [0], [1], [0, 0, 1, 1], [], []>} : vector<8x32xf32>, vector<32x40xf32>, vector<8x40xf32> -> vector<8x40xf32>
    %222 = arith.addf %221, %8 : vector<8x40xf32>
    %cst_63 = arith.constant 0.333333343 : f32
    %223 = arith.mulf %213, %cst_63 : f32
    %224 = vector.broadcast %223 : f32 to vector<8x40xf32>
    %225 = arith.mulf %224, %222 : vector<8x40xf32>
    %226 = arith.addf %211, %225 : vector<8x40xf32>
    %cst_64 = arith.constant dense<0.000000e+00> : vector<8x32xf32>
    %227 = tpu.matmul %226, %1, %cst_64 {dimension_numbers = #tpu.dot_dimension_numbers<[1], [0], [0], [1], [0, 0, 1, 1], [], []>} : vector<8x40xf32>, vector<40x32xf32>, vector<8x32xf32> -> vector<8x32xf32>
    %228 = arith.addf %227, %5 : vector<8x32xf32>
    %cst_65 = arith.constant 0.000000e+00 : f32
    %229 = vector.broadcast %cst_65 : f32 to vector<8x32xf32>
    %230 = arith.cmpf oge, %228, %229 : vector<8x32xf32>
    %cst_66 = arith.constant 0.00999999977 : f32
    %231 = vector.broadcast %cst_66 : f32 to vector<8x32xf32>
    %232 = arith.mulf %231, %228 : vector<8x32xf32>
    %233 = arith.select %230, %228, %232 : vector<8x32xi1>, vector<8x32xf32>
    %cst_67 = arith.constant dense<0.000000e+00> : vector<8x40xf32>
    %234 = tpu.matmul %233, %2, %cst_67 {dimension_numbers = #tpu.dot_dimension_numbers<[1], [0], [0], [1], [0, 0, 1, 1], [], []>} : vector<8x32xf32>, vector<32x40xf32>, vector<8x40xf32> -> vector<8x40xf32>
    %235 = arith.addf %234, %8 : vector<8x40xf32>
    %cst_68 = arith.constant 0.333333343 : f32
    %236 = vector.broadcast %cst_68 : f32 to vector<8x40xf32>
    %237 = arith.mulf %236, %222 : vector<8x40xf32>
    %238 = arith.subf %235, %237 : vector<8x40xf32>
    %239 = vector.broadcast %213 : f32 to vector<8x40xf32>
    %240 = arith.mulf %239, %238 : vector<8x40xf32>
    %241 = arith.addf %211, %240 : vector<8x40xf32>
    %cst_69 = arith.constant dense<0.000000e+00> : vector<8x32xf32>
    %242 = tpu.matmul %241, %1, %cst_69 {dimension_numbers = #tpu.dot_dimension_numbers<[1], [0], [0], [1], [0, 0, 1, 1], [], []>} : vector<8x40xf32>, vector<40x32xf32>, vector<8x32xf32> -> vector<8x32xf32>
    %243 = arith.addf %242, %5 : vector<8x32xf32>
    %cst_70 = arith.constant 0.000000e+00 : f32
    %244 = vector.broadcast %cst_70 : f32 to vector<8x32xf32>
    %245 = arith.cmpf oge, %243, %244 : vector<8x32xf32>
    %cst_71 = arith.constant 0.00999999977 : f32
    %246 = vector.broadcast %cst_71 : f32 to vector<8x32xf32>
    %247 = arith.mulf %246, %243 : vector<8x32xf32>
    %248 = arith.select %245, %243, %247 : vector<8x32xi1>, vector<8x32xf32>
    %cst_72 = arith.constant dense<0.000000e+00> : vector<8x40xf32>
    %249 = tpu.matmul %248, %2, %cst_72 {dimension_numbers = #tpu.dot_dimension_numbers<[1], [0], [0], [1], [0, 0, 1, 1], [], []>} : vector<8x32xf32>, vector<32x40xf32>, vector<8x40xf32> -> vector<8x40xf32>
    %250 = arith.addf %249, %8 : vector<8x40xf32>
    %251 = arith.subf %222, %235 : vector<8x40xf32>
    %252 = arith.addf %251, %250 : vector<8x40xf32>
    %253 = vector.broadcast %213 : f32 to vector<8x40xf32>
    %254 = arith.mulf %253, %252 : vector<8x40xf32>
    %255 = arith.addf %211, %254 : vector<8x40xf32>
    %cst_73 = arith.constant dense<0.000000e+00> : vector<8x32xf32>
    %256 = tpu.matmul %255, %1, %cst_73 {dimension_numbers = #tpu.dot_dimension_numbers<[1], [0], [0], [1], [0, 0, 1, 1], [], []>} : vector<8x40xf32>, vector<40x32xf32>, vector<8x32xf32> -> vector<8x32xf32>
    %257 = arith.addf %256, %5 : vector<8x32xf32>
    %cst_74 = arith.constant 0.000000e+00 : f32
    %258 = vector.broadcast %cst_74 : f32 to vector<8x32xf32>
    %259 = arith.cmpf oge, %257, %258 : vector<8x32xf32>
    %cst_75 = arith.constant 0.00999999977 : f32
    %260 = vector.broadcast %cst_75 : f32 to vector<8x32xf32>
    %261 = arith.mulf %260, %257 : vector<8x32xf32>
    %262 = arith.select %259, %257, %261 : vector<8x32xi1>, vector<8x32xf32>
    %cst_76 = arith.constant dense<0.000000e+00> : vector<8x40xf32>
    %263 = tpu.matmul %262, %2, %cst_76 {dimension_numbers = #tpu.dot_dimension_numbers<[1], [0], [0], [1], [0, 0, 1, 1], [], []>} : vector<8x32xf32>, vector<32x40xf32>, vector<8x40xf32> -> vector<8x40xf32>
    %264 = arith.addf %263, %8 : vector<8x40xf32>
    %265 = arith.addf %235, %250 : vector<8x40xf32>
    %cst_77 = arith.constant 3.000000e+00 : f32
    %266 = vector.broadcast %cst_77 : f32 to vector<8x40xf32>
    %267 = arith.mulf %266, %265 : vector<8x40xf32>
    %268 = arith.addf %222, %267 : vector<8x40xf32>
    %269 = arith.addf %268, %264 : vector<8x40xf32>
    %cst_78 = arith.constant 1.250000e-01 : f32
    %270 = arith.mulf %213, %cst_78 : f32
    %271 = vector.broadcast %270 : f32 to vector<8x40xf32>
    %272 = arith.mulf %269, %271 : vector<8x40xf32>
    %273 = arith.addf %211, %272 : vector<8x40xf32>
    %274 = vector.extract_strided_slice %273 {offsets = [0, 32], sizes = [8, 8], strides = [1, 1]} : vector<8x40xf32> to vector<8x8xf32>
    %275 = tpu.concatenate %274, %190, %9 in 1 : vector<8x8xf32>, vector<8x16xf32>, vector<8x104xf32> -> vector<8x128xf32>
    %276 = arith.index_cast %c1_i32 : i32 to index
    %c0_79 = arith.constant 0 : index
    %c0_80 = arith.constant 0 : index
    %277 = vector.load %arg9[%276, %c0_79, %c0_80] : memref<7x8x128xf32, #tpu.memory_space<vmem>>, vector<1x8x128xf32>
    %278 = vector.shape_cast %277 : vector<1x8x128xf32> to vector<8x128xf32>
    %279 = vector.shape_cast %275 : vector<8x128xf32> to vector<1x8x128xf32>
    tpu.vector_store %arg9[%276, %c0_79, %c0_80], %279 {strides = array<i32>} : memref<7x8x128xf32, #tpu.memory_space<vmem>>, vector<1x8x128xf32>,
    %c2_i32 = arith.constant 2 : i32
    %280 = arith.index_cast %c2_i32 : i32 to index
    %c0_81 = arith.constant 0 : index
    %c0_82 = arith.constant 0 : index
    %281 = vector.load %arg1[%280, %c0_81, %c0_82] : memref<7x8x8xf32, #tpu.memory_space<vmem>>, vector<1x8x8xf32>
    %282 = vector.shape_cast %281 : vector<1x8x8xf32> to vector<8x8xf32>
    %283 = vector.extract_strided_slice %273 {offsets = [0, 0], sizes = [8, 32], strides = [1, 1]} : vector<8x40xf32> to vector<8x32xf32>
    %284 = tpu.concatenate %283, %282 in 1 : vector<8x32xf32>, vector<8x8xf32> -> vector<8x40xf32>
    %285 = vector.extract_strided_slice %273 {offsets = [0, 0], sizes = [8, 16], strides = [1, 1]} : vector<8x40xf32> to vector<8x16xf32>
    %286 = vector.extract_strided_slice %273 {offsets = [0, 16], sizes = [8, 16], strides = [1, 1]} : vector<8x40xf32> to vector<8x16xf32>
    %cst_83 = arith.constant dense<0.000000e+00> : vector<8x192xf32>
    %287 = tpu.matmul %284, %0, %cst_83 {dimension_numbers = #tpu.dot_dimension_numbers<[1], [0], [0], [1], [0, 0, 1, 1], [], []>} : vector<8x40xf32>, vector<40x192xf32>, vector<8x192xf32> -> vector<8x192xf32>
    %288 = arith.index_cast %c2_i32 : i32 to index
    %c0_84 = arith.constant 0 : index
    %c0_85 = arith.constant 0 : index
    %289 = vector.load %arg2[%288, %c0_84, %c0_85] : memref<7x8x192xf32, #tpu.memory_space<vmem>>, vector<1x8x192xf32>
    %290 = vector.shape_cast %289 : vector<1x8x192xf32> to vector<8x192xf32>
    %291 = arith.addf %287, %290 : vector<8x192xf32>
    %292 = vector.extract_strided_slice %291 {offsets = [0, 0], sizes = [8, 48], strides = [1, 1]} : vector<8x192xf32> to vector<8x48xf32>
    %293 = vector.extract_strided_slice %291 {offsets = [0, 48], sizes = [8, 48], strides = [1, 1]} : vector<8x192xf32> to vector<8x48xf32>
    %294 = vector.extract_strided_slice %291 {offsets = [0, 96], sizes = [8, 48], strides = [1, 1]} : vector<8x192xf32> to vector<8x48xf32>
    %295 = vector.extract_strided_slice %291 {offsets = [0, 144], sizes = [8, 48], strides = [1, 1]} : vector<8x192xf32> to vector<8x48xf32>
    %296 = vector.extract_strided_slice %292 {offsets = [0, 0], sizes = [8, 32], strides = [1, 1]} : vector<8x48xf32> to vector<8x32xf32>
    %297 = vector.extract_strided_slice %293 {offsets = [0, 0], sizes = [8, 32], strides = [1, 1]} : vector<8x48xf32> to vector<8x32xf32>
    %298 = arith.addf %296, %297 : vector<8x32xf32>
    %299 = arith.negf %298 : vector<8x32xf32>
    %300 = math.exp %299 : vector<8x32xf32>
    %cst_86 = arith.constant 1.000000e+00 : f32
    %301 = vector.broadcast %cst_86 : f32 to vector<8x32xf32>
    %302 = arith.addf %301, %300 : vector<8x32xf32>
    %303 = arith.divf %301, %302 : vector<8x32xf32>
    %304 = vector.extract_strided_slice %303 {offsets = [0, 0], sizes = [8, 16], strides = [1, 1]} : vector<8x32xf32> to vector<8x16xf32>
    %305 = vector.extract_strided_slice %303 {offsets = [0, 16], sizes = [8, 16], strides = [1, 1]} : vector<8x32xf32> to vector<8x16xf32>
    %306 = vector.extract_strided_slice %292 {offsets = [0, 32], sizes = [8, 16], strides = [1, 1]} : vector<8x48xf32> to vector<8x16xf32>
    %307 = vector.extract_strided_slice %293 {offsets = [0, 32], sizes = [8, 16], strides = [1, 1]} : vector<8x48xf32> to vector<8x16xf32>
    %308 = arith.mulf %304, %307 : vector<8x16xf32>
    %309 = arith.addf %306, %308 : vector<8x16xf32>
    %310 = math.tanh %309 : vector<8x16xf32>
    %cst_87 = arith.constant 1.000000e+00 : f32
    %311 = vector.broadcast %cst_87 : f32 to vector<8x16xf32>
    %312 = arith.subf %311, %305 : vector<8x16xf32>
    %313 = arith.mulf %312, %310 : vector<8x16xf32>
    %314 = arith.mulf %305, %286 : vector<8x16xf32>
    %315 = arith.addf %313, %314 : vector<8x16xf32>
    %316 = arith.index_cast %c2_i32 : i32 to index
    %c0_88 = arith.constant 0 : index
    %c0_89 = arith.constant 0 : index
    %317 = vector.load %arg3[%316, %c0_88, %c0_89] : memref<7x8x16xf32, #tpu.memory_space<vmem>>, vector<1x8x16xf32>
    %318 = vector.shape_cast %317 : vector<1x8x16xf32> to vector<8x16xf32>
    %319 = arith.mulf %318, %315 : vector<8x16xf32>
    %cst_90 = arith.constant 1.000000e+00 : f32
    %320 = vector.broadcast %cst_90 : f32 to vector<8x16xf32>
    %321 = arith.subf %320, %318 : vector<8x16xf32>
    %322 = arith.mulf %321, %286 : vector<8x16xf32>
    %323 = arith.addf %319, %322 : vector<8x16xf32>
    %324 = vector.extract_strided_slice %294 {offsets = [0, 0], sizes = [8, 32], strides = [1, 1]} : vector<8x48xf32> to vector<8x32xf32>
    %325 = vector.extract_strided_slice %295 {offsets = [0, 0], sizes = [8, 32], strides = [1, 1]} : vector<8x48xf32> to vector<8x32xf32>
    %326 = arith.addf %324, %325 : vector<8x32xf32>
    %327 = arith.negf %326 : vector<8x32xf32>
    %328 = math.exp %327 : vector<8x32xf32>
    %cst_91 = arith.constant 1.000000e+00 : f32
    %329 = vector.broadcast %cst_91 : f32 to vector<8x32xf32>
    %330 = arith.addf %329, %328 : vector<8x32xf32>
    %331 = arith.divf %329, %330 : vector<8x32xf32>
    %332 = vector.extract_strided_slice %331 {offsets = [0, 0], sizes = [8, 16], strides = [1, 1]} : vector<8x32xf32> to vector<8x16xf32>
    %333 = vector.extract_strided_slice %331 {offsets = [0, 16], sizes = [8, 16], strides = [1, 1]} : vector<8x32xf32> to vector<8x16xf32>
    %334 = vector.extract_strided_slice %294 {offsets = [0, 32], sizes = [8, 16], strides = [1, 1]} : vector<8x48xf32> to vector<8x16xf32>
    %335 = vector.extract_strided_slice %295 {offsets = [0, 32], sizes = [8, 16], strides = [1, 1]} : vector<8x48xf32> to vector<8x16xf32>
    %336 = arith.mulf %332, %335 : vector<8x16xf32>
    %337 = arith.addf %334, %336 : vector<8x16xf32>
    %338 = math.tanh %337 : vector<8x16xf32>
    %cst_92 = arith.constant 1.000000e+00 : f32
    %339 = vector.broadcast %cst_92 : f32 to vector<8x16xf32>
    %340 = arith.subf %339, %333 : vector<8x16xf32>
    %341 = arith.mulf %340, %338 : vector<8x16xf32>
    %342 = arith.mulf %333, %285 : vector<8x16xf32>
    %343 = arith.addf %341, %342 : vector<8x16xf32>
    %344 = tpu.concatenate %343, %323, %282 in 1 : vector<8x16xf32>, vector<8x16xf32>, vector<8x8xf32> -> vector<8x40xf32>
    %345 = arith.index_cast %c2_i32 : i32 to index
    %346 = memref.load %arg0[%345] : memref<7xf32, #tpu.memory_space<smem>>
    %cst_93 = arith.constant dense<0.000000e+00> : vector<8x32xf32>
    %347 = tpu.matmul %344, %1, %cst_93 {dimension_numbers = #tpu.dot_dimension_numbers<[1], [0], [0], [1], [0, 0, 1, 1], [], []>} : vector<8x40xf32>, vector<40x32xf32>, vector<8x32xf32> -> vector<8x32xf32>
    %348 = arith.addf %347, %5 : vector<8x32xf32>
    %cst_94 = arith.constant 0.000000e+00 : f32
    %349 = vector.broadcast %cst_94 : f32 to vector<8x32xf32>
    %350 = arith.cmpf oge, %348, %349 : vector<8x32xf32>
    %cst_95 = arith.constant 0.00999999977 : f32
    %351 = vector.broadcast %cst_95 : f32 to vector<8x32xf32>
    %352 = arith.mulf %351, %348 : vector<8x32xf32>
    %353 = arith.select %350, %348, %352 : vector<8x32xi1>, vector<8x32xf32>
    %cst_96 = arith.constant dense<0.000000e+00> : vector<8x40xf32>
    %354 = tpu.matmul %353, %2, %cst_96 {dimension_numbers = #tpu.dot_dimension_numbers<[1], [0], [0], [1], [0, 0, 1, 1], [], []>} : vector<8x32xf32>, vector<32x40xf32>, vector<8x40xf32> -> vector<8x40xf32>
    %355 = arith.addf %354, %8 : vector<8x40xf32>
    %cst_97 = arith.constant 0.333333343 : f32
    %356 = arith.mulf %346, %cst_97 : f32
    %357 = vector.broadcast %356 : f32 to vector<8x40xf32>
    %358 = arith.mulf %357, %355 : vector<8x40xf32>
    %359 = arith.addf %344, %358 : vector<8x40xf32>
    %cst_98 = arith.constant dense<0.000000e+00> : vector<8x32xf32>
    %360 = tpu.matmul %359, %1, %cst_98 {dimension_numbers = #tpu.dot_dimension_numbers<[1], [0], [0], [1], [0, 0, 1, 1], [], []>} : vector<8x40xf32>, vector<40x32xf32>, vector<8x32xf32> -> vector<8x32xf32>
    %361 = arith.addf %360, %5 : vector<8x32xf32>
    %cst_99 = arith.constant 0.000000e+00 : f32
    %362 = vector.broadcast %cst_99 : f32 to vector<8x32xf32>
    %363 = arith.cmpf oge, %361, %362 : vector<8x32xf32>
    %cst_100 = arith.constant 0.00999999977 : f32
    %364 = vector.broadcast %cst_100 : f32 to vector<8x32xf32>
    %365 = arith.mulf %364, %361 : vector<8x32xf32>
    %366 = arith.select %363, %361, %365 : vector<8x32xi1>, vector<8x32xf32>
    %cst_101 = arith.constant dense<0.000000e+00> : vector<8x40xf32>
    %367 = tpu.matmul %366, %2, %cst_101 {dimension_numbers = #tpu.dot_dimension_numbers<[1], [0], [0], [1], [0, 0, 1, 1], [], []>} : vector<8x32xf32>, vector<32x40xf32>, vector<8x40xf32> -> vector<8x40xf32>
    %368 = arith.addf %367, %8 : vector<8x40xf32>
    %cst_102 = arith.constant 0.333333343 : f32
    %369 = vector.broadcast %cst_102 : f32 to vector<8x40xf32>
    %370 = arith.mulf %369, %355 : vector<8x40xf32>
    %371 = arith.subf %368, %370 : vector<8x40xf32>
    %372 = vector.broadcast %346 : f32 to vector<8x40xf32>
    %373 = arith.mulf %372, %371 : vector<8x40xf32>
    %374 = arith.addf %344, %373 : vector<8x40xf32>
    %cst_103 = arith.constant dense<0.000000e+00> : vector<8x32xf32>
    %375 = tpu.matmul %374, %1, %cst_103 {dimension_numbers = #tpu.dot_dimension_numbers<[1], [0], [0], [1], [0, 0, 1, 1], [], []>} : vector<8x40xf32>, vector<40x32xf32>, vector<8x32xf32> -> vector<8x32xf32>
    %376 = arith.addf %375, %5 : vector<8x32xf32>
    %cst_104 = arith.constant 0.000000e+00 : f32
    %377 = vector.broadcast %cst_104 : f32 to vector<8x32xf32>
    %378 = arith.cmpf oge, %376, %377 : vector<8x32xf32>
    %cst_105 = arith.constant 0.00999999977 : f32
    %379 = vector.broadcast %cst_105 : f32 to vector<8x32xf32>
    %380 = arith.mulf %379, %376 : vector<8x32xf32>
    %381 = arith.select %378, %376, %380 : vector<8x32xi1>, vector<8x32xf32>
    %cst_106 = arith.constant dense<0.000000e+00> : vector<8x40xf32>
    %382 = tpu.matmul %381, %2, %cst_106 {dimension_numbers = #tpu.dot_dimension_numbers<[1], [0], [0], [1], [0, 0, 1, 1], [], []>} : vector<8x32xf32>, vector<32x40xf32>, vector<8x40xf32> -> vector<8x40xf32>
    %383 = arith.addf %382, %8 : vector<8x40xf32>
    %384 = arith.subf %355, %368 : vector<8x40xf32>
    %385 = arith.addf %384, %383 : vector<8x40xf32>
    %386 = vector.broadcast %346 : f32 to vector<8x40xf32>
    %387 = arith.mulf %386, %385 : vector<8x40xf32>
    %388 = arith.addf %344, %387 : vector<8x40xf32>
    %cst_107 = arith.constant dense<0.000000e+00> : vector<8x32xf32>
    %389 = tpu.matmul %388, %1, %cst_107 {dimension_numbers = #tpu.dot_dimension_numbers<[1], [0], [0], [1], [0, 0, 1, 1], [], []>} : vector<8x40xf32>, vector<40x32xf32>, vector<8x32xf32> -> vector<8x32xf32>
    %390 = arith.addf %389, %5 : vector<8x32xf32>
    %cst_108 = arith.constant 0.000000e+00 : f32
    %391 = vector.broadcast %cst_108 : f32 to vector<8x32xf32>
    %392 = arith.cmpf oge, %390, %391 : vector<8x32xf32>
    %cst_109 = arith.constant 0.00999999977 : f32
    %393 = vector.broadcast %cst_109 : f32 to vector<8x32xf32>
    %394 = arith.mulf %393, %390 : vector<8x32xf32>
    %395 = arith.select %392, %390, %394 : vector<8x32xi1>, vector<8x32xf32>
    %cst_110 = arith.constant dense<0.000000e+00> : vector<8x40xf32>
    %396 = tpu.matmul %395, %2, %cst_110 {dimension_numbers = #tpu.dot_dimension_numbers<[1], [0], [0], [1], [0, 0, 1, 1], [], []>} : vector<8x32xf32>, vector<32x40xf32>, vector<8x40xf32> -> vector<8x40xf32>
    %397 = arith.addf %396, %8 : vector<8x40xf32>
    %398 = arith.addf %368, %383 : vector<8x40xf32>
    %cst_111 = arith.constant 3.000000e+00 : f32
    %399 = vector.broadcast %cst_111 : f32 to vector<8x40xf32>
    %400 = arith.mulf %399, %398 : vector<8x40xf32>
    %401 = arith.addf %355, %400 : vector<8x40xf32>
    %402 = arith.addf %401, %397 : vector<8x40xf32>
    %cst_112 = arith.constant 1.250000e-01 : f32
    %403 = arith.mulf %346, %cst_112 : f32
    %404 = vector.broadcast %403 : f32 to vector<8x40xf32>
    %405 = arith.mulf %402, %404 : vector<8x40xf32>
    %406 = arith.addf %344, %405 : vector<8x40xf32>
    %407 = vector.extract_strided_slice %406 {offsets = [0, 32], sizes = [8, 8], strides = [1, 1]} : vector<8x40xf32> to vector<8x8xf32>
    %408 = tpu.concatenate %407, %323, %9 in 1 : vector<8x8xf32>, vector<8x16xf32>, vector<8x104xf32> -> vector<8x128xf32>
    %409 = arith.index_cast %c2_i32 : i32 to index
    %c0_113 = arith.constant 0 : index
    %c0_114 = arith.constant 0 : index
    %410 = vector.load %arg9[%409, %c0_113, %c0_114] : memref<7x8x128xf32, #tpu.memory_space<vmem>>, vector<1x8x128xf32>
    %411 = vector.shape_cast %410 : vector<1x8x128xf32> to vector<8x128xf32>
    %412 = vector.shape_cast %408 : vector<8x128xf32> to vector<1x8x128xf32>
    tpu.vector_store %arg9[%409, %c0_113, %c0_114], %412 {strides = array<i32>} : memref<7x8x128xf32, #tpu.memory_space<vmem>>, vector<1x8x128xf32>,
    %c3_i32 = arith.constant 3 : i32
    %413 = arith.index_cast %c3_i32 : i32 to index
    %c0_115 = arith.constant 0 : index
    %c0_116 = arith.constant 0 : index
    %414 = vector.load %arg1[%413, %c0_115, %c0_116] : memref<7x8x8xf32, #tpu.memory_space<vmem>>, vector<1x8x8xf32>
    %415 = vector.shape_cast %414 : vector<1x8x8xf32> to vector<8x8xf32>
    %416 = vector.extract_strided_slice %406 {offsets = [0, 0], sizes = [8, 32], strides = [1, 1]} : vector<8x40xf32> to vector<8x32xf32>
    %417 = tpu.concatenate %416, %415 in 1 : vector<8x32xf32>, vector<8x8xf32> -> vector<8x40xf32>
    %418 = vector.extract_strided_slice %406 {offsets = [0, 0], sizes = [8, 16], strides = [1, 1]} : vector<8x40xf32> to vector<8x16xf32>
    %419 = vector.extract_strided_slice %406 {offsets = [0, 16], sizes = [8, 16], strides = [1, 1]} : vector<8x40xf32> to vector<8x16xf32>
    %cst_117 = arith.constant dense<0.000000e+00> : vector<8x192xf32>
    %420 = tpu.matmul %417, %0, %cst_117 {dimension_numbers = #tpu.dot_dimension_numbers<[1], [0], [0], [1], [0, 0, 1, 1], [], []>} : vector<8x40xf32>, vector<40x192xf32>, vector<8x192xf32> -> vector<8x192xf32>
    %421 = arith.index_cast %c3_i32 : i32 to index
    %c0_118 = arith.constant 0 : index
    %c0_119 = arith.constant 0 : index
    %422 = vector.load %arg2[%421, %c0_118, %c0_119] : memref<7x8x192xf32, #tpu.memory_space<vmem>>, vector<1x8x192xf32>
    %423 = vector.shape_cast %422 : vector<1x8x192xf32> to vector<8x192xf32>
    %424 = arith.addf %420, %423 : vector<8x192xf32>
    %425 = vector.extract_strided_slice %424 {offsets = [0, 0], sizes = [8, 48], strides = [1, 1]} : vector<8x192xf32> to vector<8x48xf32>
    %426 = vector.extract_strided_slice %424 {offsets = [0, 48], sizes = [8, 48], strides = [1, 1]} : vector<8x192xf32> to vector<8x48xf32>
    %427 = vector.extract_strided_slice %424 {offsets = [0, 96], sizes = [8, 48], strides = [1, 1]} : vector<8x192xf32> to vector<8x48xf32>
    %428 = vector.extract_strided_slice %424 {offsets = [0, 144], sizes = [8, 48], strides = [1, 1]} : vector<8x192xf32> to vector<8x48xf32>
    %429 = vector.extract_strided_slice %425 {offsets = [0, 0], sizes = [8, 32], strides = [1, 1]} : vector<8x48xf32> to vector<8x32xf32>
    %430 = vector.extract_strided_slice %426 {offsets = [0, 0], sizes = [8, 32], strides = [1, 1]} : vector<8x48xf32> to vector<8x32xf32>
    %431 = arith.addf %429, %430 : vector<8x32xf32>
    %432 = arith.negf %431 : vector<8x32xf32>
    %433 = math.exp %432 : vector<8x32xf32>
    %cst_120 = arith.constant 1.000000e+00 : f32
    %434 = vector.broadcast %cst_120 : f32 to vector<8x32xf32>
    %435 = arith.addf %434, %433 : vector<8x32xf32>
    %436 = arith.divf %434, %435 : vector<8x32xf32>
    %437 = vector.extract_strided_slice %436 {offsets = [0, 0], sizes = [8, 16], strides = [1, 1]} : vector<8x32xf32> to vector<8x16xf32>
    %438 = vector.extract_strided_slice %436 {offsets = [0, 16], sizes = [8, 16], strides = [1, 1]} : vector<8x32xf32> to vector<8x16xf32>
    %439 = vector.extract_strided_slice %425 {offsets = [0, 32], sizes = [8, 16], strides = [1, 1]} : vector<8x48xf32> to vector<8x16xf32>
    %440 = vector.extract_strided_slice %426 {offsets = [0, 32], sizes = [8, 16], strides = [1, 1]} : vector<8x48xf32> to vector<8x16xf32>
    %441 = arith.mulf %437, %440 : vector<8x16xf32>
    %442 = arith.addf %439, %441 : vector<8x16xf32>
    %443 = math.tanh %442 : vector<8x16xf32>
    %cst_121 = arith.constant 1.000000e+00 : f32
    %444 = vector.broadcast %cst_121 : f32 to vector<8x16xf32>
    %445 = arith.subf %444, %438 : vector<8x16xf32>
    %446 = arith.mulf %445, %443 : vector<8x16xf32>
    %447 = arith.mulf %438, %419 : vector<8x16xf32>
    %448 = arith.addf %446, %447 : vector<8x16xf32>
    %449 = arith.index_cast %c3_i32 : i32 to index
    %c0_122 = arith.constant 0 : index
    %c0_123 = arith.constant 0 : index
    %450 = vector.load %arg3[%449, %c0_122, %c0_123] : memref<7x8x16xf32, #tpu.memory_space<vmem>>, vector<1x8x16xf32>
    %451 = vector.shape_cast %450 : vector<1x8x16xf32> to vector<8x16xf32>
    %452 = arith.mulf %451, %448 : vector<8x16xf32>
    %cst_124 = arith.constant 1.000000e+00 : f32
    %453 = vector.broadcast %cst_124 : f32 to vector<8x16xf32>
    %454 = arith.subf %453, %451 : vector<8x16xf32>
    %455 = arith.mulf %454, %419 : vector<8x16xf32>
    %456 = arith.addf %452, %455 : vector<8x16xf32>
    %457 = vector.extract_strided_slice %427 {offsets = [0, 0], sizes = [8, 32], strides = [1, 1]} : vector<8x48xf32> to vector<8x32xf32>
    %458 = vector.extract_strided_slice %428 {offsets = [0, 0], sizes = [8, 32], strides = [1, 1]} : vector<8x48xf32> to vector<8x32xf32>
    %459 = arith.addf %457, %458 : vector<8x32xf32>
    %460 = arith.negf %459 : vector<8x32xf32>
    %461 = math.exp %460 : vector<8x32xf32>
    %cst_125 = arith.constant 1.000000e+00 : f32
    %462 = vector.broadcast %cst_125 : f32 to vector<8x32xf32>
    %463 = arith.addf %462, %461 : vector<8x32xf32>
    %464 = arith.divf %462, %463 : vector<8x32xf32>
    %465 = vector.extract_strided_slice %464 {offsets = [0, 0], sizes = [8, 16], strides = [1, 1]} : vector<8x32xf32> to vector<8x16xf32>
    %466 = vector.extract_strided_slice %464 {offsets = [0, 16], sizes = [8, 16], strides = [1, 1]} : vector<8x32xf32> to vector<8x16xf32>
    %467 = vector.extract_strided_slice %427 {offsets = [0, 32], sizes = [8, 16], strides = [1, 1]} : vector<8x48xf32> to vector<8x16xf32>
    %468 = vector.extract_strided_slice %428 {offsets = [0, 32], sizes = [8, 16], strides = [1, 1]} : vector<8x48xf32> to vector<8x16xf32>
    %469 = arith.mulf %465, %468 : vector<8x16xf32>
    %470 = arith.addf %467, %469 : vector<8x16xf32>
    %471 = math.tanh %470 : vector<8x16xf32>
    %cst_126 = arith.constant 1.000000e+00 : f32
    %472 = vector.broadcast %cst_126 : f32 to vector<8x16xf32>
    %473 = arith.subf %472, %466 : vector<8x16xf32>
    %474 = arith.mulf %473, %471 : vector<8x16xf32>
    %475 = arith.mulf %466, %418 : vector<8x16xf32>
    %476 = arith.addf %474, %475 : vector<8x16xf32>
    %477 = tpu.concatenate %476, %456, %415 in 1 : vector<8x16xf32>, vector<8x16xf32>, vector<8x8xf32> -> vector<8x40xf32>
    %478 = arith.index_cast %c3_i32 : i32 to index
    %479 = memref.load %arg0[%478] : memref<7xf32, #tpu.memory_space<smem>>
    %cst_127 = arith.constant dense<0.000000e+00> : vector<8x32xf32>
    %480 = tpu.matmul %477, %1, %cst_127 {dimension_numbers = #tpu.dot_dimension_numbers<[1], [0], [0], [1], [0, 0, 1, 1], [], []>} : vector<8x40xf32>, vector<40x32xf32>, vector<8x32xf32> -> vector<8x32xf32>
    %481 = arith.addf %480, %5 : vector<8x32xf32>
    %cst_128 = arith.constant 0.000000e+00 : f32
    %482 = vector.broadcast %cst_128 : f32 to vector<8x32xf32>
    %483 = arith.cmpf oge, %481, %482 : vector<8x32xf32>
    %cst_129 = arith.constant 0.00999999977 : f32
    %484 = vector.broadcast %cst_129 : f32 to vector<8x32xf32>
    %485 = arith.mulf %484, %481 : vector<8x32xf32>
    %486 = arith.select %483, %481, %485 : vector<8x32xi1>, vector<8x32xf32>
    %cst_130 = arith.constant dense<0.000000e+00> : vector<8x40xf32>
    %487 = tpu.matmul %486, %2, %cst_130 {dimension_numbers = #tpu.dot_dimension_numbers<[1], [0], [0], [1], [0, 0, 1, 1], [], []>} : vector<8x32xf32>, vector<32x40xf32>, vector<8x40xf32> -> vector<8x40xf32>
    %488 = arith.addf %487, %8 : vector<8x40xf32>
    %cst_131 = arith.constant 0.333333343 : f32
    %489 = arith.mulf %479, %cst_131 : f32
    %490 = vector.broadcast %489 : f32 to vector<8x40xf32>
    %491 = arith.mulf %490, %488 : vector<8x40xf32>
    %492 = arith.addf %477, %491 : vector<8x40xf32>
    %cst_132 = arith.constant dense<0.000000e+00> : vector<8x32xf32>
    %493 = tpu.matmul %492, %1, %cst_132 {dimension_numbers = #tpu.dot_dimension_numbers<[1], [0], [0], [1], [0, 0, 1, 1], [], []>} : vector<8x40xf32>, vector<40x32xf32>, vector<8x32xf32> -> vector<8x32xf32>
    %494 = arith.addf %493, %5 : vector<8x32xf32>
    %cst_133 = arith.constant 0.000000e+00 : f32
    %495 = vector.broadcast %cst_133 : f32 to vector<8x32xf32>
    %496 = arith.cmpf oge, %494, %495 : vector<8x32xf32>
    %cst_134 = arith.constant 0.00999999977 : f32
    %497 = vector.broadcast %cst_134 : f32 to vector<8x32xf32>
    %498 = arith.mulf %497, %494 : vector<8x32xf32>
    %499 = arith.select %496, %494, %498 : vector<8x32xi1>, vector<8x32xf32>
    %cst_135 = arith.constant dense<0.000000e+00> : vector<8x40xf32>
    %500 = tpu.matmul %499, %2, %cst_135 {dimension_numbers = #tpu.dot_dimension_numbers<[1], [0], [0], [1], [0, 0, 1, 1], [], []>} : vector<8x32xf32>, vector<32x40xf32>, vector<8x40xf32> -> vector<8x40xf32>
    %501 = arith.addf %500, %8 : vector<8x40xf32>
    %cst_136 = arith.constant 0.333333343 : f32
    %502 = vector.broadcast %cst_136 : f32 to vector<8x40xf32>
    %503 = arith.mulf %502, %488 : vector<8x40xf32>
    %504 = arith.subf %501, %503 : vector<8x40xf32>
    %505 = vector.broadcast %479 : f32 to vector<8x40xf32>
    %506 = arith.mulf %505, %504 : vector<8x40xf32>
    %507 = arith.addf %477, %506 : vector<8x40xf32>
    %cst_137 = arith.constant dense<0.000000e+00> : vector<8x32xf32>
    %508 = tpu.matmul %507, %1, %cst_137 {dimension_numbers = #tpu.dot_dimension_numbers<[1], [0], [0], [1], [0, 0, 1, 1], [], []>} : vector<8x40xf32>, vector<40x32xf32>, vector<8x32xf32> -> vector<8x32xf32>
    %509 = arith.addf %508, %5 : vector<8x32xf32>
    %cst_138 = arith.constant 0.000000e+00 : f32
    %510 = vector.broadcast %cst_138 : f32 to vector<8x32xf32>
    %511 = arith.cmpf oge, %509, %510 : vector<8x32xf32>
    %cst_139 = arith.constant 0.00999999977 : f32
    %512 = vector.broadcast %cst_139 : f32 to vector<8x32xf32>
    %513 = arith.mulf %512, %509 : vector<8x32xf32>
    %514 = arith.select %511, %509, %513 : vector<8x32xi1>, vector<8x32xf32>
    %cst_140 = arith.constant dense<0.000000e+00> : vector<8x40xf32>
    %515 = tpu.matmul %514, %2, %cst_140 {dimension_numbers = #tpu.dot_dimension_numbers<[1], [0], [0], [1], [0, 0, 1, 1], [], []>} : vector<8x32xf32>, vector<32x40xf32>, vector<8x40xf32> -> vector<8x40xf32>
    %516 = arith.addf %515, %8 : vector<8x40xf32>
    %517 = arith.subf %488, %501 : vector<8x40xf32>
    %518 = arith.addf %517, %516 : vector<8x40xf32>
    %519 = vector.broadcast %479 : f32 to vector<8x40xf32>
    %520 = arith.mulf %519, %518 : vector<8x40xf32>
    %521 = arith.addf %477, %520 : vector<8x40xf32>
    %cst_141 = arith.constant dense<0.000000e+00> : vector<8x32xf32>
    %522 = tpu.matmul %521, %1, %cst_141 {dimension_numbers = #tpu.dot_dimension_numbers<[1], [0], [0], [1], [0, 0, 1, 1], [], []>} : vector<8x40xf32>, vector<40x32xf32>, vector<8x32xf32> -> vector<8x32xf32>
    %523 = arith.addf %522, %5 : vector<8x32xf32>
    %cst_142 = arith.constant 0.000000e+00 : f32
    %524 = vector.broadcast %cst_142 : f32 to vector<8x32xf32>
    %525 = arith.cmpf oge, %523, %524 : vector<8x32xf32>
    %cst_143 = arith.constant 0.00999999977 : f32
    %526 = vector.broadcast %cst_143 : f32 to vector<8x32xf32>
    %527 = arith.mulf %526, %523 : vector<8x32xf32>
    %528 = arith.select %525, %523, %527 : vector<8x32xi1>, vector<8x32xf32>
    %cst_144 = arith.constant dense<0.000000e+00> : vector<8x40xf32>
    %529 = tpu.matmul %528, %2, %cst_144 {dimension_numbers = #tpu.dot_dimension_numbers<[1], [0], [0], [1], [0, 0, 1, 1], [], []>} : vector<8x32xf32>, vector<32x40xf32>, vector<8x40xf32> -> vector<8x40xf32>
    %530 = arith.addf %529, %8 : vector<8x40xf32>
    %531 = arith.addf %501, %516 : vector<8x40xf32>
    %cst_145 = arith.constant 3.000000e+00 : f32
    %532 = vector.broadcast %cst_145 : f32 to vector<8x40xf32>
    %533 = arith.mulf %532, %531 : vector<8x40xf32>
    %534 = arith.addf %488, %533 : vector<8x40xf32>
    %535 = arith.addf %534, %530 : vector<8x40xf32>
    %cst_146 = arith.constant 1.250000e-01 : f32
    %536 = arith.mulf %479, %cst_146 : f32
    %537 = vector.broadcast %536 : f32 to vector<8x40xf32>
    %538 = arith.mulf %535, %537 : vector<8x40xf32>
    %539 = arith.addf %477, %538 : vector<8x40xf32>
    %540 = vector.extract_strided_slice %539 {offsets = [0, 32], sizes = [8, 8], strides = [1, 1]} : vector<8x40xf32> to vector<8x8xf32>
    %541 = tpu.concatenate %540, %456, %9 in 1 : vector<8x8xf32>, vector<8x16xf32>, vector<8x104xf32> -> vector<8x128xf32>
    %542 = arith.index_cast %c3_i32 : i32 to index
    %c0_147 = arith.constant 0 : index
    %c0_148 = arith.constant 0 : index
    %543 = vector.load %arg9[%542, %c0_147, %c0_148] : memref<7x8x128xf32, #tpu.memory_space<vmem>>, vector<1x8x128xf32>
    %544 = vector.shape_cast %543 : vector<1x8x128xf32> to vector<8x128xf32>
    %545 = vector.shape_cast %541 : vector<8x128xf32> to vector<1x8x128xf32>
    tpu.vector_store %arg9[%542, %c0_147, %c0_148], %545 {strides = array<i32>} : memref<7x8x128xf32, #tpu.memory_space<vmem>>, vector<1x8x128xf32>,
    %c4_i32 = arith.constant 4 : i32
    %c4_i32_149 = arith.constant 4 : i32
    %546 = vector.extract_strided_slice %539 {offsets = [0, 32], sizes = [8, 8], strides = [1, 1]} : vector<8x40xf32> to vector<8x8xf32>
    %547 = vector.extract_strided_slice %539 {offsets = [0, 0], sizes = [8, 16], strides = [1, 1]} : vector<8x40xf32> to vector<8x16xf32>
    %548 = vector.extract_strided_slice %539 {offsets = [0, 16], sizes = [8, 16], strides = [1, 1]} : vector<8x40xf32> to vector<8x16xf32>
    %cst_150 = arith.constant dense<0.000000e+00> : vector<8x192xf32>
    %549 = tpu.matmul %539, %0, %cst_150 {dimension_numbers = #tpu.dot_dimension_numbers<[1], [0], [0], [1], [0, 0, 1, 1], [], []>} : vector<8x40xf32>, vector<40x192xf32>, vector<8x192xf32> -> vector<8x192xf32>
    %550 = arith.index_cast %c4_i32_149 : i32 to index
    %c0_151 = arith.constant 0 : index
    %c0_152 = arith.constant 0 : index
    %551 = vector.load %arg2[%550, %c0_151, %c0_152] : memref<7x8x192xf32, #tpu.memory_space<vmem>>, vector<1x8x192xf32>
    %552 = vector.shape_cast %551 : vector<1x8x192xf32> to vector<8x192xf32>
    %553 = arith.addf %549, %552 : vector<8x192xf32>
    %554 = vector.extract_strided_slice %553 {offsets = [0, 0], sizes = [8, 48], strides = [1, 1]} : vector<8x192xf32> to vector<8x48xf32>
    %555 = vector.extract_strided_slice %553 {offsets = [0, 48], sizes = [8, 48], strides = [1, 1]} : vector<8x192xf32> to vector<8x48xf32>
    %556 = vector.extract_strided_slice %553 {offsets = [0, 96], sizes = [8, 48], strides = [1, 1]} : vector<8x192xf32> to vector<8x48xf32>
    %557 = vector.extract_strided_slice %553 {offsets = [0, 144], sizes = [8, 48], strides = [1, 1]} : vector<8x192xf32> to vector<8x48xf32>
    %558 = vector.extract_strided_slice %554 {offsets = [0, 0], sizes = [8, 32], strides = [1, 1]} : vector<8x48xf32> to vector<8x32xf32>
    %559 = vector.extract_strided_slice %555 {offsets = [0, 0], sizes = [8, 32], strides = [1, 1]} : vector<8x48xf32> to vector<8x32xf32>
    %560 = arith.addf %558, %559 : vector<8x32xf32>
    %561 = arith.negf %560 : vector<8x32xf32>
    %562 = math.exp %561 : vector<8x32xf32>
    %cst_153 = arith.constant 1.000000e+00 : f32
    %563 = vector.broadcast %cst_153 : f32 to vector<8x32xf32>
    %564 = arith.addf %563, %562 : vector<8x32xf32>
    %565 = arith.divf %563, %564 : vector<8x32xf32>
    %566 = vector.extract_strided_slice %565 {offsets = [0, 0], sizes = [8, 16], strides = [1, 1]} : vector<8x32xf32> to vector<8x16xf32>
    %567 = vector.extract_strided_slice %565 {offsets = [0, 16], sizes = [8, 16], strides = [1, 1]} : vector<8x32xf32> to vector<8x16xf32>
    %568 = vector.extract_strided_slice %554 {offsets = [0, 32], sizes = [8, 16], strides = [1, 1]} : vector<8x48xf32> to vector<8x16xf32>
    %569 = vector.extract_strided_slice %555 {offsets = [0, 32], sizes = [8, 16], strides = [1, 1]} : vector<8x48xf32> to vector<8x16xf32>
    %570 = arith.mulf %566, %569 : vector<8x16xf32>
    %571 = arith.addf %568, %570 : vector<8x16xf32>
    %572 = math.tanh %571 : vector<8x16xf32>
    %cst_154 = arith.constant 1.000000e+00 : f32
    %573 = vector.broadcast %cst_154 : f32 to vector<8x16xf32>
    %574 = arith.subf %573, %567 : vector<8x16xf32>
    %575 = arith.mulf %574, %572 : vector<8x16xf32>
    %576 = arith.mulf %567, %548 : vector<8x16xf32>
    %577 = arith.addf %575, %576 : vector<8x16xf32>
    %578 = arith.index_cast %c4_i32_149 : i32 to index
    %c0_155 = arith.constant 0 : index
    %c0_156 = arith.constant 0 : index
    %579 = vector.load %arg3[%578, %c0_155, %c0_156] : memref<7x8x16xf32, #tpu.memory_space<vmem>>, vector<1x8x16xf32>
    %580 = vector.shape_cast %579 : vector<1x8x16xf32> to vector<8x16xf32>
    %581 = arith.mulf %580, %577 : vector<8x16xf32>
    %cst_157 = arith.constant 1.000000e+00 : f32
    %582 = vector.broadcast %cst_157 : f32 to vector<8x16xf32>
    %583 = arith.subf %582, %580 : vector<8x16xf32>
    %584 = arith.mulf %583, %548 : vector<8x16xf32>
    %585 = arith.addf %581, %584 : vector<8x16xf32>
    %586 = vector.extract_strided_slice %556 {offsets = [0, 0], sizes = [8, 32], strides = [1, 1]} : vector<8x48xf32> to vector<8x32xf32>
    %587 = vector.extract_strided_slice %557 {offsets = [0, 0], sizes = [8, 32], strides = [1, 1]} : vector<8x48xf32> to vector<8x32xf32>
    %588 = arith.addf %586, %587 : vector<8x32xf32>
    %589 = arith.negf %588 : vector<8x32xf32>
    %590 = math.exp %589 : vector<8x32xf32>
    %cst_158 = arith.constant 1.000000e+00 : f32
    %591 = vector.broadcast %cst_158 : f32 to vector<8x32xf32>
    %592 = arith.addf %591, %590 : vector<8x32xf32>
    %593 = arith.divf %591, %592 : vector<8x32xf32>
    %594 = vector.extract_strided_slice %593 {offsets = [0, 0], sizes = [8, 16], strides = [1, 1]} : vector<8x32xf32> to vector<8x16xf32>
    %595 = vector.extract_strided_slice %593 {offsets = [0, 16], sizes = [8, 16], strides = [1, 1]} : vector<8x32xf32> to vector<8x16xf32>
    %596 = vector.extract_strided_slice %556 {offsets = [0, 32], sizes = [8, 16], strides = [1, 1]} : vector<8x48xf32> to vector<8x16xf32>
    %597 = vector.extract_strided_slice %557 {offsets = [0, 32], sizes = [8, 16], strides = [1, 1]} : vector<8x48xf32> to vector<8x16xf32>
    %598 = arith.mulf %594, %597 : vector<8x16xf32>
    %599 = arith.addf %596, %598 : vector<8x16xf32>
    %600 = math.tanh %599 : vector<8x16xf32>
    %cst_159 = arith.constant 1.000000e+00 : f32
    %601 = vector.broadcast %cst_159 : f32 to vector<8x16xf32>
    %602 = arith.subf %601, %595 : vector<8x16xf32>
    %603 = arith.mulf %602, %600 : vector<8x16xf32>
    %604 = arith.mulf %595, %547 : vector<8x16xf32>
    %605 = arith.addf %603, %604 : vector<8x16xf32>
    %606 = tpu.concatenate %605, %585, %546 in 1 : vector<8x16xf32>, vector<8x16xf32>, vector<8x8xf32> -> vector<8x40xf32>
    %607 = arith.index_cast %c4_i32_149 : i32 to index
    %608 = memref.load %arg0[%607] : memref<7xf32, #tpu.memory_space<smem>>
    %cst_160 = arith.constant dense<0.000000e+00> : vector<8x32xf32>
    %609 = tpu.matmul %606, %1, %cst_160 {dimension_numbers = #tpu.dot_dimension_numbers<[1], [0], [0], [1], [0, 0, 1, 1], [], []>} : vector<8x40xf32>, vector<40x32xf32>, vector<8x32xf32> -> vector<8x32xf32>
    %610 = arith.addf %609, %5 : vector<8x32xf32>
    %cst_161 = arith.constant 0.000000e+00 : f32
    %611 = vector.broadcast %cst_161 : f32 to vector<8x32xf32>
    %612 = arith.cmpf oge, %610, %611 : vector<8x32xf32>
    %cst_162 = arith.constant 0.00999999977 : f32
    %613 = vector.broadcast %cst_162 : f32 to vector<8x32xf32>
    %614 = arith.mulf %613, %610 : vector<8x32xf32>
    %615 = arith.select %612, %610, %614 : vector<8x32xi1>, vector<8x32xf32>
    %cst_163 = arith.constant dense<0.000000e+00> : vector<8x40xf32>
    %616 = tpu.matmul %615, %2, %cst_163 {dimension_numbers = #tpu.dot_dimension_numbers<[1], [0], [0], [1], [0, 0, 1, 1], [], []>} : vector<8x32xf32>, vector<32x40xf32>, vector<8x40xf32> -> vector<8x40xf32>
    %617 = arith.addf %616, %8 : vector<8x40xf32>
    %cst_164 = arith.constant 0.333333343 : f32
    %618 = arith.mulf %608, %cst_164 : f32
    %619 = vector.broadcast %618 : f32 to vector<8x40xf32>
    %620 = arith.mulf %619, %617 : vector<8x40xf32>
    %621 = arith.addf %606, %620 : vector<8x40xf32>
    %cst_165 = arith.constant dense<0.000000e+00> : vector<8x32xf32>
    %622 = tpu.matmul %621, %1, %cst_165 {dimension_numbers = #tpu.dot_dimension_numbers<[1], [0], [0], [1], [0, 0, 1, 1], [], []>} : vector<8x40xf32>, vector<40x32xf32>, vector<8x32xf32> -> vector<8x32xf32>
    %623 = arith.addf %622, %5 : vector<8x32xf32>
    %cst_166 = arith.constant 0.000000e+00 : f32
    %624 = vector.broadcast %cst_166 : f32 to vector<8x32xf32>
    %625 = arith.cmpf oge, %623, %624 : vector<8x32xf32>
    %cst_167 = arith.constant 0.00999999977 : f32
    %626 = vector.broadcast %cst_167 : f32 to vector<8x32xf32>
    %627 = arith.mulf %626, %623 : vector<8x32xf32>
    %628 = arith.select %625, %623, %627 : vector<8x32xi1>, vector<8x32xf32>
    %cst_168 = arith.constant dense<0.000000e+00> : vector<8x40xf32>
    %629 = tpu.matmul %628, %2, %cst_168 {dimension_numbers = #tpu.dot_dimension_numbers<[1], [0], [0], [1], [0, 0, 1, 1], [], []>} : vector<8x32xf32>, vector<32x40xf32>, vector<8x40xf32> -> vector<8x40xf32>
    %630 = arith.addf %629, %8 : vector<8x40xf32>
    %cst_169 = arith.constant 0.333333343 : f32
    %631 = vector.broadcast %cst_169 : f32 to vector<8x40xf32>
    %632 = arith.mulf %631, %617 : vector<8x40xf32>
    %633 = arith.subf %630, %632 : vector<8x40xf32>
    %634 = vector.broadcast %608 : f32 to vector<8x40xf32>
    %635 = arith.mulf %634, %633 : vector<8x40xf32>
    %636 = arith.addf %606, %635 : vector<8x40xf32>
    %cst_170 = arith.constant dense<0.000000e+00> : vector<8x32xf32>
    %637 = tpu.matmul %636, %1, %cst_170 {dimension_numbers = #tpu.dot_dimension_numbers<[1], [0], [0], [1], [0, 0, 1, 1], [], []>} : vector<8x40xf32>, vector<40x32xf32>, vector<8x32xf32> -> vector<8x32xf32>
    %638 = arith.addf %637, %5 : vector<8x32xf32>
    %cst_171 = arith.constant 0.000000e+00 : f32
    %639 = vector.broadcast %cst_171 : f32 to vector<8x32xf32>
    %640 = arith.cmpf oge, %638, %639 : vector<8x32xf32>
    %cst_172 = arith.constant 0.00999999977 : f32
    %641 = vector.broadcast %cst_172 : f32 to vector<8x32xf32>
    %642 = arith.mulf %641, %638 : vector<8x32xf32>
    %643 = arith.select %640, %638, %642 : vector<8x32xi1>, vector<8x32xf32>
    %cst_173 = arith.constant dense<0.000000e+00> : vector<8x40xf32>
    %644 = tpu.matmul %643, %2, %cst_173 {dimension_numbers = #tpu.dot_dimension_numbers<[1], [0], [0], [1], [0, 0, 1, 1], [], []>} : vector<8x32xf32>, vector<32x40xf32>, vector<8x40xf32> -> vector<8x40xf32>
    %645 = arith.addf %644, %8 : vector<8x40xf32>
    %646 = arith.subf %617, %630 : vector<8x40xf32>
    %647 = arith.addf %646, %645 : vector<8x40xf32>
    %648 = vector.broadcast %608 : f32 to vector<8x40xf32>
    %649 = arith.mulf %648, %647 : vector<8x40xf32>
    %650 = arith.addf %606, %649 : vector<8x40xf32>
    %cst_174 = arith.constant dense<0.000000e+00> : vector<8x32xf32>
    %651 = tpu.matmul %650, %1, %cst_174 {dimension_numbers = #tpu.dot_dimension_numbers<[1], [0], [0], [1], [0, 0, 1, 1], [], []>} : vector<8x40xf32>, vector<40x32xf32>, vector<8x32xf32> -> vector<8x32xf32>
    %652 = arith.addf %651, %5 : vector<8x32xf32>
    %cst_175 = arith.constant 0.000000e+00 : f32
    %653 = vector.broadcast %cst_175 : f32 to vector<8x32xf32>
    %654 = arith.cmpf oge, %652, %653 : vector<8x32xf32>
    %cst_176 = arith.constant 0.00999999977 : f32
    %655 = vector.broadcast %cst_176 : f32 to vector<8x32xf32>
    %656 = arith.mulf %655, %652 : vector<8x32xf32>
    %657 = arith.select %654, %652, %656 : vector<8x32xi1>, vector<8x32xf32>
    %cst_177 = arith.constant dense<0.000000e+00> : vector<8x40xf32>
    %658 = tpu.matmul %657, %2, %cst_177 {dimension_numbers = #tpu.dot_dimension_numbers<[1], [0], [0], [1], [0, 0, 1, 1], [], []>} : vector<8x32xf32>, vector<32x40xf32>, vector<8x40xf32> -> vector<8x40xf32>
    %659 = arith.addf %658, %8 : vector<8x40xf32>
    %660 = arith.addf %630, %645 : vector<8x40xf32>
    %cst_178 = arith.constant 3.000000e+00 : f32
    %661 = vector.broadcast %cst_178 : f32 to vector<8x40xf32>
    %662 = arith.mulf %661, %660 : vector<8x40xf32>
    %663 = arith.addf %617, %662 : vector<8x40xf32>
    %664 = arith.addf %663, %659 : vector<8x40xf32>
    %cst_179 = arith.constant 1.250000e-01 : f32
    %665 = arith.mulf %608, %cst_179 : f32
    %666 = vector.broadcast %665 : f32 to vector<8x40xf32>
    %667 = arith.mulf %664, %666 : vector<8x40xf32>
    %668 = arith.addf %606, %667 : vector<8x40xf32>
    %669 = vector.extract_strided_slice %668 {offsets = [0, 32], sizes = [8, 8], strides = [1, 1]} : vector<8x40xf32> to vector<8x8xf32>
    %670 = tpu.concatenate %669, %585, %9 in 1 : vector<8x8xf32>, vector<8x16xf32>, vector<8x104xf32> -> vector<8x128xf32>
    %671 = arith.index_cast %c4_i32_149 : i32 to index
    %c0_180 = arith.constant 0 : index
    %c0_181 = arith.constant 0 : index
    %672 = vector.load %arg9[%671, %c0_180, %c0_181] : memref<7x8x128xf32, #tpu.memory_space<vmem>>, vector<1x8x128xf32>
    %673 = vector.shape_cast %672 : vector<1x8x128xf32> to vector<8x128xf32>
    %674 = vector.shape_cast %670 : vector<8x128xf32> to vector<1x8x128xf32>
    tpu.vector_store %arg9[%671, %c0_180, %c0_181], %674 {strides = array<i32>} : memref<7x8x128xf32, #tpu.memory_space<vmem>>, vector<1x8x128xf32>,
    %c5_i32 = arith.constant 5 : i32
    %675 = vector.extract_strided_slice %668 {offsets = [0, 32], sizes = [8, 8], strides = [1, 1]} : vector<8x40xf32> to vector<8x8xf32>
    %676 = vector.extract_strided_slice %668 {offsets = [0, 0], sizes = [8, 16], strides = [1, 1]} : vector<8x40xf32> to vector<8x16xf32>
    %677 = vector.extract_strided_slice %668 {offsets = [0, 16], sizes = [8, 16], strides = [1, 1]} : vector<8x40xf32> to vector<8x16xf32>
    %cst_182 = arith.constant dense<0.000000e+00> : vector<8x192xf32>
    %678 = tpu.matmul %668, %0, %cst_182 {dimension_numbers = #tpu.dot_dimension_numbers<[1], [0], [0], [1], [0, 0, 1, 1], [], []>} : vector<8x40xf32>, vector<40x192xf32>, vector<8x192xf32> -> vector<8x192xf32>
    %679 = arith.index_cast %c5_i32 : i32 to index
    %c0_183 = arith.constant 0 : index
    %c0_184 = arith.constant 0 : index
    %680 = vector.load %arg2[%679, %c0_183, %c0_184] : memref<7x8x192xf32, #tpu.memory_space<vmem>>, vector<1x8x192xf32>
    %681 = vector.shape_cast %680 : vector<1x8x192xf32> to vector<8x192xf32>
    %682 = arith.addf %678, %681 : vector<8x192xf32>
    %683 = vector.extract_strided_slice %682 {offsets = [0, 0], sizes = [8, 48], strides = [1, 1]} : vector<8x192xf32> to vector<8x48xf32>
    %684 = vector.extract_strided_slice %682 {offsets = [0, 48], sizes = [8, 48], strides = [1, 1]} : vector<8x192xf32> to vector<8x48xf32>
    %685 = vector.extract_strided_slice %682 {offsets = [0, 96], sizes = [8, 48], strides = [1, 1]} : vector<8x192xf32> to vector<8x48xf32>
    %686 = vector.extract_strided_slice %682 {offsets = [0, 144], sizes = [8, 48], strides = [1, 1]} : vector<8x192xf32> to vector<8x48xf32>
    %687 = vector.extract_strided_slice %683 {offsets = [0, 0], sizes = [8, 32], strides = [1, 1]} : vector<8x48xf32> to vector<8x32xf32>
    %688 = vector.extract_strided_slice %684 {offsets = [0, 0], sizes = [8, 32], strides = [1, 1]} : vector<8x48xf32> to vector<8x32xf32>
    %689 = arith.addf %687, %688 : vector<8x32xf32>
    %690 = arith.negf %689 : vector<8x32xf32>
    %691 = math.exp %690 : vector<8x32xf32>
    %cst_185 = arith.constant 1.000000e+00 : f32
    %692 = vector.broadcast %cst_185 : f32 to vector<8x32xf32>
    %693 = arith.addf %692, %691 : vector<8x32xf32>
    %694 = arith.divf %692, %693 : vector<8x32xf32>
    %695 = vector.extract_strided_slice %694 {offsets = [0, 0], sizes = [8, 16], strides = [1, 1]} : vector<8x32xf32> to vector<8x16xf32>
    %696 = vector.extract_strided_slice %694 {offsets = [0, 16], sizes = [8, 16], strides = [1, 1]} : vector<8x32xf32> to vector<8x16xf32>
    %697 = vector.extract_strided_slice %683 {offsets = [0, 32], sizes = [8, 16], strides = [1, 1]} : vector<8x48xf32> to vector<8x16xf32>
    %698 = vector.extract_strided_slice %684 {offsets = [0, 32], sizes = [8, 16], strides = [1, 1]} : vector<8x48xf32> to vector<8x16xf32>
    %699 = arith.mulf %695, %698 : vector<8x16xf32>
    %700 = arith.addf %697, %699 : vector<8x16xf32>
    %701 = math.tanh %700 : vector<8x16xf32>
    %cst_186 = arith.constant 1.000000e+00 : f32
    %702 = vector.broadcast %cst_186 : f32 to vector<8x16xf32>
    %703 = arith.subf %702, %696 : vector<8x16xf32>
    %704 = arith.mulf %703, %701 : vector<8x16xf32>
    %705 = arith.mulf %696, %677 : vector<8x16xf32>
    %706 = arith.addf %704, %705 : vector<8x16xf32>
    %707 = arith.index_cast %c5_i32 : i32 to index
    %c0_187 = arith.constant 0 : index
    %c0_188 = arith.constant 0 : index
    %708 = vector.load %arg3[%707, %c0_187, %c0_188] : memref<7x8x16xf32, #tpu.memory_space<vmem>>, vector<1x8x16xf32>
    %709 = vector.shape_cast %708 : vector<1x8x16xf32> to vector<8x16xf32>
    %710 = arith.mulf %709, %706 : vector<8x16xf32>
    %cst_189 = arith.constant 1.000000e+00 : f32
    %711 = vector.broadcast %cst_189 : f32 to vector<8x16xf32>
    %712 = arith.subf %711, %709 : vector<8x16xf32>
    %713 = arith.mulf %712, %677 : vector<8x16xf32>
    %714 = arith.addf %710, %713 : vector<8x16xf32>
    %715 = vector.extract_strided_slice %685 {offsets = [0, 0], sizes = [8, 32], strides = [1, 1]} : vector<8x48xf32> to vector<8x32xf32>
    %716 = vector.extract_strided_slice %686 {offsets = [0, 0], sizes = [8, 32], strides = [1, 1]} : vector<8x48xf32> to vector<8x32xf32>
    %717 = arith.addf %715, %716 : vector<8x32xf32>
    %718 = arith.negf %717 : vector<8x32xf32>
    %719 = math.exp %718 : vector<8x32xf32>
    %cst_190 = arith.constant 1.000000e+00 : f32
    %720 = vector.broadcast %cst_190 : f32 to vector<8x32xf32>
    %721 = arith.addf %720, %719 : vector<8x32xf32>
    %722 = arith.divf %720, %721 : vector<8x32xf32>
    %723 = vector.extract_strided_slice %722 {offsets = [0, 0], sizes = [8, 16], strides = [1, 1]} : vector<8x32xf32> to vector<8x16xf32>
    %724 = vector.extract_strided_slice %722 {offsets = [0, 16], sizes = [8, 16], strides = [1, 1]} : vector<8x32xf32> to vector<8x16xf32>
    %725 = vector.extract_strided_slice %685 {offsets = [0, 32], sizes = [8, 16], strides = [1, 1]} : vector<8x48xf32> to vector<8x16xf32>
    %726 = vector.extract_strided_slice %686 {offsets = [0, 32], sizes = [8, 16], strides = [1, 1]} : vector<8x48xf32> to vector<8x16xf32>
    %727 = arith.mulf %723, %726 : vector<8x16xf32>
    %728 = arith.addf %725, %727 : vector<8x16xf32>
    %729 = math.tanh %728 : vector<8x16xf32>
    %cst_191 = arith.constant 1.000000e+00 : f32
    %730 = vector.broadcast %cst_191 : f32 to vector<8x16xf32>
    %731 = arith.subf %730, %724 : vector<8x16xf32>
    %732 = arith.mulf %731, %729 : vector<8x16xf32>
    %733 = arith.mulf %724, %676 : vector<8x16xf32>
    %734 = arith.addf %732, %733 : vector<8x16xf32>
    %735 = tpu.concatenate %734, %714, %675 in 1 : vector<8x16xf32>, vector<8x16xf32>, vector<8x8xf32> -> vector<8x40xf32>
    %736 = arith.index_cast %c5_i32 : i32 to index
    %737 = memref.load %arg0[%736] : memref<7xf32, #tpu.memory_space<smem>>
    %cst_192 = arith.constant dense<0.000000e+00> : vector<8x32xf32>
    %738 = tpu.matmul %735, %1, %cst_192 {dimension_numbers = #tpu.dot_dimension_numbers<[1], [0], [0], [1], [0, 0, 1, 1], [], []>} : vector<8x40xf32>, vector<40x32xf32>, vector<8x32xf32> -> vector<8x32xf32>
    %739 = arith.addf %738, %5 : vector<8x32xf32>
    %cst_193 = arith.constant 0.000000e+00 : f32
    %740 = vector.broadcast %cst_193 : f32 to vector<8x32xf32>
    %741 = arith.cmpf oge, %739, %740 : vector<8x32xf32>
    %cst_194 = arith.constant 0.00999999977 : f32
    %742 = vector.broadcast %cst_194 : f32 to vector<8x32xf32>
    %743 = arith.mulf %742, %739 : vector<8x32xf32>
    %744 = arith.select %741, %739, %743 : vector<8x32xi1>, vector<8x32xf32>
    %cst_195 = arith.constant dense<0.000000e+00> : vector<8x40xf32>
    %745 = tpu.matmul %744, %2, %cst_195 {dimension_numbers = #tpu.dot_dimension_numbers<[1], [0], [0], [1], [0, 0, 1, 1], [], []>} : vector<8x32xf32>, vector<32x40xf32>, vector<8x40xf32> -> vector<8x40xf32>
    %746 = arith.addf %745, %8 : vector<8x40xf32>
    %cst_196 = arith.constant 0.333333343 : f32
    %747 = arith.mulf %737, %cst_196 : f32
    %748 = vector.broadcast %747 : f32 to vector<8x40xf32>
    %749 = arith.mulf %748, %746 : vector<8x40xf32>
    %750 = arith.addf %735, %749 : vector<8x40xf32>
    %cst_197 = arith.constant dense<0.000000e+00> : vector<8x32xf32>
    %751 = tpu.matmul %750, %1, %cst_197 {dimension_numbers = #tpu.dot_dimension_numbers<[1], [0], [0], [1], [0, 0, 1, 1], [], []>} : vector<8x40xf32>, vector<40x32xf32>, vector<8x32xf32> -> vector<8x32xf32>
    %752 = arith.addf %751, %5 : vector<8x32xf32>
    %cst_198 = arith.constant 0.000000e+00 : f32
    %753 = vector.broadcast %cst_198 : f32 to vector<8x32xf32>
    %754 = arith.cmpf oge, %752, %753 : vector<8x32xf32>
    %cst_199 = arith.constant 0.00999999977 : f32
    %755 = vector.broadcast %cst_199 : f32 to vector<8x32xf32>
    %756 = arith.mulf %755, %752 : vector<8x32xf32>
    %757 = arith.select %754, %752, %756 : vector<8x32xi1>, vector<8x32xf32>
    %cst_200 = arith.constant dense<0.000000e+00> : vector<8x40xf32>
    %758 = tpu.matmul %757, %2, %cst_200 {dimension_numbers = #tpu.dot_dimension_numbers<[1], [0], [0], [1], [0, 0, 1, 1], [], []>} : vector<8x32xf32>, vector<32x40xf32>, vector<8x40xf32> -> vector<8x40xf32>
    %759 = arith.addf %758, %8 : vector<8x40xf32>
    %cst_201 = arith.constant 0.333333343 : f32
    %760 = vector.broadcast %cst_201 : f32 to vector<8x40xf32>
    %761 = arith.mulf %760, %746 : vector<8x40xf32>
    %762 = arith.subf %759, %761 : vector<8x40xf32>
    %763 = vector.broadcast %737 : f32 to vector<8x40xf32>
    %764 = arith.mulf %763, %762 : vector<8x40xf32>
    %765 = arith.addf %735, %764 : vector<8x40xf32>
    %cst_202 = arith.constant dense<0.000000e+00> : vector<8x32xf32>
    %766 = tpu.matmul %765, %1, %cst_202 {dimension_numbers = #tpu.dot_dimension_numbers<[1], [0], [0], [1], [0, 0, 1, 1], [], []>} : vector<8x40xf32>, vector<40x32xf32>, vector<8x32xf32> -> vector<8x32xf32>
    %767 = arith.addf %766, %5 : vector<8x32xf32>
    %cst_203 = arith.constant 0.000000e+00 : f32
    %768 = vector.broadcast %cst_203 : f32 to vector<8x32xf32>
    %769 = arith.cmpf oge, %767, %768 : vector<8x32xf32>
    %cst_204 = arith.constant 0.00999999977 : f32
    %770 = vector.broadcast %cst_204 : f32 to vector<8x32xf32>
    %771 = arith.mulf %770, %767 : vector<8x32xf32>
    %772 = arith.select %769, %767, %771 : vector<8x32xi1>, vector<8x32xf32>
    %cst_205 = arith.constant dense<0.000000e+00> : vector<8x40xf32>
    %773 = tpu.matmul %772, %2, %cst_205 {dimension_numbers = #tpu.dot_dimension_numbers<[1], [0], [0], [1], [0, 0, 1, 1], [], []>} : vector<8x32xf32>, vector<32x40xf32>, vector<8x40xf32> -> vector<8x40xf32>
    %774 = arith.addf %773, %8 : vector<8x40xf32>
    %775 = arith.subf %746, %759 : vector<8x40xf32>
    %776 = arith.addf %775, %774 : vector<8x40xf32>
    %777 = vector.broadcast %737 : f32 to vector<8x40xf32>
    %778 = arith.mulf %777, %776 : vector<8x40xf32>
    %779 = arith.addf %735, %778 : vector<8x40xf32>
    %cst_206 = arith.constant dense<0.000000e+00> : vector<8x32xf32>
    %780 = tpu.matmul %779, %1, %cst_206 {dimension_numbers = #tpu.dot_dimension_numbers<[1], [0], [0], [1], [0, 0, 1, 1], [], []>} : vector<8x40xf32>, vector<40x32xf32>, vector<8x32xf32> -> vector<8x32xf32>
    %781 = arith.addf %780, %5 : vector<8x32xf32>
    %cst_207 = arith.constant 0.000000e+00 : f32
    %782 = vector.broadcast %cst_207 : f32 to vector<8x32xf32>
    %783 = arith.cmpf oge, %781, %782 : vector<8x32xf32>
    %cst_208 = arith.constant 0.00999999977 : f32
    %784 = vector.broadcast %cst_208 : f32 to vector<8x32xf32>
    %785 = arith.mulf %784, %781 : vector<8x32xf32>
    %786 = arith.select %783, %781, %785 : vector<8x32xi1>, vector<8x32xf32>
    %cst_209 = arith.constant dense<0.000000e+00> : vector<8x40xf32>
    %787 = tpu.matmul %786, %2, %cst_209 {dimension_numbers = #tpu.dot_dimension_numbers<[1], [0], [0], [1], [0, 0, 1, 1], [], []>} : vector<8x32xf32>, vector<32x40xf32>, vector<8x40xf32> -> vector<8x40xf32>
    %788 = arith.addf %787, %8 : vector<8x40xf32>
    %789 = arith.addf %759, %774 : vector<8x40xf32>
    %cst_210 = arith.constant 3.000000e+00 : f32
    %790 = vector.broadcast %cst_210 : f32 to vector<8x40xf32>
    %791 = arith.mulf %790, %789 : vector<8x40xf32>
    %792 = arith.addf %746, %791 : vector<8x40xf32>
    %793 = arith.addf %792, %788 : vector<8x40xf32>
    %cst_211 = arith.constant 1.250000e-01 : f32
    %794 = arith.mulf %737, %cst_211 : f32
    %795 = vector.broadcast %794 : f32 to vector<8x40xf32>
    %796 = arith.mulf %793, %795 : vector<8x40xf32>
    %797 = arith.addf %735, %796 : vector<8x40xf32>
    %798 = vector.extract_strided_slice %797 {offsets = [0, 32], sizes = [8, 8], strides = [1, 1]} : vector<8x40xf32> to vector<8x8xf32>
    %799 = tpu.concatenate %798, %714, %9 in 1 : vector<8x8xf32>, vector<8x16xf32>, vector<8x104xf32> -> vector<8x128xf32>
    %800 = arith.index_cast %c5_i32 : i32 to index
    %c0_212 = arith.constant 0 : index
    %c0_213 = arith.constant 0 : index
    %801 = vector.load %arg9[%800, %c0_212, %c0_213] : memref<7x8x128xf32, #tpu.memory_space<vmem>>, vector<1x8x128xf32>
    %802 = vector.shape_cast %801 : vector<1x8x128xf32> to vector<8x128xf32>
    %803 = vector.shape_cast %799 : vector<8x128xf32> to vector<1x8x128xf32>
    tpu.vector_store %arg9[%800, %c0_212, %c0_213], %803 {strides = array<i32>} : memref<7x8x128xf32, #tpu.memory_space<vmem>>, vector<1x8x128xf32>,
    %c6_i32 = arith.constant 6 : i32
    %804 = vector.extract_strided_slice %797 {offsets = [0, 32], sizes = [8, 8], strides = [1, 1]} : vector<8x40xf32> to vector<8x8xf32>
    %805 = vector.extract_strided_slice %797 {offsets = [0, 0], sizes = [8, 16], strides = [1, 1]} : vector<8x40xf32> to vector<8x16xf32>
    %806 = vector.extract_strided_slice %797 {offsets = [0, 16], sizes = [8, 16], strides = [1, 1]} : vector<8x40xf32> to vector<8x16xf32>
    %cst_214 = arith.constant dense<0.000000e+00> : vector<8x192xf32>
    %807 = tpu.matmul %797, %0, %cst_214 {dimension_numbers = #tpu.dot_dimension_numbers<[1], [0], [0], [1], [0, 0, 1, 1], [], []>} : vector<8x40xf32>, vector<40x192xf32>, vector<8x192xf32> -> vector<8x192xf32>
    %808 = arith.index_cast %c6_i32 : i32 to index
    %c0_215 = arith.constant 0 : index
    %c0_216 = arith.constant 0 : index
    %809 = vector.load %arg2[%808, %c0_215, %c0_216] : memref<7x8x192xf32, #tpu.memory_space<vmem>>, vector<1x8x192xf32>
    %810 = vector.shape_cast %809 : vector<1x8x192xf32> to vector<8x192xf32>
    %811 = arith.addf %807, %810 : vector<8x192xf32>
    %812 = vector.extract_strided_slice %811 {offsets = [0, 0], sizes = [8, 48], strides = [1, 1]} : vector<8x192xf32> to vector<8x48xf32>
    %813 = vector.extract_strided_slice %811 {offsets = [0, 48], sizes = [8, 48], strides = [1, 1]} : vector<8x192xf32> to vector<8x48xf32>
    %814 = vector.extract_strided_slice %811 {offsets = [0, 96], sizes = [8, 48], strides = [1, 1]} : vector<8x192xf32> to vector<8x48xf32>
    %815 = vector.extract_strided_slice %811 {offsets = [0, 144], sizes = [8, 48], strides = [1, 1]} : vector<8x192xf32> to vector<8x48xf32>
    %816 = vector.extract_strided_slice %812 {offsets = [0, 0], sizes = [8, 32], strides = [1, 1]} : vector<8x48xf32> to vector<8x32xf32>
    %817 = vector.extract_strided_slice %813 {offsets = [0, 0], sizes = [8, 32], strides = [1, 1]} : vector<8x48xf32> to vector<8x32xf32>
    %818 = arith.addf %816, %817 : vector<8x32xf32>
    %819 = arith.negf %818 : vector<8x32xf32>
    %820 = math.exp %819 : vector<8x32xf32>
    %cst_217 = arith.constant 1.000000e+00 : f32
    %821 = vector.broadcast %cst_217 : f32 to vector<8x32xf32>
    %822 = arith.addf %821, %820 : vector<8x32xf32>
    %823 = arith.divf %821, %822 : vector<8x32xf32>
    %824 = vector.extract_strided_slice %823 {offsets = [0, 0], sizes = [8, 16], strides = [1, 1]} : vector<8x32xf32> to vector<8x16xf32>
    %825 = vector.extract_strided_slice %823 {offsets = [0, 16], sizes = [8, 16], strides = [1, 1]} : vector<8x32xf32> to vector<8x16xf32>
    %826 = vector.extract_strided_slice %812 {offsets = [0, 32], sizes = [8, 16], strides = [1, 1]} : vector<8x48xf32> to vector<8x16xf32>
    %827 = vector.extract_strided_slice %813 {offsets = [0, 32], sizes = [8, 16], strides = [1, 1]} : vector<8x48xf32> to vector<8x16xf32>
    %828 = arith.mulf %824, %827 : vector<8x16xf32>
    %829 = arith.addf %826, %828 : vector<8x16xf32>
    %830 = math.tanh %829 : vector<8x16xf32>
    %cst_218 = arith.constant 1.000000e+00 : f32
    %831 = vector.broadcast %cst_218 : f32 to vector<8x16xf32>
    %832 = arith.subf %831, %825 : vector<8x16xf32>
    %833 = arith.mulf %832, %830 : vector<8x16xf32>
    %834 = arith.mulf %825, %806 : vector<8x16xf32>
    %835 = arith.addf %833, %834 : vector<8x16xf32>
    %836 = arith.index_cast %c6_i32 : i32 to index
    %c0_219 = arith.constant 0 : index
    %c0_220 = arith.constant 0 : index
    %837 = vector.load %arg3[%836, %c0_219, %c0_220] : memref<7x8x16xf32, #tpu.memory_space<vmem>>, vector<1x8x16xf32>
    %838 = vector.shape_cast %837 : vector<1x8x16xf32> to vector<8x16xf32>
    %839 = arith.mulf %838, %835 : vector<8x16xf32>
    %cst_221 = arith.constant 1.000000e+00 : f32
    %840 = vector.broadcast %cst_221 : f32 to vector<8x16xf32>
    %841 = arith.subf %840, %838 : vector<8x16xf32>
    %842 = arith.mulf %841, %806 : vector<8x16xf32>
    %843 = arith.addf %839, %842 : vector<8x16xf32>
    %844 = vector.extract_strided_slice %814 {offsets = [0, 0], sizes = [8, 32], strides = [1, 1]} : vector<8x48xf32> to vector<8x32xf32>
    %845 = vector.extract_strided_slice %815 {offsets = [0, 0], sizes = [8, 32], strides = [1, 1]} : vector<8x48xf32> to vector<8x32xf32>
    %846 = arith.addf %844, %845 : vector<8x32xf32>
    %847 = arith.negf %846 : vector<8x32xf32>
    %848 = math.exp %847 : vector<8x32xf32>
    %cst_222 = arith.constant 1.000000e+00 : f32
    %849 = vector.broadcast %cst_222 : f32 to vector<8x32xf32>
    %850 = arith.addf %849, %848 : vector<8x32xf32>
    %851 = arith.divf %849, %850 : vector<8x32xf32>
    %852 = vector.extract_strided_slice %851 {offsets = [0, 0], sizes = [8, 16], strides = [1, 1]} : vector<8x32xf32> to vector<8x16xf32>
    %853 = vector.extract_strided_slice %851 {offsets = [0, 16], sizes = [8, 16], strides = [1, 1]} : vector<8x32xf32> to vector<8x16xf32>
    %854 = vector.extract_strided_slice %814 {offsets = [0, 32], sizes = [8, 16], strides = [1, 1]} : vector<8x48xf32> to vector<8x16xf32>
    %855 = vector.extract_strided_slice %815 {offsets = [0, 32], sizes = [8, 16], strides = [1, 1]} : vector<8x48xf32> to vector<8x16xf32>
    %856 = arith.mulf %852, %855 : vector<8x16xf32>
    %857 = arith.addf %854, %856 : vector<8x16xf32>
    %858 = math.tanh %857 : vector<8x16xf32>
    %cst_223 = arith.constant 1.000000e+00 : f32
    %859 = vector.broadcast %cst_223 : f32 to vector<8x16xf32>
    %860 = arith.subf %859, %853 : vector<8x16xf32>
    %861 = arith.mulf %860, %858 : vector<8x16xf32>
    %862 = arith.mulf %853, %805 : vector<8x16xf32>
    %863 = arith.addf %861, %862 : vector<8x16xf32>
    %864 = tpu.concatenate %863, %843, %804 in 1 : vector<8x16xf32>, vector<8x16xf32>, vector<8x8xf32> -> vector<8x40xf32>
    %865 = arith.index_cast %c6_i32 : i32 to index
    %866 = memref.load %arg0[%865] : memref<7xf32, #tpu.memory_space<smem>>
    %cst_224 = arith.constant dense<0.000000e+00> : vector<8x32xf32>
    %867 = tpu.matmul %864, %1, %cst_224 {dimension_numbers = #tpu.dot_dimension_numbers<[1], [0], [0], [1], [0, 0, 1, 1], [], []>} : vector<8x40xf32>, vector<40x32xf32>, vector<8x32xf32> -> vector<8x32xf32>
    %868 = arith.addf %867, %5 : vector<8x32xf32>
    %cst_225 = arith.constant 0.000000e+00 : f32
    %869 = vector.broadcast %cst_225 : f32 to vector<8x32xf32>
    %870 = arith.cmpf oge, %868, %869 : vector<8x32xf32>
    %cst_226 = arith.constant 0.00999999977 : f32
    %871 = vector.broadcast %cst_226 : f32 to vector<8x32xf32>
    %872 = arith.mulf %871, %868 : vector<8x32xf32>
    %873 = arith.select %870, %868, %872 : vector<8x32xi1>, vector<8x32xf32>
    %cst_227 = arith.constant dense<0.000000e+00> : vector<8x40xf32>
    %874 = tpu.matmul %873, %2, %cst_227 {dimension_numbers = #tpu.dot_dimension_numbers<[1], [0], [0], [1], [0, 0, 1, 1], [], []>} : vector<8x32xf32>, vector<32x40xf32>, vector<8x40xf32> -> vector<8x40xf32>
    %875 = arith.addf %874, %8 : vector<8x40xf32>
    %cst_228 = arith.constant 0.333333343 : f32
    %876 = arith.mulf %866, %cst_228 : f32
    %877 = vector.broadcast %876 : f32 to vector<8x40xf32>
    %878 = arith.mulf %877, %875 : vector<8x40xf32>
    %879 = arith.addf %864, %878 : vector<8x40xf32>
    %cst_229 = arith.constant dense<0.000000e+00> : vector<8x32xf32>
    %880 = tpu.matmul %879, %1, %cst_229 {dimension_numbers = #tpu.dot_dimension_numbers<[1], [0], [0], [1], [0, 0, 1, 1], [], []>} : vector<8x40xf32>, vector<40x32xf32>, vector<8x32xf32> -> vector<8x32xf32>
    %881 = arith.addf %880, %5 : vector<8x32xf32>
    %cst_230 = arith.constant 0.000000e+00 : f32
    %882 = vector.broadcast %cst_230 : f32 to vector<8x32xf32>
    %883 = arith.cmpf oge, %881, %882 : vector<8x32xf32>
    %cst_231 = arith.constant 0.00999999977 : f32
    %884 = vector.broadcast %cst_231 : f32 to vector<8x32xf32>
    %885 = arith.mulf %884, %881 : vector<8x32xf32>
    %886 = arith.select %883, %881, %885 : vector<8x32xi1>, vector<8x32xf32>
    %cst_232 = arith.constant dense<0.000000e+00> : vector<8x40xf32>
    %887 = tpu.matmul %886, %2, %cst_232 {dimension_numbers = #tpu.dot_dimension_numbers<[1], [0], [0], [1], [0, 0, 1, 1], [], []>} : vector<8x32xf32>, vector<32x40xf32>, vector<8x40xf32> -> vector<8x40xf32>
    %888 = arith.addf %887, %8 : vector<8x40xf32>
    %cst_233 = arith.constant 0.333333343 : f32
    %889 = vector.broadcast %cst_233 : f32 to vector<8x40xf32>
    %890 = arith.mulf %889, %875 : vector<8x40xf32>
    %891 = arith.subf %888, %890 : vector<8x40xf32>
    %892 = vector.broadcast %866 : f32 to vector<8x40xf32>
    %893 = arith.mulf %892, %891 : vector<8x40xf32>
    %894 = arith.addf %864, %893 : vector<8x40xf32>
    %cst_234 = arith.constant dense<0.000000e+00> : vector<8x32xf32>
    %895 = tpu.matmul %894, %1, %cst_234 {dimension_numbers = #tpu.dot_dimension_numbers<[1], [0], [0], [1], [0, 0, 1, 1], [], []>} : vector<8x40xf32>, vector<40x32xf32>, vector<8x32xf32> -> vector<8x32xf32>
    %896 = arith.addf %895, %5 : vector<8x32xf32>
    %cst_235 = arith.constant 0.000000e+00 : f32
    %897 = vector.broadcast %cst_235 : f32 to vector<8x32xf32>
    %898 = arith.cmpf oge, %896, %897 : vector<8x32xf32>
    %cst_236 = arith.constant 0.00999999977 : f32
    %899 = vector.broadcast %cst_236 : f32 to vector<8x32xf32>
    %900 = arith.mulf %899, %896 : vector<8x32xf32>
    %901 = arith.select %898, %896, %900 : vector<8x32xi1>, vector<8x32xf32>
    %cst_237 = arith.constant dense<0.000000e+00> : vector<8x40xf32>
    %902 = tpu.matmul %901, %2, %cst_237 {dimension_numbers = #tpu.dot_dimension_numbers<[1], [0], [0], [1], [0, 0, 1, 1], [], []>} : vector<8x32xf32>, vector<32x40xf32>, vector<8x40xf32> -> vector<8x40xf32>
    %903 = arith.addf %902, %8 : vector<8x40xf32>
    %904 = arith.subf %875, %888 : vector<8x40xf32>
    %905 = arith.addf %904, %903 : vector<8x40xf32>
    %906 = vector.broadcast %866 : f32 to vector<8x40xf32>
    %907 = arith.mulf %906, %905 : vector<8x40xf32>
    %908 = arith.addf %864, %907 : vector<8x40xf32>
    %cst_238 = arith.constant dense<0.000000e+00> : vector<8x32xf32>
    %909 = tpu.matmul %908, %1, %cst_238 {dimension_numbers = #tpu.dot_dimension_numbers<[1], [0], [0], [1], [0, 0, 1, 1], [], []>} : vector<8x40xf32>, vector<40x32xf32>, vector<8x32xf32> -> vector<8x32xf32>
    %910 = arith.addf %909, %5 : vector<8x32xf32>
    %cst_239 = arith.constant 0.000000e+00 : f32
    %911 = vector.broadcast %cst_239 : f32 to vector<8x32xf32>
    %912 = arith.cmpf oge, %910, %911 : vector<8x32xf32>
    %cst_240 = arith.constant 0.00999999977 : f32
    %913 = vector.broadcast %cst_240 : f32 to vector<8x32xf32>
    %914 = arith.mulf %913, %910 : vector<8x32xf32>
    %915 = arith.select %912, %910, %914 : vector<8x32xi1>, vector<8x32xf32>
    %cst_241 = arith.constant dense<0.000000e+00> : vector<8x40xf32>
    %916 = tpu.matmul %915, %2, %cst_241 {dimension_numbers = #tpu.dot_dimension_numbers<[1], [0], [0], [1], [0, 0, 1, 1], [], []>} : vector<8x32xf32>, vector<32x40xf32>, vector<8x40xf32> -> vector<8x40xf32>
    %917 = arith.addf %916, %8 : vector<8x40xf32>
    %918 = arith.addf %888, %903 : vector<8x40xf32>
    %cst_242 = arith.constant 3.000000e+00 : f32
    %919 = vector.broadcast %cst_242 : f32 to vector<8x40xf32>
    %920 = arith.mulf %919, %918 : vector<8x40xf32>
    %921 = arith.addf %875, %920 : vector<8x40xf32>
    %922 = arith.addf %921, %917 : vector<8x40xf32>
    %cst_243 = arith.constant 1.250000e-01 : f32
    %923 = arith.mulf %866, %cst_243 : f32
    %924 = vector.broadcast %923 : f32 to vector<8x40xf32>
    %925 = arith.mulf %922, %924 : vector<8x40xf32>
    %926 = arith.addf %864, %925 : vector<8x40xf32>
    %927 = vector.extract_strided_slice %926 {offsets = [0, 32], sizes = [8, 8], strides = [1, 1]} : vector<8x40xf32> to vector<8x8xf32>
    %928 = tpu.concatenate %927, %843, %9 in 1 : vector<8x8xf32>, vector<8x16xf32>, vector<8x104xf32> -> vector<8x128xf32>
    %929 = arith.index_cast %c6_i32 : i32 to index
    %c0_244 = arith.constant 0 : index
    %c0_245 = arith.constant 0 : index
    %930 = vector.load %arg9[%929, %c0_244, %c0_245] : memref<7x8x128xf32, #tpu.memory_space<vmem>>, vector<1x8x128xf32>
    %931 = vector.shape_cast %930 : vector<1x8x128xf32> to vector<8x128xf32>
    %932 = vector.shape_cast %928 : vector<8x128xf32> to vector<1x8x128xf32>
    tpu.vector_store %arg9[%929, %c0_244, %c0_245], %932 {strides = array<i32>} : memref<7x8x128xf32, #tpu.memory_space<vmem>>, vector<1x8x128xf32>,
    %c3_i32_246 = arith.constant 3 : i32
    return
  }
}

</mosaic_0001>

<llo_original>
// kernel: tpu_custom_call.1
$region0: #{tpu_custom_call.1}
  #allocation0 [shape = 'u32[]', space=smem, size = 0x4, offset = 0x4, fixed_abs, tag = 'smem constant byte address 0x4 - core index']
  #allocation1 [shape = 'u32[144,128]{1,0:T(1,128)}', space=vmem, size = 0x12000, scoped, tag = 'internal scratch']
  %s0 = inlined_call_operand.vmem [shape: f32[7], index: 0, kind: input, shape index: {}]
  %s1 = inlined_call_operand.hbm [shape: f32[7,8,8], index: 1, kind: input, shape index: {}]
  %s2 = inlined_call_operand.hbm [shape: f32[7,8,192], index: 2, kind: input, shape index: {}]
  %s3 = inlined_call_operand.hbm [shape: f32[7,8,16], index: 3, kind: input, shape index: {}]
  %s4 = inlined_call_operand.vmem [shape: f32[40,192], index: 4, kind: input, shape index: {}]
  %s5 = inlined_call_operand.vmem [shape: f32[40,32], index: 5, kind: input, shape index: {}]
  %s6 = inlined_call_operand.vmem [shape: f32[1,32], index: 6, kind: input, shape index: {}]
  %s7 = inlined_call_operand.hbm [shape: f32[32,40], index: 7, kind: input, shape index: {}]
  %s8 = inlined_call_operand.vmem [shape: f32[1,40], index: 8, kind: input, shape index: {}]
  %s9 = inlined_call_operand.hbm [shape: f32[7,8,128], index: 9, kind: output, shape index: {}]
  %s10 = sld [smem:[#allocation0]]
  $region66: #{tpu_custom_call.1} parent=0
    _
  %s12 = ssub.s32 1, %s10
  %s13 = scalar_select 0, %s12, %s10
  $region1: #{tpu_custom_call.1} parent=0
    #allocation2 [shape = 'u8[512]{0}', space=smem, size = 0x200, scoped, tag = 'input window, operand 0, single buffered']
    #allocation3 [shape = 's32[1]{0}', space=sflag, size = 0x4, scoped, tag = 'scoped memory for tpu_custom_call.1']
    #allocation4 [shape = 's32[1]{0}', space=sflag, size = 0x4, scoped, tag = 'scoped memory for tpu_custom_call.1']
    #allocation5 [shape = 's32[1]{0}', space=sflag, size = 0x4, scoped, tag = 'scoped memory for tpu_custom_call.1']
    #allocation6 [shape = 'u8[28672]{0}', space=vmem, size = 0x7000, scoped, tag = 'input window, operand 1, single buffered']
    #allocation7 [shape = 'u8[57344]{0}', space=vmem, size = 0xe000, scoped, tag = 'input window, operand 2, single buffered']
    #allocation8 [shape = 's32[1]{0}', space=sflag, size = 0x4, scoped, tag = 'scoped memory for tpu_custom_call.1']
    #allocation9 [shape = 'u8[28672]{0}', space=vmem, size = 0x7000, scoped, tag = 'input window, operand 3, single buffered']
    #allocation10 [shape = 'u8[16384]{0}', space=vmem, size = 0x4000, scoped, tag = 'input window, operand 7, single buffered']
    #allocation11 [shape = 's32[1]{0}', space=sflag, size = 0x4, scoped, tag = 'scoped memory for tpu_custom_call.1']
    #allocation12 [shape = 'u8[28672]{0}', space=vmem, size = 0x7000, scoped, tag = 'output window, operand 0, single buffered']
    %14 = vsyncpa [#allocation5], 0
    %15 = vsyncpa [#allocation3], 0
    %16 = vsyncpa [#allocation8], 0
    %17 = vsyncpa [#allocation11], 0
    %18 = vsyncpa [#allocation4], 0
    // Predicated region
    $region2: #{tpu_custom_call.1} parent=1 // pred_check
      _
    $region3: #{tpu_custom_call.1} parent=1 // pred_check_branch
      %20 = sbr.rel (0) target = $region5
    $region4: #{tpu_custom_call.1} parent=1 // pred_region
      %s22 = ssub.s32 16, 16
      %23 = vsyncadd [#allocation5], %s22
      %s25 = sshll.u32 %s0, 4
      %s26 = int_to_ptr.vmem [resolvable:$true] %s25
      %28 = dma.vmem_to_smem %s26, 16, [#allocation2], [#allocation5]
    $region5: #{tpu_custom_call.1} parent=1 // pred_fallthru
      _
    // Predicated region
    $region6: #{tpu_custom_call.1} parent=1 // pred_check
      _
    $region7: #{tpu_custom_call.1} parent=1 // pred_check_branch
      %30 = sbr.rel (0) target = $region9
    $region8: #{tpu_custom_call.1} parent=1 // pred_region
      %s32 = ssub.s32 896, 896
      %33 = vsyncadd [#allocation3], %s32
      %s34 = sshll.u32 [#allocation6], 4
      %s35 = int_to_ptr.vmem [resolvable:$true] %s34
      %40 = dma.hbm_to_vmem [thread:$0]  %s1, 896, %s35, [#allocation3], 128, 128, 8
    $region9: #{tpu_custom_call.1} parent=1 // pred_fallthru
      _
    // Predicated region
    $region10: #{tpu_custom_call.1} parent=1 // pred_check
      _
    $region11: #{tpu_custom_call.1} parent=1 // pred_check_branch
      %42 = sbr.rel (0) target = $region13
    $region12: #{tpu_custom_call.1} parent=1 // pred_region
      %s44 = ssub.s32 1792, 1792
      %45 = vsyncadd [#allocation8], %s44
      %s46 = sshll.u32 [#allocation7], 4
      %s47 = int_to_ptr.vmem [resolvable:$true] %s46
      %52 = dma.hbm_to_vmem [thread:$0]  %s2, 1792, %s47, [#allocation8], 256, 256, 16
    $region13: #{tpu_custom_call.1} parent=1 // pred_fallthru
      _
    // Predicated region
    $region14: #{tpu_custom_call.1} parent=1 // pred_check
      _
    $region15: #{tpu_custom_call.1} parent=1 // pred_check_branch
      %54 = sbr.rel (0) target = $region17
    $region16: #{tpu_custom_call.1} parent=1 // pred_region
      %s56 = ssub.s32 896, 896
      %57 = vsyncadd [#allocation8], %s56
      %s58 = sshll.u32 [#allocation9], 4
      %s59 = int_to_ptr.vmem [resolvable:$true] %s58
      %64 = dma.hbm_to_vmem [thread:$0]  %s3, 896, %s59, [#allocation8], 128, 128, 8
    $region17: #{tpu_custom_call.1} parent=1 // pred_fallthru
      _
    // Predicated region
    $region18: #{tpu_custom_call.1} parent=1 // pred_check
      _
    $region19: #{tpu_custom_call.1} parent=1 // pred_check_branch
      %66 = sbr.rel (0) target = $region21
    $region20: #{tpu_custom_call.1} parent=1 // pred_region
      _
    $region21: #{tpu_custom_call.1} parent=1 // pred_fallthru
      _
    // Predicated region
    $region22: #{tpu_custom_call.1} parent=1 // pred_check
      _
    $region23: #{tpu_custom_call.1} parent=1 // pred_check_branch
      %68 = sbr.rel (0) target = $region25
    $region24: #{tpu_custom_call.1} parent=1 // pred_region
      _
    $region25: #{tpu_custom_call.1} parent=1 // pred_fallthru
      _
    // Predicated region
    $region26: #{tpu_custom_call.1} parent=1 // pred_check
      _
    $region27: #{tpu_custom_call.1} parent=1 // pred_check_branch
      %70 = sbr.rel (0) target = $region29
    $region28: #{tpu_custom_call.1} parent=1 // pred_region
      _
    $region29: #{tpu_custom_call.1} parent=1 // pred_fallthru
      _
    // Predicated region
    $region30: #{tpu_custom_call.1} parent=1 // pred_check
      _
    $region31: #{tpu_custom_call.1} parent=1 // pred_check_branch
      %72 = sbr.rel (0) target = $region33
    $region32: #{tpu_custom_call.1} parent=1 // pred_region
      %s74 = ssub.s32 512, 512
      %75 = vsyncadd [#allocation11], %s74
      %s76 = sshll.u32 [#allocation10], 4
      %s77 = int_to_ptr.vmem [resolvable:$true] %s76
      %82 = dma.hbm_to_vmem [thread:$0]  %s7, 512, %s77, [#allocation11], 128, 128, 8
    $region33: #{tpu_custom_call.1} parent=1 // pred_fallthru
      _
    // Predicated region
    $region34: #{tpu_custom_call.1} parent=1 // pred_check
      _
    $region35: #{tpu_custom_call.1} parent=1 // pred_check_branch
      %84 = sbr.rel (0) target = $region37
    $region36: #{tpu_custom_call.1} parent=1 // pred_region
      _
    $region37: #{tpu_custom_call.1} parent=1 // pred_fallthru
      _
    // Predicated region
    $region38: #{tpu_custom_call.1} parent=1 // pred_check
      _
    $region39: #{tpu_custom_call.1} parent=1 // pred_check_branch
      %86 = sbr.rel (0) target = $region41
    $region40: #{tpu_custom_call.1} parent=1 // pred_region
      %87 = dma.done [#allocation5], 16
    $region41: #{tpu_custom_call.1} parent=1 // pred_fallthru
      _
    // Predicated region
    $region42: #{tpu_custom_call.1} parent=1 // pred_check
      _
    $region43: #{tpu_custom_call.1} parent=1 // pred_check_branch
      %89 = sbr.rel (0) target = $region45
    $region44: #{tpu_custom_call.1} parent=1 // pred_region
      %90 = dma.done [#allocation3], 896
    $region45: #{tpu_custom_call.1} parent=1 // pred_fallthru
      _
    // Predicated region
    $region46: #{tpu_custom_call.1} parent=1 // pred_check
      _
    $region47: #{tpu_custom_call.1} parent=1 // pred_check_branch
      %92 = sbr.rel (0) target = $region49
    $region48: #{tpu_custom_call.1} parent=1 // pred_region
      %93 = dma.done [#allocation8], 1792
    $region49: #{tpu_custom_call.1} parent=1 // pred_fallthru
      _
    // Predicated region
    $region50: #{tpu_custom_call.1} parent=1 // pred_check
      _
    $region51: #{tpu_custom_call.1} parent=1 // pred_check_branch
      %95 = sbr.rel (0) target = $region53
    $region52: #{tpu_custom_call.1} parent=1 // pred_region
      %96 = dma.done [#allocation8], 896
    $region53: #{tpu_custom_call.1} parent=1 // pred_fallthru
      _
    // Predicated region
    $region54: #{tpu_custom_call.1} parent=1 // pred_check
      _
    $region55: #{tpu_custom_call.1} parent=1 // pred_check_branch
      %98 = sbr.rel (0) target = $region57
    $region56: #{tpu_custom_call.1} parent=1 // pred_region
      %99 = dma.done [#allocation11], 512
    $region57: #{tpu_custom_call.1} parent=1 // pred_fallthru
      _
    %100 = sfence
    %v101 = vld [vmem:[%s4] sm:$0xff]
    %v102 = vld [vmem:[%s4 + $0x8] sm:$0xff]
    %v103 = vld [vmem:[%s4 + $0x10] sm:$0xff]
    %v104 = vld [vmem:[%s4 + $0x18] sm:$0xff]
    %v105 = vld [vmem:[%s4 + $0x20] sm:$0xff]
    %v106 = vld [vmem:[%s4 + $0x28] sm:$0xff]
    %v107 = vld [vmem:[%s4 + $0x30] sm:$0xff]
    %v108 = vld [vmem:[%s4 + $0x38] sm:$0xff]
    %v109 = vld [vmem:[%s4 + $0x40] sm:$0xff]
    %v110 = vld [vmem:[%s4 + $0x48] sm:$0xff]
    %v111 = vld [vmem:[%s5] sm:$0xff]
    %v112 = vld [vmem:[%s5 + $0x8] sm:$0xff]
    %v113 = vld [vmem:[%s5 + $0x10] sm:$0xff]
    %v114 = vld [vmem:[%s5 + $0x18] sm:$0xff]
    %v115 = vld [vmem:[%s5 + $0x20] sm:$0xff]
    %v116 = vld [vmem:[#allocation10] sm:$0xff]
    %v117 = vld [vmem:[#allocation10 + $0x8] sm:$0xff]
    %v118 = vld [vmem:[#allocation10 + $0x10] sm:$0xff]
    %v119 = vld [vmem:[#allocation10 + $0x18] sm:$0xff]
    %v120 = vld [vmem:[%s6] sm:$0x1]
    %v122 = vlaneseq
    %v123 = vshrl.u32 %v122, 7
    %v124 = vsub.s32 0, %v123
    %v125 = vrot.slane %v120, %v124
    %v127 = vld [vmem:[%s8] sm:$0x1]
    %v129 = vlaneseq
    %v130 = vshrl.u32 %v129, 7
    %v131 = vsub.s32 0, %v130
    %v132 = vrot.slane %v127, %v131
    %v134 = vld [vmem:[#allocation6] sm:$0xff]
    %136 = vrot.lane.b32.xlu0 %v134, 32
    %v137 = vpop.permute.xlu0 %136
    %vm139 = vcmask 261120
    %v140 = vsel %vm139, 0.0, %v137
    %v141 = vsel %vm139, %v140, %v137
    %v142 = vld [vmem:[#allocation7] sm:$0xff]
    %v143 = vld [vmem:[#allocation7 + $0x8] sm:$0xff]
    %vm144 = vcmask 326656
    %v146 = vsel %vm144, %v141, 0
    %148 = vmatprep.subr.mxu0 %v102
    %149 = vmatpush1.msra.mxu0 %v101
    %150 = vmatprep.subr.mxu0 %v104
    %151 = vmatpush1.msra.mxu0 %v103
    %152 = vmatprep.subr.mxu0 %v106
    %153 = vmatpush1.msra.mxu0 %v105
    %154 = vmatprep.subr.mxu0 %v108
    %155 = vmatpush1.msra.mxu0 %v107
    %156 = vmatprep.subr.mxu0 %v110
    %157 = vmatpush1.msra.mxu0 %v109
    %158 = vmatprep.subr.mxu0 0.0
    %159 = vmatpush1.msra.mxu0 0.0
    %160 = vmatprep.subr.mxu0 0.0
    %161 = vmatpush1.msra.mxu0 0.0
    %162 = vmatprep.subr.mxu0 0.0
    %163 = vmatpush1.msra.mxu0 0.0
    %164 = vmatprep.subr.mxu0 0.0
    %165 = vmatpush1.msra.mxu0 0.0
    %166 = vmatprep.subr.mxu0 0.0
    %167 = vmatpush1.msra.mxu0 0.0
    %168 = vmatprep.subr.mxu0 0.0
    %169 = vmatpush1.msra.mxu0 0.0
    %170 = vmatprep.subr.mxu0 0.0
    %171 = vmatpush1.msra.mxu0 0.0
    %172 = vmatprep.subr.mxu0 0.0
    %173 = vmatpush1.msra.mxu0 0.0
    %174 = vmatprep.subr.mxu0 0.0
    %175 = vmatpush1.msra.mxu0 0.0
    %176 = vmatprep.subr.mxu0 0.0
    %177 = vmatpush1.msra.mxu0 0.0
    %178 = vmatprep.subr.mxu0 0.0
    %179 = vmatpush1.msra.mxu0 0.0
    %180 = vmatprep.subr.mxu0 0.0
    %181 = vmatpush1.msra.mxu0 0.0
    %182 = vmatprep.subr.mxu0 0.0
    %183 = vmatpush1.msra.mxu0 0.0
    %184 = vmatprep.subr.mxu0 0.0
    %185 = vmatpush1.msra.mxu0 0.0
    %186 = vmatprep.subr.mxu0 0.0
    %187 = vmatpush1.msra.mxu0 0.0
    %188 = vmatprep.subr.mxu0 0.0
    %189 = vmatpush1.msra.mxu0 0.0
    %190 = vmatprep.subr.mxu0 0.0
    %191 = vmatpush1.msra.mxu0 0.0
    %192 = vmatprep.subr.mxu0 0.0
    %193 = vmatpush1.msra.mxu0 0.0
    %194 = vmatprep.subr.mxu0 0.0
    %195 = vmatpush1.msra.mxu0 0.0
    %196 = vmatprep.subr.mxu0 0.0
    %197 = vmatpush1.msra.mxu0 0.0
    %198 = vmatprep.subr.mxu0 0.0
    %199 = vmatpush1.msra.mxu0 0.0
    %200 = vmatprep.subr.mxu0 0.0
    %201 = vmatpush1.msra.mxu0 0.0
    %202 = vmatprep.subr.mxu0 0.0
    %203 = vmatpush1.msra.mxu0 0.0
    %204 = vmatprep.subr.mxu0 0.0
    %205 = vmatpush1.msra.mxu0 0.0
    %206 = vmatprep.subr.mxu0 0.0
    %207 = vmatpush1.msra.mxu0 0.0
    %208 = vmatprep.subr.mxu0 0.0
    %209 = vmatpush1.msra.mxu0 0.0
    %210 = vmatprep.subr.mxu0 0.0
    %211 = vmatpush1.msra.mxu0 0.0
    %212 = vmatprep.mubr.f32.mxu0 0.0
    %213 = vmatmul.mubr.f32.gmra.mrb[0].mxu0 %v146
    %v214 = vpop.f32.mrb[0].mxu0
    %v215 = vadd.f32 %v142, %v214
    %v216 = vpop.f32.mrb[0].mxu0
    %v217 = vadd.f32 %v143, %v216
    %218 = vdwg.mxu0
    %220 = vrot.lane.b32.xlu0 %v215, 80
    %v221 = vpop.permute.xlu0 %220
    %v223 = vadd.f32 %v215, %v221
    %v224 = vxor.u32 %v223, 2147483648
    %v225 = vmul.f32 %v224, 1.442695
    %v226 = vpow.pop %v225
    %v227 = vadd.f32 %v226, 1.0
    %v228 = vrcp.pop %v227
    %v229 = vmul.f32 1.0, %v228
    %230 = vrot.lane.b32.xlu0 %v215, 48
    %v231 = vpop.permute.xlu0 %230
    %v233 = vmul.f32 %v229, %v231
    %235 = vrot.lane.b32.xlu0 %v233, 32
    %v236 = vpop.permute.xlu0 %235
    %v238 = vadd.f32 %v215, %v236
    %v239 = vtanh.pop %v238
    %v240 = vsub.f32 1.0, %v229
    %242 = vrot.lane.b32.xlu0 %v239, 112
    %v243 = vpop.permute.xlu0 %242
    %v245 = vmul.f32 %v240, %v243
    %v246 = vmul.f32 %v229, %v140
    %v247 = vadd.f32 %v245, %v246
    %v248 = vld [vmem:[#allocation9] sm:$0xff]
    %250 = vrot.lane.b32.xlu0 %v247, 112
    %v251 = vpop.permute.xlu0 %250
    %v253 = vmul.f32 %v248, %v251
    %v254 = vsub.f32 1.0, %v248
    %256 = vrot.lane.b32.xlu0 %v140, 112
    %v257 = vpop.permute.xlu0 %256
    %v259 = vmul.f32 %v254, %v257
    %v260 = vadd.f32 %v253, %v259
    %262 = vrot.lane.b32.xlu0 %v217, 80
    %v263 = vpop.permute.xlu0 %262
    %v265 = vadd.f32 %v215, %v263
    %v266 = vxor.u32 %v265, 2147483648
    %v267 = vmul.f32 %v266, 1.442695
    %v268 = vpow.pop %v267
    %v269 = vadd.f32 %v268, 1.0
    %v270 = vrcp.pop %v269
    %v271 = vmul.f32 1.0, %v270
    %272 = vrot.lane.b32.xlu0 %v217, 48
    %v273 = vpop.permute.xlu0 %272
    %v275 = vmul.f32 %v271, %v273
    %277 = vrot.lane.b32.xlu0 %v275, 32
    %v278 = vpop.permute.xlu0 %277
    %v280 = vadd.f32 %v217, %v278
    %v281 = vtanh.pop %v280
    %v282 = vsub.f32 1.0, %v271
    %284 = vrot.lane.b32.xlu0 %v281, 112
    %v285 = vpop.permute.xlu0 %284
    %v287 = vmul.f32 %v282, %v285
    %v288 = vmul.f32 %v271, %v257
    %v289 = vadd.f32 %v287, %v288
    %291 = vrot.lane.b32.xlu0 %v289, 16
    %v292 = vpop.permute.xlu0 %291
    %295 = vrot.lane.b32.xlu0 %v260, 16
    %v296 = vpop.permute.xlu0 %295
    %vm298 = vcmask 130048
    %v299 = vsel %vm298, %v292, %v296
    %v300 = vsel %vm139, %v299, %v137
    %s301 = sld [smem:[#allocation2]]
    %v303 = vsel %vm144, %v300, 0
    %305 = vmatprep.subr.mxu0 0.0
    %306 = vmatpush1.msra.mxu0 %v111
    %307 = vmatprep.subr.mxu0 0.0
    %308 = vmatpush1.msra.mxu0 %v112
    %309 = vmatprep.subr.mxu0 0.0
    %310 = vmatpush1.msra.mxu0 %v113
    %311 = vmatprep.subr.mxu0 0.0
    %312 = vmatpush1.msra.mxu0 %v114
    %313 = vmatprep.subr.mxu0 0.0
    %314 = vmatpush1.msra.mxu0 %v115
    %315 = vmatprep.subr.mxu0 0.0
    %316 = vmatpush1.msra.mxu0 0.0
    %317 = vmatprep.subr.mxu0 0.0
    %318 = vmatpush1.msra.mxu0 0.0
    %319 = vmatprep.subr.mxu0 0.0
    %320 = vmatpush1.msra.mxu0 0.0
    %321 = vmatprep.subr.mxu0 0.0
    %322 = vmatpush1.msra.mxu0 0.0
    %323 = vmatprep.subr.mxu0 0.0
    %324 = vmatpush1.msra.mxu0 0.0
    %325 = vmatprep.subr.mxu0 0.0
    %326 = vmatpush1.msra.mxu0 0.0
    %327 = vmatprep.subr.mxu0 0.0
    %328 = vmatpush1.msra.mxu0 0.0
    %329 = vmatprep.subr.mxu0 0.0
    %330 = vmatpush1.msra.mxu0 0.0
    %331 = vmatprep.subr.mxu0 0.0
    %332 = vmatpush1.msra.mxu0 0.0
    %333 = vmatprep.subr.mxu0 0.0
    %334 = vmatpush1.msra.mxu0 0.0
    %335 = vmatprep.subr.mxu0 0.0
    %336 = vmatpush1.msra.mxu0 0.0
    %337 = vmatprep.subr.mxu0 0.0
    %338 = vmatpush1.msra.mxu0 0.0
    %339 = vmatprep.subr.mxu0 0.0
    %340 = vmatpush1.msra.mxu0 0.0
    %341 = vmatprep.subr.mxu0 0.0
    %342 = vmatpush1.msra.mxu0 0.0
    %343 = vmatprep.subr.mxu0 0.0
    %344 = vmatpush1.msra.mxu0 0.0
    %345 = vmatprep.subr.mxu0 0.0
    %346 = vmatpush1.msra.mxu0 0.0
    %347 = vmatprep.subr.mxu0 0.0
    %348 = vmatpush1.msra.mxu0 0.0
    %349 = vmatprep.subr.mxu0 0.0
    %350 = vmatpush1.msra.mxu0 0.0
    %351 = vmatprep.subr.mxu0 0.0
    %352 = vmatpush1.msra.mxu0 0.0
    %353 = vmatprep.subr.mxu0 0.0
    %354 = vmatpush1.msra.mxu0 0.0
    %355 = vmatprep.subr.mxu0 0.0
    %356 = vmatpush1.msra.mxu0 0.0
    %357 = vmatprep.subr.mxu0 0.0
    %358 = vmatpush1.msra.mxu0 0.0
    %359 = vmatprep.subr.mxu0 0.0
    %360 = vmatpush1.msra.mxu0 0.0
    %361 = vmatprep.subr.mxu0 0.0
    %362 = vmatpush1.msra.mxu0 0.0
    %363 = vmatprep.subr.mxu0 0.0
    %364 = vmatpush1.msra.mxu0 0.0
    %365 = vmatprep.subr.mxu0 0.0
    %366 = vmatpush1.msra.mxu0 0.0
    %367 = vmatprep.subr.mxu0 0.0
    %368 = vmatpush1.msra.mxu0 0.0
    %369 = vmatprep.mubr.f32.mxu0 0.0
    %370 = vmatmul.mubr.f32.gmra.mrb[0].mxu0 %v303
    %v371 = vpop.f32.mrb[0].mxu0
    %v372 = vadd.f32 %v125, %v371
    %v373 = vpop.f32.mrb[0].mxu0
    %374 = vdwg.mxu0
    %vm375 = vcmp.ge.f32.partialorder %v372, 0.0
    %v376 = vmul.f32 %v372, 0.01
    %v377 = vsel %vm375, %v372, %v376
    %v379 = vsel %vm139, %v377, 0
    %381 = vmatprep.subr.mxu0 0.0
    %382 = vmatpush1.msra.mxu0 %v116
    %383 = vmatprep.subr.mxu0 0.0
    %384 = vmatpush1.msra.mxu0 %v117
    %385 = vmatprep.subr.mxu0 0.0
    %386 = vmatpush1.msra.mxu0 %v118
    %387 = vmatprep.subr.mxu0 0.0
    %388 = vmatpush1.msra.mxu0 %v119
    %389 = vmatprep.subr.mxu0 0.0
    %390 = vmatpush1.msra.mxu0 0.0
    %391 = vmatprep.subr.mxu0 0.0
    %392 = vmatpush1.msra.mxu0 0.0
    %393 = vmatprep.subr.mxu0 0.0
    %394 = vmatpush1.msra.mxu0 0.0
    %395 = vmatprep.subr.mxu0 0.0
    %396 = vmatpush1.msra.mxu0 0.0
    %397 = vmatprep.subr.mxu0 0.0
    %398 = vmatpush1.msra.mxu0 0.0
    %399 = vmatprep.subr.mxu0 0.0
    %400 = vmatpush1.msra.mxu0 0.0
    %401 = vmatprep.subr.mxu0 0.0
    %402 = vmatpush1.msra.mxu0 0.0
    %403 = vmatprep.subr.mxu0 0.0
    %404 = vmatpush1.msra.mxu0 0.0
    %405 = vmatprep.subr.mxu0 0.0
    %406 = vmatpush1.msra.mxu0 0.0
    %407 = vmatprep.subr.mxu0 0.0
    %408 = vmatpush1.msra.mxu0 0.0
    %409 = vmatprep.subr.mxu0 0.0
    %410 = vmatpush1.msra.mxu0 0.0
    %411 = vmatprep.subr.mxu0 0.0
    %412 = vmatpush1.msra.mxu0 0.0
    %413 = vmatprep.subr.mxu0 0.0
    %414 = vmatpush1.msra.mxu0 0.0
    %415 = vmatprep.subr.mxu0 0.0
    %416 = vmatpush1.msra.mxu0 0.0
    %417 = vmatprep.subr.mxu0 0.0
    %418 = vmatpush1.msra.mxu0 0.0
    %419 = vmatprep.subr.mxu0 0.0
    %420 = vmatpush1.msra.mxu0 0.0
    %421 = vmatprep.subr.mxu0 0.0
    %422 = vmatpush1.msra.mxu0 0.0
    %423 = vmatprep.subr.mxu0 0.0
    %424 = vmatpush1.msra.mxu0 0.0
    %425 = vmatprep.subr.mxu0 0.0
    %426 = vmatpush1.msra.mxu0 0.0
    %427 = vmatprep.subr.mxu0 0.0
    %428 = vmatpush1.msra.mxu0 0.0
    %429 = vmatprep.subr.mxu0 0.0
    %430 = vmatpush1.msra.mxu0 0.0
    %431 = vmatprep.subr.mxu0 0.0
    %432 = vmatpush1.msra.mxu0 0.0
    %433 = vmatprep.subr.mxu0 0.0
    %434 = vmatpush1.msra.mxu0 0.0
    %435 = vmatprep.subr.mxu0 0.0
    %436 = vmatpush1.msra.mxu0 0.0
    %437 = vmatprep.subr.mxu0 0.0
    %438 = vmatpush1.msra.mxu0 0.0
    %439 = vmatprep.subr.mxu0 0.0
    %440 = vmatpush1.msra.mxu0 0.0
    %441 = vmatprep.subr.mxu0 0.0
    %442 = vmatpush1.msra.mxu0 0.0
    %443 = vmatprep.subr.mxu0 0.0
    %444 = vmatpush1.msra.mxu0 0.0
    %445 = vmatprep.mubr.f32.mxu0 0.0
    %446 = vmatmul.mubr.f32.gmra.mrb[0].mxu0 %v379
    %v447 = vpop.f32.mrb[0].mxu0
    %v448 = vadd.f32 %v132, %v447
    %v449 = vpop.f32.mrb[0].mxu0
    %450 = vdwg.mxu0
    %s451 = smul.f32 %s301, 0.33333334
    %v452 = vstv %s451
    %v453 = vmul.f32 %v452, %v448
    %v454 = vadd.f32 %v300, %v453
    %v456 = vsel %vm144, %v454, 0
    %458 = vmatprep.subr.mxu0 0.0
    %459 = vmatpush1.msra.mxu0 %v111
    %460 = vmatprep.subr.mxu0 0.0
    %461 = vmatpush1.msra.mxu0 %v112
    %462 = vmatprep.subr.mxu0 0.0
    %463 = vmatpush1.msra.mxu0 %v113
    %464 = vmatprep.subr.mxu0 0.0
    %465 = vmatpush1.msra.mxu0 %v114
    %466 = vmatprep.subr.mxu0 0.0
    %467 = vmatpush1.msra.mxu0 %v115
    %468 = vmatprep.subr.mxu0 0.0
    %469 = vmatpush1.msra.mxu0 0.0
    %470 = vmatprep.subr.mxu0 0.0
    %471 = vmatpush1.msra.mxu0 0.0
    %472 = vmatprep.subr.mxu0 0.0
    %473 = vmatpush1.msra.mxu0 0.0
    %474 = vmatprep.subr.mxu0 0.0
    %475 = vmatpush1.msra.mxu0 0.0
    %476 = vmatprep.subr.mxu0 0.0
    %477 = vmatpush1.msra.mxu0 0.0
    %478 = vmatprep.subr.mxu0 0.0
    %479 = vmatpush1.msra.mxu0 0.0
    %480 = vmatprep.subr.mxu0 0.0
    %481 = vmatpush1.msra.mxu0 0.0
    %482 = vmatprep.subr.mxu0 0.0
    %483 = vmatpush1.msra.mxu0 0.0
    %484 = vmatprep.subr.mxu0 0.0
    %485 = vmatpush1.msra.mxu0 0.0
    %486 = vmatprep.subr.mxu0 0.0
    %487 = vmatpush1.msra.mxu0 0.0
    %488 = vmatprep.subr.mxu0 0.0
    %489 = vmatpush1.msra.mxu0 0.0
    %490 = vmatprep.subr.mxu0 0.0
    %491 = vmatpush1.msra.mxu0 0.0
    %492 = vmatprep.subr.mxu0 0.0
    %493 = vmatpush1.msra.mxu0 0.0
    %494 = vmatprep.subr.mxu0 0.0
    %495 = vmatpush1.msra.mxu0 0.0
    %496 = vmatprep.subr.mxu0 0.0
    %497 = vmatpush1.msra.mxu0 0.0
    %498 = vmatprep.subr.mxu0 0.0
    %499 = vmatpush1.msra.mxu0 0.0
    %500 = vmatprep.subr.mxu0 0.0
    %501 = vmatpush1.msra.mxu0 0.0
    %502 = vmatprep.subr.mxu0 0.0
    %503 = vmatpush1.msra.mxu0 0.0
    %504 = vmatprep.subr.mxu0 0.0
    %505 = vmatpush1.msra.mxu0 0.0
    %506 = vmatprep.subr.mxu0 0.0
    %507 = vmatpush1.msra.mxu0 0.0
    %508 = vmatprep.subr.mxu0 0.0
    %509 = vmatpush1.msra.mxu0 0.0
    %510 = vmatprep.subr.mxu0 0.0
    %511 = vmatpush1.msra.mxu0 0.0
    %512 = vmatprep.subr.mxu0 0.0
    %513 = vmatpush1.msra.mxu0 0.0
    %514 = vmatprep.subr.mxu0 0.0
    %515 = vmatpush1.msra.mxu0 0.0
    %516 = vmatprep.subr.mxu0 0.0
    %517 = vmatpush1.msra.mxu0 0.0
    %518 = vmatprep.subr.mxu0 0.0
    %519 = vmatpush1.msra.mxu0 0.0
    %520 = vmatprep.subr.mxu0 0.0
    %521 = vmatpush1.msra.mxu0 0.0
    %522 = vmatprep.mubr.f32.mxu0 0.0
    %523 = vmatmul.mubr.f32.gmra.mrb[0].mxu0 %v456
    %v524 = vpop.f32.mrb[0].mxu0
    %v525 = vadd.f32 %v125, %v524
    %v526 = vpop.f32.mrb[0].mxu0
    %527 = vdwg.mxu0
    %vm528 = vcmp.ge.f32.partialorder %v525, 0.0
    %v529 = vmul.f32 %v525, 0.01
    %v530 = vsel %vm528, %v525, %v529
    %v532 = vsel %vm139, %v530, 0
    %534 = vmatprep.subr.mxu0 0.0
    %535 = vmatpush1.msra.mxu0 %v116
    %536 = vmatprep.subr.mxu0 0.0
    %537 = vmatpush1.msra.mxu0 %v117
    %538 = vmatprep.subr.mxu0 0.0
    %539 = vmatpush1.msra.mxu0 %v118
    %540 = vmatprep.subr.mxu0 0.0
    %541 = vmatpush1.msra.mxu0 %v119
    %542 = vmatprep.subr.mxu0 0.0
    %543 = vmatpush1.msra.mxu0 0.0
    %544 = vmatprep.subr.mxu0 0.0
    %545 = vmatpush1.msra.mxu0 0.0
    %546 = vmatprep.subr.mxu0 0.0
    %547 = vmatpush1.msra.mxu0 0.0
    %548 = vmatprep.subr.mxu0 0.0
    %549 = vmatpush1.msra.mxu0 0.0
    %550 = vmatprep.subr.mxu0 0.0
    %551 = vmatpush1.msra.mxu0 0.0
    %552 = vmatprep.subr.mxu0 0.0
    %553 = vmatpush1.msra.mxu0 0.0
    %554 = vmatprep.subr.mxu0 0.0
    %555 = vmatpush1.msra.mxu0 0.0
    %556 = vmatprep.subr.mxu0 0.0
    %557 = vmatpush1.msra.mxu0 0.0
    %558 = vmatprep.subr.mxu0 0.0
    %559 = vmatpush1.msra.mxu0 0.0
    %560 = vmatprep.subr.mxu0 0.0
    %561 = vmatpush1.msra.mxu0 0.0
    %562 = vmatprep.subr.mxu0 0.0
    %563 = vmatpush1.msra.mxu0 0.0
    %564 = vmatprep.subr.mxu0 0.0
    %565 = vmatpush1.msra.mxu0 0.0
    %566 = vmatprep.subr.mxu0 0.0
    %567 = vmatpush1.msra.mxu0 0.0
    %568 = vmatprep.subr.mxu0 0.0
    %569 = vmatpush1.msra.mxu0 0.0
    %570 = vmatprep.subr.mxu0 0.0
    %571 = vmatpush1.msra.mxu0 0.0
    %572 = vmatprep.subr.mxu0 0.0
    %573 = vmatpush1.msra.mxu0 0.0
    %574 = vmatprep.subr.mxu0 0.0
    %575 = vmatpush1.msra.mxu0 0.0
    %576 = vmatprep.subr.mxu0 0.0
    %577 = vmatpush1.msra.mxu0 0.0
    %578 = vmatprep.subr.mxu0 0.0
    %579 = vmatpush1.msra.mxu0 0.0
    %580 = vmatprep.subr.mxu0 0.0
    %581 = vmatpush1.msra.mxu0 0.0
    %582 = vmatprep.subr.mxu0 0.0
    %583 = vmatpush1.msra.mxu0 0.0
    %584 = vmatprep.subr.mxu0 0.0
    %585 = vmatpush1.msra.mxu0 0.0
    %586 = vmatprep.subr.mxu0 0.0
    %587 = vmatpush1.msra.mxu0 0.0
    %588 = vmatprep.subr.mxu0 0.0
    %589 = vmatpush1.msra.mxu0 0.0
    %590 = vmatprep.subr.mxu0 0.0
    %591 = vmatpush1.msra.mxu0 0.0
    %592 = vmatprep.subr.mxu0 0.0
    %593 = vmatpush1.msra.mxu0 0.0
    %594 = vmatprep.subr.mxu0 0.0
    %595 = vmatpush1.msra.mxu0 0.0
    %596 = vmatprep.subr.mxu0 0.0
    %597 = vmatpush1.msra.mxu0 0.0
    %598 = vmatprep.mubr.f32.mxu0 0.0
    %599 = vmatmul.mubr.f32.gmra.mrb[0].mxu0 %v532
    %v600 = vpop.f32.mrb[0].mxu0
    %v601 = vadd.f32 %v132, %v600
    %v602 = vpop.f32.mrb[0].mxu0
    %603 = vdwg.mxu0
    %v604 = vmul.f32 %v448, 0.33333334
    %v605 = vsub.f32 %v601, %v604
    %v606 = vstv %s301
    %v607 = vmul.f32 %v606, %v605
    %v608 = vadd.f32 %v300, %v607
    %v610 = vsel %vm144, %v608, 0
    %612 = vmatprep.subr.mxu0 0.0
    %613 = vmatpush1.msra.mxu0 %v111
    %614 = vmatprep.subr.mxu0 0.0
    %615 = vmatpush1.msra.mxu0 %v112
    %616 = vmatprep.subr.mxu0 0.0
    %617 = vmatpush1.msra.mxu0 %v113
    %618 = vmatprep.subr.mxu0 0.0
    %619 = vmatpush1.msra.mxu0 %v114
    %620 = vmatprep.subr.mxu0 0.0
    %621 = vmatpush1.msra.mxu0 %v115
    %622 = vmatprep.subr.mxu0 0.0
    %623 = vmatpush1.msra.mxu0 0.0
    %624 = vmatprep.subr.mxu0 0.0
    %625 = vmatpush1.msra.mxu0 0.0
    %626 = vmatprep.subr.mxu0 0.0
    %627 = vmatpush1.msra.mxu0 0.0
    %628 = vmatprep.subr.mxu0 0.0
    %629 = vmatpush1.msra.mxu0 0.0
    %630 = vmatprep.subr.mxu0 0.0
    %631 = vmatpush1.msra.mxu0 0.0
    %632 = vmatprep.subr.mxu0 0.0
    %633 = vmatpush1.msra.mxu0 0.0
    %634 = vmatprep.subr.mxu0 0.0
    %635 = vmatpush1.msra.mxu0 0.0
    %636 = vmatprep.subr.mxu0 0.0
    %637 = vmatpush1.msra.mxu0 0.0
    %638 = vmatprep.subr.mxu0 0.0
    %639 = vmatpush1.msra.mxu0 0.0
    %640 = vmatprep.subr.mxu0 0.0
    %641 = vmatpush1.msra.mxu0 0.0
    %642 = vmatprep.subr.mxu0 0.0
    %643 = vmatpush1.msra.mxu0 0.0
    %644 = vmatprep.subr.mxu0 0.0
    %645 = vmatpush1.msra.mxu0 0.0
    %646 = vmatprep.subr.mxu0 0.0
    %647 = vmatpush1.msra.mxu0 0.0
    %648 = vmatprep.subr.mxu0 0.0
    %649 = vmatpush1.msra.mxu0 0.0
    %650 = vmatprep.subr.mxu0 0.0
    %651 = vmatpush1.msra.mxu0 0.0
    %652 = vmatprep.subr.mxu0 0.0
    %653 = vmatpush1.msra.mxu0 0.0
    %654 = vmatprep.subr.mxu0 0.0
    %655 = vmatpush1.msra.mxu0 0.0
    %656 = vmatprep.subr.mxu0 0.0
    %657 = vmatpush1.msra.mxu0 0.0
    %658 = vmatprep.subr.mxu0 0.0
    %659 = vmatpush1.msra.mxu0 0.0
    %660 = vmatprep.subr.mxu0 0.0
    %661 = vmatpush1.msra.mxu0 0.0
    %662 = vmatprep.subr.mxu0 0.0
    %663 = vmatpush1.msra.mxu0 0.0
    %664 = vmatprep.subr.mxu0 0.0
    %665 = vmatpush1.msra.mxu0 0.0
    %666 = vmatprep.subr.mxu0 0.0
    %667 = vmatpush1.msra.mxu0 0.0
    %668 = vmatprep.subr.mxu0 0.0
    %669 = vmatpush1.msra.mxu0 0.0
    %670 = vmatprep.subr.mxu0 0.0
    %671 = vmatpush1.msra.mxu0 0.0
    %672 = vmatprep.subr.mxu0 0.0
    %673 = vmatpush1.msra.mxu0 0.0
    %674 = vmatprep.subr.mxu0 0.0
    %675 = vmatpush1.msra.mxu0 0.0
    %676 = vmatprep.mubr.f32.mxu0 0.0
    %677 = vmatmul.mubr.f32.gmra.mrb[0].mxu0 %v610
    %v678 = vpop.f32.mrb[0].mxu0
    %v679 = vadd.f32 %v125, %v678
    %v680 = vpop.f32.mrb[0].mxu0
    %681 = vdwg.mxu0
    %vm682 = vcmp.ge.f32.partialorder %v679, 0.0
    %v683 = vmul.f32 %v679, 0.01
    %v684 = vsel %vm682, %v679, %v683
    %v686 = vsel %vm139, %v684, 0
    %688 = vmatprep.subr.mxu0 0.0
    %689 = vmatpush1.msra.mxu0 %v116
    %690 = vmatprep.subr.mxu0 0.0
    %691 = vmatpush1.msra.mxu0 %v117
    %692 = vmatprep.subr.mxu0 0.0
    %693 = vmatpush1.msra.mxu0 %v118
    %694 = vmatprep.subr.mxu0 0.0
    %695 = vmatpush1.msra.mxu0 %v119
    %696 = vmatprep.subr.mxu0 0.0
    %697 = vmatpush1.msra.mxu0 0.0
    %698 = vmatprep.subr.mxu0 0.0
    %699 = vmatpush1.msra.mxu0 0.0
    %700 = vmatprep.subr.mxu0 0.0
    %701 = vmatpush1.msra.mxu0 0.0
    %702 = vmatprep.subr.mxu0 0.0
    %703 = vmatpush1.msra.mxu0 0.0
    %704 = vmatprep.subr.mxu0 0.0
    %705 = vmatpush1.msra.mxu0 0.0
    %706 = vmatprep.subr.mxu0 0.0
    %707 = vmatpush1.msra.mxu0 0.0
    %708 = vmatprep.subr.mxu0 0.0
    %709 = vmatpush1.msra.mxu0 0.0
    %710 = vmatprep.subr.mxu0 0.0
    %711 = vmatpush1.msra.mxu0 0.0
    %712 = vmatprep.subr.mxu0 0.0
    %713 = vmatpush1.msra.mxu0 0.0
    %714 = vmatprep.subr.mxu0 0.0
    %715 = vmatpush1.msra.mxu0 0.0
    %716 = vmatprep.subr.mxu0 0.0
    %717 = vmatpush1.msra.mxu0 0.0
    %718 = vmatprep.subr.mxu0 0.0
    %719 = vmatpush1.msra.mxu0 0.0
    %720 = vmatprep.subr.mxu0 0.0
    %721 = vmatpush1.msra.mxu0 0.0
    %722 = vmatprep.subr.mxu0 0.0
    %723 = vmatpush1.msra.mxu0 0.0
    %724 = vmatprep.subr.mxu0 0.0
    %725 = vmatpush1.msra.mxu0 0.0
    %726 = vmatprep.subr.mxu0 0.0
    %727 = vmatpush1.msra.mxu0 0.0
    %728 = vmatprep.subr.mxu0 0.0
    %729 = vmatpush1.msra.mxu0 0.0
    %730 = vmatprep.subr.mxu0 0.0
    %731 = vmatpush1.msra.mxu0 0.0
    %732 = vmatprep.subr.mxu0 0.0
    %733 = vmatpush1.msra.mxu0 0.0
    %734 = vmatprep.subr.mxu0 0.0
    %735 = vmatpush1.msra.mxu0 0.0
    %736 = vmatprep.subr.mxu0 0.0
    %737 = vmatpush1.msra.mxu0 0.0
    %738 = vmatprep.subr.mxu0 0.0
    %739 = vmatpush1.msra.mxu0 0.0
    %740 = vmatprep.subr.mxu0 0.0
    %741 = vmatpush1.msra.mxu0 0.0
    %742 = vmatprep.subr.mxu0 0.0
    %743 = vmatpush1.msra.mxu0 0.0
    %744 = vmatprep.subr.mxu0 0.0
    %745 = vmatpush1.msra.mxu0 0.0
    %746 = vmatprep.subr.mxu0 0.0
    %747 = vmatpush1.msra.mxu0 0.0
    %748 = vmatprep.subr.mxu0 0.0
    %749 = vmatpush1.msra.mxu0 0.0
    %750 = vmatprep.subr.mxu0 0.0
    %751 = vmatpush1.msra.mxu0 0.0
    %752 = vmatprep.mubr.f32.mxu0 0.0
    %753 = vmatmul.mubr.f32.gmra.mrb[0].mxu0 %v686
    %v754 = vpop.f32.mrb[0].mxu0
    %v755 = vadd.f32 %v132, %v754
    %v756 = vpop.f32.mrb[0].mxu0
    %757 = vdwg.mxu0
    %v758 = vsub.f32 %v448, %v601
    %v759 = vadd.f32 %v758, %v755
    %v760 = vmul.f32 %v606, %v759
    %v761 = vadd.f32 %v300, %v760
    %v763 = vsel %vm144, %v761, 0
    %765 = vmatprep.subr.mxu0 0.0
    %766 = vmatpush1.msra.mxu0 %v111
    %767 = vmatprep.subr.mxu0 0.0
    %768 = vmatpush1.msra.mxu0 %v112
    %769 = vmatprep.subr.mxu0 0.0
    %770 = vmatpush1.msra.mxu0 %v113
    %771 = vmatprep.subr.mxu0 0.0
    %772 = vmatpush1.msra.mxu0 %v114
    %773 = vmatprep.subr.mxu0 0.0
    %774 = vmatpush1.msra.mxu0 %v115
    %775 = vmatprep.subr.mxu0 0.0
    %776 = vmatpush1.msra.mxu0 0.0
    %777 = vmatprep.subr.mxu0 0.0
    %778 = vmatpush1.msra.mxu0 0.0
    %779 = vmatprep.subr.mxu0 0.0
    %780 = vmatpush1.msra.mxu0 0.0
    %781 = vmatprep.subr.mxu0 0.0
    %782 = vmatpush1.msra.mxu0 0.0
    %783 = vmatprep.subr.mxu0 0.0
    %784 = vmatpush1.msra.mxu0 0.0
    %785 = vmatprep.subr.mxu0 0.0
    %786 = vmatpush1.msra.mxu0 0.0
    %787 = vmatprep.subr.mxu0 0.0
    %788 = vmatpush1.msra.mxu0 0.0
    %789 = vmatprep.subr.mxu0 0.0
    %790 = vmatpush1.msra.mxu0 0.0
    %791 = vmatprep.subr.mxu0 0.0
    %792 = vmatpush1.msra.mxu0 0.0
    %793 = vmatprep.subr.mxu0 0.0
    %794 = vmatpush1.msra.mxu0 0.0
    %795 = vmatprep.subr.mxu0 0.0
    %796 = vmatpush1.msra.mxu0 0.0
    %797 = vmatprep.subr.mxu0 0.0
    %798 = vmatpush1.msra.mxu0 0.0
    %799 = vmatprep.subr.mxu0 0.0
    %800 = vmatpush1.msra.mxu0 0.0
    %801 = vmatprep.subr.mxu0 0.0
    %802 = vmatpush1.msra.mxu0 0.0
    %803 = vmatprep.subr.mxu0 0.0
    %804 = vmatpush1.msra.mxu0 0.0
    %805 = vmatprep.subr.mxu0 0.0
    %806 = vmatpush1.msra.mxu0 0.0
    %807 = vmatprep.subr.mxu0 0.0
    %808 = vmatpush1.msra.mxu0 0.0
    %809 = vmatprep.subr.mxu0 0.0
    %810 = vmatpush1.msra.mxu0 0.0
    %811 = vmatprep.subr.mxu0 0.0
    %812 = vmatpush1.msra.mxu0 0.0
    %813 = vmatprep.subr.mxu0 0.0
    %814 = vmatpush1.msra.mxu0 0.0
    %815 = vmatprep.subr.mxu0 0.0
    %816 = vmatpush1.msra.mxu0 0.0
    %817 = vmatprep.subr.mxu0 0.0
    %818 = vmatpush1.msra.mxu0 0.0
    %819 = vmatprep.subr.mxu0 0.0
    %820 = vmatpush1.msra.mxu0 0.0
    %821 = vmatprep.subr.mxu0 0.0
    %822 = vmatpush1.msra.mxu0 0.0
    %823 = vmatprep.subr.mxu0 0.0
    %824 = vmatpush1.msra.mxu0 0.0
    %825 = vmatprep.subr.mxu0 0.0
    %826 = vmatpush1.msra.mxu0 0.0
    %827 = vmatprep.subr.mxu0 0.0
    %828 = vmatpush1.msra.mxu0 0.0
    %829 = vmatprep.mubr.f32.mxu0 0.0
    %830 = vmatmul.mubr.f32.gmra.mrb[0].mxu0 %v763
    %v831 = vpop.f32.mrb[0].mxu0
    %v832 = vadd.f32 %v125, %v831
    %v833 = vpop.f32.mrb[0].mxu0
    %834 = vdwg.mxu0
    %vm835 = vcmp.ge.f32.partialorder %v832, 0.0
    %v836 = vmul.f32 %v832, 0.01
    %v837 = vsel %vm835, %v832, %v836
    %v839 = vsel %vm139, %v837, 0
    %841 = vmatprep.subr.mxu0 0.0
    %842 = vmatpush1.msra.mxu0 %v116
    %843 = vmatprep.subr.mxu0 0.0
    %844 = vmatpush1.msra.mxu0 %v117
    %845 = vmatprep.subr.mxu0 0.0
    %846 = vmatpush1.msra.mxu0 %v118
    %847 = vmatprep.subr.mxu0 0.0
    %848 = vmatpush1.msra.mxu0 %v119
    %849 = vmatprep.subr.mxu0 0.0
    %850 = vmatpush1.msra.mxu0 0.0
    %851 = vmatprep.subr.mxu0 0.0
    %852 = vmatpush1.msra.mxu0 0.0
    %853 = vmatprep.subr.mxu0 0.0
    %854 = vmatpush1.msra.mxu0 0.0
    %855 = vmatprep.subr.mxu0 0.0
    %856 = vmatpush1.msra.mxu0 0.0
    %857 = vmatprep.subr.mxu0 0.0
    %858 = vmatpush1.msra.mxu0 0.0
    %859 = vmatprep.subr.mxu0 0.0
    %860 = vmatpush1.msra.mxu0 0.0
    %861 = vmatprep.subr.mxu0 0.0
    %862 = vmatpush1.msra.mxu0 0.0
    %863 = vmatprep.subr.mxu0 0.0
    %864 = vmatpush1.msra.mxu0 0.0
    %865 = vmatprep.subr.mxu0 0.0
    %866 = vmatpush1.msra.mxu0 0.0
    %867 = vmatprep.subr.mxu0 0.0
    %868 = vmatpush1.msra.mxu0 0.0
    %869 = vmatprep.subr.mxu0 0.0
    %870 = vmatpush1.msra.mxu0 0.0
    %871 = vmatprep.subr.mxu0 0.0
    %872 = vmatpush1.msra.mxu0 0.0
    %873 = vmatprep.subr.mxu0 0.0
    %874 = vmatpush1.msra.mxu0 0.0
    %875 = vmatprep.subr.mxu0 0.0
    %876 = vmatpush1.msra.mxu0 0.0
    %877 = vmatprep.subr.mxu0 0.0
    %878 = vmatpush1.msra.mxu0 0.0
    %879 = vmatprep.subr.mxu0 0.0
    %880 = vmatpush1.msra.mxu0 0.0
    %881 = vmatprep.subr.mxu0 0.0
    %882 = vmatpush1.msra.mxu0 0.0
    %883 = vmatprep.subr.mxu0 0.0
    %884 = vmatpush1.msra.mxu0 0.0
    %885 = vmatprep.subr.mxu0 0.0
    %886 = vmatpush1.msra.mxu0 0.0
    %887 = vmatprep.subr.mxu0 0.0
    %888 = vmatpush1.msra.mxu0 0.0
    %889 = vmatprep.subr.mxu0 0.0
    %890 = vmatpush1.msra.mxu0 0.0
    %891 = vmatprep.subr.mxu0 0.0
    %892 = vmatpush1.msra.mxu0 0.0
    %893 = vmatprep.subr.mxu0 0.0
    %894 = vmatpush1.msra.mxu0 0.0
    %895 = vmatprep.subr.mxu0 0.0
    %896 = vmatpush1.msra.mxu0 0.0
    %897 = vmatprep.subr.mxu0 0.0
    %898 = vmatpush1.msra.mxu0 0.0
    %899 = vmatprep.subr.mxu0 0.0
    %900 = vmatpush1.msra.mxu0 0.0
    %901 = vmatprep.subr.mxu0 0.0
    %902 = vmatpush1.msra.mxu0 0.0
    %903 = vmatprep.subr.mxu0 0.0
    %904 = vmatpush1.msra.mxu0 0.0
    %905 = vmatprep.mubr.f32.mxu0 0.0
    %906 = vmatmul.mubr.f32.gmra.mrb[0].mxu0 %v839
    %v907 = vpop.f32.mrb[0].mxu0
    %v908 = vadd.f32 %v132, %v907
    %v909 = vpop.f32.mrb[0].mxu0
    %910 = vdwg.mxu0
    %v911 = vadd.f32 %v601, %v755
    %v912 = vmul.f32 %v911, 3.0
    %v913 = vadd.f32 %v448, %v912
    %v914 = vadd.f32 %v913, %v908
    %s915 = smul.f32 %s301, 0.125
    %v916 = vstv %s915
    %v917 = vmul.f32 %v914, %v916
    %v918 = vadd.f32 %v300, %v917
    %920 = vrot.lane.b32.xlu0 %v918, 96
    %v921 = vpop.permute.xlu0 %920
    %923 = vrot.lane.b32.xlu0 %v260, 8
    %v924 = vpop.permute.xlu0 %923
    %vm926 = vcmask 64512
    %v927 = vsel %vm926, %v921, %v924
    %vm928 = vcmask 195584
    %v929 = vsel %vm928, %v927, 0.0
    %930 = vst [vmem:[#allocation12] sm:$0xff] %v929
    %s931 = scalar_lea.vmem [#allocation6], 8
    %v932 = vld [vmem:[%s931] sm:$0xff]
    %934 = vrot.lane.b32.xlu0 %v932, 32
    %v935 = vpop.permute.xlu0 %934
    %v937 = vsel %vm139, %v918, %v935
    %s938 = scalar_lea.vmem [#allocation7], 16
    %v939 = vld [vmem:[%s938] sm:$0xff]
    %v940 = vld [vmem:[%s938 + $0x8] sm:$0xff]
    %v942 = vsel %vm144, %v937, 0
    %944 = vmatprep.subr.mxu0 %v102
    %945 = vmatpush1.msra.mxu0 %v101
    %946 = vmatprep.subr.mxu0 %v104
    %947 = vmatpush1.msra.mxu0 %v103
    %948 = vmatprep.subr.mxu0 %v106
    %949 = vmatpush1.msra.mxu0 %v105
    %950 = vmatprep.subr.mxu0 %v108
    %951 = vmatpush1.msra.mxu0 %v107
    %952 = vmatprep.subr.mxu0 %v110
    %953 = vmatpush1.msra.mxu0 %v109
    %954 = vmatprep.subr.mxu0 0.0
    %955 = vmatpush1.msra.mxu0 0.0
    %956 = vmatprep.subr.mxu0 0.0
    %957 = vmatpush1.msra.mxu0 0.0
    %958 = vmatprep.subr.mxu0 0.0
    %959 = vmatpush1.msra.mxu0 0.0
    %960 = vmatprep.subr.mxu0 0.0
    %961 = vmatpush1.msra.mxu0 0.0
    %962 = vmatprep.subr.mxu0 0.0
    %963 = vmatpush1.msra.mxu0 0.0
    %964 = vmatprep.subr.mxu0 0.0
    %965 = vmatpush1.msra.mxu0 0.0
    %966 = vmatprep.subr.mxu0 0.0
    %967 = vmatpush1.msra.mxu0 0.0
    %968 = vmatprep.subr.mxu0 0.0
    %969 = vmatpush1.msra.mxu0 0.0
    %970 = vmatprep.subr.mxu0 0.0
    %971 = vmatpush1.msra.mxu0 0.0
    %972 = vmatprep.subr.mxu0 0.0
    %973 = vmatpush1.msra.mxu0 0.0
    %974 = vmatprep.subr.mxu0 0.0
    %975 = vmatpush1.msra.mxu0 0.0
    %976 = vmatprep.subr.mxu0 0.0
    %977 = vmatpush1.msra.mxu0 0.0
    %978 = vmatprep.subr.mxu0 0.0
    %979 = vmatpush1.msra.mxu0 0.0
    %980 = vmatprep.subr.mxu0 0.0
    %981 = vmatpush1.msra.mxu0 0.0
    %982 = vmatprep.subr.mxu0 0.0
    %983 = vmatpush1.msra.mxu0 0.0
    %984 = vmatprep.subr.mxu0 0.0
    %985 = vmatpush1.msra.mxu0 0.0
    %986 = vmatprep.subr.mxu0 0.0
    %987 = vmatpush1.msra.mxu0 0.0
    %988 = vmatprep.subr.mxu0 0.0
    %989 = vmatpush1.msra.mxu0 0.0
    %990 = vmatprep.subr.mxu0 0.0
    %991 = vmatpush1.msra.mxu0 0.0
    %992 = vmatprep.subr.mxu0 0.0
    %993 = vmatpush1.msra.mxu0 0.0
    %994 = vmatprep.subr.mxu0 0.0
    %995 = vmatpush1.msra.mxu0 0.0
    %996 = vmatprep.subr.mxu0 0.0
    %997 = vmatpush1.msra.mxu0 0.0
    %998 = vmatprep.subr.mxu0 0.0
    %999 = vmatpush1.msra.mxu0 0.0
    %1000 = vmatprep.subr.mxu0 0.0
    %1001 = vmatpush1.msra.mxu0 0.0
    %1002 = vmatprep.subr.mxu0 0.0
    %1003 = vmatpush1.msra.mxu0 0.0
    %1004 = vmatprep.subr.mxu0 0.0
    %1005 = vmatpush1.msra.mxu0 0.0
    %1006 = vmatprep.subr.mxu0 0.0
    %1007 = vmatpush1.msra.mxu0 0.0
    %1008 = vmatprep.mubr.f32.mxu0 0.0
    %1009 = vmatmul.mubr.f32.gmra.mrb[0].mxu0 %v942
    %v1010 = vpop.f32.mrb[0].mxu0
    %v1011 = vadd.f32 %v939, %v1010
    %v1012 = vpop.f32.mrb[0].mxu0
    %v1013 = vadd.f32 %v940, %v1012
    %1014 = vdwg.mxu0
    %1016 = vrot.lane.b32.xlu0 %v1011, 80
    %v1017 = vpop.permute.xlu0 %1016
    %v1019 = vadd.f32 %v1011, %v1017
    %v1020 = vxor.u32 %v1019, 2147483648
    %v1021 = vmul.f32 %v1020, 1.442695
    %v1022 = vpow.pop %v1021
    %v1023 = vadd.f32 %v1022, 1.0
    %v1024 = vrcp.pop %v1023
    %v1025 = vmul.f32 1.0, %v1024
    %1026 = vrot.lane.b32.xlu0 %v1011, 48
    %v1027 = vpop.permute.xlu0 %1026
    %v1029 = vmul.f32 %v1025, %v1027
    %1031 = vrot.lane.b32.xlu0 %v1029, 32
    %v1032 = vpop.permute.xlu0 %1031
    %v1034 = vadd.f32 %v1011, %v1032
    %v1035 = vtanh.pop %v1034
    %v1036 = vsub.f32 1.0, %v1025
    %1038 = vrot.lane.b32.xlu0 %v1035, 112
    %v1039 = vpop.permute.xlu0 %1038
    %v1041 = vmul.f32 %v1036, %v1039
    %v1042 = vmul.f32 %v1025, %v918
    %v1043 = vadd.f32 %v1041, %v1042
    %s1044 = scalar_lea.vmem [#allocation9], 8
    %v1045 = vld [vmem:[%s1044] sm:$0xff]
    %1047 = vrot.lane.b32.xlu0 %v1043, 112
    %v1048 = vpop.permute.xlu0 %1047
    %v1050 = vmul.f32 %v1045, %v1048
    %v1051 = vsub.f32 1.0, %v1045
    %1052 = vrot.lane.b32.xlu0 %v918, 112
    %v1053 = vpop.permute.xlu0 %1052
    %v1055 = vmul.f32 %v1051, %v1053
    %v1056 = vadd.f32 %v1050, %v1055
    %1058 = vrot.lane.b32.xlu0 %v1013, 80
    %v1059 = vpop.permute.xlu0 %1058
    %v1061 = vadd.f32 %v1011, %v1059
    %v1062 = vxor.u32 %v1061, 2147483648
    %v1063 = vmul.f32 %v1062, 1.442695
    %v1064 = vpow.pop %v1063
    %v1065 = vadd.f32 %v1064, 1.0
    %v1066 = vrcp.pop %v1065
    %v1067 = vmul.f32 1.0, %v1066
    %1068 = vrot.lane.b32.xlu0 %v1013, 48
    %v1069 = vpop.permute.xlu0 %1068
    %v1071 = vmul.f32 %v1067, %v1069
    %1073 = vrot.lane.b32.xlu0 %v1071, 32
    %v1074 = vpop.permute.xlu0 %1073
    %v1076 = vadd.f32 %v1013, %v1074
    %v1077 = vtanh.pop %v1076
    %v1078 = vsub.f32 1.0, %v1067
    %1080 = vrot.lane.b32.xlu0 %v1077, 112
    %v1081 = vpop.permute.xlu0 %1080
    %v1083 = vmul.f32 %v1078, %v1081
    %v1084 = vmul.f32 %v1067, %v1053
    %v1085 = vadd.f32 %v1083, %v1084
    %1087 = vrot.lane.b32.xlu0 %v1085, 16
    %v1088 = vpop.permute.xlu0 %1087
    %1091 = vrot.lane.b32.xlu0 %v1056, 16
    %v1092 = vpop.permute.xlu0 %1091
    %v1094 = vsel %vm298, %v1088, %v1092
    %v1095 = vsel %vm139, %v1094, %v935
    %s1096 = sld [smem:[#allocation2 + $0x1]]
    %v1098 = vsel %vm144, %v1095, 0
    %1100 = vmatprep.subr.mxu0 0.0
    %1101 = vmatpush1.msra.mxu0 %v111
    %1102 = vmatprep.subr.mxu0 0.0
    %1103 = vmatpush1.msra.mxu0 %v112
    %1104 = vmatprep.subr.mxu0 0.0
    %1105 = vmatpush1.msra.mxu0 %v113
    %1106 = vmatprep.subr.mxu0 0.0
    %1107 = vmatpush1.msra.mxu0 %v114
    %1108 = vmatprep.subr.mxu0 0.0
    %1109 = vmatpush1.msra.mxu0 %v115
    %1110 = vmatprep.subr.mxu0 0.0
    %1111 = vmatpush1.msra.mxu0 0.0
    %1112 = vmatprep.subr.mxu0 0.0
    %1113 = vmatpush1.msra.mxu0 0.0
    %1114 = vmatprep.subr.mxu0 0.0
    %1115 = vmatpush1.msra.mxu0 0.0
    %1116 = vmatprep.subr.mxu0 0.0
    %1117 = vmatpush1.msra.mxu0 0.0
    %1118 = vmatprep.subr.mxu0 0.0
    %1119 = vmatpush1.msra.mxu0 0.0
    %1120 = vmatprep.subr.mxu0 0.0
    %1121 = vmatpush1.msra.mxu0 0.0
    %1122 = vmatprep.subr.mxu0 0.0
    %1123 = vmatpush1.msra.mxu0 0.0
    %1124 = vmatprep.subr.mxu0 0.0
    %1125 = vmatpush1.msra.mxu0 0.0
    %1126 = vmatprep.subr.mxu0 0.0
    %1127 = vmatpush1.msra.mxu0 0.0
    %1128 = vmatprep.subr.mxu0 0.0
    %1129 = vmatpush1.msra.mxu0 0.0
    %1130 = vmatprep.subr.mxu0 0.0
    %1131 = vmatpush1.msra.mxu0 0.0
    %1132 = vmatprep.subr.mxu0 0.0
    %1133 = vmatpush1.msra.mxu0 0.0
    %1134 = vmatprep.subr.mxu0 0.0
    %1135 = vmatpush1.msra.mxu0 0.0
    %1136 = vmatprep.subr.mxu0 0.0
    %1137 = vmatpush1.msra.mxu0 0.0
    %1138 = vmatprep.subr.mxu0 0.0
    %1139 = vmatpush1.msra.mxu0 0.0
    %1140 = vmatprep.subr.mxu0 0.0
    %1141 = vmatpush1.msra.mxu0 0.0
    %1142 = vmatprep.subr.mxu0 0.0
    %1143 = vmatpush1.msra.mxu0 0.0
    %1144 = vmatprep.subr.mxu0 0.0
    %1145 = vmatpush1.msra.mxu0 0.0
    %1146 = vmatprep.subr.mxu0 0.0
    %1147 = vmatpush1.msra.mxu0 0.0
    %1148 = vmatprep.subr.mxu0 0.0
    %1149 = vmatpush1.msra.mxu0 0.0
    %1150 = vmatprep.subr.mxu0 0.0
    %1151 = vmatpush1.msra.mxu0 0.0
    %1152 = vmatprep.subr.mxu0 0.0
    %1153 = vmatpush1.msra.mxu0 0.0
    %1154 = vmatprep.subr.mxu0 0.0
    %1155 = vmatpush1.msra.mxu0 0.0
    %1156 = vmatprep.subr.mxu0 0.0
    %1157 = vmatpush1.msra.mxu0 0.0
    %1158 = vmatprep.subr.mxu0 0.0
    %1159 = vmatpush1.msra.mxu0 0.0
    %1160 = vmatprep.subr.mxu0 0.0
    %1161 = vmatpush1.msra.mxu0 0.0
    %1162 = vmatprep.subr.mxu0 0.0
    %1163 = vmatpush1.msra.mxu0 0.0
    %1164 = vmatprep.mubr.f32.mxu0 0.0
    %1165 = vmatmul.mubr.f32.gmra.mrb[0].mxu0 %v1098
    %v1166 = vpop.f32.mrb[0].mxu0
    %v1167 = vadd.f32 %v125, %v1166
    %v1168 = vpop.f32.mrb[0].mxu0
    %1169 = vdwg.mxu0
    %vm1170 = vcmp.ge.f32.partialorder %v1167, 0.0
    %v1171 = vmul.f32 %v1167, 0.01
    %v1172 = vsel %vm1170, %v1167, %v1171
    %v1174 = vsel %vm139, %v1172, 0
    %1176 = vmatprep.subr.mxu0 0.0
    %1177 = vmatpush1.msra.mxu0 %v116
    %1178 = vmatprep.subr.mxu0 0.0
    %1179 = vmatpush1.msra.mxu0 %v117
    %1180 = vmatprep.subr.mxu0 0.0
    %1181 = vmatpush1.msra.mxu0 %v118
    %1182 = vmatprep.subr.mxu0 0.0
    %1183 = vmatpush1.msra.mxu0 %v119
    %1184 = vmatprep.subr.mxu0 0.0
    %1185 = vmatpush1.msra.mxu0 0.0
    %1186 = vmatprep.subr.mxu0 0.0
    %1187 = vmatpush1.msra.mxu0 0.0
    %1188 = vmatprep.subr.mxu0 0.0
    %1189 = vmatpush1.msra.mxu0 0.0
    %1190 = vmatprep.subr.mxu0 0.0
    %1191 = vmatpush1.msra.mxu0 0.0
    %1192 = vmatprep.subr.mxu0 0.0
    %1193 = vmatpush1.msra.mxu0 0.0
    %1194 = vmatprep.subr.mxu0 0.0
    %1195 = vmatpush1.msra.mxu0 0.0
    %1196 = vmatprep.subr.mxu0 0.0
    %1197 = vmatpush1.msra.mxu0 0.0
    %1198 = vmatprep.subr.mxu0 0.0
    %1199 = vmatpush1.msra.mxu0 0.0
    %1200 = vmatprep.subr.mxu0 0.0
    %1201 = vmatpush1.msra.mxu0 0.0
    %1202 = vmatprep.subr.mxu0 0.0
    %1203 = vmatpush1.msra.mxu0 0.0
    %1204 = vmatprep.subr.mxu0 0.0
    %1205 = vmatpush1.msra.mxu0 0.0
    %1206 = vmatprep.subr.mxu0 0.0
    %1207 = vmatpush1.msra.mxu0 0.0
    %1208 = vmatprep.subr.mxu0 0.0
    %1209 = vmatpush1.msra.mxu0 0.0
    %1210 = vmatprep.subr.mxu0 0.0
    %1211 = vmatpush1.msra.mxu0 0.0
    %1212 = vmatprep.subr.mxu0 0.0
    %1213 = vmatpush1.msra.mxu0 0.0
    %1214 = vmatprep.subr.mxu0 0.0
    %1215 = vmatpush1.msra.mxu0 0.0
    %1216 = vmatprep.subr.mxu0 0.0
    %1217 = vmatpush1.msra.mxu0 0.0
    %1218 = vmatprep.subr.mxu0 0.0
    %1219 = vmatpush1.msra.mxu0 0.0
    %1220 = vmatprep.subr.mxu0 0.0
    %1221 = vmatpush1.msra.mxu0 0.0
    %1222 = vmatprep.subr.mxu0 0.0
    %1223 = vmatpush1.msra.mxu0 0.0
    %1224 = vmatprep.subr.mxu0 0.0
    %1225 = vmatpush1.msra.mxu0 0.0
    %1226 = vmatprep.subr.mxu0 0.0
    %1227 = vmatpush1.msra.mxu0 0.0
    %1228 = vmatprep.subr.mxu0 0.0
    %1229 = vmatpush1.msra.mxu0 0.0
    %1230 = vmatprep.subr.mxu0 0.0
    %1231 = vmatpush1.msra.mxu0 0.0
    %1232 = vmatprep.subr.mxu0 0.0
    %1233 = vmatpush1.msra.mxu0 0.0
    %1234 = vmatprep.subr.mxu0 0.0
    %1235 = vmatpush1.msra.mxu0 0.0
    %1236 = vmatprep.subr.mxu0 0.0
    %1237 = vmatpush1.msra.mxu0 0.0
    %1238 = vmatprep.subr.mxu0 0.0
    %1239 = vmatpush1.msra.mxu0 0.0
    %1240 = vmatprep.mubr.f32.mxu0 0.0
    %1241 = vmatmul.mubr.f32.gmra.mrb[0].mxu0 %v1174
    %v1242 = vpop.f32.mrb[0].mxu0
    %v1243 = vadd.f32 %v132, %v1242
    %v1244 = vpop.f32.mrb[0].mxu0
    %1245 = vdwg.mxu0
    %s1246 = smul.f32 %s1096, 0.33333334
    %v1247 = vstv %s1246
    %v1248 = vmul.f32 %v1247, %v1243
    %v1249 = vadd.f32 %v1095, %v1248
    %v1251 = vsel %vm144, %v1249, 0
    %1253 = vmatprep.subr.mxu0 0.0
    %1254 = vmatpush1.msra.mxu0 %v111
    %1255 = vmatprep.subr.mxu0 0.0
    %1256 = vmatpush1.msra.mxu0 %v112
    %1257 = vmatprep.subr.mxu0 0.0
    %1258 = vmatpush1.msra.mxu0 %v113
    %1259 = vmatprep.subr.mxu0 0.0
    %1260 = vmatpush1.msra.mxu0 %v114
    %1261 = vmatprep.subr.mxu0 0.0
    %1262 = vmatpush1.msra.mxu0 %v115
    %1263 = vmatprep.subr.mxu0 0.0
    %1264 = vmatpush1.msra.mxu0 0.0
    %1265 = vmatprep.subr.mxu0 0.0
    %1266 = vmatpush1.msra.mxu0 0.0
    %1267 = vmatprep.subr.mxu0 0.0
    %1268 = vmatpush1.msra.mxu0 0.0
    %1269 = vmatprep.subr.mxu0 0.0
    %1270 = vmatpush1.msra.mxu0 0.0
    %1271 = vmatprep.subr.mxu0 0.0
    %1272 = vmatpush1.msra.mxu0 0.0
    %1273 = vmatprep.subr.mxu0 0.0
    %1274 = vmatpush1.msra.mxu0 0.0
    %1275 = vmatprep.subr.mxu0 0.0
    %1276 = vmatpush1.msra.mxu0 0.0
    %1277 = vmatprep.subr.mxu0 0.0
    %1278 = vmatpush1.msra.mxu0 0.0
    %1279 = vmatprep.subr.mxu0 0.0
    %1280 = vmatpush1.msra.mxu0 0.0
    %1281 = vmatprep.subr.mxu0 0.0
    %1282 = vmatpush1.msra.mxu0 0.0
    %1283 = vmatprep.subr.mxu0 0.0
    %1284 = vmatpush1.msra.mxu0 0.0
    %1285 = vmatprep.subr.mxu0 0.0
    %1286 = vmatpush1.msra.mxu0 0.0
    %1287 = vmatprep.subr.mxu0 0.0
    %1288 = vmatpush1.msra.mxu0 0.0
    %1289 = vmatprep.subr.mxu0 0.0
    %1290 = vmatpush1.msra.mxu0 0.0
    %1291 = vmatprep.subr.mxu0 0.0
    %1292 = vmatpush1.msra.mxu0 0.0
    %1293 = vmatprep.subr.mxu0 0.0
    %1294 = vmatpush1.msra.mxu0 0.0
    %1295 = vmatprep.subr.mxu0 0.0
    %1296 = vmatpush1.msra.mxu0 0.0
    %1297 = vmatprep.subr.mxu0 0.0
    %1298 = vmatpush1.msra.mxu0 0.0
    %1299 = vmatprep.subr.mxu0 0.0
    %1300 = vmatpush1.msra.mxu0 0.0
    %1301 = vmatprep.subr.mxu0 0.0
    %1302 = vmatpush1.msra.mxu0 0.0
    %1303 = vmatprep.subr.mxu0 0.0
    %1304 = vmatpush1.msra.mxu0 0.0
    %1305 = vmatprep.subr.mxu0 0.0
    %1306 = vmatpush1.msra.mxu0 0.0
    %1307 = vmatprep.subr.mxu0 0.0
    %1308 = vmatpush1.msra.mxu0 0.0
    %1309 = vmatprep.subr.mxu0 0.0
    %1310 = vmatpush1.msra.mxu0 0.0
    %1311 = vmatprep.subr.mxu0 0.0
    %1312 = vmatpush1.msra.mxu0 0.0
    %1313 = vmatprep.subr.mxu0 0.0
    %1314 = vmatpush1.msra.mxu0 0.0
    %1315 = vmatprep.subr.mxu0 0.0
    %1316 = vmatpush1.msra.mxu0 0.0
    %1317 = vmatprep.mubr.f32.mxu0 0.0
    %1318 = vmatmul.mubr.f32.gmra.mrb[0].mxu0 %v1251
    %v1319 = vpop.f32.mrb[0].mxu0
    %v1320 = vadd.f32 %v125, %v1319
    %v1321 = vpop.f32.mrb[0].mxu0
    %1322 = vdwg.mxu0
    %vm1323 = vcmp.ge.f32.partialorder %v1320, 0.0
    %v1324 = vmul.f32 %v1320, 0.01
    %v1325 = vsel %vm1323, %v1320, %v1324
    %v1327 = vsel %vm139, %v1325, 0
    %1329 = vmatprep.subr.mxu0 0.0
    %1330 = vmatpush1.msra.mxu0 %v116
    %1331 = vmatprep.subr.mxu0 0.0
    %1332 = vmatpush1.msra.mxu0 %v117
    %1333 = vmatprep.subr.mxu0 0.0
    %1334 = vmatpush1.msra.mxu0 %v118
    %1335 = vmatprep.subr.mxu0 0.0
    %1336 = vmatpush1.msra.mxu0 %v119
    %1337 = vmatprep.subr.mxu0 0.0
    %1338 = vmatpush1.msra.mxu0 0.0
    %1339 = vmatprep.subr.mxu0 0.0
    %1340 = vmatpush1.msra.mxu0 0.0
    %1341 = vmatprep.subr.mxu0 0.0
    %1342 = vmatpush1.msra.mxu0 0.0
    %1343 = vmatprep.subr.mxu0 0.0
    %1344 = vmatpush1.msra.mxu0 0.0
    %1345 = vmatprep.subr.mxu0 0.0
    %1346 = vmatpush1.msra.mxu0 0.0
    %1347 = vmatprep.subr.mxu0 0.0
    %1348 = vmatpush1.msra.mxu0 0.0
    %1349 = vmatprep.subr.mxu0 0.0
    %1350 = vmatpush1.msra.mxu0 0.0
    %1351 = vmatprep.subr.mxu0 0.0
    %1352 = vmatpush1.msra.mxu0 0.0
    %1353 = vmatprep.subr.mxu0 0.0
    %1354 = vmatpush1.msra.mxu0 0.0
    %1355 = vmatprep.subr.mxu0 0.0
    %1356 = vmatpush1.msra.mxu0 0.0
    %1357 = vmatprep.subr.mxu0 0.0
    %1358 = vmatpush1.msra.mxu0 0.0
    %1359 = vmatprep.subr.mxu0 0.0
    %1360 = vmatpush1.msra.mxu0 0.0
    %1361 = vmatprep.subr.mxu0 0.0
    %1362 = vmatpush1.msra.mxu0 0.0
    %1363 = vmatprep.subr.mxu0 0.0
    %1364 = vmatpush1.msra.mxu0 0.0
    %1365 = vmatprep.subr.mxu0 0.0
    %1366 = vmatpush1.msra.mxu0 0.0
    %1367 = vmatprep.subr.mxu0 0.0
    %1368 = vmatpush1.msra.mxu0 0.0
    %1369 = vmatprep.subr.mxu0 0.0
    %1370 = vmatpush1.msra.mxu0 0.0
    %1371 = vmatprep.subr.mxu0 0.0
    %1372 = vmatpush1.msra.mxu0 0.0
    %1373 = vmatprep.subr.mxu0 0.0
    %1374 = vmatpush1.msra.mxu0 0.0
    %1375 = vmatprep.subr.mxu0 0.0
    %1376 = vmatpush1.msra.mxu0 0.0
    %1377 = vmatprep.subr.mxu0 0.0
    %1378 = vmatpush1.msra.mxu0 0.0
    %1379 = vmatprep.subr.mxu0 0.0
    %1380 = vmatpush1.msra.mxu0 0.0
    %1381 = vmatprep.subr.mxu0 0.0
    %1382 = vmatpush1.msra.mxu0 0.0
    %1383 = vmatprep.subr.mxu0 0.0
    %1384 = vmatpush1.msra.mxu0 0.0
    %1385 = vmatprep.subr.mxu0 0.0
    %1386 = vmatpush1.msra.mxu0 0.0
    %1387 = vmatprep.subr.mxu0 0.0
    %1388 = vmatpush1.msra.mxu0 0.0
    %1389 = vmatprep.subr.mxu0 0.0
    %1390 = vmatpush1.msra.mxu0 0.0
    %1391 = vmatprep.subr.mxu0 0.0
    %1392 = vmatpush1.msra.mxu0 0.0
    %1393 = vmatprep.mubr.f32.mxu0 0.0
    %1394 = vmatmul.mubr.f32.gmra.mrb[0].mxu0 %v1327
    %v1395 = vpop.f32.mrb[0].mxu0
    %v1396 = vadd.f32 %v132, %v1395
    %v1397 = vpop.f32.mrb[0].mxu0
    %1398 = vdwg.mxu0
    %v1399 = vmul.f32 %v1243, 0.33333334
    %v1400 = vsub.f32 %v1396, %v1399
    %v1401 = vstv %s1096
    %v1402 = vmul.f32 %v1401, %v1400
    %v1403 = vadd.f32 %v1095, %v1402
    %v1405 = vsel %vm144, %v1403, 0
    %1407 = vmatprep.subr.mxu0 0.0
    %1408 = vmatpush1.msra.mxu0 %v111
    %1409 = vmatprep.subr.mxu0 0.0
    %1410 = vmatpush1.msra.mxu0 %v112
    %1411 = vmatprep.subr.mxu0 0.0
    %1412 = vmatpush1.msra.mxu0 %v113
    %1413 = vmatprep.subr.mxu0 0.0
    %1414 = vmatpush1.msra.mxu0 %v114
    %1415 = vmatprep.subr.mxu0 0.0
    %1416 = vmatpush1.msra.mxu0 %v115
    %1417 = vmatprep.subr.mxu0 0.0
    %1418 = vmatpush1.msra.mxu0 0.0
    %1419 = vmatprep.subr.mxu0 0.0
    %1420 = vmatpush1.msra.mxu0 0.0
    %1421 = vmatprep.subr.mxu0 0.0
    %1422 = vmatpush1.msra.mxu0 0.0
    %1423 = vmatprep.subr.mxu0 0.0
    %1424 = vmatpush1.msra.mxu0 0.0
    %1425 = vmatprep.subr.mxu0 0.0
    %1426 = vmatpush1.msra.mxu0 0.0
    %1427 = vmatprep.subr.mxu0 0.0
    %1428 = vmatpush1.msra.mxu0 0.0
    %1429 = vmatprep.subr.mxu0 0.0
    %1430 = vmatpush1.msra.mxu0 0.0
    %1431 = vmatprep.subr.mxu0 0.0
    %1432 = vmatpush1.msra.mxu0 0.0
    %1433 = vmatprep.subr.mxu0 0.0
    %1434 = vmatpush1.msra.mxu0 0.0
    %1435 = vmatprep.subr.mxu0 0.0
    %1436 = vmatpush1.msra.mxu0 0.0
    %1437 = vmatprep.subr.mxu0 0.0
    %1438 = vmatpush1.msra.mxu0 0.0
    %1439 = vmatprep.subr.mxu0 0.0
    %1440 = vmatpush1.msra.mxu0 0.0
    %1441 = vmatprep.subr.mxu0 0.0
    %1442 = vmatpush1.msra.mxu0 0.0
    %1443 = vmatprep.subr.mxu0 0.0
    %1444 = vmatpush1.msra.mxu0 0.0
    %1445 = vmatprep.subr.mxu0 0.0
    %1446 = vmatpush1.msra.mxu0 0.0
    %1447 = vmatprep.subr.mxu0 0.0
    %1448 = vmatpush1.msra.mxu0 0.0
    %1449 = vmatprep.subr.mxu0 0.0
    %1450 = vmatpush1.msra.mxu0 0.0
    %1451 = vmatprep.subr.mxu0 0.0
    %1452 = vmatpush1.msra.mxu0 0.0
    %1453 = vmatprep.subr.mxu0 0.0
    %1454 = vmatpush1.msra.mxu0 0.0
    %1455 = vmatprep.subr.mxu0 0.0
    %1456 = vmatpush1.msra.mxu0 0.0
    %1457 = vmatprep.subr.mxu0 0.0
    %1458 = vmatpush1.msra.mxu0 0.0
    %1459 = vmatprep.subr.mxu0 0.0
    %1460 = vmatpush1.msra.mxu0 0.0
    %1461 = vmatprep.subr.mxu0 0.0
    %1462 = vmatpush1.msra.mxu0 0.0
    %1463 = vmatprep.subr.mxu0 0.0
    %1464 = vmatpush1.msra.mxu0 0.0
    %1465 = vmatprep.subr.mxu0 0.0
    %1466 = vmatpush1.msra.mxu0 0.0
    %1467 = vmatprep.subr.mxu0 0.0
    %1468 = vmatpush1.msra.mxu0 0.0
    %1469 = vmatprep.subr.mxu0 0.0
    %1470 = vmatpush1.msra.mxu0 0.0
    %1471 = vmatprep.mubr.f32.mxu0 0.0
    %1472 = vmatmul.mubr.f32.gmra.mrb[0].mxu0 %v1405
    %v1473 = vpop.f32.mrb[0].mxu0
    %v1474 = vadd.f32 %v125, %v1473
    %v1475 = vpop.f32.mrb[0].mxu0
    %1476 = vdwg.mxu0
    %vm1477 = vcmp.ge.f32.partialorder %v1474, 0.0
    %v1478 = vmul.f32 %v1474, 0.01
    %v1479 = vsel %vm1477, %v1474, %v1478
    %v1481 = vsel %vm139, %v1479, 0
    %1483 = vmatprep.subr.mxu0 0.0
    %1484 = vmatpush1.msra.mxu0 %v116
    %1485 = vmatprep.subr.mxu0 0.0
    %1486 = vmatpush1.msra.mxu0 %v117
    %1487 = vmatprep.subr.mxu0 0.0
    %1488 = vmatpush1.msra.mxu0 %v118
    %1489 = vmatprep.subr.mxu0 0.0
    %1490 = vmatpush1.msra.mxu0 %v119
    %1491 = vmatprep.subr.mxu0 0.0
    %1492 = vmatpush1.msra.mxu0 0.0
    %1493 = vmatprep.subr.mxu0 0.0
    %1494 = vmatpush1.msra.mxu0 0.0
    %1495 = vmatprep.subr.mxu0 0.0
    %1496 = vmatpush1.msra.mxu0 0.0
    %1497 = vmatprep.subr.mxu0 0.0
    %1498 = vmatpush1.msra.mxu0 0.0
    %1499 = vmatprep.subr.mxu0 0.0
    %1500 = vmatpush1.msra.mxu0 0.0
    %1501 = vmatprep.subr.mxu0 0.0
    %1502 = vmatpush1.msra.mxu0 0.0
    %1503 = vmatprep.subr.mxu0 0.0
    %1504 = vmatpush1.msra.mxu0 0.0
    %1505 = vmatprep.subr.mxu0 0.0
    %1506 = vmatpush1.msra.mxu0 0.0
    %1507 = vmatprep.subr.mxu0 0.0
    %1508 = vmatpush1.msra.mxu0 0.0
    %1509 = vmatprep.subr.mxu0 0.0
    %1510 = vmatpush1.msra.mxu0 0.0
    %1511 = vmatprep.subr.mxu0 0.0
    %1512 = vmatpush1.msra.mxu0 0.0
    %1513 = vmatprep.subr.mxu0 0.0
    %1514 = vmatpush1.msra.mxu0 0.0
    %1515 = vmatprep.subr.mxu0 0.0
    %1516 = vmatpush1.msra.mxu0 0.0
    %1517 = vmatprep.subr.mxu0 0.0
    %1518 = vmatpush1.msra.mxu0 0.0
    %1519 = vmatprep.subr.mxu0 0.0
    %1520 = vmatpush1.msra.mxu0 0.0
    %1521 = vmatprep.subr.mxu0 0.0
    %1522 = vmatpush1.msra.mxu0 0.0
    %1523 = vmatprep.subr.mxu0 0.0
    %1524 = vmatpush1.msra.mxu0 0.0
    %1525 = vmatprep.subr.mxu0 0.0
    %1526 = vmatpush1.msra.mxu0 0.0
    %1527 = vmatprep.subr.mxu0 0.0
    %1528 = vmatpush1.msra.mxu0 0.0
    %1529 = vmatprep.subr.mxu0 0.0
    %1530 = vmatpush1.msra.mxu0 0.0
    %1531 = vmatprep.subr.mxu0 0.0
    %1532 = vmatpush1.msra.mxu0 0.0
    %1533 = vmatprep.subr.mxu0 0.0
    %1534 = vmatpush1.msra.mxu0 0.0
    %1535 = vmatprep.subr.mxu0 0.0
    %1536 = vmatpush1.msra.mxu0 0.0
    %1537 = vmatprep.subr.mxu0 0.0
    %1538 = vmatpush1.msra.mxu0 0.0
    %1539 = vmatprep.subr.mxu0 0.0
    %1540 = vmatpush1.msra.mxu0 0.0
    %1541 = vmatprep.subr.mxu0 0.0
    %1542 = vmatpush1.msra.mxu0 0.0
    %1543 = vmatprep.subr.mxu0 0.0
    %1544 = vmatpush1.msra.mxu0 0.0
    %1545 = vmatprep.subr.mxu0 0.0
    %1546 = vmatpush1.msra.mxu0 0.0
    %1547 = vmatprep.mubr.f32.mxu0 0.0
    %1548 = vmatmul.mubr.f32.gmra.mrb[0].mxu0 %v1481
    %v1549 = vpop.f32.mrb[0].mxu0
    %v1550 = vadd.f32 %v132, %v1549
    %v1551 = vpop.f32.mrb[0].mxu0
    %1552 = vdwg.mxu0
    %v1553 = vsub.f32 %v1243, %v1396
    %v1554 = vadd.f32 %v1553, %v1550
    %v1555 = vmul.f32 %v1401, %v1554
    %v1556 = vadd.f32 %v1095, %v1555
    %v1558 = vsel %vm144, %v1556, 0
    %1560 = vmatprep.subr.mxu0 0.0
    %1561 = vmatpush1.msra.mxu0 %v111
    %1562 = vmatprep.subr.mxu0 0.0
    %1563 = vmatpush1.msra.mxu0 %v112
    %1564 = vmatprep.subr.mxu0 0.0
    %1565 = vmatpush1.msra.mxu0 %v113
    %1566 = vmatprep.subr.mxu0 0.0
    %1567 = vmatpush1.msra.mxu0 %v114
    %1568 = vmatprep.subr.mxu0 0.0
    %1569 = vmatpush1.msra.mxu0 %v115
    %1570 = vmatprep.subr.mxu0 0.0
    %1571 = vmatpush1.msra.mxu0 0.0
    %1572 = vmatprep.subr.mxu0 0.0
    %1573 = vmatpush1.msra.mxu0 0.0
    %1574 = vmatprep.subr.mxu0 0.0
    %1575 = vmatpush1.msra.mxu0 0.0
    %1576 = vmatprep.subr.mxu0 0.0
    %1577 = vmatpush1.msra.mxu0 0.0
    %1578 = vmatprep.subr.mxu0 0.0
    %1579 = vmatpush1.msra.mxu0 0.0
    %1580 = vmatprep.subr.mxu0 0.0
    %1581 = vmatpush1.msra.mxu0 0.0
    %1582 = vmatprep.subr.mxu0 0.0
    %1583 = vmatpush1.msra.mxu0 0.0
    %1584 = vmatprep.subr.mxu0 0.0
    %1585 = vmatpush1.msra.mxu0 0.0
    %1586 = vmatprep.subr.mxu0 0.0
    %1587 = vmatpush1.msra.mxu0 0.0
    %1588 = vmatprep.subr.mxu0 0.0
    %1589 = vmatpush1.msra.mxu0 0.0
    %1590 = vmatprep.subr.mxu0 0.0
    %1591 = vmatpush1.msra.mxu0 0.0
    %1592 = vmatprep.subr.mxu0 0.0
    %1593 = vmatpush1.msra.mxu0 0.0
    %1594 = vmatprep.subr.mxu0 0.0
    %1595 = vmatpush1.msra.mxu0 0.0
    %1596 = vmatprep.subr.mxu0 0.0
    %1597 = vmatpush1.msra.mxu0 0.0
    %1598 = vmatprep.subr.mxu0 0.0
    %1599 = vmatpush1.msra.mxu0 0.0
    %1600 = vmatprep.subr.mxu0 0.0
    %1601 = vmatpush1.msra.mxu0 0.0
    %1602 = vmatprep.subr.mxu0 0.0
    %1603 = vmatpush1.msra.mxu0 0.0
    %1604 = vmatprep.subr.mxu0 0.0
    %1605 = vmatpush1.msra.mxu0 0.0
    %1606 = vmatprep.subr.mxu0 0.0
    %1607 = vmatpush1.msra.mxu0 0.0
    %1608 = vmatprep.subr.mxu0 0.0
    %1609 = vmatpush1.msra.mxu0 0.0
    %1610 = vmatprep.subr.mxu0 0.0
    %1611 = vmatpush1.msra.mxu0 0.0
    %1612 = vmatprep.subr.mxu0 0.0
    %1613 = vmatpush1.msra.mxu0 0.0
    %1614 = vmatprep.subr.mxu0 0.0
    %1615 = vmatpush1.msra.mxu0 0.0
    %1616 = vmatprep.subr.mxu0 0.0
    %1617 = vmatpush1.msra.mxu0 0.0
    %1618 = vmatprep.subr.mxu0 0.0
    %1619 = vmatpush1.msra.mxu0 0.0
    %1620 = vmatprep.subr.mxu0 0.0
    %1621 = vmatpush1.msra.mxu0 0.0
    %1622 = vmatprep.subr.mxu0 0.0
    %1623 = vmatpush1.msra.mxu0 0.0
    %1624 = vmatprep.mubr.f32.mxu0 0.0
    %1625 = vmatmul.mubr.f32.gmra.mrb[0].mxu0 %v1558
    %v1626 = vpop.f32.mrb[0].mxu0
    %v1627 = vadd.f32 %v125, %v1626
    %v1628 = vpop.f32.mrb[0].mxu0
    %1629 = vdwg.mxu0
    %vm1630 = vcmp.ge.f32.partialorder %v1627, 0.0
    %v1631 = vmul.f32 %v1627, 0.01
    %v1632 = vsel %vm1630, %v1627, %v1631
    %v1634 = vsel %vm139, %v1632, 0
    %1636 = vmatprep.subr.mxu0 0.0
    %1637 = vmatpush1.msra.mxu0 %v116
    %1638 = vmatprep.subr.mxu0 0.0
    %1639 = vmatpush1.msra.mxu0 %v117
    %1640 = vmatprep.subr.mxu0 0.0
    %1641 = vmatpush1.msra.mxu0 %v118
    %1642 = vmatprep.subr.mxu0 0.0
    %1643 = vmatpush1.msra.mxu0 %v119
    %1644 = vmatprep.subr.mxu0 0.0
    %1645 = vmatpush1.msra.mxu0 0.0
    %1646 = vmatprep.subr.mxu0 0.0
    %1647 = vmatpush1.msra.mxu0 0.0
    %1648 = vmatprep.subr.mxu0 0.0
    %1649 = vmatpush1.msra.mxu0 0.0
    %1650 = vmatprep.subr.mxu0 0.0
    %1651 = vmatpush1.msra.mxu0 0.0
    %1652 = vmatprep.subr.mxu0 0.0
    %1653 = vmatpush1.msra.mxu0 0.0
    %1654 = vmatprep.subr.mxu0 0.0
    %1655 = vmatpush1.msra.mxu0 0.0
    %1656 = vmatprep.subr.mxu0 0.0
    %1657 = vmatpush1.msra.mxu0 0.0
    %1658 = vmatprep.subr.mxu0 0.0
    %1659 = vmatpush1.msra.mxu0 0.0
    %1660 = vmatprep.subr.mxu0 0.0
    %1661 = vmatpush1.msra.mxu0 0.0
    %1662 = vmatprep.subr.mxu0 0.0
    %1663 = vmatpush1.msra.mxu0 0.0
    %1664 = vmatprep.subr.mxu0 0.0
    %1665 = vmatpush1.msra.mxu0 0.0
    %1666 = vmatprep.subr.mxu0 0.0
    %1667 = vmatpush1.msra.mxu0 0.0
    %1668 = vmatprep.subr.mxu0 0.0
    %1669 = vmatpush1.msra.mxu0 0.0
    %1670 = vmatprep.subr.mxu0 0.0
    %1671 = vmatpush1.msra.mxu0 0.0
    %1672 = vmatprep.subr.mxu0 0.0
    %1673 = vmatpush1.msra.mxu0 0.0
    %1674 = vmatprep.subr.mxu0 0.0
    %1675 = vmatpush1.msra.mxu0 0.0
    %1676 = vmatprep.subr.mxu0 0.0
    %1677 = vmatpush1.msra.mxu0 0.0
    %1678 = vmatprep.subr.mxu0 0.0
    %1679 = vmatpush1.msra.mxu0 0.0
    %1680 = vmatprep.subr.mxu0 0.0
    %1681 = vmatpush1.msra.mxu0 0.0
    %1682 = vmatprep.subr.mxu0 0.0
    %1683 = vmatpush1.msra.mxu0 0.0
    %1684 = vmatprep.subr.mxu0 0.0
    %1685 = vmatpush1.msra.mxu0 0.0
    %1686 = vmatprep.subr.mxu0 0.0
    %1687 = vmatpush1.msra.mxu0 0.0
    %1688 = vmatprep.subr.mxu0 0.0
    %1689 = vmatpush1.msra.mxu0 0.0
    %1690 = vmatprep.subr.mxu0 0.0
    %1691 = vmatpush1.msra.mxu0 0.0
    %1692 = vmatprep.subr.mxu0 0.0
    %1693 = vmatpush1.msra.mxu0 0.0
    %1694 = vmatprep.subr.mxu0 0.0
    %1695 = vmatpush1.msra.mxu0 0.0
    %1696 = vmatprep.subr.mxu0 0.0
    %1697 = vmatpush1.msra.mxu0 0.0
    %1698 = vmatprep.subr.mxu0 0.0
    %1699 = vmatpush1.msra.mxu0 0.0
    %1700 = vmatprep.mubr.f32.mxu0 0.0
    %1701 = vmatmul.mubr.f32.gmra.mrb[0].mxu0 %v1634
    %v1702 = vpop.f32.mrb[0].mxu0
    %v1703 = vadd.f32 %v132, %v1702
    %v1704 = vpop.f32.mrb[0].mxu0
    %1705 = vdwg.mxu0
    %v1706 = vadd.f32 %v1396, %v1550
    %v1707 = vmul.f32 %v1706, 3.0
    %v1708 = vadd.f32 %v1243, %v1707
    %v1709 = vadd.f32 %v1708, %v1703
    %s1710 = smul.f32 %s1096, 0.125
    %v1711 = vstv %s1710
    %v1712 = vmul.f32 %v1709, %v1711
    %v1713 = vadd.f32 %v1095, %v1712
    %1715 = vrot.lane.b32.xlu0 %v1713, 96
    %v1716 = vpop.permute.xlu0 %1715
    %1718 = vrot.lane.b32.xlu0 %v1056, 8
    %v1719 = vpop.permute.xlu0 %1718
    %v1721 = vsel %vm926, %v1716, %v1719
    %v1722 = vsel %vm928, %v1721, 0.0
    %s1723 = scalar_lea.vmem [#allocation12], 8
    %1724 = vst [vmem:[%s1723] sm:$0xff] %v1722
    %s1725 = scalar_lea.vmem [#allocation6], 16
    %v1726 = vld [vmem:[%s1725] sm:$0xff]
    %1728 = vrot.lane.b32.xlu0 %v1726, 32
    %v1729 = vpop.permute.xlu0 %1728
    %v1731 = vsel %vm139, %v1713, %v1729
    %s1732 = scalar_lea.vmem [#allocation7], 32
    %v1733 = vld [vmem:[%s1732] sm:$0xff]
    %v1734 = vld [vmem:[%s1732 + $0x8] sm:$0xff]
    %v1736 = vsel %vm144, %v1731, 0
    %1738 = vmatprep.subr.mxu0 %v102
    %1739 = vmatpush1.msra.mxu0 %v101
    %1740 = vmatprep.subr.mxu0 %v104
    %1741 = vmatpush1.msra.mxu0 %v103
    %1742 = vmatprep.subr.mxu0 %v106
    %1743 = vmatpush1.msra.mxu0 %v105
    %1744 = vmatprep.subr.mxu0 %v108
    %1745 = vmatpush1.msra.mxu0 %v107
    %1746 = vmatprep.subr.mxu0 %v110
    %1747 = vmatpush1.msra.mxu0 %v109
    %1748 = vmatprep.subr.mxu0 0.0
    %1749 = vmatpush1.msra.mxu0 0.0
    %1750 = vmatprep.subr.mxu0 0.0
    %1751 = vmatpush1.msra.mxu0 0.0
    %1752 = vmatprep.subr.mxu0 0.0
    %1753 = vmatpush1.msra.mxu0 0.0
    %1754 = vmatprep.subr.mxu0 0.0
    %1755 = vmatpush1.msra.mxu0 0.0
    %1756 = vmatprep.subr.mxu0 0.0
    %1757 = vmatpush1.msra.mxu0 0.0
    %1758 = vmatprep.subr.mxu0 0.0
    %1759 = vmatpush1.msra.mxu0 0.0
    %1760 = vmatprep.subr.mxu0 0.0
    %1761 = vmatpush1.msra.mxu0 0.0
    %1762 = vmatprep.subr.mxu0 0.0
    %1763 = vmatpush1.msra.mxu0 0.0
    %1764 = vmatprep.subr.mxu0 0.0
    %1765 = vmatpush1.msra.mxu0 0.0
    %1766 = vmatprep.subr.mxu0 0.0
    %1767 = vmatpush1.msra.mxu0 0.0
    %1768 = vmatprep.subr.mxu0 0.0
    %1769 = vmatpush1.msra.mxu0 0.0
    %1770 = vmatprep.subr.mxu0 0.0
    %1771 = vmatpush1.msra.mxu0 0.0
    %1772 = vmatprep.subr.mxu0 0.0
    %1773 = vmatpush1.msra.mxu0 0.0
    %1774 = vmatprep.subr.mxu0 0.0
    %1775 = vmatpush1.msra.mxu0 0.0
    %1776 = vmatprep.subr.mxu0 0.0
    %1777 = vmatpush1.msra.mxu0 0.0
    %1778 = vmatprep.subr.mxu0 0.0
    %1779 = vmatpush1.msra.mxu0 0.0
    %1780 = vmatprep.subr.mxu0 0.0
    %1781 = vmatpush1.msra.mxu0 0.0
    %1782 = vmatprep.subr.mxu0 0.0
    %1783 = vmatpush1.msra.mxu0 0.0
    %1784 = vmatprep.subr.mxu0 0.0
    %1785 = vmatpush1.msra.mxu0 0.0
    %1786 = vmatprep.subr.mxu0 0.0
    %1787 = vmatpush1.msra.mxu0 0.0
    %1788 = vmatprep.subr.mxu0 0.0
    %1789 = vmatpush1.msra.mxu0 0.0
    %1790 = vmatprep.subr.mxu0 0.0
    %1791 = vmatpush1.msra.mxu0 0.0
    %1792 = vmatprep.subr.mxu0 0.0
    %1793 = vmatpush1.msra.mxu0 0.0
    %1794 = vmatprep.subr.mxu0 0.0
    %1795 = vmatpush1.msra.mxu0 0.0
    %1796 = vmatprep.subr.mxu0 0.0
    %1797 = vmatpush1.msra.mxu0 0.0
    %1798 = vmatprep.subr.mxu0 0.0
    %1799 = vmatpush1.msra.mxu0 0.0
    %1800 = vmatprep.subr.mxu0 0.0
    %1801 = vmatpush1.msra.mxu0 0.0
    %1802 = vmatprep.mubr.f32.mxu0 0.0
    %1803 = vmatmul.mubr.f32.gmra.mrb[0].mxu0 %v1736
    %v1804 = vpop.f32.mrb[0].mxu0
    %v1805 = vadd.f32 %v1733, %v1804
    %v1806 = vpop.f32.mrb[0].mxu0
    %v1807 = vadd.f32 %v1734, %v1806
    %1808 = vdwg.mxu0
    %1810 = vrot.lane.b32.xlu0 %v1805, 80
    %v1811 = vpop.permute.xlu0 %1810
    %v1813 = vadd.f32 %v1805, %v1811
    %v1814 = vxor.u32 %v1813, 2147483648
    %v1815 = vmul.f32 %v1814, 1.442695
    %v1816 = vpow.pop %v1815
    %v1817 = vadd.f32 %v1816, 1.0
    %v1818 = vrcp.pop %v1817
    %v1819 = vmul.f32 1.0, %v1818
    %1820 = vrot.lane.b32.xlu0 %v1805, 48
    %v1821 = vpop.permute.xlu0 %1820
    %v1823 = vmul.f32 %v1819, %v1821
    %1825 = vrot.lane.b32.xlu0 %v1823, 32
    %v1826 = vpop.permute.xlu0 %1825
    %v1828 = vadd.f32 %v1805, %v1826
    %v1829 = vtanh.pop %v1828
    %v1830 = vsub.f32 1.0, %v1819
    %1832 = vrot.lane.b32.xlu0 %v1829, 112
    %v1833 = vpop.permute.xlu0 %1832
    %v1835 = vmul.f32 %v1830, %v1833
    %v1836 = vmul.f32 %v1819, %v1713
    %v1837 = vadd.f32 %v1835, %v1836
    %s1838 = scalar_lea.vmem [#allocation9], 16
    %v1839 = vld [vmem:[%s1838] sm:$0xff]
    %1841 = vrot.lane.b32.xlu0 %v1837, 112
    %v1842 = vpop.permute.xlu0 %1841
    %v1844 = vmul.f32 %v1839, %v1842
    %v1845 = vsub.f32 1.0, %v1839
    %1846 = vrot.lane.b32.xlu0 %v1713, 112
    %v1847 = vpop.permute.xlu0 %1846
    %v1849 = vmul.f32 %v1845, %v1847
    %v1850 = vadd.f32 %v1844, %v1849
    %1852 = vrot.lane.b32.xlu0 %v1807, 80
    %v1853 = vpop.permute.xlu0 %1852
    %v1855 = vadd.f32 %v1805, %v1853
    %v1856 = vxor.u32 %v1855, 2147483648
    %v1857 = vmul.f32 %v1856, 1.442695
    %v1858 = vpow.pop %v1857
    %v1859 = vadd.f32 %v1858, 1.0
    %v1860 = vrcp.pop %v1859
    %v1861 = vmul.f32 1.0, %v1860
    %1862 = vrot.lane.b32.xlu0 %v1807, 48
    %v1863 = vpop.permute.xlu0 %1862
    %v1865 = vmul.f32 %v1861, %v1863
    %1867 = vrot.lane.b32.xlu0 %v1865, 32
    %v1868 = vpop.permute.xlu0 %1867
    %v1870 = vadd.f32 %v1807, %v1868
    %v1871 = vtanh.pop %v1870
    %v1872 = vsub.f32 1.0, %v1861
    %1874 = vrot.lane.b32.xlu0 %v1871, 112
    %v1875 = vpop.permute.xlu0 %1874
    %v1877 = vmul.f32 %v1872, %v1875
    %v1878 = vmul.f32 %v1861, %v1847
    %v1879 = vadd.f32 %v1877, %v1878
    %1881 = vrot.lane.b32.xlu0 %v1879, 16
    %v1882 = vpop.permute.xlu0 %1881
    %1885 = vrot.lane.b32.xlu0 %v1850, 16
    %v1886 = vpop.permute.xlu0 %1885
    %v1888 = vsel %vm298, %v1882, %v1886
    %v1889 = vsel %vm139, %v1888, %v1729
    %s1890 = sld [smem:[#allocation2 + $0x2]]
    %v1892 = vsel %vm144, %v1889, 0
    %1894 = vmatprep.subr.mxu0 0.0
    %1895 = vmatpush1.msra.mxu0 %v111
    %1896 = vmatprep.subr.mxu0 0.0
    %1897 = vmatpush1.msra.mxu0 %v112
    %1898 = vmatprep.subr.mxu0 0.0
    %1899 = vmatpush1.msra.mxu0 %v113
    %1900 = vmatprep.subr.mxu0 0.0
    %1901 = vmatpush1.msra.mxu0 %v114
    %1902 = vmatprep.subr.mxu0 0.0
    %1903 = vmatpush1.msra.mxu0 %v115
    %1904 = vmatprep.subr.mxu0 0.0
    %1905 = vmatpush1.msra.mxu0 0.0
    %1906 = vmatprep.subr.mxu0 0.0
    %1907 = vmatpush1.msra.mxu0 0.0
    %1908 = vmatprep.subr.mxu0 0.0
    %1909 = vmatpush1.msra.mxu0 0.0
    %1910 = vmatprep.subr.mxu0 0.0
    %1911 = vmatpush1.msra.mxu0 0.0
    %1912 = vmatprep.subr.mxu0 0.0
    %1913 = vmatpush1.msra.mxu0 0.0
    %1914 = vmatprep.subr.mxu0 0.0
    %1915 = vmatpush1.msra.mxu0 0.0
    %1916 = vmatprep.subr.mxu0 0.0
    %1917 = vmatpush1.msra.mxu0 0.0
    %1918 = vmatprep.subr.mxu0 0.0
    %1919 = vmatpush1.msra.mxu0 0.0
    %1920 = vmatprep.subr.mxu0 0.0
    %1921 = vmatpush1.msra.mxu0 0.0
    %1922 = vmatprep.subr.mxu0 0.0
    %1923 = vmatpush1.msra.mxu0 0.0
    %1924 = vmatprep.subr.mxu0 0.0
    %1925 = vmatpush1.msra.mxu0 0.0
    %1926 = vmatprep.subr.mxu0 0.0
    %1927 = vmatpush1.msra.mxu0 0.0
    %1928 = vmatprep.subr.mxu0 0.0
    %1929 = vmatpush1.msra.mxu0 0.0
    %1930 = vmatprep.subr.mxu0 0.0
    %1931 = vmatpush1.msra.mxu0 0.0
    %1932 = vmatprep.subr.mxu0 0.0
    %1933 = vmatpush1.msra.mxu0 0.0
    %1934 = vmatprep.subr.mxu0 0.0
    %1935 = vmatpush1.msra.mxu0 0.0
    %1936 = vmatprep.subr.mxu0 0.0
    %1937 = vmatpush1.msra.mxu0 0.0
    %1938 = vmatprep.subr.mxu0 0.0
    %1939 = vmatpush1.msra.mxu0 0.0
    %1940 = vmatprep.subr.mxu0 0.0
    %1941 = vmatpush1.msra.mxu0 0.0
    %1942 = vmatprep.subr.mxu0 0.0
    %1943 = vmatpush1.msra.mxu0 0.0
    %1944 = vmatprep.subr.mxu0 0.0
    %1945 = vmatpush1.msra.mxu0 0.0
    %1946 = vmatprep.subr.mxu0 0.0
    %1947 = vmatpush1.msra.mxu0 0.0
    %1948 = vmatprep.subr.mxu0 0.0
    %1949 = vmatpush1.msra.mxu0 0.0
    %1950 = vmatprep.subr.mxu0 0.0
    %1951 = vmatpush1.msra.mxu0 0.0
    %1952 = vmatprep.subr.mxu0 0.0
    %1953 = vmatpush1.msra.mxu0 0.0
    %1954 = vmatprep.subr.mxu0 0.0
    %1955 = vmatpush1.msra.mxu0 0.0
    %1956 = vmatprep.subr.mxu0 0.0
    %1957 = vmatpush1.msra.mxu0 0.0
    %1958 = vmatprep.mubr.f32.mxu0 0.0
    %1959 = vmatmul.mubr.f32.gmra.mrb[0].mxu0 %v1892
    %v1960 = vpop.f32.mrb[0].mxu0
    %v1961 = vadd.f32 %v125, %v1960
    %v1962 = vpop.f32.mrb[0].mxu0
    %1963 = vdwg.mxu0
    %vm1964 = vcmp.ge.f32.partialorder %v1961, 0.0
    %v1965 = vmul.f32 %v1961, 0.01
    %v1966 = vsel %vm1964, %v1961, %v1965
    %v1968 = vsel %vm139, %v1966, 0
    %1970 = vmatprep.subr.mxu0 0.0
    %1971 = vmatpush1.msra.mxu0 %v116
    %1972 = vmatprep.subr.mxu0 0.0
    %1973 = vmatpush1.msra.mxu0 %v117
    %1974 = vmatprep.subr.mxu0 0.0
    %1975 = vmatpush1.msra.mxu0 %v118
    %1976 = vmatprep.subr.mxu0 0.0
    %1977 = vmatpush1.msra.mxu0 %v119
    %1978 = vmatprep.subr.mxu0 0.0
    %1979 = vmatpush1.msra.mxu0 0.0
    %1980 = vmatprep.subr.mxu0 0.0
    %1981 = vmatpush1.msra.mxu0 0.0
    %1982 = vmatprep.subr.mxu0 0.0
    %1983 = vmatpush1.msra.mxu0 0.0
    %1984 = vmatprep.subr.mxu0 0.0
    %1985 = vmatpush1.msra.mxu0 0.0
    %1986 = vmatprep.subr.mxu0 0.0
    %1987 = vmatpush1.msra.mxu0 0.0
    %1988 = vmatprep.subr.mxu0 0.0
    %1989 = vmatpush1.msra.mxu0 0.0
    %1990 = vmatprep.subr.mxu0 0.0
    %1991 = vmatpush1.msra.mxu0 0.0
    %1992 = vmatprep.subr.mxu0 0.0
    %1993 = vmatpush1.msra.mxu0 0.0
    %1994 = vmatprep.subr.mxu0 0.0
    %1995 = vmatpush1.msra.mxu0 0.0
    %1996 = vmatprep.subr.mxu0 0.0
    %1997 = vmatpush1.msra.mxu0 0.0
    %1998 = vmatprep.subr.mxu0 0.0
    %1999 = vmatpush1.msra.mxu0 0.0
    %2000 = vmatprep.subr.mxu0 0.0
    %2001 = vmatpush1.msra.mxu0 0.0
    %2002 = vmatprep.subr.mxu0 0.0
    %2003 = vmatpush1.msra.mxu0 0.0
    %2004 = vmatprep.subr.mxu0 0.0
    %2005 = vmatpush1.msra.mxu0 0.0
    %2006 = vmatprep.subr.mxu0 0.0
    %2007 = vmatpush1.msra.mxu0 0.0
    %2008 = vmatprep.subr.mxu0 0.0
    %2009 = vmatpush1.msra.mxu0 0.0
    %2010 = vmatprep.subr.mxu0 0.0
    %2011 = vmatpush1.msra.mxu0 0.0
    %2012 = vmatprep.subr.mxu0 0.0
    %2013 = vmatpush1.msra.mxu0 0.0
    %2014 = vmatprep.subr.mxu0 0.0
    %2015 = vmatpush1.msra.mxu0 0.0
    %2016 = vmatprep.subr.mxu0 0.0
    %2017 = vmatpush1.msra.mxu0 0.0
    %2018 = vmatprep.subr.mxu0 0.0
    %2019 = vmatpush1.msra.mxu0 0.0
    %2020 = vmatprep.subr.mxu0 0.0
    %2021 = vmatpush1.msra.mxu0 0.0
    %2022 = vmatprep.subr.mxu0 0.0
    %2023 = vmatpush1.msra.mxu0 0.0
    %2024 = vmatprep.subr.mxu0 0.0
    %2025 = vmatpush1.msra.mxu0 0.0
    %2026 = vmatprep.subr.mxu0 0.0
    %2027 = vmatpush1.msra.mxu0 0.0
    %2028 = vmatprep.subr.mxu0 0.0
    %2029 = vmatpush1.msra.mxu0 0.0
    %2030 = vmatprep.subr.mxu0 0.0
    %2031 = vmatpush1.msra.mxu0 0.0
    %2032 = vmatprep.subr.mxu0 0.0
    %2033 = vmatpush1.msra.mxu0 0.0
    %2034 = vmatprep.mubr.f32.mxu0 0.0
    %2035 = vmatmul.mubr.f32.gmra.mrb[0].mxu0 %v1968
    %v2036 = vpop.f32.mrb[0].mxu0
    %v2037 = vadd.f32 %v132, %v2036
    %v2038 = vpop.f32.mrb[0].mxu0
    %2039 = vdwg.mxu0
    %s2040 = smul.f32 %s1890, 0.33333334
    %v2041 = vstv %s2040
    %v2042 = vmul.f32 %v2041, %v2037
    %v2043 = vadd.f32 %v1889, %v2042
    %v2045 = vsel %vm144, %v2043, 0
    %2047 = vmatprep.subr.mxu0 0.0
    %2048 = vmatpush1.msra.mxu0 %v111
    %2049 = vmatprep.subr.mxu0 0.0
    %2050 = vmatpush1.msra.mxu0 %v112
    %2051 = vmatprep.subr.mxu0 0.0
    %2052 = vmatpush1.msra.mxu0 %v113
    %2053 = vmatprep.subr.mxu0 0.0
    %2054 = vmatpush1.msra.mxu0 %v114
    %2055 = vmatprep.subr.mxu0 0.0
    %2056 = vmatpush1.msra.mxu0 %v115
    %2057 = vmatprep.subr.mxu0 0.0
    %2058 = vmatpush1.msra.mxu0 0.0
    %2059 = vmatprep.subr.mxu0 0.0
    %2060 = vmatpush1.msra.mxu0 0.0
    %2061 = vmatprep.subr.mxu0 0.0
    %2062 = vmatpush1.msra.mxu0 0.0
    %2063 = vmatprep.subr.mxu0 0.0
    %2064 = vmatpush1.msra.mxu0 0.0
    %2065 = vmatprep.subr.mxu0 0.0
    %2066 = vmatpush1.msra.mxu0 0.0
    %2067 = vmatprep.subr.mxu0 0.0
    %2068 = vmatpush1.msra.mxu0 0.0
    %2069 = vmatprep.subr.mxu0 0.0
    %2070 = vmatpush1.msra.mxu0 0.0
    %2071 = vmatprep.subr.mxu0 0.0
    %2072 = vmatpush1.msra.mxu0 0.0
    %2073 = vmatprep.subr.mxu0 0.0
    %2074 = vmatpush1.msra.mxu0 0.0
    %2075 = vmatprep.subr.mxu0 0.0
    %2076 = vmatpush1.msra.mxu0 0.0
    %2077 = vmatprep.subr.mxu0 0.0
    %2078 = vmatpush1.msra.mxu0 0.0
    %2079 = vmatprep.subr.mxu0 0.0
    %2080 = vmatpush1.msra.mxu0 0.0
    %2081 = vmatprep.subr.mxu0 0.0
    %2082 = vmatpush1.msra.mxu0 0.0
    %2083 = vmatprep.subr.mxu0 0.0
    %2084 = vmatpush1.msra.mxu0 0.0
    %2085 = vmatprep.subr.mxu0 0.0
    %2086 = vmatpush1.msra.mxu0 0.0
    %2087 = vmatprep.subr.mxu0 0.0
    %2088 = vmatpush1.msra.mxu0 0.0
    %2089 = vmatprep.subr.mxu0 0.0
    %2090 = vmatpush1.msra.mxu0 0.0
    %2091 = vmatprep.subr.mxu0 0.0
    %2092 = vmatpush1.msra.mxu0 0.0
    %2093 = vmatprep.subr.mxu0 0.0
    %2094 = vmatpush1.msra.mxu0 0.0
    %2095 = vmatprep.subr.mxu0 0.0
    %2096 = vmatpush1.msra.mxu0 0.0
    %2097 = vmatprep.subr.mxu0 0.0
    %2098 = vmatpush1.msra.mxu0 0.0
    %2099 = vmatprep.subr.mxu0 0.0
    %2100 = vmatpush1.msra.mxu0 0.0
    %2101 = vmatprep.subr.mxu0 0.0
    %2102 = vmatpush1.msra.mxu0 0.0
    %2103 = vmatprep.subr.mxu0 0.0
    %2104 = vmatpush1.msra.mxu0 0.0
    %2105 = vmatprep.subr.mxu0 0.0
    %2106 = vmatpush1.msra.mxu0 0.0
    %2107 = vmatprep.subr.mxu0 0.0
    %2108 = vmatpush1.msra.mxu0 0.0
    %2109 = vmatprep.subr.mxu0 0.0
    %2110 = vmatpush1.msra.mxu0 0.0
    %2111 = vmatprep.mubr.f32.mxu0 0.0
    %2112 = vmatmul.mubr.f32.gmra.mrb[0].mxu0 %v2045
    %v2113 = vpop.f32.mrb[0].mxu0
    %v2114 = vadd.f32 %v125, %v2113
    %v2115 = vpop.f32.mrb[0].mxu0
    %2116 = vdwg.mxu0
    %vm2117 = vcmp.ge.f32.partialorder %v2114, 0.0
    %v2118 = vmul.f32 %v2114, 0.01
    %v2119 = vsel %vm2117, %v2114, %v2118
    %v2121 = vsel %vm139, %v2119, 0
    %2123 = vmatprep.subr.mxu0 0.0
    %2124 = vmatpush1.msra.mxu0 %v116
    %2125 = vmatprep.subr.mxu0 0.0
    %2126 = vmatpush1.msra.mxu0 %v117
    %2127 = vmatprep.subr.mxu0 0.0
    %2128 = vmatpush1.msra.mxu0 %v118
    %2129 = vmatprep.subr.mxu0 0.0
    %2130 = vmatpush1.msra.mxu0 %v119
    %2131 = vmatprep.subr.mxu0 0.0
    %2132 = vmatpush1.msra.mxu0 0.0
    %2133 = vmatprep.subr.mxu0 0.0
    %2134 = vmatpush1.msra.mxu0 0.0
    %2135 = vmatprep.subr.mxu0 0.0
    %2136 = vmatpush1.msra.mxu0 0.0
    %2137 = vmatprep.subr.mxu0 0.0
    %2138 = vmatpush1.msra.mxu0 0.0
    %2139 = vmatprep.subr.mxu0 0.0
    %2140 = vmatpush1.msra.mxu0 0.0
    %2141 = vmatprep.subr.mxu0 0.0
    %2142 = vmatpush1.msra.mxu0 0.0
    %2143 = vmatprep.subr.mxu0 0.0
    %2144 = vmatpush1.msra.mxu0 0.0
    %2145 = vmatprep.subr.mxu0 0.0
    %2146 = vmatpush1.msra.mxu0 0.0
    %2147 = vmatprep.subr.mxu0 0.0
    %2148 = vmatpush1.msra.mxu0 0.0
    %2149 = vmatprep.subr.mxu0 0.0
    %2150 = vmatpush1.msra.mxu0 0.0
    %2151 = vmatprep.subr.mxu0 0.0
    %2152 = vmatpush1.msra.mxu0 0.0
    %2153 = vmatprep.subr.mxu0 0.0
    %2154 = vmatpush1.msra.mxu0 0.0
    %2155 = vmatprep.subr.mxu0 0.0
    %2156 = vmatpush1.msra.mxu0 0.0
    %2157 = vmatprep.subr.mxu0 0.0
    %2158 = vmatpush1.msra.mxu0 0.0
    %2159 = vmatprep.subr.mxu0 0.0
    %2160 = vmatpush1.msra.mxu0 0.0
    %2161 = vmatprep.subr.mxu0 0.0
    %2162 = vmatpush1.msra.mxu0 0.0
    %2163 = vmatprep.subr.mxu0 0.0
    %2164 = vmatpush1.msra.mxu0 0.0
    %2165 = vmatprep.subr.mxu0 0.0
    %2166 = vmatpush1.msra.mxu0 0.0
    %2167 = vmatprep.subr.mxu0 0.0
    %2168 = vmatpush1.msra.mxu0 0.0
    %2169 = vmatprep.subr.mxu0 0.0
    %2170 = vmatpush1.msra.mxu0 0.0
    %2171 = vmatprep.subr.mxu0 0.0
    %2172 = vmatpush1.msra.mxu0 0.0
    %2173 = vmatprep.subr.mxu0 0.0
    %2174 = vmatpush1.msra.mxu0 0.0
    %2175 = vmatprep.subr.mxu0 0.0
    %2176 = vmatpush1.msra.mxu0 0.0
    %2177 = vmatprep.subr.mxu0 0.0
    %2178 = vmatpush1.msra.mxu0 0.0
    %2179 = vmatprep.subr.mxu0 0.0
    %2180 = vmatpush1.msra.mxu0 0.0
    %2181 = vmatprep.subr.mxu0 0.0
    %2182 = vmatpush1.msra.mxu0 0.0
    %2183 = vmatprep.subr.mxu0 0.0
    %2184 = vmatpush1.msra.mxu0 0.0
    %2185 = vmatprep.subr.mxu0 0.0
    %2186 = vmatpush1.msra.mxu0 0.0
    %2187 = vmatprep.mubr.f32.mxu0 0.0
    %2188 = vmatmul.mubr.f32.gmra.mrb[0].mxu0 %v2121
    %v2189 = vpop.f32.mrb[0].mxu0
    %v2190 = vadd.f32 %v132, %v2189
    %v2191 = vpop.f32.mrb[0].mxu0
    %2192 = vdwg.mxu0
    %v2193 = vmul.f32 %v2037, 0.33333334
    %v2194 = vsub.f32 %v2190, %v2193
    %v2195 = vstv %s1890
    %v2196 = vmul.f32 %v2195, %v2194
    %v2197 = vadd.f32 %v1889, %v2196
    %v2199 = vsel %vm144, %v2197, 0
    %2201 = vmatprep.subr.mxu0 0.0
    %2202 = vmatpush1.msra.mxu0 %v111
    %2203 = vmatprep.subr.mxu0 0.0
    %2204 = vmatpush1.msra.mxu0 %v112
    %2205 = vmatprep.subr.mxu0 0.0
    %2206 = vmatpush1.msra.mxu0 %v113
    %2207 = vmatprep.subr.mxu0 0.0
    %2208 = vmatpush1.msra.mxu0 %v114
    %2209 = vmatprep.subr.mxu0 0.0
    %2210 = vmatpush1.msra.mxu0 %v115
    %2211 = vmatprep.subr.mxu0 0.0
    %2212 = vmatpush1.msra.mxu0 0.0
    %2213 = vmatprep.subr.mxu0 0.0
    %2214 = vmatpush1.msra.mxu0 0.0
    %2215 = vmatprep.subr.mxu0 0.0
    %2216 = vmatpush1.msra.mxu0 0.0
    %2217 = vmatprep.subr.mxu0 0.0
    %2218 = vmatpush1.msra.mxu0 0.0
    %2219 = vmatprep.subr.mxu0 0.0
    %2220 = vmatpush1.msra.mxu0 0.0
    %2221 = vmatprep.subr.mxu0 0.0
    %2222 = vmatpush1.msra.mxu0 0.0
    %2223 = vmatprep.subr.mxu0 0.0
    %2224 = vmatpush1.msra.mxu0 0.0
    %2225 = vmatprep.subr.mxu0 0.0
    %2226 = vmatpush1.msra.mxu0 0.0
    %2227 = vmatprep.subr.mxu0 0.0
    %2228 = vmatpush1.msra.mxu0 0.0
    %2229 = vmatprep.subr.mxu0 0.0
    %2230 = vmatpush1.msra.mxu0 0.0
    %2231 = vmatprep.subr.mxu0 0.0
    %2232 = vmatpush1.msra.mxu0 0.0
    %2233 = vmatprep.subr.mxu0 0.0
    %2234 = vmatpush1.msra.mxu0 0.0
    %2235 = vmatprep.subr.mxu0 0.0
    %2236 = vmatpush1.msra.mxu0 0.0
    %2237 = vmatprep.subr.mxu0 0.0
    %2238 = vmatpush1.msra.mxu0 0.0
    %2239 = vmatprep.subr.mxu0 0.0
    %2240 = vmatpush1.msra.mxu0 0.0
    %2241 = vmatprep.subr.mxu0 0.0
    %2242 = vmatpush1.msra.mxu0 0.0
    %2243 = vmatprep.subr.mxu0 0.0
    %2244 = vmatpush1.msra.mxu0 0.0
    %2245 = vmatprep.subr.mxu0 0.0
    %2246 = vmatpush1.msra.mxu0 0.0
    %2247 = vmatprep.subr.mxu0 0.0
    %2248 = vmatpush1.msra.mxu0 0.0
    %2249 = vmatprep.subr.mxu0 0.0
    %2250 = vmatpush1.msra.mxu0 0.0
    %2251 = vmatprep.subr.mxu0 0.0
    %2252 = vmatpush1.msra.mxu0 0.0
    %2253 = vmatprep.subr.mxu0 0.0
    %2254 = vmatpush1.msra.mxu0 0.0
    %2255 = vmatprep.subr.mxu0 0.0
    %2256 = vmatpush1.msra.mxu0 0.0
    %2257 = vmatprep.subr.mxu0 0.0
    %2258 = vmatpush1.msra.mxu0 0.0
    %2259 = vmatprep.subr.mxu0 0.0
    %2260 = vmatpush1.msra.mxu0 0.0
    %2261 = vmatprep.subr.mxu0 0.0
    %2262 = vmatpush1.msra.mxu0 0.0
    %2263 = vmatprep.subr.mxu0 0.0
    %2264 = vmatpush1.msra.mxu0 0.0
    %2265 = vmatprep.mubr.f32.mxu0 0.0
    %2266 = vmatmul.mubr.f32.gmra.mrb[0].mxu0 %v2199
    %v2267 = vpop.f32.mrb[0].mxu0
    %v2268 = vadd.f32 %v125, %v2267
    %v2269 = vpop.f32.mrb[0].mxu0
    %2270 = vdwg.mxu0
    %vm2271 = vcmp.ge.f32.partialorder %v2268, 0.0
    %v2272 = vmul.f32 %v2268, 0.01
    %v2273 = vsel %vm2271, %v2268, %v2272
    %v2275 = vsel %vm139, %v2273, 0
    %2277 = vmatprep.subr.mxu0 0.0
    %2278 = vmatpush1.msra.mxu0 %v116
    %2279 = vmatprep.subr.mxu0 0.0
    %2280 = vmatpush1.msra.mxu0 %v117
    %2281 = vmatprep.subr.mxu0 0.0
    %2282 = vmatpush1.msra.mxu0 %v118
    %2283 = vmatprep.subr.mxu0 0.0
    %2284 = vmatpush1.msra.mxu0 %v119
    %2285 = vmatprep.subr.mxu0 0.0
    %2286 = vmatpush1.msra.mxu0 0.0
    %2287 = vmatprep.subr.mxu0 0.0
    %2288 = vmatpush1.msra.mxu0 0.0
    %2289 = vmatprep.subr.mxu0 0.0
    %2290 = vmatpush1.msra.mxu0 0.0
    %2291 = vmatprep.subr.mxu0 0.0
    %2292 = vmatpush1.msra.mxu0 0.0
    %2293 = vmatprep.subr.mxu0 0.0
    %2294 = vmatpush1.msra.mxu0 0.0
    %2295 = vmatprep.subr.mxu0 0.0
    %2296 = vmatpush1.msra.mxu0 0.0
    %2297 = vmatprep.subr.mxu0 0.0
    %2298 = vmatpush1.msra.mxu0 0.0
    %2299 = vmatprep.subr.mxu0 0.0
    %2300 = vmatpush1.msra.mxu0 0.0
    %2301 = vmatprep.subr.mxu0 0.0
    %2302 = vmatpush1.msra.mxu0 0.0
    %2303 = vmatprep.subr.mxu0 0.0
    %2304 = vmatpush1.msra.mxu0 0.0
    %2305 = vmatprep.subr.mxu0 0.0
    %2306 = vmatpush1.msra.mxu0 0.0
    %2307 = vmatprep.subr.mxu0 0.0
    %2308 = vmatpush1.msra.mxu0 0.0
    %2309 = vmatprep.subr.mxu0 0.0
    %2310 = vmatpush1.msra.mxu0 0.0
    %2311 = vmatprep.subr.mxu0 0.0
    %2312 = vmatpush1.msra.mxu0 0.0
    %2313 = vmatprep.subr.mxu0 0.0
    %2314 = vmatpush1.msra.mxu0 0.0
    %2315 = vmatprep.subr.mxu0 0.0
    %2316 = vmatpush1.msra.mxu0 0.0
    %2317 = vmatprep.subr.mxu0 0.0
    %2318 = vmatpush1.msra.mxu0 0.0
    %2319 = vmatprep.subr.mxu0 0.0
    %2320 = vmatpush1.msra.mxu0 0.0
    %2321 = vmatprep.subr.mxu0 0.0
    %2322 = vmatpush1.msra.mxu0 0.0
    %2323 = vmatprep.subr.mxu0 0.0
    %2324 = vmatpush1.msra.mxu0 0.0
    %2325 = vmatprep.subr.mxu0 0.0
    %2326 = vmatpush1.msra.mxu0 0.0
    %2327 = vmatprep.subr.mxu0 0.0
    %2328 = vmatpush1.msra.mxu0 0.0
    %2329 = vmatprep.subr.mxu0 0.0
    %2330 = vmatpush1.msra.mxu0 0.0
    %2331 = vmatprep.subr.mxu0 0.0
    %2332 = vmatpush1.msra.mxu0 0.0
    %2333 = vmatprep.subr.mxu0 0.0
    %2334 = vmatpush1.msra.mxu0 0.0
    %2335 = vmatprep.subr.mxu0 0.0
    %2336 = vmatpush1.msra.mxu0 0.0
    %2337 = vmatprep.subr.mxu0 0.0
    %2338 = vmatpush1.msra.mxu0 0.0
    %2339 = vmatprep.subr.mxu0 0.0
    %2340 = vmatpush1.msra.mxu0 0.0
    %2341 = vmatprep.mubr.f32.mxu0 0.0
    %2342 = vmatmul.mubr.f32.gmra.mrb[0].mxu0 %v2275
    %v2343 = vpop.f32.mrb[0].mxu0
    %v2344 = vadd.f32 %v132, %v2343
    %v2345 = vpop.f32.mrb[0].mxu0
    %2346 = vdwg.mxu0
    %v2347 = vsub.f32 %v2037, %v2190
    %v2348 = vadd.f32 %v2347, %v2344
    %v2349 = vmul.f32 %v2195, %v2348
    %v2350 = vadd.f32 %v1889, %v2349
    %v2352 = vsel %vm144, %v2350, 0
    %2354 = vmatprep.subr.mxu0 0.0
    %2355 = vmatpush1.msra.mxu0 %v111
    %2356 = vmatprep.subr.mxu0 0.0
    %2357 = vmatpush1.msra.mxu0 %v112
    %2358 = vmatprep.subr.mxu0 0.0
    %2359 = vmatpush1.msra.mxu0 %v113
    %2360 = vmatprep.subr.mxu0 0.0
    %2361 = vmatpush1.msra.mxu0 %v114
    %2362 = vmatprep.subr.mxu0 0.0
    %2363 = vmatpush1.msra.mxu0 %v115
    %2364 = vmatprep.subr.mxu0 0.0
    %2365 = vmatpush1.msra.mxu0 0.0
    %2366 = vmatprep.subr.mxu0 0.0
    %2367 = vmatpush1.msra.mxu0 0.0
    %2368 = vmatprep.subr.mxu0 0.0
    %2369 = vmatpush1.msra.mxu0 0.0
    %2370 = vmatprep.subr.mxu0 0.0
    %2371 = vmatpush1.msra.mxu0 0.0
    %2372 = vmatprep.subr.mxu0 0.0
    %2373 = vmatpush1.msra.mxu0 0.0
    %2374 = vmatprep.subr.mxu0 0.0
    %2375 = vmatpush1.msra.mxu0 0.0
    %2376 = vmatprep.subr.mxu0 0.0
    %2377 = vmatpush1.msra.mxu0 0.0
    %2378 = vmatprep.subr.mxu0 0.0
    %2379 = vmatpush1.msra.mxu0 0.0
    %2380 = vmatprep.subr.mxu0 0.0
    %2381 = vmatpush1.msra.mxu0 0.0
    %2382 = vmatprep.subr.mxu0 0.0
    %2383 = vmatpush1.msra.mxu0 0.0
    %2384 = vmatprep.subr.mxu0 0.0
    %2385 = vmatpush1.msra.mxu0 0.0
    %2386 = vmatprep.subr.mxu0 0.0
    %2387 = vmatpush1.msra.mxu0 0.0
    %2388 = vmatprep.subr.mxu0 0.0
    %2389 = vmatpush1.msra.mxu0 0.0
    %2390 = vmatprep.subr.mxu0 0.0
    %2391 = vmatpush1.msra.mxu0 0.0
    %2392 = vmatprep.subr.mxu0 0.0
    %2393 = vmatpush1.msra.mxu0 0.0
    %2394 = vmatprep.subr.mxu0 0.0
    %2395 = vmatpush1.msra.mxu0 0.0
    %2396 = vmatprep.subr.mxu0 0.0
    %2397 = vmatpush1.msra.mxu0 0.0
    %2398 = vmatprep.subr.mxu0 0.0
    %2399 = vmatpush1.msra.mxu0 0.0
    %2400 = vmatprep.subr.mxu0 0.0
    %2401 = vmatpush1.msra.mxu0 0.0
    %2402 = vmatprep.subr.mxu0 0.0
    %2403 = vmatpush1.msra.mxu0 0.0
    %2404 = vmatprep.subr.mxu0 0.0
    %2405 = vmatpush1.msra.mxu0 0.0
    %2406 = vmatprep.subr.mxu0 0.0
    %2407 = vmatpush1.msra.mxu0 0.0
    %2408 = vmatprep.subr.mxu0 0.0
    %2409 = vmatpush1.msra.mxu0 0.0
    %2410 = vmatprep.subr.mxu0 0.0
    %2411 = vmatpush1.msra.mxu0 0.0
    %2412 = vmatprep.subr.mxu0 0.0
    %2413 = vmatpush1.msra.mxu0 0.0
    %2414 = vmatprep.subr.mxu0 0.0
    %2415 = vmatpush1.msra.mxu0 0.0
    %2416 = vmatprep.subr.mxu0 0.0
    %2417 = vmatpush1.msra.mxu0 0.0
    %2418 = vmatprep.mubr.f32.mxu0 0.0
    %2419 = vmatmul.mubr.f32.gmra.mrb[0].mxu0 %v2352
    %v2420 = vpop.f32.mrb[0].mxu0
    %v2421 = vadd.f32 %v125, %v2420
    %v2422 = vpop.f32.mrb[0].mxu0
    %2423 = vdwg.mxu0
    %vm2424 = vcmp.ge.f32.partialorder %v2421, 0.0
    %v2425 = vmul.f32 %v2421, 0.01
    %v2426 = vsel %vm2424, %v2421, %v2425
    %v2428 = vsel %vm139, %v2426, 0
    %2430 = vmatprep.subr.mxu0 0.0
    %2431 = vmatpush1.msra.mxu0 %v116
    %2432 = vmatprep.subr.mxu0 0.0
    %2433 = vmatpush1.msra.mxu0 %v117
    %2434 = vmatprep.subr.mxu0 0.0
    %2435 = vmatpush1.msra.mxu0 %v118
    %2436 = vmatprep.subr.mxu0 0.0
    %2437 = vmatpush1.msra.mxu0 %v119
    %2438 = vmatprep.subr.mxu0 0.0
    %2439 = vmatpush1.msra.mxu0 0.0
    %2440 = vmatprep.subr.mxu0 0.0
    %2441 = vmatpush1.msra.mxu0 0.0
    %2442 = vmatprep.subr.mxu0 0.0
    %2443 = vmatpush1.msra.mxu0 0.0
    %2444 = vmatprep.subr.mxu0 0.0
    %2445 = vmatpush1.msra.mxu0 0.0
    %2446 = vmatprep.subr.mxu0 0.0
    %2447 = vmatpush1.msra.mxu0 0.0
    %2448 = vmatprep.subr.mxu0 0.0
    %2449 = vmatpush1.msra.mxu0 0.0
    %2450 = vmatprep.subr.mxu0 0.0
    %2451 = vmatpush1.msra.mxu0 0.0
    %2452 = vmatprep.subr.mxu0 0.0
    %2453 = vmatpush1.msra.mxu0 0.0
    %2454 = vmatprep.subr.mxu0 0.0
    %2455 = vmatpush1.msra.mxu0 0.0
    %2456 = vmatprep.subr.mxu0 0.0
    %2457 = vmatpush1.msra.mxu0 0.0
    %2458 = vmatprep.subr.mxu0 0.0
    %2459 = vmatpush1.msra.mxu0 0.0
    %2460 = vmatprep.subr.mxu0 0.0
    %2461 = vmatpush1.msra.mxu0 0.0
    %2462 = vmatprep.subr.mxu0 0.0
    %2463 = vmatpush1.msra.mxu0 0.0
    %2464 = vmatprep.subr.mxu0 0.0
    %2465 = vmatpush1.msra.mxu0 0.0
    %2466 = vmatprep.subr.mxu0 0.0
    %2467 = vmatpush1.msra.mxu0 0.0
    %2468 = vmatprep.subr.mxu0 0.0
    %2469 = vmatpush1.msra.mxu0 0.0
    %2470 = vmatprep.subr.mxu0 0.0
    %2471 = vmatpush1.msra.mxu0 0.0
    %2472 = vmatprep.subr.mxu0 0.0
    %2473 = vmatpush1.msra.mxu0 0.0
    %2474 = vmatprep.subr.mxu0 0.0
    %2475 = vmatpush1.msra.mxu0 0.0
    %2476 = vmatprep.subr.mxu0 0.0
    %2477 = vmatpush1.msra.mxu0 0.0
    %2478 = vmatprep.subr.mxu0 0.0
    %2479 = vmatpush1.msra.mxu0 0.0
    %2480 = vmatprep.subr.mxu0 0.0
    %2481 = vmatpush1.msra.mxu0 0.0
    %2482 = vmatprep.subr.mxu0 0.0
    %2483 = vmatpush1.msra.mxu0 0.0
    %2484 = vmatprep.subr.mxu0 0.0
    %2485 = vmatpush1.msra.mxu0 0.0
    %2486 = vmatprep.subr.mxu0 0.0
    %2487 = vmatpush1.msra.mxu0 0.0
    %2488 = vmatprep.subr.mxu0 0.0
    %2489 = vmatpush1.msra.mxu0 0.0
    %2490 = vmatprep.subr.mxu0 0.0
    %2491 = vmatpush1.msra.mxu0 0.0
    %2492 = vmatprep.subr.mxu0 0.0
    %2493 = vmatpush1.msra.mxu0 0.0
    %2494 = vmatprep.mubr.f32.mxu0 0.0
    %2495 = vmatmul.mubr.f32.gmra.mrb[0].mxu0 %v2428
    %v2496 = vpop.f32.mrb[0].mxu0
    %v2497 = vadd.f32 %v132, %v2496
    %v2498 = vpop.f32.mrb[0].mxu0
    %2499 = vdwg.mxu0
    %v2500 = vadd.f32 %v2190, %v2344
    %v2501 = vmul.f32 %v2500, 3.0
    %v2502 = vadd.f32 %v2037, %v2501
    %v2503 = vadd.f32 %v2502, %v2497
    %s2504 = smul.f32 %s1890, 0.125
    %v2505 = vstv %s2504
    %v2506 = vmul.f32 %v2503, %v2505
    %v2507 = vadd.f32 %v1889, %v2506
    %2509 = vrot.lane.b32.xlu0 %v2507, 96
    %v2510 = vpop.permute.xlu0 %2509
    %2512 = vrot.lane.b32.xlu0 %v1850, 8
    %v2513 = vpop.permute.xlu0 %2512
    %v2515 = vsel %vm926, %v2510, %v2513
    %v2516 = vsel %vm928, %v2515, 0.0
    %s2517 = scalar_lea.vmem [#allocation12], 16
    %2518 = vst [vmem:[%s2517] sm:$0xff] %v2516
    %s2519 = scalar_lea.vmem [#allocation6], 24
    %v2520 = vld [vmem:[%s2519] sm:$0xff]
    %2522 = vrot.lane.b32.xlu0 %v2520, 32
    %v2523 = vpop.permute.xlu0 %2522
    %v2525 = vsel %vm139, %v2507, %v2523
    %s2526 = scalar_lea.vmem [#allocation7], 48
    %v2527 = vld [vmem:[%s2526] sm:$0xff]
    %v2528 = vld [vmem:[%s2526 + $0x8] sm:$0xff]
    %v2530 = vsel %vm144, %v2525, 0
    %2532 = vmatprep.subr.mxu0 %v102
    %2533 = vmatpush1.msra.mxu0 %v101
    %2534 = vmatprep.subr.mxu0 %v104
    %2535 = vmatpush1.msra.mxu0 %v103
    %2536 = vmatprep.subr.mxu0 %v106
    %2537 = vmatpush1.msra.mxu0 %v105
    %2538 = vmatprep.subr.mxu0 %v108
    %2539 = vmatpush1.msra.mxu0 %v107
    %2540 = vmatprep.subr.mxu0 %v110
    %2541 = vmatpush1.msra.mxu0 %v109
    %2542 = vmatprep.subr.mxu0 0.0
    %2543 = vmatpush1.msra.mxu0 0.0
    %2544 = vmatprep.subr.mxu0 0.0
    %2545 = vmatpush1.msra.mxu0 0.0
    %2546 = vmatprep.subr.mxu0 0.0
    %2547 = vmatpush1.msra.mxu0 0.0
    %2548 = vmatprep.subr.mxu0 0.0
    %2549 = vmatpush1.msra.mxu0 0.0
    %2550 = vmatprep.subr.mxu0 0.0
    %2551 = vmatpush1.msra.mxu0 0.0
    %2552 = vmatprep.subr.mxu0 0.0
    %2553 = vmatpush1.msra.mxu0 0.0
    %2554 = vmatprep.subr.mxu0 0.0
    %2555 = vmatpush1.msra.mxu0 0.0
    %2556 = vmatprep.subr.mxu0 0.0
    %2557 = vmatpush1.msra.mxu0 0.0
    %2558 = vmatprep.subr.mxu0 0.0
    %2559 = vmatpush1.msra.mxu0 0.0
    %2560 = vmatprep.subr.mxu0 0.0
    %2561 = vmatpush1.msra.mxu0 0.0
    %2562 = vmatprep.subr.mxu0 0.0
    %2563 = vmatpush1.msra.mxu0 0.0
    %2564 = vmatprep.subr.mxu0 0.0
    %2565 = vmatpush1.msra.mxu0 0.0
    %2566 = vmatprep.subr.mxu0 0.0
    %2567 = vmatpush1.msra.mxu0 0.0
    %2568 = vmatprep.subr.mxu0 0.0
    %2569 = vmatpush1.msra.mxu0 0.0
    %2570 = vmatprep.subr.mxu0 0.0
    %2571 = vmatpush1.msra.mxu0 0.0
    %2572 = vmatprep.subr.mxu0 0.0
    %2573 = vmatpush1.msra.mxu0 0.0
    %2574 = vmatprep.subr.mxu0 0.0
    %2575 = vmatpush1.msra.mxu0 0.0
    %2576 = vmatprep.subr.mxu0 0.0
    %2577 = vmatpush1.msra.mxu0 0.0
    %2578 = vmatprep.subr.mxu0 0.0
    %2579 = vmatpush1.msra.mxu0 0.0
    %2580 = vmatprep.subr.mxu0 0.0
    %2581 = vmatpush1.msra.mxu0 0.0
    %2582 = vmatprep.subr.mxu0 0.0
    %2583 = vmatpush1.msra.mxu0 0.0
    %2584 = vmatprep.subr.mxu0 0.0
    %2585 = vmatpush1.msra.mxu0 0.0
    %2586 = vmatprep.subr.mxu0 0.0
    %2587 = vmatpush1.msra.mxu0 0.0
    %2588 = vmatprep.subr.mxu0 0.0
    %2589 = vmatpush1.msra.mxu0 0.0
    %2590 = vmatprep.subr.mxu0 0.0
    %2591 = vmatpush1.msra.mxu0 0.0
    %2592 = vmatprep.subr.mxu0 0.0
    %2593 = vmatpush1.msra.mxu0 0.0
    %2594 = vmatprep.subr.mxu0 0.0
    %2595 = vmatpush1.msra.mxu0 0.0
    %2596 = vmatprep.mubr.f32.mxu0 0.0
    %2597 = vmatmul.mubr.f32.gmra.mrb[0].mxu0 %v2530
    %v2598 = vpop.f32.mrb[0].mxu0
    %v2599 = vadd.f32 %v2527, %v2598
    %v2600 = vpop.f32.mrb[0].mxu0
    %v2601 = vadd.f32 %v2528, %v2600
    %2602 = vdwg.mxu0
    %2604 = vrot.lane.b32.xlu0 %v2599, 80
    %v2605 = vpop.permute.xlu0 %2604
    %v2607 = vadd.f32 %v2599, %v2605
    %v2608 = vxor.u32 %v2607, 2147483648
    %v2609 = vmul.f32 %v2608, 1.442695
    %v2610 = vpow.pop %v2609
    %v2611 = vadd.f32 %v2610, 1.0
    %v2612 = vrcp.pop %v2611
    %v2613 = vmul.f32 1.0, %v2612
    %2614 = vrot.lane.b32.xlu0 %v2599, 48
    %v2615 = vpop.permute.xlu0 %2614
    %v2617 = vmul.f32 %v2613, %v2615
    %2619 = vrot.lane.b32.xlu0 %v2617, 32
    %v2620 = vpop.permute.xlu0 %2619
    %v2622 = vadd.f32 %v2599, %v2620
    %v2623 = vtanh.pop %v2622
    %v2624 = vsub.f32 1.0, %v2613
    %2626 = vrot.lane.b32.xlu0 %v2623, 112
    %v2627 = vpop.permute.xlu0 %2626
    %v2629 = vmul.f32 %v2624, %v2627
    %v2630 = vmul.f32 %v2613, %v2507
    %v2631 = vadd.f32 %v2629, %v2630
    %s2632 = scalar_lea.vmem [#allocation9], 24
    %v2633 = vld [vmem:[%s2632] sm:$0xff]
    %2635 = vrot.lane.b32.xlu0 %v2631, 112
    %v2636 = vpop.permute.xlu0 %2635
    %v2638 = vmul.f32 %v2633, %v2636
    %v2639 = vsub.f32 1.0, %v2633
    %2640 = vrot.lane.b32.xlu0 %v2507, 112
    %v2641 = vpop.permute.xlu0 %2640
    %v2643 = vmul.f32 %v2639, %v2641
    %v2644 = vadd.f32 %v2638, %v2643
    %2646 = vrot.lane.b32.xlu0 %v2601, 80
    %v2647 = vpop.permute.xlu0 %2646
    %v2649 = vadd.f32 %v2599, %v2647
    %v2650 = vxor.u32 %v2649, 2147483648
    %v2651 = vmul.f32 %v2650, 1.442695
    %v2652 = vpow.pop %v2651
    %v2653 = vadd.f32 %v2652, 1.0
    %v2654 = vrcp.pop %v2653
    %v2655 = vmul.f32 1.0, %v2654
    %2656 = vrot.lane.b32.xlu0 %v2601, 48
    %v2657 = vpop.permute.xlu0 %2656
    %v2659 = vmul.f32 %v2655, %v2657
    %2661 = vrot.lane.b32.xlu0 %v2659, 32
    %v2662 = vpop.permute.xlu0 %2661
    %v2664 = vadd.f32 %v2601, %v2662
    %v2665 = vtanh.pop %v2664
    %v2666 = vsub.f32 1.0, %v2655
    %2668 = vrot.lane.b32.xlu0 %v2665, 112
    %v2669 = vpop.permute.xlu0 %2668
    %v2671 = vmul.f32 %v2666, %v2669
    %v2672 = vmul.f32 %v2655, %v2641
    %v2673 = vadd.f32 %v2671, %v2672
    %2675 = vrot.lane.b32.xlu0 %v2673, 16
    %v2676 = vpop.permute.xlu0 %2675
    %2679 = vrot.lane.b32.xlu0 %v2644, 16
    %v2680 = vpop.permute.xlu0 %2679
    %v2682 = vsel %vm298, %v2676, %v2680
    %v2683 = vsel %vm139, %v2682, %v2523
    %s2684 = sld [smem:[#allocation2 + $0x3]]
    %v2686 = vsel %vm144, %v2683, 0
    %2688 = vmatprep.subr.mxu0 0.0
    %2689 = vmatpush1.msra.mxu0 %v111
    %2690 = vmatprep.subr.mxu0 0.0
    %2691 = vmatpush1.msra.mxu0 %v112
    %2692 = vmatprep.subr.mxu0 0.0
    %2693 = vmatpush1.msra.mxu0 %v113
    %2694 = vmatprep.subr.mxu0 0.0
    %2695 = vmatpush1.msra.mxu0 %v114
    %2696 = vmatprep.subr.mxu0 0.0
    %2697 = vmatpush1.msra.mxu0 %v115
    %2698 = vmatprep.subr.mxu0 0.0
    %2699 = vmatpush1.msra.mxu0 0.0
    %2700 = vmatprep.subr.mxu0 0.0
    %2701 = vmatpush1.msra.mxu0 0.0
    %2702 = vmatprep.subr.mxu0 0.0
    %2703 = vmatpush1.msra.mxu0 0.0
    %2704 = vmatprep.subr.mxu0 0.0
    %2705 = vmatpush1.msra.mxu0 0.0
    %2706 = vmatprep.subr.mxu0 0.0
    %2707 = vmatpush1.msra.mxu0 0.0
    %2708 = vmatprep.subr.mxu0 0.0
    %2709 = vmatpush1.msra.mxu0 0.0
    %2710 = vmatprep.subr.mxu0 0.0
    %2711 = vmatpush1.msra.mxu0 0.0
    %2712 = vmatprep.subr.mxu0 0.0
    %2713 = vmatpush1.msra.mxu0 0.0
    %2714 = vmatprep.subr.mxu0 0.0
    %2715 = vmatpush1.msra.mxu0 0.0
    %2716 = vmatprep.subr.mxu0 0.0
    %2717 = vmatpush1.msra.mxu0 0.0
    %2718 = vmatprep.subr.mxu0 0.0
    %2719 = vmatpush1.msra.mxu0 0.0
    %2720 = vmatprep.subr.mxu0 0.0
    %2721 = vmatpush1.msra.mxu0 0.0
    %2722 = vmatprep.subr.mxu0 0.0
    %2723 = vmatpush1.msra.mxu0 0.0
    %2724 = vmatprep.subr.mxu0 0.0
    %2725 = vmatpush1.msra.mxu0 0.0
    %2726 = vmatprep.subr.mxu0 0.0
    %2727 = vmatpush1.msra.mxu0 0.0
    %2728 = vmatprep.subr.mxu0 0.0
    %2729 = vmatpush1.msra.mxu0 0.0
    %2730 = vmatprep.subr.mxu0 0.0
    %2731 = vmatpush1.msra.mxu0 0.0
    %2732 = vmatprep.subr.mxu0 0.0
    %2733 = vmatpush1.msra.mxu0 0.0
    %2734 = vmatprep.subr.mxu0 0.0
    %2735 = vmatpush1.msra.mxu0 0.0
    %2736 = vmatprep.subr.mxu0 0.0
    %2737 = vmatpush1.msra.mxu0 0.0
    %2738 = vmatprep.subr.mxu0 0.0
    %2739 = vmatpush1.msra.mxu0 0.0
    %2740 = vmatprep.subr.mxu0 0.0
    %2741 = vmatpush1.msra.mxu0 0.0
    %2742 = vmatprep.subr.mxu0 0.0
    %2743 = vmatpush1.msra.mxu0 0.0
    %2744 = vmatprep.subr.mxu0 0.0
    %2745 = vmatpush1.msra.mxu0 0.0
    %2746 = vmatprep.subr.mxu0 0.0
    %2747 = vmatpush1.msra.mxu0 0.0
    %2748 = vmatprep.subr.mxu0 0.0
    %2749 = vmatpush1.msra.mxu0 0.0
    %2750 = vmatprep.subr.mxu0 0.0
    %2751 = vmatpush1.msra.mxu0 0.0
    %2752 = vmatprep.mubr.f32.mxu0 0.0
    %2753 = vmatmul.mubr.f32.gmra.mrb[0].mxu0 %v2686
    %v2754 = vpop.f32.mrb[0].mxu0
    %v2755 = vadd.f32 %v125, %v2754
    %v2756 = vpop.f32.mrb[0].mxu0
    %2757 = vdwg.mxu0
    %vm2758 = vcmp.ge.f32.partialorder %v2755, 0.0
    %v2759 = vmul.f32 %v2755, 0.01
    %v2760 = vsel %vm2758, %v2755, %v2759
    %v2762 = vsel %vm139, %v2760, 0
    %2764 = vmatprep.subr.mxu0 0.0
    %2765 = vmatpush1.msra.mxu0 %v116
    %2766 = vmatprep.subr.mxu0 0.0
    %2767 = vmatpush1.msra.mxu0 %v117
    %2768 = vmatprep.subr.mxu0 0.0
    %2769 = vmatpush1.msra.mxu0 %v118
    %2770 = vmatprep.subr.mxu0 0.0
    %2771 = vmatpush1.msra.mxu0 %v119
    %2772 = vmatprep.subr.mxu0 0.0
    %2773 = vmatpush1.msra.mxu0 0.0
    %2774 = vmatprep.subr.mxu0 0.0
    %2775 = vmatpush1.msra.mxu0 0.0
    %2776 = vmatprep.subr.mxu0 0.0
    %2777 = vmatpush1.msra.mxu0 0.0
    %2778 = vmatprep.subr.mxu0 0.0
    %2779 = vmatpush1.msra.mxu0 0.0
    %2780 = vmatprep.subr.mxu0 0.0
    %2781 = vmatpush1.msra.mxu0 0.0
    %2782 = vmatprep.subr.mxu0 0.0
    %2783 = vmatpush1.msra.mxu0 0.0
    %2784 = vmatprep.subr.mxu0 0.0
    %2785 = vmatpush1.msra.mxu0 0.0
    %2786 = vmatprep.subr.mxu0 0.0
    %2787 = vmatpush1.msra.mxu0 0.0
    %2788 = vmatprep.subr.mxu0 0.0
    %2789 = vmatpush1.msra.mxu0 0.0
    %2790 = vmatprep.subr.mxu0 0.0
    %2791 = vmatpush1.msra.mxu0 0.0
    %2792 = vmatprep.subr.mxu0 0.0
    %2793 = vmatpush1.msra.mxu0 0.0
    %2794 = vmatprep.subr.mxu0 0.0
    %2795 = vmatpush1.msra.mxu0 0.0
    %2796 = vmatprep.subr.mxu0 0.0
    %2797 = vmatpush1.msra.mxu0 0.0
    %2798 = vmatprep.subr.mxu0 0.0
    %2799 = vmatpush1.msra.mxu0 0.0
    %2800 = vmatprep.subr.mxu0 0.0
    %2801 = vmatpush1.msra.mxu0 0.0
    %2802 = vmatprep.subr.mxu0 0.0
    %2803 = vmatpush1.msra.mxu0 0.0
    %2804 = vmatprep.subr.mxu0 0.0
    %2805 = vmatpush1.msra.mxu0 0.0
    %2806 = vmatprep.subr.mxu0 0.0
    %2807 = vmatpush1.msra.mxu0 0.0
    %2808 = vmatprep.subr.mxu0 0.0
    %2809 = vmatpush1.msra.mxu0 0.0
    %2810 = vmatprep.subr.mxu0 0.0
    %2811 = vmatpush1.msra.mxu0 0.0
    %2812 = vmatprep.subr.mxu0 0.0
    %2813 = vmatpush1.msra.mxu0 0.0
    %2814 = vmatprep.subr.mxu0 0.0
    %2815 = vmatpush1.msra.mxu0 0.0
    %2816 = vmatprep.subr.mxu0 0.0
    %2817 = vmatpush1.msra.mxu0 0.0
    %2818 = vmatprep.subr.mxu0 0.0
    %2819 = vmatpush1.msra.mxu0 0.0
    %2820 = vmatprep.subr.mxu0 0.0
    %2821 = vmatpush1.msra.mxu0 0.0
    %2822 = vmatprep.subr.mxu0 0.0
    %2823 = vmatpush1.msra.mxu0 0.0
    %2824 = vmatprep.subr.mxu0 0.0
    %2825 = vmatpush1.msra.mxu0 0.0
    %2826 = vmatprep.subr.mxu0 0.0
    %2827 = vmatpush1.msra.mxu0 0.0
    %2828 = vmatprep.mubr.f32.mxu0 0.0
    %2829 = vmatmul.mubr.f32.gmra.mrb[0].mxu0 %v2762
    %v2830 = vpop.f32.mrb[0].mxu0
    %v2831 = vadd.f32 %v132, %v2830
    %v2832 = vpop.f32.mrb[0].mxu0
    %2833 = vdwg.mxu0
    %s2834 = smul.f32 %s2684, 0.33333334
    %v2835 = vstv %s2834
    %v2836 = vmul.f32 %v2835, %v2831
    %v2837 = vadd.f32 %v2683, %v2836
    %v2839 = vsel %vm144, %v2837, 0
    %2841 = vmatprep.subr.mxu0 0.0
    %2842 = vmatpush1.msra.mxu0 %v111
    %2843 = vmatprep.subr.mxu0 0.0
    %2844 = vmatpush1.msra.mxu0 %v112
    %2845 = vmatprep.subr.mxu0 0.0
    %2846 = vmatpush1.msra.mxu0 %v113
    %2847 = vmatprep.subr.mxu0 0.0
    %2848 = vmatpush1.msra.mxu0 %v114
    %2849 = vmatprep.subr.mxu0 0.0
    %2850 = vmatpush1.msra.mxu0 %v115
    %2851 = vmatprep.subr.mxu0 0.0
    %2852 = vmatpush1.msra.mxu0 0.0
    %2853 = vmatprep.subr.mxu0 0.0
    %2854 = vmatpush1.msra.mxu0 0.0
    %2855 = vmatprep.subr.mxu0 0.0
    %2856 = vmatpush1.msra.mxu0 0.0
    %2857 = vmatprep.subr.mxu0 0.0
    %2858 = vmatpush1.msra.mxu0 0.0
    %2859 = vmatprep.subr.mxu0 0.0
    %2860 = vmatpush1.msra.mxu0 0.0
    %2861 = vmatprep.subr.mxu0 0.0
    %2862 = vmatpush1.msra.mxu0 0.0
    %2863 = vmatprep.subr.mxu0 0.0
    %2864 = vmatpush1.msra.mxu0 0.0
    %2865 = vmatprep.subr.mxu0 0.0
    %2866 = vmatpush1.msra.mxu0 0.0
    %2867 = vmatprep.subr.mxu0 0.0
    %2868 = vmatpush1.msra.mxu0 0.0
    %2869 = vmatprep.subr.mxu0 0.0
    %2870 = vmatpush1.msra.mxu0 0.0
    %2871 = vmatprep.subr.mxu0 0.0
    %2872 = vmatpush1.msra.mxu0 0.0
    %2873 = vmatprep.subr.mxu0 0.0
    %2874 = vmatpush1.msra.mxu0 0.0
    %2875 = vmatprep.subr.mxu0 0.0
    %2876 = vmatpush1.msra.mxu0 0.0
    %2877 = vmatprep.subr.mxu0 0.0
    %2878 = vmatpush1.msra.mxu0 0.0
    %2879 = vmatprep.subr.mxu0 0.0
    %2880 = vmatpush1.msra.mxu0 0.0
    %2881 = vmatprep.subr.mxu0 0.0
    %2882 = vmatpush1.msra.mxu0 0.0
    %2883 = vmatprep.subr.mxu0 0.0
    %2884 = vmatpush1.msra.mxu0 0.0
    %2885 = vmatprep.subr.mxu0 0.0
    %2886 = vmatpush1.msra.mxu0 0.0
    %2887 = vmatprep.subr.mxu0 0.0
    %2888 = vmatpush1.msra.mxu0 0.0
    %2889 = vmatprep.subr.mxu0 0.0
    %2890 = vmatpush1.msra.mxu0 0.0
    %2891 = vmatprep.subr.mxu0 0.0
    %2892 = vmatpush1.msra.mxu0 0.0
    %2893 = vmatprep.subr.mxu0 0.0
    %2894 = vmatpush1.msra.mxu0 0.0
    %2895 = vmatprep.subr.mxu0 0.0
    %2896 = vmatpush1.msra.mxu0 0.0
    %2897 = vmatprep.subr.mxu0 0.0
    %2898 = vmatpush1.msra.mxu0 0.0
    %2899 = vmatprep.subr.mxu0 0.0
    %2900 = vmatpush1.msra.mxu0 0.0
    %2901 = vmatprep.subr.mxu0 0.0
    %2902 = vmatpush1.msra.mxu0 0.0
    %2903 = vmatprep.subr.mxu0 0.0
    %2904 = vmatpush1.msra.mxu0 0.0
    %2905 = vmatprep.mubr.f32.mxu0 0.0
    %2906 = vmatmul.mubr.f32.gmra.mrb[0].mxu0 %v2839
    %v2907 = vpop.f32.mrb[0].mxu0
    %v2908 = vadd.f32 %v125, %v2907
    %v2909 = vpop.f32.mrb[0].mxu0
    %2910 = vdwg.mxu0
    %vm2911 = vcmp.ge.f32.partialorder %v2908, 0.0
    %v2912 = vmul.f32 %v2908, 0.01
    %v2913 = vsel %vm2911, %v2908, %v2912
    %v2915 = vsel %vm139, %v2913, 0
    %2917 = vmatprep.subr.mxu0 0.0
    %2918 = vmatpush1.msra.mxu0 %v116
    %2919 = vmatprep.subr.mxu0 0.0
    %2920 = vmatpush1.msra.mxu0 %v117
    %2921 = vmatprep.subr.mxu0 0.0
    %2922 = vmatpush1.msra.mxu0 %v118
    %2923 = vmatprep.subr.mxu0 0.0
    %2924 = vmatpush1.msra.mxu0 %v119
    %2925 = vmatprep.subr.mxu0 0.0
    %2926 = vmatpush1.msra.mxu0 0.0
    %2927 = vmatprep.subr.mxu0 0.0
    %2928 = vmatpush1.msra.mxu0 0.0
    %2929 = vmatprep.subr.mxu0 0.0
    %2930 = vmatpush1.msra.mxu0 0.0
    %2931 = vmatprep.subr.mxu0 0.0
    %2932 = vmatpush1.msra.mxu0 0.0
    %2933 = vmatprep.subr.mxu0 0.0
    %2934 = vmatpush1.msra.mxu0 0.0
    %2935 = vmatprep.subr.mxu0 0.0
    %2936 = vmatpush1.msra.mxu0 0.0
    %2937 = vmatprep.subr.mxu0 0.0
    %2938 = vmatpush1.msra.mxu0 0.0
    %2939 = vmatprep.subr.mxu0 0.0
    %2940 = vmatpush1.msra.mxu0 0.0
    %2941 = vmatprep.subr.mxu0 0.0
    %2942 = vmatpush1.msra.mxu0 0.0
    %2943 = vmatprep.subr.mxu0 0.0
    %2944 = vmatpush1.msra.mxu0 0.0
    %2945 = vmatprep.subr.mxu0 0.0
    %2946 = vmatpush1.msra.mxu0 0.0
    %2947 = vmatprep.subr.mxu0 0.0
    %2948 = vmatpush1.msra.mxu0 0.0
    %2949 = vmatprep.subr.mxu0 0.0
    %2950 = vmatpush1.msra.mxu0 0.0
    %2951 = vmatprep.subr.mxu0 0.0
    %2952 = vmatpush1.msra.mxu0 0.0
    %2953 = vmatprep.subr.mxu0 0.0
    %2954 = vmatpush1.msra.mxu0 0.0
    %2955 = vmatprep.subr.mxu0 0.0
    %2956 = vmatpush1.msra.mxu0 0.0
    %2957 = vmatprep.subr.mxu0 0.0
    %2958 = vmatpush1.msra.mxu0 0.0
    %2959 = vmatprep.subr.mxu0 0.0
    %2960 = vmatpush1.msra.mxu0 0.0
    %2961 = vmatprep.subr.mxu0 0.0
    %2962 = vmatpush1.msra.mxu0 0.0
    %2963 = vmatprep.subr.mxu0 0.0
    %2964 = vmatpush1.msra.mxu0 0.0
    %2965 = vmatprep.subr.mxu0 0.0
    %2966 = vmatpush1.msra.mxu0 0.0
    %2967 = vmatprep.subr.mxu0 0.0
    %2968 = vmatpush1.msra.mxu0 0.0
    %2969 = vmatprep.subr.mxu0 0.0
    %2970 = vmatpush1.msra.mxu0 0.0
    %2971 = vmatprep.subr.mxu0 0.0
    %2972 = vmatpush1.msra.mxu0 0.0
    %2973 = vmatprep.subr.mxu0 0.0
    %2974 = vmatpush1.msra.mxu0 0.0
    %2975 = vmatprep.subr.mxu0 0.0
    %2976 = vmatpush1.msra.mxu0 0.0
    %2977 = vmatprep.subr.mxu0 0.0
    %2978 = vmatpush1.msra.mxu0 0.0
    %2979 = vmatprep.subr.mxu0 0.0
    %2980 = vmatpush1.msra.mxu0 0.0
    %2981 = vmatprep.mubr.f32.mxu0 0.0
    %2982 = vmatmul.mubr.f32.gmra.mrb[0].mxu0 %v2915
    %v2983 = vpop.f32.mrb[0].mxu0
    %v2984 = vadd.f32 %v132, %v2983
    %v2985 = vpop.f32.mrb[0].mxu0
    %2986 = vdwg.mxu0
    %v2987 = vmul.f32 %v2831, 0.33333334
    %v2988 = vsub.f32 %v2984, %v2987
    %v2989 = vstv %s2684
    %v2990 = vmul.f32 %v2989, %v2988
    %v2991 = vadd.f32 %v2683, %v2990
    %v2993 = vsel %vm144, %v2991, 0
    %2995 = vmatprep.subr.mxu0 0.0
    %2996 = vmatpush1.msra.mxu0 %v111
    %2997 = vmatprep.subr.mxu0 0.0
    %2998 = vmatpush1.msra.mxu0 %v112
    %2999 = vmatprep.subr.mxu0 0.0
    %3000 = vmatpush1.msra.mxu0 %v113
    %3001 = vmatprep.subr.mxu0 0.0
    %3002 = vmatpush1.msra.mxu0 %v114
    %3003 = vmatprep.subr.mxu0 0.0
    %3004 = vmatpush1.msra.mxu0 %v115
    %3005 = vmatprep.subr.mxu0 0.0
    %3006 = vmatpush1.msra.mxu0 0.0
    %3007 = vmatprep.subr.mxu0 0.0
    %3008 = vmatpush1.msra.mxu0 0.0
    %3009 = vmatprep.subr.mxu0 0.0
    %3010 = vmatpush1.msra.mxu0 0.0
    %3011 = vmatprep.subr.mxu0 0.0
    %3012 = vmatpush1.msra.mxu0 0.0
    %3013 = vmatprep.subr.mxu0 0.0
    %3014 = vmatpush1.msra.mxu0 0.0
    %3015 = vmatprep.subr.mxu0 0.0
    %3016 = vmatpush1.msra.mxu0 0.0
    %3017 = vmatprep.subr.mxu0 0.0
    %3018 = vmatpush1.msra.mxu0 0.0
    %3019 = vmatprep.subr.mxu0 0.0
    %3020 = vmatpush1.msra.mxu0 0.0
    %3021 = vmatprep.subr.mxu0 0.0
    %3022 = vmatpush1.msra.mxu0 0.0
    %3023 = vmatprep.subr.mxu0 0.0
    %3024 = vmatpush1.msra.mxu0 0.0
    %3025 = vmatprep.subr.mxu0 0.0
    %3026 = vmatpush1.msra.mxu0 0.0
    %3027 = vmatprep.subr.mxu0 0.0
    %3028 = vmatpush1.msra.mxu0 0.0
    %3029 = vmatprep.subr.mxu0 0.0
    %3030 = vmatpush1.msra.mxu0 0.0
    %3031 = vmatprep.subr.mxu0 0.0
    %3032 = vmatpush1.msra.mxu0 0.0
    %3033 = vmatprep.subr.mxu0 0.0
    %3034 = vmatpush1.msra.mxu0 0.0
    %3035 = vmatprep.subr.mxu0 0.0
    %3036 = vmatpush1.msra.mxu0 0.0
    %3037 = vmatprep.subr.mxu0 0.0
    %3038 = vmatpush1.msra.mxu0 0.0
    %3039 = vmatprep.subr.mxu0 0.0
    %3040 = vmatpush1.msra.mxu0 0.0
    %3041 = vmatprep.subr.mxu0 0.0
    %3042 = vmatpush1.msra.mxu0 0.0
    %3043 = vmatprep.subr.mxu0 0.0
    %3044 = vmatpush1.msra.mxu0 0.0
    %3045 = vmatprep.subr.mxu0 0.0
    %3046 = vmatpush1.msra.mxu0 0.0
    %3047 = vmatprep.subr.mxu0 0.0
    %3048 = vmatpush1.msra.mxu0 0.0
    %3049 = vmatprep.subr.mxu0 0.0
    %3050 = vmatpush1.msra.mxu0 0.0
    %3051 = vmatprep.subr.mxu0 0.0
    %3052 = vmatpush1.msra.mxu0 0.0
    %3053 = vmatprep.subr.mxu0 0.0
    %3054 = vmatpush1.msra.mxu0 0.0
    %3055 = vmatprep.subr.mxu0 0.0
    %3056 = vmatpush1.msra.mxu0 0.0
    %3057 = vmatprep.subr.mxu0 0.0
    %3058 = vmatpush1.msra.mxu0 0.0
    %3059 = vmatprep.mubr.f32.mxu0 0.0
    %3060 = vmatmul.mubr.f32.gmra.mrb[0].mxu0 %v2993
    %v3061 = vpop.f32.mrb[0].mxu0
    %v3062 = vadd.f32 %v125, %v3061
    %v3063 = vpop.f32.mrb[0].mxu0
    %3064 = vdwg.mxu0
    %vm3065 = vcmp.ge.f32.partialorder %v3062, 0.0
    %v3066 = vmul.f32 %v3062, 0.01
    %v3067 = vsel %vm3065, %v3062, %v3066
    %v3069 = vsel %vm139, %v3067, 0
    %3071 = vmatprep.subr.mxu0 0.0
    %3072 = vmatpush1.msra.mxu0 %v116
    %3073 = vmatprep.subr.mxu0 0.0
    %3074 = vmatpush1.msra.mxu0 %v117
    %3075 = vmatprep.subr.mxu0 0.0
    %3076 = vmatpush1.msra.mxu0 %v118
    %3077 = vmatprep.subr.mxu0 0.0
    %3078 = vmatpush1.msra.mxu0 %v119
    %3079 = vmatprep.subr.mxu0 0.0
    %3080 = vmatpush1.msra.mxu0 0.0
    %3081 = vmatprep.subr.mxu0 0.0
    %3082 = vmatpush1.msra.mxu0 0.0
    %3083 = vmatprep.subr.mxu0 0.0
    %3084 = vmatpush1.msra.mxu0 0.0
    %3085 = vmatprep.subr.mxu0 0.0
    %3086 = vmatpush1.msra.mxu0 0.0
    %3087 = vmatprep.subr.mxu0 0.0
    %3088 = vmatpush1.msra.mxu0 0.0
    %3089 = vmatprep.subr.mxu0 0.0
    %3090 = vmatpush1.msra.mxu0 0.0
    %3091 = vmatprep.subr.mxu0 0.0
    %3092 = vmatpush1.msra.mxu0 0.0
    %3093 = vmatprep.subr.mxu0 0.0
    %3094 = vmatpush1.msra.mxu0 0.0
    %3095 = vmatprep.subr.mxu0 0.0
    %3096 = vmatpush1.msra.mxu0 0.0
    %3097 = vmatprep.subr.mxu0 0.0
    %3098 = vmatpush1.msra.mxu0 0.0
    %3099 = vmatprep.subr.mxu0 0.0
    %3100 = vmatpush1.msra.mxu0 0.0
    %3101 = vmatprep.subr.mxu0 0.0
    %3102 = vmatpush1.msra.mxu0 0.0
    %3103 = vmatprep.subr.mxu0 0.0
    %3104 = vmatpush1.msra.mxu0 0.0
    %3105 = vmatprep.subr.mxu0 0.0
    %3106 = vmatpush1.msra.mxu0 0.0
    %3107 = vmatprep.subr.mxu0 0.0
    %3108 = vmatpush1.msra.mxu0 0.0
    %3109 = vmatprep.subr.mxu0 0.0
    %3110 = vmatpush1.msra.mxu0 0.0
    %3111 = vmatprep.subr.mxu0 0.0
    %3112 = vmatpush1.msra.mxu0 0.0
    %3113 = vmatprep.subr.mxu0 0.0
    %3114 = vmatpush1.msra.mxu0 0.0
    %3115 = vmatprep.subr.mxu0 0.0
    %3116 = vmatpush1.msra.mxu0 0.0
    %3117 = vmatprep.subr.mxu0 0.0
    %3118 = vmatpush1.msra.mxu0 0.0
    %3119 = vmatprep.subr.mxu0 0.0
    %3120 = vmatpush1.msra.mxu0 0.0
    %3121 = vmatprep.subr.mxu0 0.0
    %3122 = vmatpush1.msra.mxu0 0.0
    %3123 = vmatprep.subr.mxu0 0.0
    %3124 = vmatpush1.msra.mxu0 0.0
    %3125 = vmatprep.subr.mxu0 0.0
    %3126 = vmatpush1.msra.mxu0 0.0
    %3127 = vmatprep.subr.mxu0 0.0
    %3128 = vmatpush1.msra.mxu0 0.0
    %3129 = vmatprep.subr.mxu0 0.0
    %3130 = vmatpush1.msra.mxu0 0.0
    %3131 = vmatprep.subr.mxu0 0.0
    %3132 = vmatpush1.msra.mxu0 0.0
    %3133 = vmatprep.subr.mxu0 0.0
    %3134 = vmatpush1.msra.mxu0 0.0
    %3135 = vmatprep.mubr.f32.mxu0 0.0
    %3136 = vmatmul.mubr.f32.gmra.mrb[0].mxu0 %v3069
    %v3137 = vpop.f32.mrb[0].mxu0
    %v3138 = vadd.f32 %v132, %v3137
    %v3139 = vpop.f32.mrb[0].mxu0
    %3140 = vdwg.mxu0
    %v3141 = vsub.f32 %v2831, %v2984
    %v3142 = vadd.f32 %v3141, %v3138
    %v3143 = vmul.f32 %v2989, %v3142
    %v3144 = vadd.f32 %v2683, %v3143
    %v3146 = vsel %vm144, %v3144, 0
    %3148 = vmatprep.subr.mxu0 0.0
    %3149 = vmatpush1.msra.mxu0 %v111
    %3150 = vmatprep.subr.mxu0 0.0
    %3151 = vmatpush1.msra.mxu0 %v112
    %3152 = vmatprep.subr.mxu0 0.0
    %3153 = vmatpush1.msra.mxu0 %v113
    %3154 = vmatprep.subr.mxu0 0.0
    %3155 = vmatpush1.msra.mxu0 %v114
    %3156 = vmatprep.subr.mxu0 0.0
    %3157 = vmatpush1.msra.mxu0 %v115
    %3158 = vmatprep.subr.mxu0 0.0
    %3159 = vmatpush1.msra.mxu0 0.0
    %3160 = vmatprep.subr.mxu0 0.0
    %3161 = vmatpush1.msra.mxu0 0.0
    %3162 = vmatprep.subr.mxu0 0.0
    %3163 = vmatpush1.msra.mxu0 0.0
    %3164 = vmatprep.subr.mxu0 0.0
    %3165 = vmatpush1.msra.mxu0 0.0
    %3166 = vmatprep.subr.mxu0 0.0
    %3167 = vmatpush1.msra.mxu0 0.0
    %3168 = vmatprep.subr.mxu0 0.0
    %3169 = vmatpush1.msra.mxu0 0.0
    %3170 = vmatprep.subr.mxu0 0.0
    %3171 = vmatpush1.msra.mxu0 0.0
    %3172 = vmatprep.subr.mxu0 0.0
    %3173 = vmatpush1.msra.mxu0 0.0
    %3174 = vmatprep.subr.mxu0 0.0
    %3175 = vmatpush1.msra.mxu0 0.0
    %3176 = vmatprep.subr.mxu0 0.0
    %3177 = vmatpush1.msra.mxu0 0.0
    %3178 = vmatprep.subr.mxu0 0.0
    %3179 = vmatpush1.msra.mxu0 0.0
    %3180 = vmatprep.subr.mxu0 0.0
    %3181 = vmatpush1.msra.mxu0 0.0
    %3182 = vmatprep.subr.mxu0 0.0
    %3183 = vmatpush1.msra.mxu0 0.0
    %3184 = vmatprep.subr.mxu0 0.0
    %3185 = vmatpush1.msra.mxu0 0.0
    %3186 = vmatprep.subr.mxu0 0.0
    %3187 = vmatpush1.msra.mxu0 0.0
    %3188 = vmatprep.subr.mxu0 0.0
    %3189 = vmatpush1.msra.mxu0 0.0
    %3190 = vmatprep.subr.mxu0 0.0
    %3191 = vmatpush1.msra.mxu0 0.0
    %3192 = vmatprep.subr.mxu0 0.0
    %3193 = vmatpush1.msra.mxu0 0.0
    %3194 = vmatprep.subr.mxu0 0.0
    %3195 = vmatpush1.msra.mxu0 0.0
    %3196 = vmatprep.subr.mxu0 0.0
    %3197 = vmatpush1.msra.mxu0 0.0
    %3198 = vmatprep.subr.mxu0 0.0
    %3199 = vmatpush1.msra.mxu0 0.0
    %3200 = vmatprep.subr.mxu0 0.0
    %3201 = vmatpush1.msra.mxu0 0.0
    %3202 = vmatprep.subr.mxu0 0.0
    %3203 = vmatpush1.msra.mxu0 0.0
    %3204 = vmatprep.subr.mxu0 0.0
    %3205 = vmatpush1.msra.mxu0 0.0
    %3206 = vmatprep.subr.mxu0 0.0
    %3207 = vmatpush1.msra.mxu0 0.0
    %3208 = vmatprep.subr.mxu0 0.0
    %3209 = vmatpush1.msra.mxu0 0.0
    %3210 = vmatprep.subr.mxu0 0.0
    %3211 = vmatpush1.msra.mxu0 0.0
    %3212 = vmatprep.mubr.f32.mxu0 0.0
    %3213 = vmatmul.mubr.f32.gmra.mrb[0].mxu0 %v3146
    %v3214 = vpop.f32.mrb[0].mxu0
    %v3215 = vadd.f32 %v125, %v3214
    %v3216 = vpop.f32.mrb[0].mxu0
    %3217 = vdwg.mxu0
    %vm3218 = vcmp.ge.f32.partialorder %v3215, 0.0
    %v3219 = vmul.f32 %v3215, 0.01
    %v3220 = vsel %vm3218, %v3215, %v3219
    %v3222 = vsel %vm139, %v3220, 0
    %3224 = vmatprep.subr.mxu0 0.0
    %3225 = vmatpush1.msra.mxu0 %v116
    %3226 = vmatprep.subr.mxu0 0.0
    %3227 = vmatpush1.msra.mxu0 %v117
    %3228 = vmatprep.subr.mxu0 0.0
    %3229 = vmatpush1.msra.mxu0 %v118
    %3230 = vmatprep.subr.mxu0 0.0
    %3231 = vmatpush1.msra.mxu0 %v119
    %3232 = vmatprep.subr.mxu0 0.0
    %3233 = vmatpush1.msra.mxu0 0.0
    %3234 = vmatprep.subr.mxu0 0.0
    %3235 = vmatpush1.msra.mxu0 0.0
    %3236 = vmatprep.subr.mxu0 0.0
    %3237 = vmatpush1.msra.mxu0 0.0
    %3238 = vmatprep.subr.mxu0 0.0
    %3239 = vmatpush1.msra.mxu0 0.0
    %3240 = vmatprep.subr.mxu0 0.0
    %3241 = vmatpush1.msra.mxu0 0.0
    %3242 = vmatprep.subr.mxu0 0.0
    %3243 = vmatpush1.msra.mxu0 0.0
    %3244 = vmatprep.subr.mxu0 0.0
    %3245 = vmatpush1.msra.mxu0 0.0
    %3246 = vmatprep.subr.mxu0 0.0
    %3247 = vmatpush1.msra.mxu0 0.0
    %3248 = vmatprep.subr.mxu0 0.0
    %3249 = vmatpush1.msra.mxu0 0.0
    %3250 = vmatprep.subr.mxu0 0.0
    %3251 = vmatpush1.msra.mxu0 0.0
    %3252 = vmatprep.subr.mxu0 0.0
    %3253 = vmatpush1.msra.mxu0 0.0
    %3254 = vmatprep.subr.mxu0 0.0
    %3255 = vmatpush1.msra.mxu0 0.0
    %3256 = vmatprep.subr.mxu0 0.0
    %3257 = vmatpush1.msra.mxu0 0.0
    %3258 = vmatprep.subr.mxu0 0.0
    %3259 = vmatpush1.msra.mxu0 0.0
    %3260 = vmatprep.subr.mxu0 0.0
    %3261 = vmatpush1.msra.mxu0 0.0
    %3262 = vmatprep.subr.mxu0 0.0
    %3263 = vmatpush1.msra.mxu0 0.0
    %3264 = vmatprep.subr.mxu0 0.0
    %3265 = vmatpush1.msra.mxu0 0.0
    %3266 = vmatprep.subr.mxu0 0.0
    %3267 = vmatpush1.msra.mxu0 0.0
    %3268 = vmatprep.subr.mxu0 0.0
    %3269 = vmatpush1.msra.mxu0 0.0
    %3270 = vmatprep.subr.mxu0 0.0
    %3271 = vmatpush1.msra.mxu0 0.0
    %3272 = vmatprep.subr.mxu0 0.0
    %3273 = vmatpush1.msra.mxu0 0.0
    %3274 = vmatprep.subr.mxu0 0.0
    %3275 = vmatpush1.msra.mxu0 0.0
    %3276 = vmatprep.subr.mxu0 0.0
    %3277 = vmatpush1.msra.mxu0 0.0
    %3278 = vmatprep.subr.mxu0 0.0
    %3279 = vmatpush1.msra.mxu0 0.0
    %3280 = vmatprep.subr.mxu0 0.0
    %3281 = vmatpush1.msra.mxu0 0.0
    %3282 = vmatprep.subr.mxu0 0.0
    %3283 = vmatpush1.msra.mxu0 0.0
    %3284 = vmatprep.subr.mxu0 0.0
    %3285 = vmatpush1.msra.mxu0 0.0
    %3286 = vmatprep.subr.mxu0 0.0
    %3287 = vmatpush1.msra.mxu0 0.0
    %3288 = vmatprep.mubr.f32.mxu0 0.0
    %3289 = vmatmul.mubr.f32.gmra.mrb[0].mxu0 %v3222
    %v3290 = vpop.f32.mrb[0].mxu0
    %v3291 = vadd.f32 %v132, %v3290
    %v3292 = vpop.f32.mrb[0].mxu0
    %3293 = vdwg.mxu0
    %v3294 = vadd.f32 %v2984, %v3138
    %v3295 = vmul.f32 %v3294, 3.0
    %v3296 = vadd.f32 %v2831, %v3295
    %v3297 = vadd.f32 %v3296, %v3291
    %s3298 = smul.f32 %s2684, 0.125
    %v3299 = vstv %s3298
    %v3300 = vmul.f32 %v3297, %v3299
    %v3301 = vadd.f32 %v2683, %v3300
    %3303 = vrot.lane.b32.xlu0 %v3301, 96
    %v3304 = vpop.permute.xlu0 %3303
    %3306 = vrot.lane.b32.xlu0 %v2644, 8
    %v3307 = vpop.permute.xlu0 %3306
    %v3309 = vsel %vm926, %v3304, %v3307
    %v3310 = vsel %vm928, %v3309, 0.0
    %s3311 = scalar_lea.vmem [#allocation12], 24
    %3312 = vst [vmem:[%s3311] sm:$0xff] %v3310
    %s3313 = scalar_lea.vmem [#allocation7], 64
    %v3314 = vld [vmem:[%s3313] sm:$0xff]
    %v3315 = vld [vmem:[%s3313 + $0x8] sm:$0xff]
    %v3316 = vsel %vm144, %v3301, 0
    %3318 = vmatprep.subr.mxu0 %v102
    %3319 = vmatpush1.msra.mxu0 %v101
    %3320 = vmatprep.subr.mxu0 %v104
    %3321 = vmatpush1.msra.mxu0 %v103
    %3322 = vmatprep.subr.mxu0 %v106
    %3323 = vmatpush1.msra.mxu0 %v105
    %3324 = vmatprep.subr.mxu0 %v108
    %3325 = vmatpush1.msra.mxu0 %v107
    %3326 = vmatprep.subr.mxu0 %v110
    %3327 = vmatpush1.msra.mxu0 %v109
    %3328 = vmatprep.subr.mxu0 0.0
    %3329 = vmatpush1.msra.mxu0 0.0
    %3330 = vmatprep.subr.mxu0 0.0
    %3331 = vmatpush1.msra.mxu0 0.0
    %3332 = vmatprep.subr.mxu0 0.0
    %3333 = vmatpush1.msra.mxu0 0.0
    %3334 = vmatprep.subr.mxu0 0.0
    %3335 = vmatpush1.msra.mxu0 0.0
    %3336 = vmatprep.subr.mxu0 0.0
    %3337 = vmatpush1.msra.mxu0 0.0
    %3338 = vmatprep.subr.mxu0 0.0
    %3339 = vmatpush1.msra.mxu0 0.0
    %3340 = vmatprep.subr.mxu0 0.0
    %3341 = vmatpush1.msra.mxu0 0.0
    %3342 = vmatprep.subr.mxu0 0.0
    %3343 = vmatpush1.msra.mxu0 0.0
    %3344 = vmatprep.subr.mxu0 0.0
    %3345 = vmatpush1.msra.mxu0 0.0
    %3346 = vmatprep.subr.mxu0 0.0
    %3347 = vmatpush1.msra.mxu0 0.0
    %3348 = vmatprep.subr.mxu0 0.0
    %3349 = vmatpush1.msra.mxu0 0.0
    %3350 = vmatprep.subr.mxu0 0.0
    %3351 = vmatpush1.msra.mxu0 0.0
    %3352 = vmatprep.subr.mxu0 0.0
    %3353 = vmatpush1.msra.mxu0 0.0
    %3354 = vmatprep.subr.mxu0 0.0
    %3355 = vmatpush1.msra.mxu0 0.0
    %3356 = vmatprep.subr.mxu0 0.0
    %3357 = vmatpush1.msra.mxu0 0.0
    %3358 = vmatprep.subr.mxu0 0.0
    %3359 = vmatpush1.msra.mxu0 0.0
    %3360 = vmatprep.subr.mxu0 0.0
    %3361 = vmatpush1.msra.mxu0 0.0
    %3362 = vmatprep.subr.mxu0 0.0
    %3363 = vmatpush1.msra.mxu0 0.0
    %3364 = vmatprep.subr.mxu0 0.0
    %3365 = vmatpush1.msra.mxu0 0.0
    %3366 = vmatprep.subr.mxu0 0.0
    %3367 = vmatpush1.msra.mxu0 0.0
    %3368 = vmatprep.subr.mxu0 0.0
    %3369 = vmatpush1.msra.mxu0 0.0
    %3370 = vmatprep.subr.mxu0 0.0
    %3371 = vmatpush1.msra.mxu0 0.0
    %3372 = vmatprep.subr.mxu0 0.0
    %3373 = vmatpush1.msra.mxu0 0.0
    %3374 = vmatprep.subr.mxu0 0.0
    %3375 = vmatpush1.msra.mxu0 0.0
    %3376 = vmatprep.subr.mxu0 0.0
    %3377 = vmatpush1.msra.mxu0 0.0
    %3378 = vmatprep.subr.mxu0 0.0
    %3379 = vmatpush1.msra.mxu0 0.0
    %3380 = vmatprep.subr.mxu0 0.0
    %3381 = vmatpush1.msra.mxu0 0.0
    %3382 = vmatprep.mubr.f32.mxu0 0.0
    %3383 = vmatmul.mubr.f32.gmra.mrb[0].mxu0 %v3316
    %v3384 = vpop.f32.mrb[0].mxu0
    %v3385 = vadd.f32 %v3314, %v3384
    %v3386 = vpop.f32.mrb[0].mxu0
    %v3387 = vadd.f32 %v3315, %v3386
    %3388 = vdwg.mxu0
    %3390 = vrot.lane.b32.xlu0 %v3385, 80
    %v3391 = vpop.permute.xlu0 %3390
    %v3393 = vadd.f32 %v3385, %v3391
    %v3394 = vxor.u32 %v3393, 2147483648
    %v3395 = vmul.f32 %v3394, 1.442695
    %v3396 = vpow.pop %v3395
    %v3397 = vadd.f32 %v3396, 1.0
    %v3398 = vrcp.pop %v3397
    %v3399 = vmul.f32 1.0, %v3398
    %3400 = vrot.lane.b32.xlu0 %v3385, 48
    %v3401 = vpop.permute.xlu0 %3400
    %v3403 = vmul.f32 %v3399, %v3401
    %3405 = vrot.lane.b32.xlu0 %v3403, 32
    %v3406 = vpop.permute.xlu0 %3405
    %v3408 = vadd.f32 %v3385, %v3406
    %v3409 = vtanh.pop %v3408
    %v3410 = vsub.f32 1.0, %v3399
    %3412 = vrot.lane.b32.xlu0 %v3409, 112
    %v3413 = vpop.permute.xlu0 %3412
    %v3415 = vmul.f32 %v3410, %v3413
    %v3416 = vmul.f32 %v3399, %v3301
    %v3417 = vadd.f32 %v3415, %v3416
    %s3418 = scalar_lea.vmem [#allocation9], 32
    %v3419 = vld [vmem:[%s3418] sm:$0xff]
    %3421 = vrot.lane.b32.xlu0 %v3417, 112
    %v3422 = vpop.permute.xlu0 %3421
    %v3424 = vmul.f32 %v3419, %v3422
    %v3425 = vsub.f32 1.0, %v3419
    %3426 = vrot.lane.b32.xlu0 %v3301, 112
    %v3427 = vpop.permute.xlu0 %3426
    %v3429 = vmul.f32 %v3425, %v3427
    %v3430 = vadd.f32 %v3424, %v3429
    %3432 = vrot.lane.b32.xlu0 %v3387, 80
    %v3433 = vpop.permute.xlu0 %3432
    %v3435 = vadd.f32 %v3385, %v3433
    %v3436 = vxor.u32 %v3435, 2147483648
    %v3437 = vmul.f32 %v3436, 1.442695
    %v3438 = vpow.pop %v3437
    %v3439 = vadd.f32 %v3438, 1.0
    %v3440 = vrcp.pop %v3439
    %v3441 = vmul.f32 1.0, %v3440
    %3442 = vrot.lane.b32.xlu0 %v3387, 48
    %v3443 = vpop.permute.xlu0 %3442
    %v3445 = vmul.f32 %v3441, %v3443
    %3447 = vrot.lane.b32.xlu0 %v3445, 32
    %v3448 = vpop.permute.xlu0 %3447
    %v3450 = vadd.f32 %v3387, %v3448
    %v3451 = vtanh.pop %v3450
    %v3452 = vsub.f32 1.0, %v3441
    %3454 = vrot.lane.b32.xlu0 %v3451, 112
    %v3455 = vpop.permute.xlu0 %3454
    %v3457 = vmul.f32 %v3452, %v3455
    %v3458 = vmul.f32 %v3441, %v3427
    %v3459 = vadd.f32 %v3457, %v3458
    %3461 = vrot.lane.b32.xlu0 %v3459, 16
    %v3462 = vpop.permute.xlu0 %3461
    %3465 = vrot.lane.b32.xlu0 %v3430, 16
    %v3466 = vpop.permute.xlu0 %3465
    %v3468 = vsel %vm298, %v3462, %v3466
    %v3469 = vsel %vm139, %v3468, %v3301
    %s3470 = sld [smem:[#allocation2 + $0x4]]
    %v3472 = vsel %vm144, %v3469, 0
    %3474 = vmatprep.subr.mxu0 0.0
    %3475 = vmatpush1.msra.mxu0 %v111
    %3476 = vmatprep.subr.mxu0 0.0
    %3477 = vmatpush1.msra.mxu0 %v112
    %3478 = vmatprep.subr.mxu0 0.0
    %3479 = vmatpush1.msra.mxu0 %v113
    %3480 = vmatprep.subr.mxu0 0.0
    %3481 = vmatpush1.msra.mxu0 %v114
    %3482 = vmatprep.subr.mxu0 0.0
    %3483 = vmatpush1.msra.mxu0 %v115
    %3484 = vmatprep.subr.mxu0 0.0
    %3485 = vmatpush1.msra.mxu0 0.0
    %3486 = vmatprep.subr.mxu0 0.0
    %3487 = vmatpush1.msra.mxu0 0.0
    %3488 = vmatprep.subr.mxu0 0.0
    %3489 = vmatpush1.msra.mxu0 0.0
    %3490 = vmatprep.subr.mxu0 0.0
    %3491 = vmatpush1.msra.mxu0 0.0
    %3492 = vmatprep.subr.mxu0 0.0
    %3493 = vmatpush1.msra.mxu0 0.0
    %3494 = vmatprep.subr.mxu0 0.0
    %3495 = vmatpush1.msra.mxu0 0.0
    %3496 = vmatprep.subr.mxu0 0.0
    %3497 = vmatpush1.msra.mxu0 0.0
    %3498 = vmatprep.subr.mxu0 0.0
    %3499 = vmatpush1.msra.mxu0 0.0
    %3500 = vmatprep.subr.mxu0 0.0
    %3501 = vmatpush1.msra.mxu0 0.0
    %3502 = vmatprep.subr.mxu0 0.0
    %3503 = vmatpush1.msra.mxu0 0.0
    %3504 = vmatprep.subr.mxu0 0.0
    %3505 = vmatpush1.msra.mxu0 0.0
    %3506 = vmatprep.subr.mxu0 0.0
    %3507 = vmatpush1.msra.mxu0 0.0
    %3508 = vmatprep.subr.mxu0 0.0
    %3509 = vmatpush1.msra.mxu0 0.0
    %3510 = vmatprep.subr.mxu0 0.0
    %3511 = vmatpush1.msra.mxu0 0.0
    %3512 = vmatprep.subr.mxu0 0.0
    %3513 = vmatpush1.msra.mxu0 0.0
    %3514 = vmatprep.subr.mxu0 0.0
    %3515 = vmatpush1.msra.mxu0 0.0
    %3516 = vmatprep.subr.mxu0 0.0
    %3517 = vmatpush1.msra.mxu0 0.0
    %3518 = vmatprep.subr.mxu0 0.0
    %3519 = vmatpush1.msra.mxu0 0.0
    %3520 = vmatprep.subr.mxu0 0.0
    %3521 = vmatpush1.msra.mxu0 0.0
    %3522 = vmatprep.subr.mxu0 0.0
    %3523 = vmatpush1.msra.mxu0 0.0
    %3524 = vmatprep.subr.mxu0 0.0
    %3525 = vmatpush1.msra.mxu0 0.0
    %3526 = vmatprep.subr.mxu0 0.0
    %3527 = vmatpush1.msra.mxu0 0.0
    %3528 = vmatprep.subr.mxu0 0.0
    %3529 = vmatpush1.msra.mxu0 0.0
    %3530 = vmatprep.subr.mxu0 0.0
    %3531 = vmatpush1.msra.mxu0 0.0
    %3532 = vmatprep.subr.mxu0 0.0
    %3533 = vmatpush1.msra.mxu0 0.0
    %3534 = vmatprep.subr.mxu0 0.0
    %3535 = vmatpush1.msra.mxu0 0.0
    %3536 = vmatprep.subr.mxu0 0.0
    %3537 = vmatpush1.msra.mxu0 0.0
    %3538 = vmatprep.mubr.f32.mxu0 0.0
    %3539 = vmatmul.mubr.f32.gmra.mrb[0].mxu0 %v3472
    %v3540 = vpop.f32.mrb[0].mxu0
    %v3541 = vadd.f32 %v125, %v3540
    %v3542 = vpop.f32.mrb[0].mxu0
    %3543 = vdwg.mxu0
    %vm3544 = vcmp.ge.f32.partialorder %v3541, 0.0
    %v3545 = vmul.f32 %v3541, 0.01
    %v3546 = vsel %vm3544, %v3541, %v3545
    %v3548 = vsel %vm139, %v3546, 0
    %3550 = vmatprep.subr.mxu0 0.0
    %3551 = vmatpush1.msra.mxu0 %v116
    %3552 = vmatprep.subr.mxu0 0.0
    %3553 = vmatpush1.msra.mxu0 %v117
    %3554 = vmatprep.subr.mxu0 0.0
    %3555 = vmatpush1.msra.mxu0 %v118
    %3556 = vmatprep.subr.mxu0 0.0
    %3557 = vmatpush1.msra.mxu0 %v119
    %3558 = vmatprep.subr.mxu0 0.0
    %3559 = vmatpush1.msra.mxu0 0.0
    %3560 = vmatprep.subr.mxu0 0.0
    %3561 = vmatpush1.msra.mxu0 0.0
    %3562 = vmatprep.subr.mxu0 0.0
    %3563 = vmatpush1.msra.mxu0 0.0
    %3564 = vmatprep.subr.mxu0 0.0
    %3565 = vmatpush1.msra.mxu0 0.0
    %3566 = vmatprep.subr.mxu0 0.0
    %3567 = vmatpush1.msra.mxu0 0.0
    %3568 = vmatprep.subr.mxu0 0.0
    %3569 = vmatpush1.msra.mxu0 0.0
    %3570 = vmatprep.subr.mxu0 0.0
    %3571 = vmatpush1.msra.mxu0 0.0
    %3572 = vmatprep.subr.mxu0 0.0
    %3573 = vmatpush1.msra.mxu0 0.0
    %3574 = vmatprep.subr.mxu0 0.0
    %3575 = vmatpush1.msra.mxu0 0.0
    %3576 = vmatprep.subr.mxu0 0.0
    %3577 = vmatpush1.msra.mxu0 0.0
    %3578 = vmatprep.subr.mxu0 0.0
    %3579 = vmatpush1.msra.mxu0 0.0
    %3580 = vmatprep.subr.mxu0 0.0
    %3581 = vmatpush1.msra.mxu0 0.0
    %3582 = vmatprep.subr.mxu0 0.0
    %3583 = vmatpush1.msra.mxu0 0.0
    %3584 = vmatprep.subr.mxu0 0.0
    %3585 = vmatpush1.msra.mxu0 0.0
    %3586 = vmatprep.subr.mxu0 0.0
    %3587 = vmatpush1.msra.mxu0 0.0
    %3588 = vmatprep.subr.mxu0 0.0
    %3589 = vmatpush1.msra.mxu0 0.0
    %3590 = vmatprep.subr.mxu0 0.0
    %3591 = vmatpush1.msra.mxu0 0.0
    %3592 = vmatprep.subr.mxu0 0.0
    %3593 = vmatpush1.msra.mxu0 0.0
    %3594 = vmatprep.subr.mxu0 0.0
    %3595 = vmatpush1.msra.mxu0 0.0
    %3596 = vmatprep.subr.mxu0 0.0
    %3597 = vmatpush1.msra.mxu0 0.0
    %3598 = vmatprep.subr.mxu0 0.0
    %3599 = vmatpush1.msra.mxu0 0.0
    %3600 = vmatprep.subr.mxu0 0.0
    %3601 = vmatpush1.msra.mxu0 0.0
    %3602 = vmatprep.subr.mxu0 0.0
    %3603 = vmatpush1.msra.mxu0 0.0
    %3604 = vmatprep.subr.mxu0 0.0
    %3605 = vmatpush1.msra.mxu0 0.0
    %3606 = vmatprep.subr.mxu0 0.0
    %3607 = vmatpush1.msra.mxu0 0.0
    %3608 = vmatprep.subr.mxu0 0.0
    %3609 = vmatpush1.msra.mxu0 0.0
    %3610 = vmatprep.subr.mxu0 0.0
    %3611 = vmatpush1.msra.mxu0 0.0
    %3612 = vmatprep.subr.mxu0 0.0
    %3613 = vmatpush1.msra.mxu0 0.0
    %3614 = vmatprep.mubr.f32.mxu0 0.0
    %3615 = vmatmul.mubr.f32.gmra.mrb[0].mxu0 %v3548
    %v3616 = vpop.f32.mrb[0].mxu0
    %v3617 = vadd.f32 %v132, %v3616
    %v3618 = vpop.f32.mrb[0].mxu0
    %3619 = vdwg.mxu0
    %s3620 = smul.f32 %s3470, 0.33333334
    %v3621 = vstv %s3620
    %v3622 = vmul.f32 %v3621, %v3617
    %v3623 = vadd.f32 %v3469, %v3622
    %v3625 = vsel %vm144, %v3623, 0
    %3627 = vmatprep.subr.mxu0 0.0
    %3628 = vmatpush1.msra.mxu0 %v111
    %3629 = vmatprep.subr.mxu0 0.0
    %3630 = vmatpush1.msra.mxu0 %v112
    %3631 = vmatprep.subr.mxu0 0.0
    %3632 = vmatpush1.msra.mxu0 %v113
    %3633 = vmatprep.subr.mxu0 0.0
    %3634 = vmatpush1.msra.mxu0 %v114
    %3635 = vmatprep.subr.mxu0 0.0
    %3636 = vmatpush1.msra.mxu0 %v115
    %3637 = vmatprep.subr.mxu0 0.0
    %3638 = vmatpush1.msra.mxu0 0.0
    %3639 = vmatprep.subr.mxu0 0.0
    %3640 = vmatpush1.msra.mxu0 0.0
    %3641 = vmatprep.subr.mxu0 0.0
    %3642 = vmatpush1.msra.mxu0 0.0
    %3643 = vmatprep.subr.mxu0 0.0
    %3644 = vmatpush1.msra.mxu0 0.0
    %3645 = vmatprep.subr.mxu0 0.0
    %3646 = vmatpush1.msra.mxu0 0.0
    %3647 = vmatprep.subr.mxu0 0.0
    %3648 = vmatpush1.msra.mxu0 0.0
    %3649 = vmatprep.subr.mxu0 0.0
    %3650 = vmatpush1.msra.mxu0 0.0
    %3651 = vmatprep.subr.mxu0 0.0
    %3652 = vmatpush1.msra.mxu0 0.0
    %3653 = vmatprep.subr.mxu0 0.0
    %3654 = vmatpush1.msra.mxu0 0.0
    %3655 = vmatprep.subr.mxu0 0.0
    %3656 = vmatpush1.msra.mxu0 0.0
    %3657 = vmatprep.subr.mxu0 0.0
    %3658 = vmatpush1.msra.mxu0 0.0
    %3659 = vmatprep.subr.mxu0 0.0
    %3660 = vmatpush1.msra.mxu0 0.0
    %3661 = vmatprep.subr.mxu0 0.0
    %3662 = vmatpush1.msra.mxu0 0.0
    %3663 = vmatprep.subr.mxu0 0.0
    %3664 = vmatpush1.msra.mxu0 0.0
    %3665 = vmatprep.subr.mxu0 0.0
    %3666 = vmatpush1.msra.mxu0 0.0
    %3667 = vmatprep.subr.mxu0 0.0
    %3668 = vmatpush1.msra.mxu0 0.0
    %3669 = vmatprep.subr.mxu0 0.0
    %3670 = vmatpush1.msra.mxu0 0.0
    %3671 = vmatprep.subr.mxu0 0.0
    %3672 = vmatpush1.msra.mxu0 0.0
    %3673 = vmatprep.subr.mxu0 0.0
    %3674 = vmatpush1.msra.mxu0 0.0
    %3675 = vmatprep.subr.mxu0 0.0
    %3676 = vmatpush1.msra.mxu0 0.0
    %3677 = vmatprep.subr.mxu0 0.0
    %3678 = vmatpush1.msra.mxu0 0.0
    %3679 = vmatprep.subr.mxu0 0.0
    %3680 = vmatpush1.msra.mxu0 0.0
    %3681 = vmatprep.subr.mxu0 0.0
    %3682 = vmatpush1.msra.mxu0 0.0
    %3683 = vmatprep.subr.mxu0 0.0
    %3684 = vmatpush1.msra.mxu0 0.0
    %3685 = vmatprep.subr.mxu0 0.0
    %3686 = vmatpush1.msra.mxu0 0.0
    %3687 = vmatprep.subr.mxu0 0.0
    %3688 = vmatpush1.msra.mxu0 0.0
    %3689 = vmatprep.subr.mxu0 0.0
    %3690 = vmatpush1.msra.mxu0 0.0
    %3691 = vmatprep.mubr.f32.mxu0 0.0
    %3692 = vmatmul.mubr.f32.gmra.mrb[0].mxu0 %v3625
    %v3693 = vpop.f32.mrb[0].mxu0
    %v3694 = vadd.f32 %v125, %v3693
    %v3695 = vpop.f32.mrb[0].mxu0
    %3696 = vdwg.mxu0
    %vm3697 = vcmp.ge.f32.partialorder %v3694, 0.0
    %v3698 = vmul.f32 %v3694, 0.01
    %v3699 = vsel %vm3697, %v3694, %v3698
    %v3701 = vsel %vm139, %v3699, 0
    %3703 = vmatprep.subr.mxu0 0.0
    %3704 = vmatpush1.msra.mxu0 %v116
    %3705 = vmatprep.subr.mxu0 0.0
    %3706 = vmatpush1.msra.mxu0 %v117
    %3707 = vmatprep.subr.mxu0 0.0
    %3708 = vmatpush1.msra.mxu0 %v118
    %3709 = vmatprep.subr.mxu0 0.0
    %3710 = vmatpush1.msra.mxu0 %v119
    %3711 = vmatprep.subr.mxu0 0.0
    %3712 = vmatpush1.msra.mxu0 0.0
    %3713 = vmatprep.subr.mxu0 0.0
    %3714 = vmatpush1.msra.mxu0 0.0
    %3715 = vmatprep.subr.mxu0 0.0
    %3716 = vmatpush1.msra.mxu0 0.0
    %3717 = vmatprep.subr.mxu0 0.0
    %3718 = vmatpush1.msra.mxu0 0.0
    %3719 = vmatprep.subr.mxu0 0.0
    %3720 = vmatpush1.msra.mxu0 0.0
    %3721 = vmatprep.subr.mxu0 0.0
    %3722 = vmatpush1.msra.mxu0 0.0
    %3723 = vmatprep.subr.mxu0 0.0
    %3724 = vmatpush1.msra.mxu0 0.0
    %3725 = vmatprep.subr.mxu0 0.0
    %3726 = vmatpush1.msra.mxu0 0.0
    %3727 = vmatprep.subr.mxu0 0.0
    %3728 = vmatpush1.msra.mxu0 0.0
    %3729 = vmatprep.subr.mxu0 0.0
    %3730 = vmatpush1.msra.mxu0 0.0
    %3731 = vmatprep.subr.mxu0 0.0
    %3732 = vmatpush1.msra.mxu0 0.0
    %3733 = vmatprep.subr.mxu0 0.0
    %3734 = vmatpush1.msra.mxu0 0.0
    %3735 = vmatprep.subr.mxu0 0.0
    %3736 = vmatpush1.msra.mxu0 0.0
    %3737 = vmatprep.subr.mxu0 0.0
    %3738 = vmatpush1.msra.mxu0 0.0
    %3739 = vmatprep.subr.mxu0 0.0
    %3740 = vmatpush1.msra.mxu0 0.0
    %3741 = vmatprep.subr.mxu0 0.0
    %3742 = vmatpush1.msra.mxu0 0.0
    %3743 = vmatprep.subr.mxu0 0.0
    %3744 = vmatpush1.msra.mxu0 0.0
    %3745 = vmatprep.subr.mxu0 0.0
    %3746 = vmatpush1.msra.mxu0 0.0
    %3747 = vmatprep.subr.mxu0 0.0
    %3748 = vmatpush1.msra.mxu0 0.0
    %3749 = vmatprep.subr.mxu0 0.0
    %3750 = vmatpush1.msra.mxu0 0.0
    %3751 = vmatprep.subr.mxu0 0.0
    %3752 = vmatpush1.msra.mxu0 0.0
    %3753 = vmatprep.subr.mxu0 0.0
    %3754 = vmatpush1.msra.mxu0 0.0
    %3755 = vmatprep.subr.mxu0 0.0
    %3756 = vmatpush1.msra.mxu0 0.0
    %3757 = vmatprep.subr.mxu0 0.0
    %3758 = vmatpush1.msra.mxu0 0.0
    %3759 = vmatprep.subr.mxu0 0.0
    %3760 = vmatpush1.msra.mxu0 0.0
    %3761 = vmatprep.subr.mxu0 0.0
    %3762 = vmatpush1.msra.mxu0 0.0
    %3763 = vmatprep.subr.mxu0 0.0
    %3764 = vmatpush1.msra.mxu0 0.0
    %3765 = vmatprep.subr.mxu0 0.0
    %3766 = vmatpush1.msra.mxu0 0.0
    %3767 = vmatprep.mubr.f32.mxu0 0.0
    %3768 = vmatmul.mubr.f32.gmra.mrb[0].mxu0 %v3701
    %v3769 = vpop.f32.mrb[0].mxu0
    %v3770 = vadd.f32 %v132, %v3769
    %v3771 = vpop.f32.mrb[0].mxu0
    %3772 = vdwg.mxu0
    %v3773 = vmul.f32 %v3617, 0.33333334
    %v3774 = vsub.f32 %v3770, %v3773
    %v3775 = vstv %s3470
    %v3776 = vmul.f32 %v3775, %v3774
    %v3777 = vadd.f32 %v3469, %v3776
    %v3779 = vsel %vm144, %v3777, 0
    %3781 = vmatprep.subr.mxu0 0.0
    %3782 = vmatpush1.msra.mxu0 %v111
    %3783 = vmatprep.subr.mxu0 0.0
    %3784 = vmatpush1.msra.mxu0 %v112
    %3785 = vmatprep.subr.mxu0 0.0
    %3786 = vmatpush1.msra.mxu0 %v113
    %3787 = vmatprep.subr.mxu0 0.0
    %3788 = vmatpush1.msra.mxu0 %v114
    %3789 = vmatprep.subr.mxu0 0.0
    %3790 = vmatpush1.msra.mxu0 %v115
    %3791 = vmatprep.subr.mxu0 0.0
    %3792 = vmatpush1.msra.mxu0 0.0
    %3793 = vmatprep.subr.mxu0 0.0
    %3794 = vmatpush1.msra.mxu0 0.0
    %3795 = vmatprep.subr.mxu0 0.0
    %3796 = vmatpush1.msra.mxu0 0.0
    %3797 = vmatprep.subr.mxu0 0.0
    %3798 = vmatpush1.msra.mxu0 0.0
    %3799 = vmatprep.subr.mxu0 0.0
    %3800 = vmatpush1.msra.mxu0 0.0
    %3801 = vmatprep.subr.mxu0 0.0
    %3802 = vmatpush1.msra.mxu0 0.0
    %3803 = vmatprep.subr.mxu0 0.0
    %3804 = vmatpush1.msra.mxu0 0.0
    %3805 = vmatprep.subr.mxu0 0.0
    %3806 = vmatpush1.msra.mxu0 0.0
    %3807 = vmatprep.subr.mxu0 0.0
    %3808 = vmatpush1.msra.mxu0 0.0
    %3809 = vmatprep.subr.mxu0 0.0
    %3810 = vmatpush1.msra.mxu0 0.0
    %3811 = vmatprep.subr.mxu0 0.0
    %3812 = vmatpush1.msra.mxu0 0.0
    %3813 = vmatprep.subr.mxu0 0.0
    %3814 = vmatpush1.msra.mxu0 0.0
    %3815 = vmatprep.subr.mxu0 0.0
    %3816 = vmatpush1.msra.mxu0 0.0
    %3817 = vmatprep.subr.mxu0 0.0
    %3818 = vmatpush1.msra.mxu0 0.0
    %3819 = vmatprep.subr.mxu0 0.0
    %3820 = vmatpush1.msra.mxu0 0.0
    %3821 = vmatprep.subr.mxu0 0.0
    %3822 = vmatpush1.msra.mxu0 0.0
    %3823 = vmatprep.subr.mxu0 0.0
    %3824 = vmatpush1.msra.mxu0 0.0
    %3825 = vmatprep.subr.mxu0 0.0
    %3826 = vmatpush1.msra.mxu0 0.0
    %3827 = vmatprep.subr.mxu0 0.0
    %3828 = vmatpush1.msra.mxu0 0.0
    %3829 = vmatprep.subr.mxu0 0.0
    %3830 = vmatpush1.msra.mxu0 0.0
    %3831 = vmatprep.subr.mxu0 0.0
    %3832 = vmatpush1.msra.mxu0 0.0
    %3833 = vmatprep.subr.mxu0 0.0
    %3834 = vmatpush1.msra.mxu0 0.0
    %3835 = vmatprep.subr.mxu0 0.0
    %3836 = vmatpush1.msra.mxu0 0.0
    %3837 = vmatprep.subr.mxu0 0.0
    %3838 = vmatpush1.msra.mxu0 0.0
    %3839 = vmatprep.subr.mxu0 0.0
    %3840 = vmatpush1.msra.mxu0 0.0
    %3841 = vmatprep.subr.mxu0 0.0
    %3842 = vmatpush1.msra.mxu0 0.0
    %3843 = vmatprep.subr.mxu0 0.0
    %3844 = vmatpush1.msra.mxu0 0.0
    %3845 = vmatprep.mubr.f32.mxu0 0.0
    %3846 = vmatmul.mubr.f32.gmra.mrb[0].mxu0 %v3779
    %v3847 = vpop.f32.mrb[0].mxu0
    %v3848 = vadd.f32 %v125, %v3847
    %v3849 = vpop.f32.mrb[0].mxu0
    %3850 = vdwg.mxu0
    %vm3851 = vcmp.ge.f32.partialorder %v3848, 0.0
    %v3852 = vmul.f32 %v3848, 0.01
    %v3853 = vsel %vm3851, %v3848, %v3852
    %v3855 = vsel %vm139, %v3853, 0
    %3857 = vmatprep.subr.mxu0 0.0
    %3858 = vmatpush1.msra.mxu0 %v116
    %3859 = vmatprep.subr.mxu0 0.0
    %3860 = vmatpush1.msra.mxu0 %v117
    %3861 = vmatprep.subr.mxu0 0.0
    %3862 = vmatpush1.msra.mxu0 %v118
    %3863 = vmatprep.subr.mxu0 0.0
    %3864 = vmatpush1.msra.mxu0 %v119
    %3865 = vmatprep.subr.mxu0 0.0
    %3866 = vmatpush1.msra.mxu0 0.0
    %3867 = vmatprep.subr.mxu0 0.0
    %3868 = vmatpush1.msra.mxu0 0.0
    %3869 = vmatprep.subr.mxu0 0.0
    %3870 = vmatpush1.msra.mxu0 0.0
    %3871 = vmatprep.subr.mxu0 0.0
    %3872 = vmatpush1.msra.mxu0 0.0
    %3873 = vmatprep.subr.mxu0 0.0
    %3874 = vmatpush1.msra.mxu0 0.0
    %3875 = vmatprep.subr.mxu0 0.0
    %3876 = vmatpush1.msra.mxu0 0.0
    %3877 = vmatprep.subr.mxu0 0.0
    %3878 = vmatpush1.msra.mxu0 0.0
    %3879 = vmatprep.subr.mxu0 0.0
    %3880 = vmatpush1.msra.mxu0 0.0
    %3881 = vmatprep.subr.mxu0 0.0
    %3882 = vmatpush1.msra.mxu0 0.0
    %3883 = vmatprep.subr.mxu0 0.0
    %3884 = vmatpush1.msra.mxu0 0.0
    %3885 = vmatprep.subr.mxu0 0.0
    %3886 = vmatpush1.msra.mxu0 0.0
    %3887 = vmatprep.subr.mxu0 0.0
    %3888 = vmatpush1.msra.mxu0 0.0
    %3889 = vmatprep.subr.mxu0 0.0
    %3890 = vmatpush1.msra.mxu0 0.0
    %3891 = vmatprep.subr.mxu0 0.0
    %3892 = vmatpush1.msra.mxu0 0.0
    %3893 = vmatprep.subr.mxu0 0.0
    %3894 = vmatpush1.msra.mxu0 0.0
    %3895 = vmatprep.subr.mxu0 0.0
    %3896 = vmatpush1.msra.mxu0 0.0
    %3897 = vmatprep.subr.mxu0 0.0
    %3898 = vmatpush1.msra.mxu0 0.0
    %3899 = vmatprep.subr.mxu0 0.0
    %3900 = vmatpush1.msra.mxu0 0.0
    %3901 = vmatprep.subr.mxu0 0.0
    %3902 = vmatpush1.msra.mxu0 0.0
    %3903 = vmatprep.subr.mxu0 0.0
    %3904 = vmatpush1.msra.mxu0 0.0
    %3905 = vmatprep.subr.mxu0 0.0
    %3906 = vmatpush1.msra.mxu0 0.0
    %3907 = vmatprep.subr.mxu0 0.0
    %3908 = vmatpush1.msra.mxu0 0.0
    %3909 = vmatprep.subr.mxu0 0.0
    %3910 = vmatpush1.msra.mxu0 0.0
    %3911 = vmatprep.subr.mxu0 0.0
    %3912 = vmatpush1.msra.mxu0 0.0
    %3913 = vmatprep.subr.mxu0 0.0
    %3914 = vmatpush1.msra.mxu0 0.0
    %3915 = vmatprep.subr.mxu0 0.0
    %3916 = vmatpush1.msra.mxu0 0.0
    %3917 = vmatprep.subr.mxu0 0.0
    %3918 = vmatpush1.msra.mxu0 0.0
    %3919 = vmatprep.subr.mxu0 0.0
    %3920 = vmatpush1.msra.mxu0 0.0
    %3921 = vmatprep.mubr.f32.mxu0 0.0
    %3922 = vmatmul.mubr.f32.gmra.mrb[0].mxu0 %v3855
    %v3923 = vpop.f32.mrb[0].mxu0
    %v3924 = vadd.f32 %v132, %v3923
    %v3925 = vpop.f32.mrb[0].mxu0
    %3926 = vdwg.mxu0
    %v3927 = vsub.f32 %v3617, %v3770
    %v3928 = vadd.f32 %v3927, %v3924
    %v3929 = vmul.f32 %v3775, %v3928
    %v3930 = vadd.f32 %v3469, %v3929
    %v3932 = vsel %vm144, %v3930, 0
    %3934 = vmatprep.subr.mxu0 0.0
    %3935 = vmatpush1.msra.mxu0 %v111
    %3936 = vmatprep.subr.mxu0 0.0
    %3937 = vmatpush1.msra.mxu0 %v112
    %3938 = vmatprep.subr.mxu0 0.0
    %3939 = vmatpush1.msra.mxu0 %v113
    %3940 = vmatprep.subr.mxu0 0.0
    %3941 = vmatpush1.msra.mxu0 %v114
    %3942 = vmatprep.subr.mxu0 0.0
    %3943 = vmatpush1.msra.mxu0 %v115
    %3944 = vmatprep.subr.mxu0 0.0
    %3945 = vmatpush1.msra.mxu0 0.0
    %3946 = vmatprep.subr.mxu0 0.0
    %3947 = vmatpush1.msra.mxu0 0.0
    %3948 = vmatprep.subr.mxu0 0.0
    %3949 = vmatpush1.msra.mxu0 0.0
    %3950 = vmatprep.subr.mxu0 0.0
    %3951 = vmatpush1.msra.mxu0 0.0
    %3952 = vmatprep.subr.mxu0 0.0
    %3953 = vmatpush1.msra.mxu0 0.0
    %3954 = vmatprep.subr.mxu0 0.0
    %3955 = vmatpush1.msra.mxu0 0.0
    %3956 = vmatprep.subr.mxu0 0.0
    %3957 = vmatpush1.msra.mxu0 0.0
    %3958 = vmatprep.subr.mxu0 0.0
    %3959 = vmatpush1.msra.mxu0 0.0
    %3960 = vmatprep.subr.mxu0 0.0
    %3961 = vmatpush1.msra.mxu0 0.0
    %3962 = vmatprep.subr.mxu0 0.0
    %3963 = vmatpush1.msra.mxu0 0.0
    %3964 = vmatprep.subr.mxu0 0.0
    %3965 = vmatpush1.msra.mxu0 0.0
    %3966 = vmatprep.subr.mxu0 0.0
    %3967 = vmatpush1.msra.mxu0 0.0
    %3968 = vmatprep.subr.mxu0 0.0
    %3969 = vmatpush1.msra.mxu0 0.0
    %3970 = vmatprep.subr.mxu0 0.0
    %3971 = vmatpush1.msra.mxu0 0.0
    %3972 = vmatprep.subr.mxu0 0.0
    %3973 = vmatpush1.msra.mxu0 0.0
    %3974 = vmatprep.subr.mxu0 0.0
    %3975 = vmatpush1.msra.mxu0 0.0
    %3976 = vmatprep.subr.mxu0 0.0
    %3977 = vmatpush1.msra.mxu0 0.0
    %3978 = vmatprep.subr.mxu0 0.0
    %3979 = vmatpush1.msra.mxu0 0.0
    %3980 = vmatprep.subr.mxu0 0.0
    %3981 = vmatpush1.msra.mxu0 0.0
    %3982 = vmatprep.subr.mxu0 0.0
    %3983 = vmatpush1.msra.mxu0 0.0
    %3984 = vmatprep.subr.mxu0 0.0
    %3985 = vmatpush1.msra.mxu0 0.0
    %3986 = vmatprep.subr.mxu0 0.0
    %3987 = vmatpush1.msra.mxu0 0.0
    %3988 = vmatprep.subr.mxu0 0.0
    %3989 = vmatpush1.msra.mxu0 0.0
    %3990 = vmatprep.subr.mxu0 0.0
    %3991 = vmatpush1.msra.mxu0 0.0
    %3992 = vmatprep.subr.mxu0 0.0
    %3993 = vmatpush1.msra.mxu0 0.0
    %3994 = vmatprep.subr.mxu0 0.0
    %3995 = vmatpush1.msra.mxu0 0.0
    %3996 = vmatprep.subr.mxu0 0.0
    %3997 = vmatpush1.msra.mxu0 0.0
    %3998 = vmatprep.mubr.f32.mxu0 0.0
    %3999 = vmatmul.mubr.f32.gmra.mrb[0].mxu0 %v3932
    %v4000 = vpop.f32.mrb[0].mxu0
    %v4001 = vadd.f32 %v125, %v4000
    %v4002 = vpop.f32.mrb[0].mxu0
    %4003 = vdwg.mxu0
    %vm4004 = vcmp.ge.f32.partialorder %v4001, 0.0
    %v4005 = vmul.f32 %v4001, 0.01
    %v4006 = vsel %vm4004, %v4001, %v4005
    %v4008 = vsel %vm139, %v4006, 0
    %4010 = vmatprep.subr.mxu0 0.0
    %4011 = vmatpush1.msra.mxu0 %v116
    %4012 = vmatprep.subr.mxu0 0.0
    %4013 = vmatpush1.msra.mxu0 %v117
    %4014 = vmatprep.subr.mxu0 0.0
    %4015 = vmatpush1.msra.mxu0 %v118
    %4016 = vmatprep.subr.mxu0 0.0
    %4017 = vmatpush1.msra.mxu0 %v119
    %4018 = vmatprep.subr.mxu0 0.0
    %4019 = vmatpush1.msra.mxu0 0.0
    %4020 = vmatprep.subr.mxu0 0.0
    %4021 = vmatpush1.msra.mxu0 0.0
    %4022 = vmatprep.subr.mxu0 0.0
    %4023 = vmatpush1.msra.mxu0 0.0
    %4024 = vmatprep.subr.mxu0 0.0
    %4025 = vmatpush1.msra.mxu0 0.0
    %4026 = vmatprep.subr.mxu0 0.0
    %4027 = vmatpush1.msra.mxu0 0.0
    %4028 = vmatprep.subr.mxu0 0.0
    %4029 = vmatpush1.msra.mxu0 0.0
    %4030 = vmatprep.subr.mxu0 0.0
    %4031 = vmatpush1.msra.mxu0 0.0
    %4032 = vmatprep.subr.mxu0 0.0
    %4033 = vmatpush1.msra.mxu0 0.0
    %4034 = vmatprep.subr.mxu0 0.0
    %4035 = vmatpush1.msra.mxu0 0.0
    %4036 = vmatprep.subr.mxu0 0.0
    %4037 = vmatpush1.msra.mxu0 0.0
    %4038 = vmatprep.subr.mxu0 0.0
    %4039 = vmatpush1.msra.mxu0 0.0
    %4040 = vmatprep.subr.mxu0 0.0
    %4041 = vmatpush1.msra.mxu0 0.0
    %4042 = vmatprep.subr.mxu0 0.0
    %4043 = vmatpush1.msra.mxu0 0.0
    %4044 = vmatprep.subr.mxu0 0.0
    %4045 = vmatpush1.msra.mxu0 0.0
    %4046 = vmatprep.subr.mxu0 0.0
    %4047 = vmatpush1.msra.mxu0 0.0
    %4048 = vmatprep.subr.mxu0 0.0
    %4049 = vmatpush1.msra.mxu0 0.0
    %4050 = vmatprep.subr.mxu0 0.0
    %4051 = vmatpush1.msra.mxu0 0.0
    %4052 = vmatprep.subr.mxu0 0.0
    %4053 = vmatpush1.msra.mxu0 0.0
    %4054 = vmatprep.subr.mxu0 0.0
    %4055 = vmatpush1.msra.mxu0 0.0
    %4056 = vmatprep.subr.mxu0 0.0
    %4057 = vmatpush1.msra.mxu0 0.0
    %4058 = vmatprep.subr.mxu0 0.0
    %4059 = vmatpush1.msra.mxu0 0.0
    %4060 = vmatprep.subr.mxu0 0.0
    %4061 = vmatpush1.msra.mxu0 0.0
    %4062 = vmatprep.subr.mxu0 0.0
    %4063 = vmatpush1.msra.mxu0 0.0
    %4064 = vmatprep.subr.mxu0 0.0
    %4065 = vmatpush1.msra.mxu0 0.0
    %4066 = vmatprep.subr.mxu0 0.0
    %4067 = vmatpush1.msra.mxu0 0.0
    %4068 = vmatprep.subr.mxu0 0.0
    %4069 = vmatpush1.msra.mxu0 0.0
    %4070 = vmatprep.subr.mxu0 0.0
    %4071 = vmatpush1.msra.mxu0 0.0
    %4072 = vmatprep.subr.mxu0 0.0
    %4073 = vmatpush1.msra.mxu0 0.0
    %4074 = vmatprep.mubr.f32.mxu0 0.0
    %4075 = vmatmul.mubr.f32.gmra.mrb[0].mxu0 %v4008
    %v4076 = vpop.f32.mrb[0].mxu0
    %v4077 = vadd.f32 %v132, %v4076
    %v4078 = vpop.f32.mrb[0].mxu0
    %4079 = vdwg.mxu0
    %v4080 = vadd.f32 %v3770, %v3924
    %v4081 = vmul.f32 %v4080, 3.0
    %v4082 = vadd.f32 %v3617, %v4081
    %v4083 = vadd.f32 %v4082, %v4077
    %s4084 = smul.f32 %s3470, 0.125
    %v4085 = vstv %s4084
    %v4086 = vmul.f32 %v4083, %v4085
    %v4087 = vadd.f32 %v3469, %v4086
    %4089 = vrot.lane.b32.xlu0 %v4087, 96
    %v4090 = vpop.permute.xlu0 %4089
    %4092 = vrot.lane.b32.xlu0 %v3430, 8
    %v4093 = vpop.permute.xlu0 %4092
    %v4095 = vsel %vm926, %v4090, %v4093
    %v4096 = vsel %vm928, %v4095, 0.0
    %s4097 = scalar_lea.vmem [#allocation12], 32
    %4098 = vst [vmem:[%s4097] sm:$0xff] %v4096
    %s4099 = scalar_lea.vmem [#allocation7], 80
    %v4100 = vld [vmem:[%s4099] sm:$0xff]
    %v4101 = vld [vmem:[%s4099 + $0x8] sm:$0xff]
    %v4102 = vsel %vm144, %v4087, 0
    %4104 = vmatprep.subr.mxu0 %v102
    %4105 = vmatpush1.msra.mxu0 %v101
    %4106 = vmatprep.subr.mxu0 %v104
    %4107 = vmatpush1.msra.mxu0 %v103
    %4108 = vmatprep.subr.mxu0 %v106
    %4109 = vmatpush1.msra.mxu0 %v105
    %4110 = vmatprep.subr.mxu0 %v108
    %4111 = vmatpush1.msra.mxu0 %v107
    %4112 = vmatprep.subr.mxu0 %v110
    %4113 = vmatpush1.msra.mxu0 %v109
    %4114 = vmatprep.subr.mxu0 0.0
    %4115 = vmatpush1.msra.mxu0 0.0
    %4116 = vmatprep.subr.mxu0 0.0
    %4117 = vmatpush1.msra.mxu0 0.0
    %4118 = vmatprep.subr.mxu0 0.0
    %4119 = vmatpush1.msra.mxu0 0.0
    %4120 = vmatprep.subr.mxu0 0.0
    %4121 = vmatpush1.msra.mxu0 0.0
    %4122 = vmatprep.subr.mxu0 0.0
    %4123 = vmatpush1.msra.mxu0 0.0
    %4124 = vmatprep.subr.mxu0 0.0
    %4125 = vmatpush1.msra.mxu0 0.0
    %4126 = vmatprep.subr.mxu0 0.0
    %4127 = vmatpush1.msra.mxu0 0.0
    %4128 = vmatprep.subr.mxu0 0.0
    %4129 = vmatpush1.msra.mxu0 0.0
    %4130 = vmatprep.subr.mxu0 0.0
    %4131 = vmatpush1.msra.mxu0 0.0
    %4132 = vmatprep.subr.mxu0 0.0
    %4133 = vmatpush1.msra.mxu0 0.0
    %4134 = vmatprep.subr.mxu0 0.0
    %4135 = vmatpush1.msra.mxu0 0.0
    %4136 = vmatprep.subr.mxu0 0.0
    %4137 = vmatpush1.msra.mxu0 0.0
    %4138 = vmatprep.subr.mxu0 0.0
    %4139 = vmatpush1.msra.mxu0 0.0
    %4140 = vmatprep.subr.mxu0 0.0
    %4141 = vmatpush1.msra.mxu0 0.0
    %4142 = vmatprep.subr.mxu0 0.0
    %4143 = vmatpush1.msra.mxu0 0.0
    %4144 = vmatprep.subr.mxu0 0.0
    %4145 = vmatpush1.msra.mxu0 0.0
    %4146 = vmatprep.subr.mxu0 0.0
    %4147 = vmatpush1.msra.mxu0 0.0
    %4148 = vmatprep.subr.mxu0 0.0
    %4149 = vmatpush1.msra.mxu0 0.0
    %4150 = vmatprep.subr.mxu0 0.0
    %4151 = vmatpush1.msra.mxu0 0.0
    %4152 = vmatprep.subr.mxu0 0.0
    %4153 = vmatpush1.msra.mxu0 0.0
    %4154 = vmatprep.subr.mxu0 0.0
    %4155 = vmatpush1.msra.mxu0 0.0
    %4156 = vmatprep.subr.mxu0 0.0
    %4157 = vmatpush1.msra.mxu0 0.0
    %4158 = vmatprep.subr.mxu0 0.0
    %4159 = vmatpush1.msra.mxu0 0.0
    %4160 = vmatprep.subr.mxu0 0.0
    %4161 = vmatpush1.msra.mxu0 0.0
    %4162 = vmatprep.subr.mxu0 0.0
    %4163 = vmatpush1.msra.mxu0 0.0
    %4164 = vmatprep.subr.mxu0 0.0
    %4165 = vmatpush1.msra.mxu0 0.0
    %4166 = vmatprep.subr.mxu0 0.0
    %4167 = vmatpush1.msra.mxu0 0.0
    %4168 = vmatprep.mubr.f32.mxu0 0.0
    %4169 = vmatmul.mubr.f32.gmra.mrb[0].mxu0 %v4102
    %v4170 = vpop.f32.mrb[0].mxu0
    %v4171 = vadd.f32 %v4100, %v4170
    %v4172 = vpop.f32.mrb[0].mxu0
    %v4173 = vadd.f32 %v4101, %v4172
    %4174 = vdwg.mxu0
    %4176 = vrot.lane.b32.xlu0 %v4171, 80
    %v4177 = vpop.permute.xlu0 %4176
    %v4179 = vadd.f32 %v4171, %v4177
    %v4180 = vxor.u32 %v4179, 2147483648
    %v4181 = vmul.f32 %v4180, 1.442695
    %v4182 = vpow.pop %v4181
    %v4183 = vadd.f32 %v4182, 1.0
    %v4184 = vrcp.pop %v4183
    %v4185 = vmul.f32 1.0, %v4184
    %4186 = vrot.lane.b32.xlu0 %v4171, 48
    %v4187 = vpop.permute.xlu0 %4186
    %v4189 = vmul.f32 %v4185, %v4187
    %4191 = vrot.lane.b32.xlu0 %v4189, 32
    %v4192 = vpop.permute.xlu0 %4191
    %v4194 = vadd.f32 %v4171, %v4192
    %v4195 = vtanh.pop %v4194
    %v4196 = vsub.f32 1.0, %v4185
    %4198 = vrot.lane.b32.xlu0 %v4195, 112
    %v4199 = vpop.permute.xlu0 %4198
    %v4201 = vmul.f32 %v4196, %v4199
    %v4202 = vmul.f32 %v4185, %v4087
    %v4203 = vadd.f32 %v4201, %v4202
    %s4204 = scalar_lea.vmem [#allocation9], 40
    %v4205 = vld [vmem:[%s4204] sm:$0xff]
    %4207 = vrot.lane.b32.xlu0 %v4203, 112
    %v4208 = vpop.permute.xlu0 %4207
    %v4210 = vmul.f32 %v4205, %v4208
    %v4211 = vsub.f32 1.0, %v4205
    %4212 = vrot.lane.b32.xlu0 %v4087, 112
    %v4213 = vpop.permute.xlu0 %4212
    %v4215 = vmul.f32 %v4211, %v4213
    %v4216 = vadd.f32 %v4210, %v4215
    %4218 = vrot.lane.b32.xlu0 %v4173, 80
    %v4219 = vpop.permute.xlu0 %4218
    %v4221 = vadd.f32 %v4171, %v4219
    %v4222 = vxor.u32 %v4221, 2147483648
    %v4223 = vmul.f32 %v4222, 1.442695
    %v4224 = vpow.pop %v4223
    %v4225 = vadd.f32 %v4224, 1.0
    %v4226 = vrcp.pop %v4225
    %v4227 = vmul.f32 1.0, %v4226
    %4228 = vrot.lane.b32.xlu0 %v4173, 48
    %v4229 = vpop.permute.xlu0 %4228
    %v4231 = vmul.f32 %v4227, %v4229
    %4233 = vrot.lane.b32.xlu0 %v4231, 32
    %v4234 = vpop.permute.xlu0 %4233
    %v4236 = vadd.f32 %v4173, %v4234
    %v4237 = vtanh.pop %v4236
    %v4238 = vsub.f32 1.0, %v4227
    %4240 = vrot.lane.b32.xlu0 %v4237, 112
    %v4241 = vpop.permute.xlu0 %4240
    %v4243 = vmul.f32 %v4238, %v4241
    %v4244 = vmul.f32 %v4227, %v4213
    %v4245 = vadd.f32 %v4243, %v4244
    %4247 = vrot.lane.b32.xlu0 %v4245, 16
    %v4248 = vpop.permute.xlu0 %4247
    %4251 = vrot.lane.b32.xlu0 %v4216, 16
    %v4252 = vpop.permute.xlu0 %4251
    %v4254 = vsel %vm298, %v4248, %v4252
    %v4255 = vsel %vm139, %v4254, %v4087
    %s4256 = sld [smem:[#allocation2 + $0x5]]
    %v4258 = vsel %vm144, %v4255, 0
    %4260 = vmatprep.subr.mxu0 0.0
    %4261 = vmatpush1.msra.mxu0 %v111
    %4262 = vmatprep.subr.mxu0 0.0
    %4263 = vmatpush1.msra.mxu0 %v112
    %4264 = vmatprep.subr.mxu0 0.0
    %4265 = vmatpush1.msra.mxu0 %v113
    %4266 = vmatprep.subr.mxu0 0.0
    %4267 = vmatpush1.msra.mxu0 %v114
    %4268 = vmatprep.subr.mxu0 0.0
    %4269 = vmatpush1.msra.mxu0 %v115
    %4270 = vmatprep.subr.mxu0 0.0
    %4271 = vmatpush1.msra.mxu0 0.0
    %4272 = vmatprep.subr.mxu0 0.0
    %4273 = vmatpush1.msra.mxu0 0.0
    %4274 = vmatprep.subr.mxu0 0.0
    %4275 = vmatpush1.msra.mxu0 0.0
    %4276 = vmatprep.subr.mxu0 0.0
    %4277 = vmatpush1.msra.mxu0 0.0
    %4278 = vmatprep.subr.mxu0 0.0
    %4279 = vmatpush1.msra.mxu0 0.0
    %4280 = vmatprep.subr.mxu0 0.0
    %4281 = vmatpush1.msra.mxu0 0.0
    %4282 = vmatprep.subr.mxu0 0.0
    %4283 = vmatpush1.msra.mxu0 0.0
    %4284 = vmatprep.subr.mxu0 0.0
    %4285 = vmatpush1.msra.mxu0 0.0
    %4286 = vmatprep.subr.mxu0 0.0
    %4287 = vmatpush1.msra.mxu0 0.0
    %4288 = vmatprep.subr.mxu0 0.0
    %4289 = vmatpush1.msra.mxu0 0.0
    %4290 = vmatprep.subr.mxu0 0.0
    %4291 = vmatpush1.msra.mxu0 0.0
    %4292 = vmatprep.subr.mxu0 0.0
    %4293 = vmatpush1.msra.mxu0 0.0
    %4294 = vmatprep.subr.mxu0 0.0
    %4295 = vmatpush1.msra.mxu0 0.0
    %4296 = vmatprep.subr.mxu0 0.0
    %4297 = vmatpush1.msra.mxu0 0.0
    %4298 = vmatprep.subr.mxu0 0.0
    %4299 = vmatpush1.msra.mxu0 0.0
    %4300 = vmatprep.subr.mxu0 0.0
    %4301 = vmatpush1.msra.mxu0 0.0
    %4302 = vmatprep.subr.mxu0 0.0
    %4303 = vmatpush1.msra.mxu0 0.0
    %4304 = vmatprep.subr.mxu0 0.0
    %4305 = vmatpush1.msra.mxu0 0.0
    %4306 = vmatprep.subr.mxu0 0.0
    %4307 = vmatpush1.msra.mxu0 0.0
    %4308 = vmatprep.subr.mxu0 0.0
    %4309 = vmatpush1.msra.mxu0 0.0
    %4310 = vmatprep.subr.mxu0 0.0
    %4311 = vmatpush1.msra.mxu0 0.0
    %4312 = vmatprep.subr.mxu0 0.0
    %4313 = vmatpush1.msra.mxu0 0.0
    %4314 = vmatprep.subr.mxu0 0.0
    %4315 = vmatpush1.msra.mxu0 0.0
    %4316 = vmatprep.subr.mxu0 0.0
    %4317 = vmatpush1.msra.mxu0 0.0
    %4318 = vmatprep.subr.mxu0 0.0
    %4319 = vmatpush1.msra.mxu0 0.0
    %4320 = vmatprep.subr.mxu0 0.0
    %4321 = vmatpush1.msra.mxu0 0.0
    %4322 = vmatprep.subr.mxu0 0.0
    %4323 = vmatpush1.msra.mxu0 0.0
    %4324 = vmatprep.mubr.f32.mxu0 0.0
    %4325 = vmatmul.mubr.f32.gmra.mrb[0].mxu0 %v4258
    %v4326 = vpop.f32.mrb[0].mxu0
    %v4327 = vadd.f32 %v125, %v4326
    %v4328 = vpop.f32.mrb[0].mxu0
    %4329 = vdwg.mxu0
    %vm4330 = vcmp.ge.f32.partialorder %v4327, 0.0
    %v4331 = vmul.f32 %v4327, 0.01
    %v4332 = vsel %vm4330, %v4327, %v4331
    %v4334 = vsel %vm139, %v4332, 0
    %4336 = vmatprep.subr.mxu0 0.0
    %4337 = vmatpush1.msra.mxu0 %v116
    %4338 = vmatprep.subr.mxu0 0.0
    %4339 = vmatpush1.msra.mxu0 %v117
    %4340 = vmatprep.subr.mxu0 0.0
    %4341 = vmatpush1.msra.mxu0 %v118
    %4342 = vmatprep.subr.mxu0 0.0
    %4343 = vmatpush1.msra.mxu0 %v119
    %4344 = vmatprep.subr.mxu0 0.0
    %4345 = vmatpush1.msra.mxu0 0.0
    %4346 = vmatprep.subr.mxu0 0.0
    %4347 = vmatpush1.msra.mxu0 0.0
    %4348 = vmatprep.subr.mxu0 0.0
    %4349 = vmatpush1.msra.mxu0 0.0
    %4350 = vmatprep.subr.mxu0 0.0
    %4351 = vmatpush1.msra.mxu0 0.0
    %4352 = vmatprep.subr.mxu0 0.0
    %4353 = vmatpush1.msra.mxu0 0.0
    %4354 = vmatprep.subr.mxu0 0.0
    %4355 = vmatpush1.msra.mxu0 0.0
    %4356 = vmatprep.subr.mxu0 0.0
    %4357 = vmatpush1.msra.mxu0 0.0
    %4358 = vmatprep.subr.mxu0 0.0
    %4359 = vmatpush1.msra.mxu0 0.0
    %4360 = vmatprep.subr.mxu0 0.0
    %4361 = vmatpush1.msra.mxu0 0.0
    %4362 = vmatprep.subr.mxu0 0.0
    %4363 = vmatpush1.msra.mxu0 0.0
    %4364 = vmatprep.subr.mxu0 0.0
    %4365 = vmatpush1.msra.mxu0 0.0
    %4366 = vmatprep.subr.mxu0 0.0
    %4367 = vmatpush1.msra.mxu0 0.0
    %4368 = vmatprep.subr.mxu0 0.0
    %4369 = vmatpush1.msra.mxu0 0.0
    %4370 = vmatprep.subr.mxu0 0.0
    %4371 = vmatpush1.msra.mxu0 0.0
    %4372 = vmatprep.subr.mxu0 0.0
    %4373 = vmatpush1.msra.mxu0 0.0
    %4374 = vmatprep.subr.mxu0 0.0
    %4375 = vmatpush1.msra.mxu0 0.0
    %4376 = vmatprep.subr.mxu0 0.0
    %4377 = vmatpush1.msra.mxu0 0.0
    %4378 = vmatprep.subr.mxu0 0.0
    %4379 = vmatpush1.msra.mxu0 0.0
    %4380 = vmatprep.subr.mxu0 0.0
    %4381 = vmatpush1.msra.mxu0 0.0
    %4382 = vmatprep.subr.mxu0 0.0
    %4383 = vmatpush1.msra.mxu0 0.0
    %4384 = vmatprep.subr.mxu0 0.0
    %4385 = vmatpush1.msra.mxu0 0.0
    %4386 = vmatprep.subr.mxu0 0.0
    %4387 = vmatpush1.msra.mxu0 0.0
    %4388 = vmatprep.subr.mxu0 0.0
    %4389 = vmatpush1.msra.mxu0 0.0
    %4390 = vmatprep.subr.mxu0 0.0
    %4391 = vmatpush1.msra.mxu0 0.0
    %4392 = vmatprep.subr.mxu0 0.0
    %4393 = vmatpush1.msra.mxu0 0.0
    %4394 = vmatprep.subr.mxu0 0.0
    %4395 = vmatpush1.msra.mxu0 0.0
    %4396 = vmatprep.subr.mxu0 0.0
    %4397 = vmatpush1.msra.mxu0 0.0
    %4398 = vmatprep.subr.mxu0 0.0
    %4399 = vmatpush1.msra.mxu0 0.0
    %4400 = vmatprep.mubr.f32.mxu0 0.0
    %4401 = vmatmul.mubr.f32.gmra.mrb[0].mxu0 %v4334
    %v4402 = vpop.f32.mrb[0].mxu0
    %v4403 = vadd.f32 %v132, %v4402
    %v4404 = vpop.f32.mrb[0].mxu0
    %4405 = vdwg.mxu0
    %s4406 = smul.f32 %s4256, 0.33333334
    %v4407 = vstv %s4406
    %v4408 = vmul.f32 %v4407, %v4403
    %v4409 = vadd.f32 %v4255, %v4408
    %v4411 = vsel %vm144, %v4409, 0
    %4413 = vmatprep.subr.mxu0 0.0
    %4414 = vmatpush1.msra.mxu0 %v111
    %4415 = vmatprep.subr.mxu0 0.0
    %4416 = vmatpush1.msra.mxu0 %v112
    %4417 = vmatprep.subr.mxu0 0.0
    %4418 = vmatpush1.msra.mxu0 %v113
    %4419 = vmatprep.subr.mxu0 0.0
    %4420 = vmatpush1.msra.mxu0 %v114
    %4421 = vmatprep.subr.mxu0 0.0
    %4422 = vmatpush1.msra.mxu0 %v115
    %4423 = vmatprep.subr.mxu0 0.0
    %4424 = vmatpush1.msra.mxu0 0.0
    %4425 = vmatprep.subr.mxu0 0.0
    %4426 = vmatpush1.msra.mxu0 0.0
    %4427 = vmatprep.subr.mxu0 0.0
    %4428 = vmatpush1.msra.mxu0 0.0
    %4429 = vmatprep.subr.mxu0 0.0
    %4430 = vmatpush1.msra.mxu0 0.0
    %4431 = vmatprep.subr.mxu0 0.0
    %4432 = vmatpush1.msra.mxu0 0.0
    %4433 = vmatprep.subr.mxu0 0.0
    %4434 = vmatpush1.msra.mxu0 0.0
    %4435 = vmatprep.subr.mxu0 0.0
    %4436 = vmatpush1.msra.mxu0 0.0
    %4437 = vmatprep.subr.mxu0 0.0
    %4438 = vmatpush1.msra.mxu0 0.0
    %4439 = vmatprep.subr.mxu0 0.0
    %4440 = vmatpush1.msra.mxu0 0.0
    %4441 = vmatprep.subr.mxu0 0.0
    %4442 = vmatpush1.msra.mxu0 0.0
    %4443 = vmatprep.subr.mxu0 0.0
    %4444 = vmatpush1.msra.mxu0 0.0
    %4445 = vmatprep.subr.mxu0 0.0
    %4446 = vmatpush1.msra.mxu0 0.0
    %4447 = vmatprep.subr.mxu0 0.0
    %4448 = vmatpush1.msra.mxu0 0.0
    %4449 = vmatprep.subr.mxu0 0.0
    %4450 = vmatpush1.msra.mxu0 0.0
    %4451 = vmatprep.subr.mxu0 0.0
    %4452 = vmatpush1.msra.mxu0 0.0
    %4453 = vmatprep.subr.mxu0 0.0
    %4454 = vmatpush1.msra.mxu0 0.0
    %4455 = vmatprep.subr.mxu0 0.0
    %4456 = vmatpush1.msra.mxu0 0.0
    %4457 = vmatprep.subr.mxu0 0.0
    %4458 = vmatpush1.msra.mxu0 0.0
    %4459 = vmatprep.subr.mxu0 0.0
    %4460 = vmatpush1.msra.mxu0 0.0
    %4461 = vmatprep.subr.mxu0 0.0
    %4462 = vmatpush1.msra.mxu0 0.0
    %4463 = vmatprep.subr.mxu0 0.0
    %4464 = vmatpush1.msra.mxu0 0.0
    %4465 = vmatprep.subr.mxu0 0.0
    %4466 = vmatpush1.msra.mxu0 0.0
    %4467 = vmatprep.subr.mxu0 0.0
    %4468 = vmatpush1.msra.mxu0 0.0
    %4469 = vmatprep.subr.mxu0 0.0
    %4470 = vmatpush1.msra.mxu0 0.0
    %4471 = vmatprep.subr.mxu0 0.0
    %4472 = vmatpush1.msra.mxu0 0.0
    %4473 = vmatprep.subr.mxu0 0.0
    %4474 = vmatpush1.msra.mxu0 0.0
    %4475 = vmatprep.subr.mxu0 0.0
    %4476 = vmatpush1.msra.mxu0 0.0
    %4477 = vmatprep.mubr.f32.mxu0 0.0
    %4478 = vmatmul.mubr.f32.gmra.mrb[0].mxu0 %v4411
    %v4479 = vpop.f32.mrb[0].mxu0
    %v4480 = vadd.f32 %v125, %v4479
    %v4481 = vpop.f32.mrb[0].mxu0
    %4482 = vdwg.mxu0
    %vm4483 = vcmp.ge.f32.partialorder %v4480, 0.0
    %v4484 = vmul.f32 %v4480, 0.01
    %v4485 = vsel %vm4483, %v4480, %v4484
    %v4487 = vsel %vm139, %v4485, 0
    %4489 = vmatprep.subr.mxu0 0.0
    %4490 = vmatpush1.msra.mxu0 %v116
    %4491 = vmatprep.subr.mxu0 0.0
    %4492 = vmatpush1.msra.mxu0 %v117
    %4493 = vmatprep.subr.mxu0 0.0
    %4494 = vmatpush1.msra.mxu0 %v118
    %4495 = vmatprep.subr.mxu0 0.0
    %4496 = vmatpush1.msra.mxu0 %v119
    %4497 = vmatprep.subr.mxu0 0.0
    %4498 = vmatpush1.msra.mxu0 0.0
    %4499 = vmatprep.subr.mxu0 0.0
    %4500 = vmatpush1.msra.mxu0 0.0
    %4501 = vmatprep.subr.mxu0 0.0
    %4502 = vmatpush1.msra.mxu0 0.0
    %4503 = vmatprep.subr.mxu0 0.0
    %4504 = vmatpush1.msra.mxu0 0.0
    %4505 = vmatprep.subr.mxu0 0.0
    %4506 = vmatpush1.msra.mxu0 0.0
    %4507 = vmatprep.subr.mxu0 0.0
    %4508 = vmatpush1.msra.mxu0 0.0
    %4509 = vmatprep.subr.mxu0 0.0
    %4510 = vmatpush1.msra.mxu0 0.0
    %4511 = vmatprep.subr.mxu0 0.0
    %4512 = vmatpush1.msra.mxu0 0.0
    %4513 = vmatprep.subr.mxu0 0.0
    %4514 = vmatpush1.msra.mxu0 0.0
    %4515 = vmatprep.subr.mxu0 0.0
    %4516 = vmatpush1.msra.mxu0 0.0
    %4517 = vmatprep.subr.mxu0 0.0
    %4518 = vmatpush1.msra.mxu0 0.0
    %4519 = vmatprep.subr.mxu0 0.0
    %4520 = vmatpush1.msra.mxu0 0.0
    %4521 = vmatprep.subr.mxu0 0.0
    %4522 = vmatpush1.msra.mxu0 0.0
    %4523 = vmatprep.subr.mxu0 0.0
    %4524 = vmatpush1.msra.mxu0 0.0
    %4525 = vmatprep.subr.mxu0 0.0
    %4526 = vmatpush1.msra.mxu0 0.0
    %4527 = vmatprep.subr.mxu0 0.0
    %4528 = vmatpush1.msra.mxu0 0.0
    %4529 = vmatprep.subr.mxu0 0.0
    %4530 = vmatpush1.msra.mxu0 0.0
    %4531 = vmatprep.subr.mxu0 0.0
    %4532 = vmatpush1.msra.mxu0 0.0
    %4533 = vmatprep.subr.mxu0 0.0
    %4534 = vmatpush1.msra.mxu0 0.0
    %4535 = vmatprep.subr.mxu0 0.0
    %4536 = vmatpush1.msra.mxu0 0.0
    %4537 = vmatprep.subr.mxu0 0.0
    %4538 = vmatpush1.msra.mxu0 0.0
    %4539 = vmatprep.subr.mxu0 0.0
    %4540 = vmatpush1.msra.mxu0 0.0
    %4541 = vmatprep.subr.mxu0 0.0
    %4542 = vmatpush1.msra.mxu0 0.0
    %4543 = vmatprep.subr.mxu0 0.0
    %4544 = vmatpush1.msra.mxu0 0.0
    %4545 = vmatprep.subr.mxu0 0.0
    %4546 = vmatpush1.msra.mxu0 0.0
    %4547 = vmatprep.subr.mxu0 0.0
    %4548 = vmatpush1.msra.mxu0 0.0
    %4549 = vmatprep.subr.mxu0 0.0
    %4550 = vmatpush1.msra.mxu0 0.0
    %4551 = vmatprep.subr.mxu0 0.0
    %4552 = vmatpush1.msra.mxu0 0.0
    %4553 = vmatprep.mubr.f32.mxu0 0.0
    %4554 = vmatmul.mubr.f32.gmra.mrb[0].mxu0 %v4487
    %v4555 = vpop.f32.mrb[0].mxu0
    %v4556 = vadd.f32 %v132, %v4555
    %v4557 = vpop.f32.mrb[0].mxu0
    %4558 = vdwg.mxu0
    %v4559 = vmul.f32 %v4403, 0.33333334
    %v4560 = vsub.f32 %v4556, %v4559
    %v4561 = vstv %s4256
    %v4562 = vmul.f32 %v4561, %v4560
    %v4563 = vadd.f32 %v4255, %v4562
    %v4565 = vsel %vm144, %v4563, 0
    %4567 = vmatprep.subr.mxu0 0.0
    %4568 = vmatpush1.msra.mxu0 %v111
    %4569 = vmatprep.subr.mxu0 0.0
    %4570 = vmatpush1.msra.mxu0 %v112
    %4571 = vmatprep.subr.mxu0 0.0
    %4572 = vmatpush1.msra.mxu0 %v113
    %4573 = vmatprep.subr.mxu0 0.0
    %4574 = vmatpush1.msra.mxu0 %v114
    %4575 = vmatprep.subr.mxu0 0.0
    %4576 = vmatpush1.msra.mxu0 %v115
    %4577 = vmatprep.subr.mxu0 0.0
    %4578 = vmatpush1.msra.mxu0 0.0
    %4579 = vmatprep.subr.mxu0 0.0
    %4580 = vmatpush1.msra.mxu0 0.0
    %4581 = vmatprep.subr.mxu0 0.0
    %4582 = vmatpush1.msra.mxu0 0.0
    %4583 = vmatprep.subr.mxu0 0.0
    %4584 = vmatpush1.msra.mxu0 0.0
    %4585 = vmatprep.subr.mxu0 0.0
    %4586 = vmatpush1.msra.mxu0 0.0
    %4587 = vmatprep.subr.mxu0 0.0
    %4588 = vmatpush1.msra.mxu0 0.0
    %4589 = vmatprep.subr.mxu0 0.0
    %4590 = vmatpush1.msra.mxu0 0.0
    %4591 = vmatprep.subr.mxu0 0.0
    %4592 = vmatpush1.msra.mxu0 0.0
    %4593 = vmatprep.subr.mxu0 0.0
    %4594 = vmatpush1.msra.mxu0 0.0
    %4595 = vmatprep.subr.mxu0 0.0
    %4596 = vmatpush1.msra.mxu0 0.0
    %4597 = vmatprep.subr.mxu0 0.0
    %4598 = vmatpush1.msra.mxu0 0.0
    %4599 = vmatprep.subr.mxu0 0.0
    %4600 = vmatpush1.msra.mxu0 0.0
    %4601 = vmatprep.subr.mxu0 0.0
    %4602 = vmatpush1.msra.mxu0 0.0
    %4603 = vmatprep.subr.mxu0 0.0
    %4604 = vmatpush1.msra.mxu0 0.0
    %4605 = vmatprep.subr.mxu0 0.0
    %4606 = vmatpush1.msra.mxu0 0.0
    %4607 = vmatprep.subr.mxu0 0.0
    %4608 = vmatpush1.msra.mxu0 0.0
    %4609 = vmatprep.subr.mxu0 0.0
    %4610 = vmatpush1.msra.mxu0 0.0
    %4611 = vmatprep.subr.mxu0 0.0
    %4612 = vmatpush1.msra.mxu0 0.0
    %4613 = vmatprep.subr.mxu0 0.0
    %4614 = vmatpush1.msra.mxu0 0.0
    %4615 = vmatprep.subr.mxu0 0.0
    %4616 = vmatpush1.msra.mxu0 0.0
    %4617 = vmatprep.subr.mxu0 0.0
    %4618 = vmatpush1.msra.mxu0 0.0
    %4619 = vmatprep.subr.mxu0 0.0
    %4620 = vmatpush1.msra.mxu0 0.0
    %4621 = vmatprep.subr.mxu0 0.0
    %4622 = vmatpush1.msra.mxu0 0.0
    %4623 = vmatprep.subr.mxu0 0.0
    %4624 = vmatpush1.msra.mxu0 0.0
    %4625 = vmatprep.subr.mxu0 0.0
    %4626 = vmatpush1.msra.mxu0 0.0
    %4627 = vmatprep.subr.mxu0 0.0
    %4628 = vmatpush1.msra.mxu0 0.0
    %4629 = vmatprep.subr.mxu0 0.0
    %4630 = vmatpush1.msra.mxu0 0.0
    %4631 = vmatprep.mubr.f32.mxu0 0.0
    %4632 = vmatmul.mubr.f32.gmra.mrb[0].mxu0 %v4565
    %v4633 = vpop.f32.mrb[0].mxu0
    %v4634 = vadd.f32 %v125, %v4633
    %v4635 = vpop.f32.mrb[0].mxu0
    %4636 = vdwg.mxu0
    %vm4637 = vcmp.ge.f32.partialorder %v4634, 0.0
    %v4638 = vmul.f32 %v4634, 0.01
    %v4639 = vsel %vm4637, %v4634, %v4638
    %v4641 = vsel %vm139, %v4639, 0
    %4643 = vmatprep.subr.mxu0 0.0
    %4644 = vmatpush1.msra.mxu0 %v116
    %4645 = vmatprep.subr.mxu0 0.0
    %4646 = vmatpush1.msra.mxu0 %v117
    %4647 = vmatprep.subr.mxu0 0.0
    %4648 = vmatpush1.msra.mxu0 %v118
    %4649 = vmatprep.subr.mxu0 0.0
    %4650 = vmatpush1.msra.mxu0 %v119
    %4651 = vmatprep.subr.mxu0 0.0
    %4652 = vmatpush1.msra.mxu0 0.0
    %4653 = vmatprep.subr.mxu0 0.0
    %4654 = vmatpush1.msra.mxu0 0.0
    %4655 = vmatprep.subr.mxu0 0.0
    %4656 = vmatpush1.msra.mxu0 0.0
    %4657 = vmatprep.subr.mxu0 0.0
    %4658 = vmatpush1.msra.mxu0 0.0
    %4659 = vmatprep.subr.mxu0 0.0
    %4660 = vmatpush1.msra.mxu0 0.0
    %4661 = vmatprep.subr.mxu0 0.0
    %4662 = vmatpush1.msra.mxu0 0.0
    %4663 = vmatprep.subr.mxu0 0.0
    %4664 = vmatpush1.msra.mxu0 0.0
    %4665 = vmatprep.subr.mxu0 0.0
    %4666 = vmatpush1.msra.mxu0 0.0
    %4667 = vmatprep.subr.mxu0 0.0
    %4668 = vmatpush1.msra.mxu0 0.0
    %4669 = vmatprep.subr.mxu0 0.0
    %4670 = vmatpush1.msra.mxu0 0.0
    %4671 = vmatprep.subr.mxu0 0.0
    %4672 = vmatpush1.msra.mxu0 0.0
    %4673 = vmatprep.subr.mxu0 0.0
    %4674 = vmatpush1.msra.mxu0 0.0
    %4675 = vmatprep.subr.mxu0 0.0
    %4676 = vmatpush1.msra.mxu0 0.0
    %4677 = vmatprep.subr.mxu0 0.0
    %4678 = vmatpush1.msra.mxu0 0.0
    %4679 = vmatprep.subr.mxu0 0.0
    %4680 = vmatpush1.msra.mxu0 0.0
    %4681 = vmatprep.subr.mxu0 0.0
    %4682 = vmatpush1.msra.mxu0 0.0
    %4683 = vmatprep.subr.mxu0 0.0
    %4684 = vmatpush1.msra.mxu0 0.0
    %4685 = vmatprep.subr.mxu0 0.0
    %4686 = vmatpush1.msra.mxu0 0.0
    %4687 = vmatprep.subr.mxu0 0.0
    %4688 = vmatpush1.msra.mxu0 0.0
    %4689 = vmatprep.subr.mxu0 0.0
    %4690 = vmatpush1.msra.mxu0 0.0
    %4691 = vmatprep.subr.mxu0 0.0
    %4692 = vmatpush1.msra.mxu0 0.0
    %4693 = vmatprep.subr.mxu0 0.0
    %4694 = vmatpush1.msra.mxu0 0.0
    %4695 = vmatprep.subr.mxu0 0.0
    %4696 = vmatpush1.msra.mxu0 0.0
    %4697 = vmatprep.subr.mxu0 0.0
    %4698 = vmatpush1.msra.mxu0 0.0
    %4699 = vmatprep.subr.mxu0 0.0
    %4700 = vmatpush1.msra.mxu0 0.0
    %4701 = vmatprep.subr.mxu0 0.0
    %4702 = vmatpush1.msra.mxu0 0.0
    %4703 = vmatprep.subr.mxu0 0.0
    %4704 = vmatpush1.msra.mxu0 0.0
    %4705 = vmatprep.subr.mxu0 0.0
    %4706 = vmatpush1.msra.mxu0 0.0
    %4707 = vmatprep.mubr.f32.mxu0 0.0
    %4708 = vmatmul.mubr.f32.gmra.mrb[0].mxu0 %v4641
    %v4709 = vpop.f32.mrb[0].mxu0
    %v4710 = vadd.f32 %v132, %v4709
    %v4711 = vpop.f32.mrb[0].mxu0
    %4712 = vdwg.mxu0
    %v4713 = vsub.f32 %v4403, %v4556
    %v4714 = vadd.f32 %v4713, %v4710
    %v4715 = vmul.f32 %v4561, %v4714
    %v4716 = vadd.f32 %v4255, %v4715
    %v4718 = vsel %vm144, %v4716, 0
    %4720 = vmatprep.subr.mxu0 0.0
    %4721 = vmatpush1.msra.mxu0 %v111
    %4722 = vmatprep.subr.mxu0 0.0
    %4723 = vmatpush1.msra.mxu0 %v112
    %4724 = vmatprep.subr.mxu0 0.0
    %4725 = vmatpush1.msra.mxu0 %v113
    %4726 = vmatprep.subr.mxu0 0.0
    %4727 = vmatpush1.msra.mxu0 %v114
    %4728 = vmatprep.subr.mxu0 0.0
    %4729 = vmatpush1.msra.mxu0 %v115
    %4730 = vmatprep.subr.mxu0 0.0
    %4731 = vmatpush1.msra.mxu0 0.0
    %4732 = vmatprep.subr.mxu0 0.0
    %4733 = vmatpush1.msra.mxu0 0.0
    %4734 = vmatprep.subr.mxu0 0.0
    %4735 = vmatpush1.msra.mxu0 0.0
    %4736 = vmatprep.subr.mxu0 0.0
    %4737 = vmatpush1.msra.mxu0 0.0
    %4738 = vmatprep.subr.mxu0 0.0
    %4739 = vmatpush1.msra.mxu0 0.0
    %4740 = vmatprep.subr.mxu0 0.0
    %4741 = vmatpush1.msra.mxu0 0.0
    %4742 = vmatprep.subr.mxu0 0.0
    %4743 = vmatpush1.msra.mxu0 0.0
    %4744 = vmatprep.subr.mxu0 0.0
    %4745 = vmatpush1.msra.mxu0 0.0
    %4746 = vmatprep.subr.mxu0 0.0
    %4747 = vmatpush1.msra.mxu0 0.0
    %4748 = vmatprep.subr.mxu0 0.0
    %4749 = vmatpush1.msra.mxu0 0.0
    %4750 = vmatprep.subr.mxu0 0.0
    %4751 = vmatpush1.msra.mxu0 0.0
    %4752 = vmatprep.subr.mxu0 0.0
    %4753 = vmatpush1.msra.mxu0 0.0
    %4754 = vmatprep.subr.mxu0 0.0
    %4755 = vmatpush1.msra.mxu0 0.0
    %4756 = vmatprep.subr.mxu0 0.0
    %4757 = vmatpush1.msra.mxu0 0.0
    %4758 = vmatprep.subr.mxu0 0.0
    %4759 = vmatpush1.msra.mxu0 0.0
    %4760 = vmatprep.subr.mxu0 0.0
    %4761 = vmatpush1.msra.mxu0 0.0
    %4762 = vmatprep.subr.mxu0 0.0
    %4763 = vmatpush1.msra.mxu0 0.0
    %4764 = vmatprep.subr.mxu0 0.0
    %4765 = vmatpush1.msra.mxu0 0.0
    %4766 = vmatprep.subr.mxu0 0.0
    %4767 = vmatpush1.msra.mxu0 0.0
    %4768 = vmatprep.subr.mxu0 0.0
    %4769 = vmatpush1.msra.mxu0 0.0
    %4770 = vmatprep.subr.mxu0 0.0
    %4771 = vmatpush1.msra.mxu0 0.0
    %4772 = vmatprep.subr.mxu0 0.0
    %4773 = vmatpush1.msra.mxu0 0.0
    %4774 = vmatprep.subr.mxu0 0.0
    %4775 = vmatpush1.msra.mxu0 0.0
    %4776 = vmatprep.subr.mxu0 0.0
    %4777 = vmatpush1.msra.mxu0 0.0
    %4778 = vmatprep.subr.mxu0 0.0
    %4779 = vmatpush1.msra.mxu0 0.0
    %4780 = vmatprep.subr.mxu0 0.0
    %4781 = vmatpush1.msra.mxu0 0.0
    %4782 = vmatprep.subr.mxu0 0.0
    %4783 = vmatpush1.msra.mxu0 0.0
    %4784 = vmatprep.mubr.f32.mxu0 0.0
    %4785 = vmatmul.mubr.f32.gmra.mrb[0].mxu0 %v4718
    %v4786 = vpop.f32.mrb[0].mxu0
    %v4787 = vadd.f32 %v125, %v4786
    %v4788 = vpop.f32.mrb[0].mxu0
    %4789 = vdwg.mxu0
    %vm4790 = vcmp.ge.f32.partialorder %v4787, 0.0
    %v4791 = vmul.f32 %v4787, 0.01
    %v4792 = vsel %vm4790, %v4787, %v4791
    %v4794 = vsel %vm139, %v4792, 0
    %4796 = vmatprep.subr.mxu0 0.0
    %4797 = vmatpush1.msra.mxu0 %v116
    %4798 = vmatprep.subr.mxu0 0.0
    %4799 = vmatpush1.msra.mxu0 %v117
    %4800 = vmatprep.subr.mxu0 0.0
    %4801 = vmatpush1.msra.mxu0 %v118
    %4802 = vmatprep.subr.mxu0 0.0
    %4803 = vmatpush1.msra.mxu0 %v119
    %4804 = vmatprep.subr.mxu0 0.0
    %4805 = vmatpush1.msra.mxu0 0.0
    %4806 = vmatprep.subr.mxu0 0.0
    %4807 = vmatpush1.msra.mxu0 0.0
    %4808 = vmatprep.subr.mxu0 0.0
    %4809 = vmatpush1.msra.mxu0 0.0
    %4810 = vmatprep.subr.mxu0 0.0
    %4811 = vmatpush1.msra.mxu0 0.0
    %4812 = vmatprep.subr.mxu0 0.0
    %4813 = vmatpush1.msra.mxu0 0.0
    %4814 = vmatprep.subr.mxu0 0.0
    %4815 = vmatpush1.msra.mxu0 0.0
    %4816 = vmatprep.subr.mxu0 0.0
    %4817 = vmatpush1.msra.mxu0 0.0
    %4818 = vmatprep.subr.mxu0 0.0
    %4819 = vmatpush1.msra.mxu0 0.0
    %4820 = vmatprep.subr.mxu0 0.0
    %4821 = vmatpush1.msra.mxu0 0.0
    %4822 = vmatprep.subr.mxu0 0.0
    %4823 = vmatpush1.msra.mxu0 0.0
    %4824 = vmatprep.subr.mxu0 0.0
    %4825 = vmatpush1.msra.mxu0 0.0
    %4826 = vmatprep.subr.mxu0 0.0
    %4827 = vmatpush1.msra.mxu0 0.0
    %4828 = vmatprep.subr.mxu0 0.0
    %4829 = vmatpush1.msra.mxu0 0.0
    %4830 = vmatprep.subr.mxu0 0.0
    %4831 = vmatpush1.msra.mxu0 0.0
    %4832 = vmatprep.subr.mxu0 0.0
    %4833 = vmatpush1.msra.mxu0 0.0
    %4834 = vmatprep.subr.mxu0 0.0
    %4835 = vmatpush1.msra.mxu0 0.0
    %4836 = vmatprep.subr.mxu0 0.0
    %4837 = vmatpush1.msra.mxu0 0.0
    %4838 = vmatprep.subr.mxu0 0.0
    %4839 = vmatpush1.msra.mxu0 0.0
    %4840 = vmatprep.subr.mxu0 0.0
    %4841 = vmatpush1.msra.mxu0 0.0
    %4842 = vmatprep.subr.mxu0 0.0
    %4843 = vmatpush1.msra.mxu0 0.0
    %4844 = vmatprep.subr.mxu0 0.0
    %4845 = vmatpush1.msra.mxu0 0.0
    %4846 = vmatprep.subr.mxu0 0.0
    %4847 = vmatpush1.msra.mxu0 0.0
    %4848 = vmatprep.subr.mxu0 0.0
    %4849 = vmatpush1.msra.mxu0 0.0
    %4850 = vmatprep.subr.mxu0 0.0
    %4851 = vmatpush1.msra.mxu0 0.0
    %4852 = vmatprep.subr.mxu0 0.0
    %4853 = vmatpush1.msra.mxu0 0.0
    %4854 = vmatprep.subr.mxu0 0.0
    %4855 = vmatpush1.msra.mxu0 0.0
    %4856 = vmatprep.subr.mxu0 0.0
    %4857 = vmatpush1.msra.mxu0 0.0
    %4858 = vmatprep.subr.mxu0 0.0
    %4859 = vmatpush1.msra.mxu0 0.0
    %4860 = vmatprep.mubr.f32.mxu0 0.0
    %4861 = vmatmul.mubr.f32.gmra.mrb[0].mxu0 %v4794
    %v4862 = vpop.f32.mrb[0].mxu0
    %v4863 = vadd.f32 %v132, %v4862
    %v4864 = vpop.f32.mrb[0].mxu0
    %4865 = vdwg.mxu0
    %v4866 = vadd.f32 %v4556, %v4710
    %v4867 = vmul.f32 %v4866, 3.0
    %v4868 = vadd.f32 %v4403, %v4867
    %v4869 = vadd.f32 %v4868, %v4863
    %s4870 = smul.f32 %s4256, 0.125
    %v4871 = vstv %s4870
    %v4872 = vmul.f32 %v4869, %v4871
    %v4873 = vadd.f32 %v4255, %v4872
    %4875 = vrot.lane.b32.xlu0 %v4873, 96
    %v4876 = vpop.permute.xlu0 %4875
    %4878 = vrot.lane.b32.xlu0 %v4216, 8
    %v4879 = vpop.permute.xlu0 %4878
    %v4881 = vsel %vm926, %v4876, %v4879
    %v4882 = vsel %vm928, %v4881, 0.0
    %s4883 = scalar_lea.vmem [#allocation12], 40
    %4884 = vst [vmem:[%s4883] sm:$0xff] %v4882
    %s4885 = scalar_lea.vmem [#allocation7], 96
    %v4886 = vld [vmem:[%s4885] sm:$0xff]
    %v4887 = vld [vmem:[%s4885 + $0x8] sm:$0xff]
    %v4888 = vsel %vm144, %v4873, 0
    %4890 = vmatprep.subr.mxu0 %v102
    %4891 = vmatpush1.msra.mxu0 %v101
    %4892 = vmatprep.subr.mxu0 %v104
    %4893 = vmatpush1.msra.mxu0 %v103
    %4894 = vmatprep.subr.mxu0 %v106
    %4895 = vmatpush1.msra.mxu0 %v105
    %4896 = vmatprep.subr.mxu0 %v108
    %4897 = vmatpush1.msra.mxu0 %v107
    %4898 = vmatprep.subr.mxu0 %v110
    %4899 = vmatpush1.msra.mxu0 %v109
    %4900 = vmatprep.subr.mxu0 0.0
    %4901 = vmatpush1.msra.mxu0 0.0
    %4902 = vmatprep.subr.mxu0 0.0
    %4903 = vmatpush1.msra.mxu0 0.0
    %4904 = vmatprep.subr.mxu0 0.0
    %4905 = vmatpush1.msra.mxu0 0.0
    %4906 = vmatprep.subr.mxu0 0.0
    %4907 = vmatpush1.msra.mxu0 0.0
    %4908 = vmatprep.subr.mxu0 0.0
    %4909 = vmatpush1.msra.mxu0 0.0
    %4910 = vmatprep.subr.mxu0 0.0
    %4911 = vmatpush1.msra.mxu0 0.0
    %4912 = vmatprep.subr.mxu0 0.0
    %4913 = vmatpush1.msra.mxu0 0.0
    %4914 = vmatprep.subr.mxu0 0.0
    %4915 = vmatpush1.msra.mxu0 0.0
    %4916 = vmatprep.subr.mxu0 0.0
    %4917 = vmatpush1.msra.mxu0 0.0
    %4918 = vmatprep.subr.mxu0 0.0
    %4919 = vmatpush1.msra.mxu0 0.0
    %4920 = vmatprep.subr.mxu0 0.0
    %4921 = vmatpush1.msra.mxu0 0.0
    %4922 = vmatprep.subr.mxu0 0.0
    %4923 = vmatpush1.msra.mxu0 0.0
    %4924 = vmatprep.subr.mxu0 0.0
    %4925 = vmatpush1.msra.mxu0 0.0
    %4926 = vmatprep.subr.mxu0 0.0
    %4927 = vmatpush1.msra.mxu0 0.0
    %4928 = vmatprep.subr.mxu0 0.0
    %4929 = vmatpush1.msra.mxu0 0.0
    %4930 = vmatprep.subr.mxu0 0.0
    %4931 = vmatpush1.msra.mxu0 0.0
    %4932 = vmatprep.subr.mxu0 0.0
    %4933 = vmatpush1.msra.mxu0 0.0
    %4934 = vmatprep.subr.mxu0 0.0
    %4935 = vmatpush1.msra.mxu0 0.0
    %4936 = vmatprep.subr.mxu0 0.0
    %4937 = vmatpush1.msra.mxu0 0.0
    %4938 = vmatprep.subr.mxu0 0.0
    %4939 = vmatpush1.msra.mxu0 0.0
    %4940 = vmatprep.subr.mxu0 0.0
    %4941 = vmatpush1.msra.mxu0 0.0
    %4942 = vmatprep.subr.mxu0 0.0
    %4943 = vmatpush1.msra.mxu0 0.0
    %4944 = vmatprep.subr.mxu0 0.0
    %4945 = vmatpush1.msra.mxu0 0.0
    %4946 = vmatprep.subr.mxu0 0.0
    %4947 = vmatpush1.msra.mxu0 0.0
    %4948 = vmatprep.subr.mxu0 0.0
    %4949 = vmatpush1.msra.mxu0 0.0
    %4950 = vmatprep.subr.mxu0 0.0
    %4951 = vmatpush1.msra.mxu0 0.0
    %4952 = vmatprep.subr.mxu0 0.0
    %4953 = vmatpush1.msra.mxu0 0.0
    %4954 = vmatprep.mubr.f32.mxu0 0.0
    %4955 = vmatmul.mubr.f32.gmra.mrb[0].mxu0 %v4888
    %v4956 = vpop.f32.mrb[0].mxu0
    %v4957 = vadd.f32 %v4886, %v4956
    %v4958 = vpop.f32.mrb[0].mxu0
    %v4959 = vadd.f32 %v4887, %v4958
    %4960 = vdwg.mxu0
    %4962 = vrot.lane.b32.xlu0 %v4957, 80
    %v4963 = vpop.permute.xlu0 %4962
    %v4965 = vadd.f32 %v4957, %v4963
    %v4966 = vxor.u32 %v4965, 2147483648
    %v4967 = vmul.f32 %v4966, 1.442695
    %v4968 = vpow.pop %v4967
    %v4969 = vadd.f32 %v4968, 1.0
    %v4970 = vrcp.pop %v4969
    %v4971 = vmul.f32 1.0, %v4970
    %4972 = vrot.lane.b32.xlu0 %v4957, 48
    %v4973 = vpop.permute.xlu0 %4972
    %v4975 = vmul.f32 %v4971, %v4973
    %4977 = vrot.lane.b32.xlu0 %v4975, 32
    %v4978 = vpop.permute.xlu0 %4977
    %v4980 = vadd.f32 %v4957, %v4978
    %v4981 = vtanh.pop %v4980
    %v4982 = vsub.f32 1.0, %v4971
    %4984 = vrot.lane.b32.xlu0 %v4981, 112
    %v4985 = vpop.permute.xlu0 %4984
    %v4987 = vmul.f32 %v4982, %v4985
    %v4988 = vmul.f32 %v4971, %v4873
    %v4989 = vadd.f32 %v4987, %v4988
    %s4990 = scalar_lea.vmem [#allocation9], 48
    %v4991 = vld [vmem:[%s4990] sm:$0xff]
    %4993 = vrot.lane.b32.xlu0 %v4989, 112
    %v4994 = vpop.permute.xlu0 %4993
    %v4996 = vmul.f32 %v4991, %v4994
    %v4997 = vsub.f32 1.0, %v4991
    %4998 = vrot.lane.b32.xlu0 %v4873, 112
    %v4999 = vpop.permute.xlu0 %4998
    %v5001 = vmul.f32 %v4997, %v4999
    %v5002 = vadd.f32 %v4996, %v5001
    %5004 = vrot.lane.b32.xlu0 %v4959, 80
    %v5005 = vpop.permute.xlu0 %5004
    %v5007 = vadd.f32 %v4957, %v5005
    %v5008 = vxor.u32 %v5007, 2147483648
    %v5009 = vmul.f32 %v5008, 1.442695
    %v5010 = vpow.pop %v5009
    %v5011 = vadd.f32 %v5010, 1.0
    %v5012 = vrcp.pop %v5011
    %v5013 = vmul.f32 1.0, %v5012
    %5014 = vrot.lane.b32.xlu0 %v4959, 48
    %v5015 = vpop.permute.xlu0 %5014
    %v5017 = vmul.f32 %v5013, %v5015
    %5019 = vrot.lane.b32.xlu0 %v5017, 32
    %v5020 = vpop.permute.xlu0 %5019
    %v5022 = vadd.f32 %v4959, %v5020
    %v5023 = vtanh.pop %v5022
    %v5024 = vsub.f32 1.0, %v5013
    %5026 = vrot.lane.b32.xlu0 %v5023, 112
    %v5027 = vpop.permute.xlu0 %5026
    %v5029 = vmul.f32 %v5024, %v5027
    %v5030 = vmul.f32 %v5013, %v4999
    %v5031 = vadd.f32 %v5029, %v5030
    %5033 = vrot.lane.b32.xlu0 %v5031, 16
    %v5034 = vpop.permute.xlu0 %5033
    %5037 = vrot.lane.b32.xlu0 %v5002, 16
    %v5038 = vpop.permute.xlu0 %5037
    %v5040 = vsel %vm298, %v5034, %v5038
    %v5041 = vsel %vm139, %v5040, %v4873
    %s5042 = sld [smem:[#allocation2 + $0x6]]
    %v5044 = vsel %vm144, %v5041, 0
    %5046 = vmatprep.subr.mxu0 0.0
    %5047 = vmatpush1.msra.mxu0 %v111
    %5048 = vmatprep.subr.mxu0 0.0
    %5049 = vmatpush1.msra.mxu0 %v112
    %5050 = vmatprep.subr.mxu0 0.0
    %5051 = vmatpush1.msra.mxu0 %v113
    %5052 = vmatprep.subr.mxu0 0.0
    %5053 = vmatpush1.msra.mxu0 %v114
    %5054 = vmatprep.subr.mxu0 0.0
    %5055 = vmatpush1.msra.mxu0 %v115
    %5056 = vmatprep.subr.mxu0 0.0
    %5057 = vmatpush1.msra.mxu0 0.0
    %5058 = vmatprep.subr.mxu0 0.0
    %5059 = vmatpush1.msra.mxu0 0.0
    %5060 = vmatprep.subr.mxu0 0.0
    %5061 = vmatpush1.msra.mxu0 0.0
    %5062 = vmatprep.subr.mxu0 0.0
    %5063 = vmatpush1.msra.mxu0 0.0
    %5064 = vmatprep.subr.mxu0 0.0
    %5065 = vmatpush1.msra.mxu0 0.0
    %5066 = vmatprep.subr.mxu0 0.0
    %5067 = vmatpush1.msra.mxu0 0.0
    %5068 = vmatprep.subr.mxu0 0.0
    %5069 = vmatpush1.msra.mxu0 0.0
    %5070 = vmatprep.subr.mxu0 0.0
    %5071 = vmatpush1.msra.mxu0 0.0
    %5072 = vmatprep.subr.mxu0 0.0
    %5073 = vmatpush1.msra.mxu0 0.0
    %5074 = vmatprep.subr.mxu0 0.0
    %5075 = vmatpush1.msra.mxu0 0.0
    %5076 = vmatprep.subr.mxu0 0.0
    %5077 = vmatpush1.msra.mxu0 0.0
    %5078 = vmatprep.subr.mxu0 0.0
    %5079 = vmatpush1.msra.mxu0 0.0
    %5080 = vmatprep.subr.mxu0 0.0
    %5081 = vmatpush1.msra.mxu0 0.0
    %5082 = vmatprep.subr.mxu0 0.0
    %5083 = vmatpush1.msra.mxu0 0.0
    %5084 = vmatprep.subr.mxu0 0.0
    %5085 = vmatpush1.msra.mxu0 0.0
    %5086 = vmatprep.subr.mxu0 0.0
    %5087 = vmatpush1.msra.mxu0 0.0
    %5088 = vmatprep.subr.mxu0 0.0
    %5089 = vmatpush1.msra.mxu0 0.0
    %5090 = vmatprep.subr.mxu0 0.0
    %5091 = vmatpush1.msra.mxu0 0.0
    %5092 = vmatprep.subr.mxu0 0.0
    %5093 = vmatpush1.msra.mxu0 0.0
    %5094 = vmatprep.subr.mxu0 0.0
    %5095 = vmatpush1.msra.mxu0 0.0
    %5096 = vmatprep.subr.mxu0 0.0
    %5097 = vmatpush1.msra.mxu0 0.0
    %5098 = vmatprep.subr.mxu0 0.0
    %5099 = vmatpush1.msra.mxu0 0.0
    %5100 = vmatprep.subr.mxu0 0.0
    %5101 = vmatpush1.msra.mxu0 0.0
    %5102 = vmatprep.subr.mxu0 0.0
    %5103 = vmatpush1.msra.mxu0 0.0
    %5104 = vmatprep.subr.mxu0 0.0
    %5105 = vmatpush1.msra.mxu0 0.0
    %5106 = vmatprep.subr.mxu0 0.0
    %5107 = vmatpush1.msra.mxu0 0.0
    %5108 = vmatprep.subr.mxu0 0.0
    %5109 = vmatpush1.msra.mxu0 0.0
    %5110 = vmatprep.mubr.f32.mxu0 0.0
    %5111 = vmatmul.mubr.f32.gmra.mrb[0].mxu0 %v5044
    %v5112 = vpop.f32.mrb[0].mxu0
    %v5113 = vadd.f32 %v125, %v5112
    %v5114 = vpop.f32.mrb[0].mxu0
    %5115 = vdwg.mxu0
    %vm5116 = vcmp.ge.f32.partialorder %v5113, 0.0
    %v5117 = vmul.f32 %v5113, 0.01
    %v5118 = vsel %vm5116, %v5113, %v5117
    %v5120 = vsel %vm139, %v5118, 0
    %5122 = vmatprep.subr.mxu0 0.0
    %5123 = vmatpush1.msra.mxu0 %v116
    %5124 = vmatprep.subr.mxu0 0.0
    %5125 = vmatpush1.msra.mxu0 %v117
    %5126 = vmatprep.subr.mxu0 0.0
    %5127 = vmatpush1.msra.mxu0 %v118
    %5128 = vmatprep.subr.mxu0 0.0
    %5129 = vmatpush1.msra.mxu0 %v119
    %5130 = vmatprep.subr.mxu0 0.0
    %5131 = vmatpush1.msra.mxu0 0.0
    %5132 = vmatprep.subr.mxu0 0.0
    %5133 = vmatpush1.msra.mxu0 0.0
    %5134 = vmatprep.subr.mxu0 0.0
    %5135 = vmatpush1.msra.mxu0 0.0
    %5136 = vmatprep.subr.mxu0 0.0
    %5137 = vmatpush1.msra.mxu0 0.0
    %5138 = vmatprep.subr.mxu0 0.0
    %5139 = vmatpush1.msra.mxu0 0.0
    %5140 = vmatprep.subr.mxu0 0.0
    %5141 = vmatpush1.msra.mxu0 0.0
    %5142 = vmatprep.subr.mxu0 0.0
    %5143 = vmatpush1.msra.mxu0 0.0
    %5144 = vmatprep.subr.mxu0 0.0
    %5145 = vmatpush1.msra.mxu0 0.0
    %5146 = vmatprep.subr.mxu0 0.0
    %5147 = vmatpush1.msra.mxu0 0.0
    %5148 = vmatprep.subr.mxu0 0.0
    %5149 = vmatpush1.msra.mxu0 0.0
    %5150 = vmatprep.subr.mxu0 0.0
    %5151 = vmatpush1.msra.mxu0 0.0
    %5152 = vmatprep.subr.mxu0 0.0
    %5153 = vmatpush1.msra.mxu0 0.0
    %5154 = vmatprep.subr.mxu0 0.0
    %5155 = vmatpush1.msra.mxu0 0.0
    %5156 = vmatprep.subr.mxu0 0.0
    %5157 = vmatpush1.msra.mxu0 0.0
    %5158 = vmatprep.subr.mxu0 0.0
    %5159 = vmatpush1.msra.mxu0 0.0
    %5160 = vmatprep.subr.mxu0 0.0
    %5161 = vmatpush1.msra.mxu0 0.0
    %5162 = vmatprep.subr.mxu0 0.0
    %5163 = vmatpush1.msra.mxu0 0.0
    %5164 = vmatprep.subr.mxu0 0.0
    %5165 = vmatpush1.msra.mxu0 0.0
    %5166 = vmatprep.subr.mxu0 0.0
    %5167 = vmatpush1.msra.mxu0 0.0
    %5168 = vmatprep.subr.mxu0 0.0
    %5169 = vmatpush1.msra.mxu0 0.0
    %5170 = vmatprep.subr.mxu0 0.0
    %5171 = vmatpush1.msra.mxu0 0.0
    %5172 = vmatprep.subr.mxu0 0.0
    %5173 = vmatpush1.msra.mxu0 0.0
    %5174 = vmatprep.subr.mxu0 0.0
    %5175 = vmatpush1.msra.mxu0 0.0
    %5176 = vmatprep.subr.mxu0 0.0
    %5177 = vmatpush1.msra.mxu0 0.0
    %5178 = vmatprep.subr.mxu0 0.0
    %5179 = vmatpush1.msra.mxu0 0.0
    %5180 = vmatprep.subr.mxu0 0.0
    %5181 = vmatpush1.msra.mxu0 0.0
    %5182 = vmatprep.subr.mxu0 0.0
    %5183 = vmatpush1.msra.mxu0 0.0
    %5184 = vmatprep.subr.mxu0 0.0
    %5185 = vmatpush1.msra.mxu0 0.0
    %5186 = vmatprep.mubr.f32.mxu0 0.0
    %5187 = vmatmul.mubr.f32.gmra.mrb[0].mxu0 %v5120
    %v5188 = vpop.f32.mrb[0].mxu0
    %v5189 = vadd.f32 %v132, %v5188
    %v5190 = vpop.f32.mrb[0].mxu0
    %5191 = vdwg.mxu0
    %s5192 = smul.f32 %s5042, 0.33333334
    %v5193 = vstv %s5192
    %v5194 = vmul.f32 %v5193, %v5189
    %v5195 = vadd.f32 %v5041, %v5194
    %v5197 = vsel %vm144, %v5195, 0
    %5199 = vmatprep.subr.mxu0 0.0
    %5200 = vmatpush1.msra.mxu0 %v111
    %5201 = vmatprep.subr.mxu0 0.0
    %5202 = vmatpush1.msra.mxu0 %v112
    %5203 = vmatprep.subr.mxu0 0.0
    %5204 = vmatpush1.msra.mxu0 %v113
    %5205 = vmatprep.subr.mxu0 0.0
    %5206 = vmatpush1.msra.mxu0 %v114
    %5207 = vmatprep.subr.mxu0 0.0
    %5208 = vmatpush1.msra.mxu0 %v115
    %5209 = vmatprep.subr.mxu0 0.0
    %5210 = vmatpush1.msra.mxu0 0.0
    %5211 = vmatprep.subr.mxu0 0.0
    %5212 = vmatpush1.msra.mxu0 0.0
    %5213 = vmatprep.subr.mxu0 0.0
    %5214 = vmatpush1.msra.mxu0 0.0
    %5215 = vmatprep.subr.mxu0 0.0
    %5216 = vmatpush1.msra.mxu0 0.0
    %5217 = vmatprep.subr.mxu0 0.0
    %5218 = vmatpush1.msra.mxu0 0.0
    %5219 = vmatprep.subr.mxu0 0.0
    %5220 = vmatpush1.msra.mxu0 0.0
    %5221 = vmatprep.subr.mxu0 0.0
    %5222 = vmatpush1.msra.mxu0 0.0
    %5223 = vmatprep.subr.mxu0 0.0
    %5224 = vmatpush1.msra.mxu0 0.0
    %5225 = vmatprep.subr.mxu0 0.0
    %5226 = vmatpush1.msra.mxu0 0.0
    %5227 = vmatprep.subr.mxu0 0.0
    %5228 = vmatpush1.msra.mxu0 0.0
    %5229 = vmatprep.subr.mxu0 0.0
    %5230 = vmatpush1.msra.mxu0 0.0
    %5231 = vmatprep.subr.mxu0 0.0
    %5232 = vmatpush1.msra.mxu0 0.0
    %5233 = vmatprep.subr.mxu0 0.0
    %5234 = vmatpush1.msra.mxu0 0.0
    %5235 = vmatprep.subr.mxu0 0.0
    %5236 = vmatpush1.msra.mxu0 0.0
    %5237 = vmatprep.subr.mxu0 0.0
    %5238 = vmatpush1.msra.mxu0 0.0
    %5239 = vmatprep.subr.mxu0 0.0
    %5240 = vmatpush1.msra.mxu0 0.0
    %5241 = vmatprep.subr.mxu0 0.0
    %5242 = vmatpush1.msra.mxu0 0.0
    %5243 = vmatprep.subr.mxu0 0.0
    %5244 = vmatpush1.msra.mxu0 0.0
    %5245 = vmatprep.subr.mxu0 0.0
    %5246 = vmatpush1.msra.mxu0 0.0
    %5247 = vmatprep.subr.mxu0 0.0
    %5248 = vmatpush1.msra.mxu0 0.0
    %5249 = vmatprep.subr.mxu0 0.0
    %5250 = vmatpush1.msra.mxu0 0.0
    %5251 = vmatprep.subr.mxu0 0.0
    %5252 = vmatpush1.msra.mxu0 0.0
    %5253 = vmatprep.subr.mxu0 0.0
    %5254 = vmatpush1.msra.mxu0 0.0
    %5255 = vmatprep.subr.mxu0 0.0
    %5256 = vmatpush1.msra.mxu0 0.0
    %5257 = vmatprep.subr.mxu0 0.0
    %5258 = vmatpush1.msra.mxu0 0.0
    %5259 = vmatprep.subr.mxu0 0.0
    %5260 = vmatpush1.msra.mxu0 0.0
    %5261 = vmatprep.subr.mxu0 0.0
    %5262 = vmatpush1.msra.mxu0 0.0
    %5263 = vmatprep.mubr.f32.mxu0 0.0
    %5264 = vmatmul.mubr.f32.gmra.mrb[0].mxu0 %v5197
    %v5265 = vpop.f32.mrb[0].mxu0
    %v5266 = vadd.f32 %v125, %v5265
    %v5267 = vpop.f32.mrb[0].mxu0
    %5268 = vdwg.mxu0
    %vm5269 = vcmp.ge.f32.partialorder %v5266, 0.0
    %v5270 = vmul.f32 %v5266, 0.01
    %v5271 = vsel %vm5269, %v5266, %v5270
    %v5273 = vsel %vm139, %v5271, 0
    %5275 = vmatprep.subr.mxu0 0.0
    %5276 = vmatpush1.msra.mxu0 %v116
    %5277 = vmatprep.subr.mxu0 0.0
    %5278 = vmatpush1.msra.mxu0 %v117
    %5279 = vmatprep.subr.mxu0 0.0
    %5280 = vmatpush1.msra.mxu0 %v118
    %5281 = vmatprep.subr.mxu0 0.0
    %5282 = vmatpush1.msra.mxu0 %v119
    %5283 = vmatprep.subr.mxu0 0.0
    %5284 = vmatpush1.msra.mxu0 0.0
    %5285 = vmatprep.subr.mxu0 0.0
    %5286 = vmatpush1.msra.mxu0 0.0
    %5287 = vmatprep.subr.mxu0 0.0
    %5288 = vmatpush1.msra.mxu0 0.0
    %5289 = vmatprep.subr.mxu0 0.0
    %5290 = vmatpush1.msra.mxu0 0.0
    %5291 = vmatprep.subr.mxu0 0.0
    %5292 = vmatpush1.msra.mxu0 0.0
    %5293 = vmatprep.subr.mxu0 0.0
    %5294 = vmatpush1.msra.mxu0 0.0
    %5295 = vmatprep.subr.mxu0 0.0
    %5296 = vmatpush1.msra.mxu0 0.0
    %5297 = vmatprep.subr.mxu0 0.0
    %5298 = vmatpush1.msra.mxu0 0.0
    %5299 = vmatprep.subr.mxu0 0.0
    %5300 = vmatpush1.msra.mxu0 0.0
    %5301 = vmatprep.subr.mxu0 0.0
    %5302 = vmatpush1.msra.mxu0 0.0
    %5303 = vmatprep.subr.mxu0 0.0
    %5304 = vmatpush1.msra.mxu0 0.0
    %5305 = vmatprep.subr.mxu0 0.0
    %5306 = vmatpush1.msra.mxu0 0.0
    %5307 = vmatprep.subr.mxu0 0.0
    %5308 = vmatpush1.msra.mxu0 0.0
    %5309 = vmatprep.subr.mxu0 0.0
    %5310 = vmatpush1.msra.mxu0 0.0
    %5311 = vmatprep.subr.mxu0 0.0
    %5312 = vmatpush1.msra.mxu0 0.0
    %5313 = vmatprep.subr.mxu0 0.0
    %5314 = vmatpush1.msra.mxu0 0.0
    %5315 = vmatprep.subr.mxu0 0.0
    %5316 = vmatpush1.msra.mxu0 0.0
    %5317 = vmatprep.subr.mxu0 0.0
    %5318 = vmatpush1.msra.mxu0 0.0
    %5319 = vmatprep.subr.mxu0 0.0
    %5320 = vmatpush1.msra.mxu0 0.0
    %5321 = vmatprep.subr.mxu0 0.0
    %5322 = vmatpush1.msra.mxu0 0.0
    %5323 = vmatprep.subr.mxu0 0.0
    %5324 = vmatpush1.msra.mxu0 0.0
    %5325 = vmatprep.subr.mxu0 0.0
    %5326 = vmatpush1.msra.mxu0 0.0
    %5327 = vmatprep.subr.mxu0 0.0
    %5328 = vmatpush1.msra.mxu0 0.0
    %5329 = vmatprep.subr.mxu0 0.0
    %5330 = vmatpush1.msra.mxu0 0.0
    %5331 = vmatprep.subr.mxu0 0.0
    %5332 = vmatpush1.msra.mxu0 0.0
    %5333 = vmatprep.subr.mxu0 0.0
    %5334 = vmatpush1.msra.mxu0 0.0
    %5335 = vmatprep.subr.mxu0 0.0
    %5336 = vmatpush1.msra.mxu0 0.0
    %5337 = vmatprep.subr.mxu0 0.0
    %5338 = vmatpush1.msra.mxu0 0.0
    %5339 = vmatprep.mubr.f32.mxu0 0.0
    %5340 = vmatmul.mubr.f32.gmra.mrb[0].mxu0 %v5273
    %v5341 = vpop.f32.mrb[0].mxu0
    %v5342 = vadd.f32 %v132, %v5341
    %v5343 = vpop.f32.mrb[0].mxu0
    %5344 = vdwg.mxu0
    %v5345 = vmul.f32 %v5189, 0.33333334
    %v5346 = vsub.f32 %v5342, %v5345
    %v5347 = vstv %s5042
    %v5348 = vmul.f32 %v5347, %v5346
    %v5349 = vadd.f32 %v5041, %v5348
    %v5351 = vsel %vm144, %v5349, 0
    %5353 = vmatprep.subr.mxu0 0.0
    %5354 = vmatpush1.msra.mxu0 %v111
    %5355 = vmatprep.subr.mxu0 0.0
    %5356 = vmatpush1.msra.mxu0 %v112
    %5357 = vmatprep.subr.mxu0 0.0
    %5358 = vmatpush1.msra.mxu0 %v113
    %5359 = vmatprep.subr.mxu0 0.0
    %5360 = vmatpush1.msra.mxu0 %v114
    %5361 = vmatprep.subr.mxu0 0.0
    %5362 = vmatpush1.msra.mxu0 %v115
    %5363 = vmatprep.subr.mxu0 0.0
    %5364 = vmatpush1.msra.mxu0 0.0
    %5365 = vmatprep.subr.mxu0 0.0
    %5366 = vmatpush1.msra.mxu0 0.0
    %5367 = vmatprep.subr.mxu0 0.0
    %5368 = vmatpush1.msra.mxu0 0.0
    %5369 = vmatprep.subr.mxu0 0.0
    %5370 = vmatpush1.msra.mxu0 0.0
    %5371 = vmatprep.subr.mxu0 0.0
    %5372 = vmatpush1.msra.mxu0 0.0
    %5373 = vmatprep.subr.mxu0 0.0
    %5374 = vmatpush1.msra.mxu0 0.0
    %5375 = vmatprep.subr.mxu0 0.0
    %5376 = vmatpush1.msra.mxu0 0.0
    %5377 = vmatprep.subr.mxu0 0.0
    %5378 = vmatpush1.msra.mxu0 0.0
    %5379 = vmatprep.subr.mxu0 0.0
    %5380 = vmatpush1.msra.mxu0 0.0
    %5381 = vmatprep.subr.mxu0 0.0
    %5382 = vmatpush1.msra.mxu0 0.0
    %5383 = vmatprep.subr.mxu0 0.0
    %5384 = vmatpush1.msra.mxu0 0.0
    %5385 = vmatprep.subr.mxu0 0.0
    %5386 = vmatpush1.msra.mxu0 0.0
    %5387 = vmatprep.subr.mxu0 0.0
    %5388 = vmatpush1.msra.mxu0 0.0
    %5389 = vmatprep.subr.mxu0 0.0
    %5390 = vmatpush1.msra.mxu0 0.0
    %5391 = vmatprep.subr.mxu0 0.0
    %5392 = vmatpush1.msra.mxu0 0.0
    %5393 = vmatprep.subr.mxu0 0.0
    %5394 = vmatpush1.msra.mxu0 0.0
    %5395 = vmatprep.subr.mxu0 0.0
    %5396 = vmatpush1.msra.mxu0 0.0
    %5397 = vmatprep.subr.mxu0 0.0
    %5398 = vmatpush1.msra.mxu0 0.0
    %5399 = vmatprep.subr.mxu0 0.0
    %5400 = vmatpush1.msra.mxu0 0.0
    %5401 = vmatprep.subr.mxu0 0.0
    %5402 = vmatpush1.msra.mxu0 0.0
    %5403 = vmatprep.subr.mxu0 0.0
    %5404 = vmatpush1.msra.mxu0 0.0
    %5405 = vmatprep.subr.mxu0 0.0
    %5406 = vmatpush1.msra.mxu0 0.0
    %5407 = vmatprep.subr.mxu0 0.0
    %5408 = vmatpush1.msra.mxu0 0.0
    %5409 = vmatprep.subr.mxu0 0.0
    %5410 = vmatpush1.msra.mxu0 0.0
    %5411 = vmatprep.subr.mxu0 0.0
    %5412 = vmatpush1.msra.mxu0 0.0
    %5413 = vmatprep.subr.mxu0 0.0
    %5414 = vmatpush1.msra.mxu0 0.0
    %5415 = vmatprep.subr.mxu0 0.0
    %5416 = vmatpush1.msra.mxu0 0.0
    %5417 = vmatprep.mubr.f32.mxu0 0.0
    %5418 = vmatmul.mubr.f32.gmra.mrb[0].mxu0 %v5351
    %v5419 = vpop.f32.mrb[0].mxu0
    %v5420 = vadd.f32 %v125, %v5419
    %v5421 = vpop.f32.mrb[0].mxu0
    %5422 = vdwg.mxu0
    %vm5423 = vcmp.ge.f32.partialorder %v5420, 0.0
    %v5424 = vmul.f32 %v5420, 0.01
    %v5425 = vsel %vm5423, %v5420, %v5424
    %v5427 = vsel %vm139, %v5425, 0
    %5429 = vmatprep.subr.mxu0 0.0
    %5430 = vmatpush1.msra.mxu0 %v116
    %5431 = vmatprep.subr.mxu0 0.0
    %5432 = vmatpush1.msra.mxu0 %v117
    %5433 = vmatprep.subr.mxu0 0.0
    %5434 = vmatpush1.msra.mxu0 %v118
    %5435 = vmatprep.subr.mxu0 0.0
    %5436 = vmatpush1.msra.mxu0 %v119
    %5437 = vmatprep.subr.mxu0 0.0
    %5438 = vmatpush1.msra.mxu0 0.0
    %5439 = vmatprep.subr.mxu0 0.0
    %5440 = vmatpush1.msra.mxu0 0.0
    %5441 = vmatprep.subr.mxu0 0.0
    %5442 = vmatpush1.msra.mxu0 0.0
    %5443 = vmatprep.subr.mxu0 0.0
    %5444 = vmatpush1.msra.mxu0 0.0
    %5445 = vmatprep.subr.mxu0 0.0
    %5446 = vmatpush1.msra.mxu0 0.0
    %5447 = vmatprep.subr.mxu0 0.0
    %5448 = vmatpush1.msra.mxu0 0.0
    %5449 = vmatprep.subr.mxu0 0.0
    %5450 = vmatpush1.msra.mxu0 0.0
    %5451 = vmatprep.subr.mxu0 0.0
    %5452 = vmatpush1.msra.mxu0 0.0
    %5453 = vmatprep.subr.mxu0 0.0
    %5454 = vmatpush1.msra.mxu0 0.0
    %5455 = vmatprep.subr.mxu0 0.0
    %5456 = vmatpush1.msra.mxu0 0.0
    %5457 = vmatprep.subr.mxu0 0.0
    %5458 = vmatpush1.msra.mxu0 0.0
    %5459 = vmatprep.subr.mxu0 0.0
    %5460 = vmatpush1.msra.mxu0 0.0
    %5461 = vmatprep.subr.mxu0 0.0
    %5462 = vmatpush1.msra.mxu0 0.0
    %5463 = vmatprep.subr.mxu0 0.0
    %5464 = vmatpush1.msra.mxu0 0.0
    %5465 = vmatprep.subr.mxu0 0.0
    %5466 = vmatpush1.msra.mxu0 0.0
    %5467 = vmatprep.subr.mxu0 0.0
    %5468 = vmatpush1.msra.mxu0 0.0
    %5469 = vmatprep.subr.mxu0 0.0
    %5470 = vmatpush1.msra.mxu0 0.0
    %5471 = vmatprep.subr.mxu0 0.0
    %5472 = vmatpush1.msra.mxu0 0.0
    %5473 = vmatprep.subr.mxu0 0.0
    %5474 = vmatpush1.msra.mxu0 0.0
    %5475 = vmatprep.subr.mxu0 0.0
    %5476 = vmatpush1.msra.mxu0 0.0
    %5477 = vmatprep.subr.mxu0 0.0
    %5478 = vmatpush1.msra.mxu0 0.0
    %5479 = vmatprep.subr.mxu0 0.0
    %5480 = vmatpush1.msra.mxu0 0.0
    %5481 = vmatprep.subr.mxu0 0.0
    %5482 = vmatpush1.msra.mxu0 0.0
    %5483 = vmatprep.subr.mxu0 0.0
    %5484 = vmatpush1.msra.mxu0 0.0
    %5485 = vmatprep.subr.mxu0 0.0
    %5486 = vmatpush1.msra.mxu0 0.0
    %5487 = vmatprep.subr.mxu0 0.0
    %5488 = vmatpush1.msra.mxu0 0.0
    %5489 = vmatprep.subr.mxu0 0.0
    %5490 = vmatpush1.msra.mxu0 0.0
    %5491 = vmatprep.subr.mxu0 0.0
    %5492 = vmatpush1.msra.mxu0 0.0
    %5493 = vmatprep.mubr.f32.mxu0 0.0
    %5494 = vmatmul.mubr.f32.gmra.mrb[0].mxu0 %v5427
    %v5495 = vpop.f32.mrb[0].mxu0
    %v5496 = vadd.f32 %v132, %v5495
    %v5497 = vpop.f32.mrb[0].mxu0
    %5498 = vdwg.mxu0
    %v5499 = vsub.f32 %v5189, %v5342
    %v5500 = vadd.f32 %v5499, %v5496
    %v5501 = vmul.f32 %v5347, %v5500
    %v5502 = vadd.f32 %v5041, %v5501
    %v5504 = vsel %vm144, %v5502, 0
    %5506 = vmatprep.subr.mxu0 0.0
    %5507 = vmatpush1.msra.mxu0 %v111
    %5508 = vmatprep.subr.mxu0 0.0
    %5509 = vmatpush1.msra.mxu0 %v112
    %5510 = vmatprep.subr.mxu0 0.0
    %5511 = vmatpush1.msra.mxu0 %v113
    %5512 = vmatprep.subr.mxu0 0.0
    %5513 = vmatpush1.msra.mxu0 %v114
    %5514 = vmatprep.subr.mxu0 0.0
    %5515 = vmatpush1.msra.mxu0 %v115
    %5516 = vmatprep.subr.mxu0 0.0
    %5517 = vmatpush1.msra.mxu0 0.0
    %5518 = vmatprep.subr.mxu0 0.0
    %5519 = vmatpush1.msra.mxu0 0.0
    %5520 = vmatprep.subr.mxu0 0.0
    %5521 = vmatpush1.msra.mxu0 0.0
    %5522 = vmatprep.subr.mxu0 0.0
    %5523 = vmatpush1.msra.mxu0 0.0
    %5524 = vmatprep.subr.mxu0 0.0
    %5525 = vmatpush1.msra.mxu0 0.0
    %5526 = vmatprep.subr.mxu0 0.0
    %5527 = vmatpush1.msra.mxu0 0.0
    %5528 = vmatprep.subr.mxu0 0.0
    %5529 = vmatpush1.msra.mxu0 0.0
    %5530 = vmatprep.subr.mxu0 0.0
    %5531 = vmatpush1.msra.mxu0 0.0
    %5532 = vmatprep.subr.mxu0 0.0
    %5533 = vmatpush1.msra.mxu0 0.0
    %5534 = vmatprep.subr.mxu0 0.0
    %5535 = vmatpush1.msra.mxu0 0.0
    %5536 = vmatprep.subr.mxu0 0.0
    %5537 = vmatpush1.msra.mxu0 0.0
    %5538 = vmatprep.subr.mxu0 0.0
    %5539 = vmatpush1.msra.mxu0 0.0
    %5540 = vmatprep.subr.mxu0 0.0
    %5541 = vmatpush1.msra.mxu0 0.0
    %5542 = vmatprep.subr.mxu0 0.0
    %5543 = vmatpush1.msra.mxu0 0.0
    %5544 = vmatprep.subr.mxu0 0.0
    %5545 = vmatpush1.msra.mxu0 0.0
    %5546 = vmatprep.subr.mxu0 0.0
    %5547 = vmatpush1.msra.mxu0 0.0
    %5548 = vmatprep.subr.mxu0 0.0
    %5549 = vmatpush1.msra.mxu0 0.0
    %5550 = vmatprep.subr.mxu0 0.0
    %5551 = vmatpush1.msra.mxu0 0.0
    %5552 = vmatprep.subr.mxu0 0.0
    %5553 = vmatpush1.msra.mxu0 0.0
    %5554 = vmatprep.subr.mxu0 0.0
    %5555 = vmatpush1.msra.mxu0 0.0
    %5556 = vmatprep.subr.mxu0 0.0
    %5557 = vmatpush1.msra.mxu0 0.0
    %5558 = vmatprep.subr.mxu0 0.0
    %5559 = vmatpush1.msra.mxu0 0.0
    %5560 = vmatprep.subr.mxu0 0.0
    %5561 = vmatpush1.msra.mxu0 0.0
    %5562 = vmatprep.subr.mxu0 0.0
    %5563 = vmatpush1.msra.mxu0 0.0
    %5564 = vmatprep.subr.mxu0 0.0
    %5565 = vmatpush1.msra.mxu0 0.0
    %5566 = vmatprep.subr.mxu0 0.0
    %5567 = vmatpush1.msra.mxu0 0.0
    %5568 = vmatprep.subr.mxu0 0.0
    %5569 = vmatpush1.msra.mxu0 0.0
    %5570 = vmatprep.mubr.f32.mxu0 0.0
    %5571 = vmatmul.mubr.f32.gmra.mrb[0].mxu0 %v5504
    %v5572 = vpop.f32.mrb[0].mxu0
    %v5573 = vadd.f32 %v125, %v5572
    %v5574 = vpop.f32.mrb[0].mxu0
    %5575 = vdwg.mxu0
    %vm5576 = vcmp.ge.f32.partialorder %v5573, 0.0
    %v5577 = vmul.f32 %v5573, 0.01
    %v5578 = vsel %vm5576, %v5573, %v5577
    %v5580 = vsel %vm139, %v5578, 0
    %5582 = vmatprep.subr.mxu0 0.0
    %5583 = vmatpush1.msra.mxu0 %v116
    %5584 = vmatprep.subr.mxu0 0.0
    %5585 = vmatpush1.msra.mxu0 %v117
    %5586 = vmatprep.subr.mxu0 0.0
    %5587 = vmatpush1.msra.mxu0 %v118
    %5588 = vmatprep.subr.mxu0 0.0
    %5589 = vmatpush1.msra.mxu0 %v119
    %5590 = vmatprep.subr.mxu0 0.0
    %5591 = vmatpush1.msra.mxu0 0.0
    %5592 = vmatprep.subr.mxu0 0.0
    %5593 = vmatpush1.msra.mxu0 0.0
    %5594 = vmatprep.subr.mxu0 0.0
    %5595 = vmatpush1.msra.mxu0 0.0
    %5596 = vmatprep.subr.mxu0 0.0
    %5597 = vmatpush1.msra.mxu0 0.0
    %5598 = vmatprep.subr.mxu0 0.0
    %5599 = vmatpush1.msra.mxu0 0.0
    %5600 = vmatprep.subr.mxu0 0.0
    %5601 = vmatpush1.msra.mxu0 0.0
    %5602 = vmatprep.subr.mxu0 0.0
    %5603 = vmatpush1.msra.mxu0 0.0
    %5604 = vmatprep.subr.mxu0 0.0
    %5605 = vmatpush1.msra.mxu0 0.0
    %5606 = vmatprep.subr.mxu0 0.0
    %5607 = vmatpush1.msra.mxu0 0.0
    %5608 = vmatprep.subr.mxu0 0.0
    %5609 = vmatpush1.msra.mxu0 0.0
    %5610 = vmatprep.subr.mxu0 0.0
    %5611 = vmatpush1.msra.mxu0 0.0
    %5612 = vmatprep.subr.mxu0 0.0
    %5613 = vmatpush1.msra.mxu0 0.0
    %5614 = vmatprep.subr.mxu0 0.0
    %5615 = vmatpush1.msra.mxu0 0.0
    %5616 = vmatprep.subr.mxu0 0.0
    %5617 = vmatpush1.msra.mxu0 0.0
    %5618 = vmatprep.subr.mxu0 0.0
    %5619 = vmatpush1.msra.mxu0 0.0
    %5620 = vmatprep.subr.mxu0 0.0
    %5621 = vmatpush1.msra.mxu0 0.0
    %5622 = vmatprep.subr.mxu0 0.0
    %5623 = vmatpush1.msra.mxu0 0.0
    %5624 = vmatprep.subr.mxu0 0.0
    %5625 = vmatpush1.msra.mxu0 0.0
    %5626 = vmatprep.subr.mxu0 0.0
    %5627 = vmatpush1.msra.mxu0 0.0
    %5628 = vmatprep.subr.mxu0 0.0
    %5629 = vmatpush1.msra.mxu0 0.0
    %5630 = vmatprep.subr.mxu0 0.0
    %5631 = vmatpush1.msra.mxu0 0.0
    %5632 = vmatprep.subr.mxu0 0.0
    %5633 = vmatpush1.msra.mxu0 0.0
    %5634 = vmatprep.subr.mxu0 0.0
    %5635 = vmatpush1.msra.mxu0 0.0
    %5636 = vmatprep.subr.mxu0 0.0
    %5637 = vmatpush1.msra.mxu0 0.0
    %5638 = vmatprep.subr.mxu0 0.0
    %5639 = vmatpush1.msra.mxu0 0.0
    %5640 = vmatprep.subr.mxu0 0.0
    %5641 = vmatpush1.msra.mxu0 0.0
    %5642 = vmatprep.subr.mxu0 0.0
    %5643 = vmatpush1.msra.mxu0 0.0
    %5644 = vmatprep.subr.mxu0 0.0
    %5645 = vmatpush1.msra.mxu0 0.0
    %5646 = vmatprep.mubr.f32.mxu0 0.0
    %5647 = vmatmul.mubr.f32.gmra.mrb[0].mxu0 %v5580
    %v5648 = vpop.f32.mrb[0].mxu0
    %v5649 = vadd.f32 %v132, %v5648
    %v5650 = vpop.f32.mrb[0].mxu0
    %5651 = vdwg.mxu0
    %v5652 = vadd.f32 %v5342, %v5496
    %v5653 = vmul.f32 %v5652, 3.0
    %v5654 = vadd.f32 %v5189, %v5653
    %v5655 = vadd.f32 %v5654, %v5649
    %s5656 = smul.f32 %s5042, 0.125
    %v5657 = vstv %s5656
    %v5658 = vmul.f32 %v5655, %v5657
    %v5659 = vadd.f32 %v5041, %v5658
    %5661 = vrot.lane.b32.xlu0 %v5659, 96
    %v5662 = vpop.permute.xlu0 %5661
    %5664 = vrot.lane.b32.xlu0 %v5002, 8
    %v5665 = vpop.permute.xlu0 %5664
    %v5667 = vsel %vm926, %v5662, %v5665
    %v5668 = vsel %vm928, %v5667, 0.0
    %s5669 = scalar_lea.vmem [#allocation12], 48
    %5670 = vst [vmem:[%s5669] sm:$0xff] %v5668
    // Predicated region
    $region58: #{tpu_custom_call.1} parent=1 // pred_check
      _
    $region59: #{tpu_custom_call.1} parent=1 // pred_check_branch
      %5672 = sbr.rel (0) target = $region61
    $region60: #{tpu_custom_call.1} parent=1 // pred_region
      %s5674 = ssub.s32 896, 896
      %5675 = vsyncadd [#allocation4], %s5674
      %s5676 = sshll.u32 [#allocation12], 4
      %s5677 = int_to_ptr.vmem [resolvable:$true] %s5676
      %5682 = dma.vmem_to_hbm [thread:$0]  %s5677, 896, %s9, [#allocation4], 128, 128, 8
    $region61: #{tpu_custom_call.1} parent=1 // pred_fallthru
      _
    // Predicated region
    $region62: #{tpu_custom_call.1} parent=1 // pred_check
      _
    $region63: #{tpu_custom_call.1} parent=1 // pred_check_branch
      %5684 = sbr.rel (0) target = $region65
    $region64: #{tpu_custom_call.1} parent=1 // pred_region
      %5685 = dma.done [#allocation4], 896
    $region65: #{tpu_custom_call.1} parent=1 // pred_fallthru
      _
    %5686 = vsyncpa [#allocation3], 1
    %5687 = vsyncpa [#allocation8], 1
    %5688 = vsyncpa [#allocation11], 1
    %5689 = vsyncpa [#allocation4], 1
    %5690 = vsyncpa [#allocation5], 1

</llo_original>
